<compile_context>
chip_gen: v6e
topology: v6e:2x2x1
jax: 0.10.0
libtpu: 0.0.40
codegen_flags: <defaults>
</compile_context>

<pallas_src>
import math
import functools

import jax
import jax.numpy as jnp
from jax import lax
from jax.experimental import pallas as pl
from jax.experimental.pallas import tpu as pltpu


def _rup(x, m):
    return (x + m - 1) // m * m


def _cdiv(a, b):
    return (a + b - 1) // b


def _vmem_limit():
    # generation-aware scoped-VMEM budget (v5e/v6e: 128 MiB, v7x: 64 MiB per TC)
    try:
        info = pltpu.get_tpu_info()
        cap = getattr(info, "vmem_capacity_bytes", None)
        if cap:
            return int(min(cap * 0.45, 100 * 1024 * 1024))
    except Exception:
        pass
    return 32 * 1024 * 1024


_VMEM_LIMIT = _vmem_limit()


def _apply_act(y, act):
    if act == 'lrelu':
        return jnp.where(y >= 0, y, 0.01 * y)
    if act == 'relu':
        return jnp.maximum(y, 0.0)
    if act == 'gelu':
        return jax.nn.gelu(y)
    return y


# ----------------------------------------------------------------------------
# Pallas kernel 1: tiled matmul with fused bias + activation (+residual)
# bf16 operands, f32 accumulation, bf16 output
# ----------------------------------------------------------------------------
def _mm_kernel_acc(a_ref, b_ref, bias_ref, o_ref, acc_ref, *, act):
    k = pl.program_id(2)

    @pl.when(k == 0)
    def _init():
        acc_ref[...] = jnp.zeros_like(acc_ref)

    acc_ref[...] += jnp.dot(a_ref[...], b_ref[...],
                            preferred_element_type=jnp.float32)

    @pl.when(k == pl.num_programs(2) - 1)
    def _fin():
        o_ref[...] = _apply_act(acc_ref[...] + bias_ref[...], act).astype(o_ref.dtype)


def _mm_kernel_1k(a_ref, b_ref, bias_ref, o_ref, *, act):
    y = jnp.dot(a_ref[...], b_ref[...], preferred_element_type=jnp.float32)
    o_ref[...] = _apply_act(y + bias_ref[...], act).astype(o_ref.dtype)


def _mm_kernel_1k_res(a_ref, b_ref, bias_ref, r_ref, o_ref, *, act):
    y = jnp.dot(a_ref[...], b_ref[...], preferred_element_type=jnp.float32)
    y = _apply_act(y + bias_ref[...], act) + r_ref[...].astype(jnp.float32)
    o_ref[...] = y.astype(o_ref.dtype)


def matmul_fused(a, b, bias=None, act=None, residual=None, out_dtype=jnp.bfloat16):
    """a: [M, K] @ b: [K, N] (+bias, +activation, +residual) -> bf16 [M, N]."""
    M, K = a.shape
    K2, N = b.shape
    assert K == K2

    tm = 512 if M >= 512 else _rup(M, 8)
    Mp = _rup(M, tm)
    if N >= 2048:
        tn = 512
    elif N > 512:
        tn = 256
    else:
        tn = N
    Np = _rup(N, tn)
    tk = 512 if K > 1024 else K
    Kp = _rup(K, tk)
    nk = Kp // tk

    a_p = a.astype(jnp.bfloat16)
    if (Mp, Kp) != (M, K):
        a_p = jnp.pad(a_p, ((0, Mp - M), (0, Kp - K)))
    b_p = b.astype(jnp.bfloat16)
    if (Kp, Np) != (K, N):
        b_p = jnp.pad(b_p, ((0, Kp - K), (0, Np - N)))
    if bias is None:
        bias_p = jnp.zeros((1, Np), jnp.float32)
    else:
        bias_p = bias.reshape(1, N).astype(jnp.float32)
        if Np != N:
            bias_p = jnp.pad(bias_p, ((0, 0), (0, Np - N)))

    grid = (Mp // tm, Np // tn, nk)
    cparams = pltpu.CompilerParams(
        dimension_semantics=("parallel", "parallel", "arbitrary"),
        vmem_limit_bytes=_VMEM_LIMIT)

    a_spec = pl.BlockSpec((tm, tk), lambda i, j, k: (i, k))
    b_spec = pl.BlockSpec((tk, tn), lambda i, j, k: (k, j))
    bias_spec = pl.BlockSpec((1, tn), lambda i, j, k: (0, j))
    o_spec = pl.BlockSpec((tm, tn), lambda i, j, k: (i, j))

    fuse_res = residual is not None and nk == 1
    if fuse_res:
        r_p = residual.astype(jnp.bfloat16)
        if (Mp, Np) != (M, N):
            r_p = jnp.pad(r_p, ((0, Mp - M), (0, Np - N)))
        out = pl.pallas_call(
            functools.partial(_mm_kernel_1k_res, act=act),
            out_shape=jax.ShapeDtypeStruct((Mp, Np), out_dtype),
            grid=grid,
            in_specs=[a_spec, b_spec, bias_spec, o_spec],
            out_specs=o_spec,
            compiler_params=cparams,
        )(a_p, b_p, bias_p, r_p)
    elif nk == 1:
        out = pl.pallas_call(
            functools.partial(_mm_kernel_1k, act=act),
            out_shape=jax.ShapeDtypeStruct((Mp, Np), out_dtype),
            grid=grid,
            in_specs=[a_spec, b_spec, bias_spec],
            out_specs=o_spec,
            compiler_params=cparams,
        )(a_p, b_p, bias_p)
    else:
        out = pl.pallas_call(
            functools.partial(_mm_kernel_acc, act=act),
            out_shape=jax.ShapeDtypeStruct((Mp, Np), out_dtype),
            grid=grid,
            in_specs=[a_spec, b_spec, bias_spec],
            out_specs=o_spec,
            scratch_shapes=[pltpu.VMEM((tm, tn), jnp.float32)],
            compiler_params=cparams,
        )(a_p, b_p, bias_p)

    if (Mp, Np) != (M, N):
        out = out[:M, :N]
    if residual is not None and not fuse_res:
        out = out + residual.astype(out.dtype)
    return out


# ----------------------------------------------------------------------------
# Pallas kernel 2: direct 3x3x3 stride-1 conv, per-depth grid.
#   - three depth-shifted input refs (dz = 0,1,2), no scratch copies
#   - 27 tap dots accumulate into a traced f32 accumulator (chunked so the
#     partials stay register / MXU-result-path resident), output written once
#   - fused bias + activation epilogue, bf16 in / bf16 out
# ----------------------------------------------------------------------------
def _dconv_kernel(x0_ref, x1_ref, x2_ref, w_ref, bias_ref, o_ref, *,
                  offs9, mo, rc, act):
    xs = (x0_ref, x1_ref, x2_ref)
    cout = o_ref.shape[-1]
    nchunks = _cdiv(mo, rc)
    for c in range(nchunks):
        r0 = c * rc
        rows = min(rc, mo - r0)
        acc = jnp.zeros((rows, cout), jnp.float32)
        for dz in range(3):
            xr = xs[dz]
            for j, off in enumerate(offs9):
                acc = acc + jnp.dot(
                    xr[r0 + off:r0 + off + rows, :], w_ref[dz * 9 + j],
                    preferred_element_type=jnp.float32)
        y = _apply_act(acc + bias_ref[...], act)
        o_ref[r0:r0 + rows, :] = y.astype(o_ref.dtype)


def conv3d_direct(x, w, bias=None, act=None):
    """k=3, stride=1, pad=1 conv. x: [B, D, H, W, Cin]; w: [3,3,3,Cin,Cout]."""
    B, D, H, W, Cin = x.shape
    Cout = w.shape[-1]
    Dp, Hp, Wp = D + 2, H + 2, W + 2
    Cp = max(Cin, 8)

    xp = jnp.pad(x.astype(jnp.bfloat16),
                 ((0, 0), (1, 1), (1, 1), (1, 1), (0, Cp - Cin)))
    mo = Hp * Wp                                   # output rows per depth (padded grid)
    hq = _rup(mo + 2 * Wp + 2, 8)                  # input rows so every tap stays in-bounds
    xf = jnp.pad(xp.reshape(B, Dp, mo, Cp),
                 ((0, 0), (0, 0), (0, hq - mo), (0, 0)))

    wf = w.astype(jnp.bfloat16)
    if Cp != Cin:
        wf = jnp.pad(wf, ((0, 0), (0, 0), (0, 0), (0, Cp - Cin), (0, 0)))
    wf = wf.reshape(27, Cp, Cout)                  # tap-major: dz*9 + dy*3 + dx

    if bias is None:
        bias_arr = jnp.zeros((1, Cout), jnp.float32)
    else:
        bias_arr = bias.reshape(1, Cout).astype(jnp.float32)

    offs9 = [dy * Wp + dx for dy in range(3) for dx in range(3)]

    # accumulator row-chunk: keep ~32 KiB of f32 partials register-resident,
    # but bound the number of unrolled chunks (trace size) at 16.
    rc = _rup(min(mo, max(8, (32 * 1024) // (4 * Cout))), 8)
    if _cdiv(mo, rc) > 16:
        rc = _rup(_cdiv(mo, 16), 8)

    out = pl.pallas_call(
        functools.partial(_dconv_kernel, offs9=offs9, mo=mo, rc=rc, act=act),
        out_shape=jax.ShapeDtypeStruct((B, D, mo, Cout), jnp.bfloat16),
        grid=(B, D),
        in_specs=[
            pl.BlockSpec((None, None, hq, Cp), lambda b, d: (b, d, 0, 0)),
            pl.BlockSpec((None, None, hq, Cp), lambda b, d: (b, d + 1, 0, 0)),
            pl.BlockSpec((None, None, hq, Cp), lambda b, d: (b, d + 2, 0, 0)),
            pl.BlockSpec((27, Cp, Cout), lambda b, d: (0, 0, 0)),
            pl.BlockSpec((1, Cout), lambda b, d: (0, 0)),
        ],
        out_specs=pl.BlockSpec((None, None, mo, Cout), lambda b, d: (b, d, 0, 0)),
        compiler_params=pltpu.CompilerParams(
            dimension_semantics=("parallel", "parallel"),
            vmem_limit_bytes=_VMEM_LIMIT),
    )(xf, xf, xf, wf, bias_arr)
    out = out.reshape(B, D, Hp, Wp, Cout)[:, :, :H, :W, :]
    return out


# ----------------------------------------------------------------------------
# Conv3d dispatcher: 1x1 -> matmul (tiny class heads -> XLA); k3/s1 -> direct;
# k3/s2 -> im2col + fused matmul (only the 4 downsampling convs).
# ----------------------------------------------------------------------------
def conv3d(x, w, b=None, stride=1, padding=1, act=None):
    B, D, H, W, Cin = x.shape
    kd, kh, kw, _, Cout = w.shape
    if kd == 1 and kh == 1 and kw == 1:
        assert stride == 1
        if Cout < 16:
            # 3-class heads: lane-sparse Pallas output is all overhead; let XLA fuse it.
            y = jnp.einsum('bdhwc,co->bdhwo', x.astype(jnp.bfloat16),
                           w.reshape(Cin, Cout).astype(jnp.bfloat16),
                           preferred_element_type=jnp.float32)
            if b is not None:
                y = y + b
            return _apply_act(y, act).astype(jnp.bfloat16)
        out = matmul_fused(x.reshape(-1, Cin), w.reshape(Cin, Cout),
                           bias=b, act=act)
        return out.reshape(B, D, H, W, Cout)
    if stride == 1 and padding == 1:
        return conv3d_direct(x, w, bias=b, act=act)

    # TODO(synk): replace the HBM im2col of the 4 stride-2 convs with a
    # phase-split direct kernel (columns ~3.4x the input volume are still
    # materialized here, although now in bf16).
    s, p = stride, padding
    xp = jnp.pad(x.astype(jnp.bfloat16),
                 ((0, 0), (p, p), (p, p), (p, p), (0, 0)))
    Do = (D + 2 * p - kd) // s + 1
    Ho = (H + 2 * p - kh) // s + 1
    Wo = (W + 2 * p - kw) // s + 1
    cols = []
    for dz in range(kd):
        for dy in range(kh):
            for dx in range(kw):
                cols.append(xp[:, dz:dz + Do * s:s,
                                  dy:dy + Ho * s:s,
                                  dx:dx + Wo * s:s, :])
    col = jnp.concatenate(cols, axis=-1).reshape(B * Do * Ho * Wo,
                                                 kd * kh * kw * Cin)
    out = matmul_fused(col, w.reshape(kd * kh * kw * Cin, Cout),
                       bias=b, act=act)
    return out.reshape(B, Do, Ho, Wo, Cout)


# ----------------------------------------------------------------------------
# Pallas kernels 3/4: InstanceNorm3d (2-pass, lane-folded, bf16 I/O, f32 stats)
# with fused LeakyReLU and optional residual add in the apply pass.
# Stats emit per-chunk partials on a fully "parallel" grid (2-TC friendly).
# ----------------------------------------------------------------------------
def _in_stats_kernel(x_ref, sum_ref, sq_ref):
    xv = x_ref[...].astype(jnp.float32)
    s = jnp.sum(xv, axis=0, keepdims=True)
    q = jnp.sum(xv * xv, axis=0, keepdims=True)
    sum_ref[...] = jnp.broadcast_to(s, sum_ref.shape)
    sq_ref[...] = jnp.broadcast_to(q, sq_ref.shape)


def _in_apply_kernel(x_ref, a_ref, c_ref, o_ref, *, neg_slope):
    y = x_ref[...].astype(jnp.float32) * a_ref[...] + c_ref[...]
    y = jnp.where(y >= 0, y, neg_slope * y)
    o_ref[...] = y.astype(o_ref.dtype)


def _in_apply_res_kernel(x_ref, a_ref, c_ref, r_ref, o_ref, *, neg_slope):
    y = x_ref[...].astype(jnp.float32) * a_ref[...] + c_ref[...]
    y = jnp.where(y >= 0, y, neg_slope * y)
    y = y + r_ref[...].astype(jnp.float32)
    o_ref[...] = y.astype(o_ref.dtype)


def instance_norm_lrelu(x, eps=1e-5, neg_slope=0.01, residual=None):
    """x: [B, D, H, W, C]; per-(b,c) normalization over D*H*W + LeakyReLU,
    optionally followed by a fused residual add (residual same shape as x)."""
    B, D, H, W, C = x.shape
    S = D * H * W
    fmax = max(1, 128 // C)
    f = 1
    for cand in range(min(fmax, S), 0, -1):
        if S % cand == 0:
            f = cand
            break
    FC = f * C
    Sf = S // f
    sblk = min(Sf, 2048)
    nS = _cdiv(Sf, sblk)
    Sp = nS * sblk

    xr = x.reshape(B, Sf, FC).astype(jnp.bfloat16)
    if Sp != Sf:
        xr = jnp.pad(xr, ((0, 0), (0, Sp - Sf), (0, 0)))

    psum, psq = pl.pallas_call(
        _in_stats_kernel,
        out_shape=[jax.ShapeDtypeStruct((B, nS, 8, FC), jnp.float32),
                   jax.ShapeDtypeStruct((B, nS, 8, FC), jnp.float32)],
        grid=(B, nS),
        in_specs=[pl.BlockSpec((None, sblk, FC), lambda b, s: (b, s, 0))],
        out_specs=[pl.BlockSpec((None, None, 8, FC), lambda b, s: (b, s, 0, 0)),
                   pl.BlockSpec((None, None, 8, FC), lambda b, s: (b, s, 0, 0))],
        compiler_params=pltpu.CompilerParams(
            dimension_semantics=("parallel", "parallel"),
            vmem_limit_bytes=_VMEM_LIMIT),
    )(xr)

    sum_c = psum[:, :, 0, :].sum(axis=1).reshape(B, f, C).sum(axis=1)
    sq_c = psq[:, :, 0, :].sum(axis=1).reshape(B, f, C).sum(axis=1)
    mean = sum_c / S
    var = jnp.maximum(sq_c / S - mean * mean, 0.0)
    rstd = lax.rsqrt(var + eps)
    scale = jnp.tile(rstd, (1, f)).reshape(B, 1, FC)
    shift = jnp.tile(-mean * rstd, (1, f)).reshape(B, 1, FC)

    cparams = pltpu.CompilerParams(
        dimension_semantics=("parallel", "parallel"),
        vmem_limit_bytes=_VMEM_LIMIT)
    x_spec = pl.BlockSpec((None, sblk, FC), lambda b, s: (b, s, 0))
    v_spec = pl.BlockSpec((None, 1, FC), lambda b, s: (b, 0, 0))

    if residual is not None:
        rr = residual.reshape(B, Sf, FC).astype(jnp.bfloat16)
        if Sp != Sf:
            rr = jnp.pad(rr, ((0, 0), (0, Sp - Sf), (0, 0)))
        out = pl.pallas_call(
            functools.partial(_in_apply_res_kernel, neg_slope=neg_slope),
            out_shape=jax.ShapeDtypeStruct((B, Sp, FC), jnp.bfloat16),
            grid=(B, nS),
            in_specs=[x_spec, v_spec, v_spec, x_spec],
            out_specs=x_spec,
            compiler_params=cparams,
        )(xr, scale, shift, rr)
    else:
        out = pl.pallas_call(
            functools.partial(_in_apply_kernel, neg_slope=neg_slope),
            out_shape=jax.ShapeDtypeStruct((B, Sp, FC), jnp.bfloat16),
            grid=(B, nS),
            in_specs=[x_spec, v_spec, v_spec],
            out_specs=x_spec,
            compiler_params=cparams,
        )(xr, scale, shift)
    return out[:, :Sf, :].reshape(B, D, H, W, C)


# ----------------------------------------------------------------------------
# Pallas kernel 5: LayerNorm over last dim (1024-row blocks, bf16 I/O)
# ----------------------------------------------------------------------------
def _ln_kernel(x_ref, g_ref, b_ref, o_ref, *, eps):
    x = x_ref[...].astype(jnp.float32)
    mean = jnp.mean(x, axis=-1, keepdims=True)
    var = jnp.mean((x - mean) ** 2, axis=-1, keepdims=True)
    y = (x - mean) * lax.rsqrt(var + eps) * g_ref[...] + b_ref[...]
    o_ref[...] = y.astype(o_ref.dtype)


def layer_norm(x2d, gamma, beta, eps=1e-5):
    R, C = x2d.shape
    rblk = min(1024, _rup(R, 8))
    Rp = _rup(R, rblk)
    xp = x2d.astype(jnp.bfloat16)
    if Rp != R:
        xp = jnp.pad(xp, ((0, Rp - R), (0, 0)))
    out = pl.pallas_call(
        functools.partial(_ln_kernel, eps=eps),
        out_shape=jax.ShapeDtypeStruct((Rp, C), jnp.bfloat16),
        grid=(Rp // rblk,),
        in_specs=[pl.BlockSpec((rblk, C), lambda i: (i, 0)),
                  pl.BlockSpec((1, C), lambda i: (0, 0)),
                  pl.BlockSpec((1, C), lambda i: (0, 0))],
        out_specs=pl.BlockSpec((rblk, C), lambda i: (i, 0)),
        compiler_params=pltpu.CompilerParams(
            dimension_semantics=("parallel",),
            vmem_limit_bytes=_VMEM_LIMIT),
    )(xp, gamma.reshape(1, C).astype(jnp.float32),
      beta.reshape(1, C).astype(jnp.float32))
    return out[:R] if Rp != R else out


# ----------------------------------------------------------------------------
# Pallas kernel 6: flash attention (online softmax, key-padding mask)
# ----------------------------------------------------------------------------
def _flash_kernel(q_ref, k_ref, v_ref, o_ref, m_sc, l_sc, acc_sc, *,
                  kv_len, blk_k, scale):
    kv = pl.program_id(1)

    @pl.when(kv == 0)
    def _init():
        m_sc[...] = jnp.full(m_sc.shape, -jnp.inf, jnp.float32)
        l_sc[...] = jnp.zeros_like(l_sc)
        acc_sc[...] = jnp.zeros_like(acc_sc)

    s = jnp.einsum('bqd,bkd->bqk', q_ref[...], k_ref[...],
                   preferred_element_type=jnp.float32) * scale
    col = kv * blk_k + lax.broadcasted_iota(jnp.int32, s.shape, 2)
    s = jnp.where(col < kv_len, s, -1e30)

    m_prev = m_sc[...]
    m_new = jnp.maximum(m_prev, s.max(axis=-1, keepdims=True))
    alpha = jnp.exp(m_prev - m_new)
    p = jnp.exp(s - m_new)
    l_sc[...] = alpha * l_sc[...] + p.sum(axis=-1, keepdims=True)
    acc_sc[...] = alpha * acc_sc[...] + jnp.einsum(
        'bqk,bkd->bqd', p.astype(v_ref.dtype), v_ref[...],
        preferred_element_type=jnp.float32)
    m_sc[...] = m_new

    @pl.when(kv == pl.num_programs(1) - 1)
    def _fin():
        o_ref[...] = (acc_sc[...] *
                      pl.reciprocal(l_sc[...], approx=True)).astype(o_ref.dtype)


def flash_attention(q, k, v):
    """q,k,v: [BH, T, dh] -> [BH, T, dh] (bf16), softmax(q k^T / sqrt(dh)) v."""
    BH, T, dh = q.shape
    blk = min(256, _rup(T, 8))
    Tp = _rup(T, blk)

    def prep(t):
        t = t.astype(jnp.bfloat16)
        if Tp != T:
            t = jnp.pad(t, ((0, 0), (0, Tp - T), (0, 0)))
        return t

    qp, kp, vp = prep(q), prep(k), prep(v)
    nblk = Tp // blk
    out = pl.pallas_call(
        functools.partial(_flash_kernel, kv_len=T, blk_k=blk,
                          scale=1.0 / math.sqrt(dh)),
        out_shape=jax.ShapeDtypeStruct((BH, Tp, dh), jnp.bfloat16),
        grid=(nblk, nblk),
        in_specs=[pl.BlockSpec((BH, blk, dh), lambda i, j: (0, i, 0)),
                  pl.BlockSpec((BH, blk, dh), lambda i, j: (0, j, 0)),
                  pl.BlockSpec((BH, blk, dh), lambda i, j: (0, j, 0))],
        out_specs=pl.BlockSpec((BH, blk, dh), lambda i, j: (0, i, 0)),
        scratch_shapes=[pltpu.VMEM((BH, blk, 1), jnp.float32),
                        pltpu.VMEM((BH, blk, 1), jnp.float32),
                        pltpu.VMEM((BH, blk, dh), jnp.float32)],
        compiler_params=pltpu.CompilerParams(
            dimension_semantics=("parallel", "arbitrary"),
            vmem_limit_bytes=_VMEM_LIMIT),
    )(qp, kp, vp)
    return out[:, :T, :]


# ----------------------------------------------------------------------------
# Small glue ops (plain JAX, bf16)
# ----------------------------------------------------------------------------
def lrelu(x, ns=0.01):
    return jnp.where(x >= 0, x, ns * x)


def maxpool3d_2(x):
    B, D, H, W, C = x.shape
    return x.reshape(B, D // 2, 2, H // 2, 2, W // 2, 2, C).max(axis=(2, 4, 6))


def upsample2(x):  # nearest-neighbor x2, single broadcast materialization
    B, D, H, W, C = x.shape
    y = jnp.broadcast_to(x[:, :, None, :, None, :, None, :],
                         (B, D, 2, H, 2, W, 2, C))
    return y.reshape(B, 2 * D, 2 * H, 2 * W, C)


def batchnorm_eval(x, eps=1e-5):
    # BatchNorm3d(256) eval with default running stats (mean=0, var=1, affine id)
    return x * (1.0 / math.sqrt(1.0 + eps))


# Composite blocks from the PyTorch module
def norm_lrelu_conv(x, w):
    return conv3d(instance_norm_lrelu(x), w)


def conv_norm_lrelu(x, w):
    return instance_norm_lrelu(conv3d(x, w))


def norm_lrelu_up_conv_norm_lrelu(x, w):
    x = instance_norm_lrelu(x)
    x = upsample2(x)
    x = conv3d(x, w)
    return instance_norm_lrelu(x)


# TODO(synk): MPI / MFFM / MCIM / MCIM1 source modules are not provided with RASnet;
# implemented as conv + InstanceNorm + LeakyReLU blocks matching the channel/shape contract.
def mpi(x, w):
    return instance_norm_lrelu(conv3d(x, w))


def mffm(a, b, w, residual=None):
    # residual add (the "out + mffm(...)" pattern) fused into the IN epilogue
    return instance_norm_lrelu(conv3d(jnp.concatenate([a, b], axis=-1), w),
                               residual=residual)


def mcim(x_lo, x_hi, w):  # (C ch @ S, 2C ch @ S/2) -> C ch @ S
    up = upsample2(x_hi)
    B, D, H, W, Cin = up.shape
    Cout = w.shape[-1]
    proj = matmul_fused(up.reshape(-1, Cin), w.reshape(Cin, Cout),
                        residual=x_lo.reshape(-1, Cout))
    return instance_norm_lrelu(proj.reshape(B, D, H, W, Cout))


def mcim1(x, w):
    return instance_norm_lrelu(conv3d(x, w))


# ----------------------------------------------------------------------------
# Transformer (TODO(synk): TransformerModel source not provided; standard
# pre-LN encoder with 8 heads and 4096-dim GELU MLP, dropout = identity in eval)
# ----------------------------------------------------------------------------
def transformer_block(x, p):
    B, T, C = x.shape
    nh, dh = 8, C // 8
    xf = x.reshape(B * T, C)
    y = layer_norm(xf, p['ln1_g'], p['ln1_b'])
    qkv = matmul_fused(y, p['w_qkv'], bias=p['b_qkv'])       # fused Q/K/V, one A read
    qkv = qkv.reshape(B, T, 3, nh, dh).transpose(2, 0, 3, 1, 4)  # [3, B, nh, T, dh]
    q = qkv[0].reshape(B * nh, T, dh)
    k = qkv[1].reshape(B * nh, T, dh)
    v = qkv[2].reshape(B * nh, T, dh)
    ctx = flash_attention(q, k, v)                           # no T x T HBM scores
    ctx = ctx.reshape(B, nh, T, dh).transpose(0, 2, 1, 3).reshape(B * T, C)
    x = x + matmul_fused(ctx, p['wo'], bias=p['bo']).reshape(B, T, C)
    y = layer_norm(x.reshape(B * T, C), p['ln2_g'], p['ln2_b'])
    h = matmul_fused(y, p['w1'], bias=p['b1'], act='gelu')   # fused bias + GELU
    h = matmul_fused(h, p['w2'], bias=p['b2'])
    return x + h.reshape(B, T, C)


# ----------------------------------------------------------------------------
# Parameter initialization (deterministic, synthetic)
# ----------------------------------------------------------------------------
def init_params(key, in_channels=1, n_classes=3, bnf=16):
    keys = iter(jax.random.split(key, 256))

    def cw(k, cin, cout):
        fan = k * k * k * cin
        return jax.random.normal(next(keys), (k, k, k, cin, cout),
                                 jnp.float32) / math.sqrt(fan)

    def dw(din, dout):
        return jax.random.normal(next(keys), (din, dout),
                                 jnp.float32) / math.sqrt(din)

    p = {}
    p['c1_1'] = cw(3, in_channels, bnf)
    p['c1_2'] = cw(3, bnf, bnf)
    p['lrelu_conv_c1'] = cw(3, bnf, bnf)
    p['c2'] = cw(3, bnf, bnf * 2)
    p['nlc_c2'] = cw(3, bnf * 2, bnf * 2)
    p['c3'] = cw(3, bnf * 2, bnf * 4)
    p['nlc_c3'] = cw(3, bnf * 4, bnf * 4)
    p['c4'] = cw(3, bnf * 4, bnf * 8)
    p['nlc_c4'] = cw(3, bnf * 8, bnf * 8)
    p['c5'] = cw(3, bnf * 8, bnf * 16)
    p['nlc_c5'] = cw(3, bnf * 16, bnf * 16)
    p['up_l0'] = cw(3, bnf * 16, bnf * 8)
    p['l0_1x1'] = cw(1, bnf * 8, bnf * 8)
    p['cnl_l1'] = cw(3, bnf * 16, bnf * 16)
    p['l1_1x1'] = cw(1, bnf * 16, bnf * 8)
    p['up_l1'] = cw(3, bnf * 8, bnf * 4)
    p['cnl_l2'] = cw(3, bnf * 8, bnf * 8)
    p['l2_1x1'] = cw(1, bnf * 8, bnf * 4)
    p['up_l2'] = cw(3, bnf * 4, bnf * 2)
    p['cnl_l3'] = cw(3, bnf * 4, bnf * 4)
    p['l3_1x1'] = cw(1, bnf * 4, bnf * 2)
    p['up_l3'] = cw(3, bnf * 2, bnf)
    p['cnl_l4'] = cw(3, bnf * 2, bnf * 2)
    p['l4_1x1'] = cw(1, bnf * 2, n_classes)
    p['ds2_1x1'] = cw(1, bnf * 8, n_classes)
    p['ds3_1x1'] = cw(1, bnf * 4, n_classes)
    p['deconv0_w'] = cw(3, 512, bnf * 16)
    p['deconv0_b'] = jnp.zeros((bnf * 16,), jnp.float32)
    p['cont_w'] = cw(3, bnf * 16, 512)
    p['cont_b'] = jnp.zeros((512,), jnp.float32)
    p['mpi_1'] = cw(3, in_channels, bnf * 2)
    p['mpi_2'] = cw(3, in_channels, bnf * 4)
    p['mpi_3'] = cw(3, in_channels, bnf * 8)
    p['mpi_4'] = cw(3, in_channels, bnf * 16)
    p['mffm_1'] = cw(3, bnf * 4, bnf * 2)
    p['mffm_2'] = cw(3, bnf * 8, bnf * 4)
    p['mffm_3'] = cw(3, bnf * 16, bnf * 8)
    p['mffm_4'] = cw(3, bnf * 32, bnf * 16)
    p['mcim_1'] = cw(1, bnf * 2, bnf)
    p['mcim_2'] = cw(1, bnf * 4, bnf * 2)
    p['mcim_3'] = cw(1, bnf * 8, bnf * 4)
    p['mcim_4'] = cw(3, bnf * 8, bnf * 8)
    p['pos_emb'] = jax.random.normal(next(keys), (1, 900, 512), jnp.float32) * 0.02
    p['phl_g'] = jnp.ones((512,), jnp.float32)
    p['phl_b'] = jnp.zeros((512,), jnp.float32)
    layers = []
    for _ in range(12):
        layers.append(dict(
            ln1_g=jnp.ones((512,), jnp.float32), ln1_b=jnp.zeros((512,), jnp.float32),
            w_qkv=dw(512, 3 * 512), b_qkv=jnp.zeros((3 * 512,), jnp.float32),
            wo=dw(512, 512), bo=jnp.zeros((512,), jnp.float32),
            ln2_g=jnp.ones((512,), jnp.float32), ln2_b=jnp.zeros((512,), jnp.float32),
            w1=dw(512, 4096), b1=jnp.zeros((4096,), jnp.float32),
            w2=dw(4096, 512), b2=jnp.zeros((512,), jnp.float32),
        ))
    p['tr_layers'] = layers
    return p


# ----------------------------------------------------------------------------
# RASnet forward (eval mode, bf16 activation datapath)
# ----------------------------------------------------------------------------
def rasnet_forward(p, x_ncdhw):
    x = jnp.transpose(x_ncdhw, (0, 2, 3, 4, 1)).astype(jnp.bfloat16)  # NCDHW -> NDHWC

    out = conv3d(x, p['c1_1'])
    residual_1 = out
    out = lrelu(out)
    out = conv3d(out, p['c1_2'], act='lrelu')            # lrelu of lrelu_conv_c1 fused
    # dropout3d: identity (eval)
    out = conv3d(out, p['lrelu_conv_c1'])
    out = out + residual_1
    context_1 = lrelu(out)
    out = instance_norm_lrelu(out)                       # inorm3d_c1 + lrelu

    mx1 = maxpool3d_2(x)
    mx1_1 = mpi(mx1, p['mpi_1'])
    out = conv3d(out, p['c2'], stride=2)
    out = mffm(out, mx1_1, p['mffm_1'], residual=out)    # "out + mffm(...)" fused
    residual_2 = out
    out = norm_lrelu_conv(out, p['nlc_c2'])
    out = norm_lrelu_conv(out, p['nlc_c2'])              # module reused, same weights
    out = out + residual_2
    out = instance_norm_lrelu(out)
    context_2 = out

    mx2 = maxpool3d_2(mx1)
    mx2_1 = mpi(mx2, p['mpi_2'])
    out = conv3d(out, p['c3'], stride=2)
    out = mffm(out, mx2_1, p['mffm_2'], residual=out)
    residual_3 = out
    out = norm_lrelu_conv(out, p['nlc_c3'])
    out = norm_lrelu_conv(out, p['nlc_c3'])
    out = out + residual_3
    out = instance_norm_lrelu(out)
    context_3 = out

    mx3 = maxpool3d_2(mx2)
    mx3_1 = mpi(mx3, p['mpi_3'])
    out = conv3d(out, p['c4'], stride=2)
    out = mffm(out, mx3_1, p['mffm_3'], residual=out)
    residual_4 = out
    out = norm_lrelu_conv(out, p['nlc_c4'])
    out = norm_lrelu_conv(out, p['nlc_c4'])
    out = out + residual_4
    out = instance_norm_lrelu(out)
    context_4 = out

    mx4 = maxpool3d_2(mx3)
    mx4_1 = mpi(mx4, p['mpi_4'])
    out = conv3d(out, p['c5'], stride=2)
    out = mffm(out, mx4_1, p['mffm_4'], residual=out)
    residual_6 = out
    out = batchnorm_eval(out)                            # norm4 (BatchNorm3d, eval)
    out = jnp.maximum(out, 0.0)                          # relu1 (tiny tensor, XLA fuses)
    out = conv3d(out, p['cont_w'], p['cont_b'])          # -> 512 channels

    B, d16, h16, w16, _ = out.shape
    T = d16 * h16 * w16
    tokens = out.reshape(B, T, 512)
    # TODO(synk): original hard-codes seq length 900 (=15*10*6); positional table sliced to T.
    tokens = tokens + p['pos_emb'][:, :T, :].astype(jnp.bfloat16)
    # pe_dropout: identity (eval)
    for lp in p['tr_layers']:
        tokens = transformer_block(tokens, lp)
    tokens = layer_norm(tokens.reshape(B * T, 512), p['phl_g'], p['phl_b'])
    out = tokens.reshape(B, d16, h16, w16, 512)

    out = conv3d(out, p['deconv0_w'], p['deconv0_b'])
    out = norm_lrelu_conv(out, p['nlc_c5'])
    out = norm_lrelu_conv(out, p['nlc_c5'])
    out = out + residual_6
    out = norm_lrelu_up_conv_norm_lrelu(out, p['up_l0'])
    out = conv3d(out, p['l0_1x1'], padding=0)
    out = instance_norm_lrelu(out)                       # inorm3d_l0 + lrelu

    context_1 = mcim(context_1, context_2, p['mcim_1'])
    context_2 = mcim(context_2, context_3, p['mcim_2'])
    context_3 = mcim(context_3, context_4, p['mcim_3'])
    context_4 = mcim1(context_4, p['mcim_4'])

    out = jnp.concatenate([out, context_4], axis=-1)
    out = conv_norm_lrelu(out, p['cnl_l1'])
    out = conv3d(out, p['l1_1x1'], padding=0)
    out = norm_lrelu_up_conv_norm_lrelu(out, p['up_l1'])
    out = jnp.concatenate([out, context_3], axis=-1)
    out = conv_norm_lrelu(out, p['cnl_l2'])
    ds2 = out
    out = conv3d(out, p['l2_1x1'], padding=0)
    out = norm_lrelu_up_conv_norm_lrelu(out, p['up_l2'])
    out = jnp.concatenate([out, context_2], axis=-1)
    out = conv_norm_lrelu(out, p['cnl_l3'])
    ds3 = out
    out = conv3d(out, p['l3_1x1'], padding=0)
    out = norm_lrelu_up_conv_norm_lrelu(out, p['up_l3'])
    out = jnp.concatenate([out, context_1], axis=-1)
    out = conv_norm_lrelu(out, p['cnl_l4'])
    out_pred = conv3d(out, p['l4_1x1'], padding=0)

    ds2_c = conv3d(ds2, p['ds2_1x1'], padding=0)
    up1 = upsample2(ds2_c)
    ds3_c = conv3d(ds3, p['ds3_1x1'], padding=0)
    up2 = upsample2(up1 + ds3_c)
    seg = out_pred + up2
    return jnp.transpose(seg, (0, 4, 1, 2, 3)).astype(jnp.float32)  # back to NCDHW


if __name__ == "__main__":
    key = jax.random.PRNGKey(0)
    pkey, xkey = jax.random.split(key)
    # in_channels=1 (MPI(1, ...) implies single-channel input), n_classes=3, base_n_filter=16
    params = init_params(pkey, in_channels=1, n_classes=3, bnf=16)
    x = jax.random.normal(xkey, (2, 1, 16, 16, 16), jnp.float32)  # NCDHW
    seg = rasnet_forward(params, x)
    seg = jax.block_until_ready(seg)
    assert seg.shape == (2, 3, 16, 16, 16), seg.shape
    assert bool(jnp.all(jnp.isfinite(seg)))
    print("KERNEL_OK")
</pallas_src>

<mosaic_0001>
module attributes {stable_mosaic.version = 11 : i64} {
  func.func @_dconv_kernel(%arg0: i32, %arg1: i32, %arg2: memref<1x1x368x8xbf16, #tpu.memory_space<vmem>>, %arg3: memref<1x1x368x8xbf16, #tpu.memory_space<vmem>>, %arg4: memref<1x1x368x8xbf16, #tpu.memory_space<vmem>>, %arg5: memref<27x8x16xbf16, #tpu.memory_space<vmem>>, %arg6: memref<1x16xf32, #tpu.memory_space<vmem>>, %arg7: memref<1x1x324x16xbf16, #tpu.memory_space<vmem>>) attributes {dimension_semantics = [#tpu.dimension_semantics<parallel>, #tpu.dimension_semantics<parallel>], iteration_bounds = array<i64: 2, 16>, scalar_prefetch = 0 : i64, scratch_operands = 0 : i64, tpu.core_type = #tpu.core_type<tc>, window_params = [{transform_indices = @transform_0, window_bounds = array<i64: 1, 1, 368, 8>}, {transform_indices = @transform_1, window_bounds = array<i64: 1, 1, 368, 8>}, {transform_indices = @transform_2, window_bounds = array<i64: 1, 1, 368, 8>}, {pipeline_mode = #tpu.pipeline_mode<synchronous>, transform_indices = @transform_3, window_bounds = array<i64: 27, 8, 16>}, {pipeline_mode = #tpu.pipeline_mode<synchronous>, transform_indices = @transform_4, window_bounds = array<i64: 1, 16>}, {transform_indices = @transform_5, window_bounds = array<i64: 1, 1, 324, 16>}]} {
    %cst = arith.constant 0.000000e+00 : f32
    %0 = vector.broadcast %cst : f32 to vector<324x16xf32>
    %c0 = arith.constant 0 : index
    %c0_0 = arith.constant 0 : index
    %c0_1 = arith.constant 0 : index
    %c0_2 = arith.constant 0 : index
    %1 = vector.load %arg2[%c0, %c0_0, %c0_1, %c0_2] : memref<1x1x368x8xbf16, #tpu.memory_space<vmem>>, vector<1x1x324x8xbf16>
    %2 = vector.shape_cast %1 : vector<1x1x324x8xbf16> to vector<324x8xbf16>
    %c0_3 = arith.constant 0 : index
    %c0_4 = arith.constant 0 : index
    %c0_5 = arith.constant 0 : index
    %3 = vector.load %arg5[%c0_3, %c0_4, %c0_5] : memref<27x8x16xbf16, #tpu.memory_space<vmem>>, vector<1x8x16xbf16>
    %4 = vector.shape_cast %3 : vector<1x8x16xbf16> to vector<8x16xbf16>
    %cst_6 = arith.constant dense<0.000000e+00> : vector<324x16xf32>
    %5 = tpu.matmul %2, %4, %cst_6 {dimension_numbers = #tpu.dot_dimension_numbers<[1], [0], [0], [1], [0, 0, 1, 1], [], []>} : vector<324x8xbf16>, vector<8x16xbf16>, vector<324x16xf32> -> vector<324x16xf32>
    %6 = arith.addf %0, %5 : vector<324x16xf32>
    %c0_7 = arith.constant 0 : index
    %c0_8 = arith.constant 0 : index
    %c1 = arith.constant 1 : index
    %c0_9 = arith.constant 0 : index
    %7 = vector.load %arg2[%c0_7, %c0_8, %c1, %c0_9] : memref<1x1x368x8xbf16, #tpu.memory_space<vmem>>, vector<1x1x324x8xbf16>
    %8 = vector.shape_cast %7 : vector<1x1x324x8xbf16> to vector<324x8xbf16>
    %c1_10 = arith.constant 1 : index
    %c0_11 = arith.constant 0 : index
    %c0_12 = arith.constant 0 : index
    %9 = vector.load %arg5[%c1_10, %c0_11, %c0_12] : memref<27x8x16xbf16, #tpu.memory_space<vmem>>, vector<1x8x16xbf16>
    %10 = vector.shape_cast %9 : vector<1x8x16xbf16> to vector<8x16xbf16>
    %cst_13 = arith.constant dense<0.000000e+00> : vector<324x16xf32>
    %11 = tpu.matmul %8, %10, %cst_13 {dimension_numbers = #tpu.dot_dimension_numbers<[1], [0], [0], [1], [0, 0, 1, 1], [], []>} : vector<324x8xbf16>, vector<8x16xbf16>, vector<324x16xf32> -> vector<324x16xf32>
    %12 = arith.addf %6, %11 : vector<324x16xf32>
    %c0_14 = arith.constant 0 : index
    %c0_15 = arith.constant 0 : index
    %c2 = arith.constant 2 : index
    %c0_16 = arith.constant 0 : index
    %13 = vector.load %arg2[%c0_14, %c0_15, %c2, %c0_16] : memref<1x1x368x8xbf16, #tpu.memory_space<vmem>>, vector<1x1x324x8xbf16>
    %14 = vector.shape_cast %13 : vector<1x1x324x8xbf16> to vector<324x8xbf16>
    %c2_17 = arith.constant 2 : index
    %c0_18 = arith.constant 0 : index
    %c0_19 = arith.constant 0 : index
    %15 = vector.load %arg5[%c2_17, %c0_18, %c0_19] : memref<27x8x16xbf16, #tpu.memory_space<vmem>>, vector<1x8x16xbf16>
    %16 = vector.shape_cast %15 : vector<1x8x16xbf16> to vector<8x16xbf16>
    %cst_20 = arith.constant dense<0.000000e+00> : vector<324x16xf32>
    %17 = tpu.matmul %14, %16, %cst_20 {dimension_numbers = #tpu.dot_dimension_numbers<[1], [0], [0], [1], [0, 0, 1, 1], [], []>} : vector<324x8xbf16>, vector<8x16xbf16>, vector<324x16xf32> -> vector<324x16xf32>
    %18 = arith.addf %12, %17 : vector<324x16xf32>
    %c0_21 = arith.constant 0 : index
    %c0_22 = arith.constant 0 : index
    %c18 = arith.constant 18 : index
    %c0_23 = arith.constant 0 : index
    %19 = vector.load %arg2[%c0_21, %c0_22, %c18, %c0_23] : memref<1x1x368x8xbf16, #tpu.memory_space<vmem>>, vector<1x1x324x8xbf16>
    %20 = vector.shape_cast %19 : vector<1x1x324x8xbf16> to vector<324x8xbf16>
    %c3 = arith.constant 3 : index
    %c0_24 = arith.constant 0 : index
    %c0_25 = arith.constant 0 : index
    %21 = vector.load %arg5[%c3, %c0_24, %c0_25] : memref<27x8x16xbf16, #tpu.memory_space<vmem>>, vector<1x8x16xbf16>
    %22 = vector.shape_cast %21 : vector<1x8x16xbf16> to vector<8x16xbf16>
    %cst_26 = arith.constant dense<0.000000e+00> : vector<324x16xf32>
    %23 = tpu.matmul %20, %22, %cst_26 {dimension_numbers = #tpu.dot_dimension_numbers<[1], [0], [0], [1], [0, 0, 1, 1], [], []>} : vector<324x8xbf16>, vector<8x16xbf16>, vector<324x16xf32> -> vector<324x16xf32>
    %24 = arith.addf %18, %23 : vector<324x16xf32>
    %c0_27 = arith.constant 0 : index
    %c0_28 = arith.constant 0 : index
    %c19 = arith.constant 19 : index
    %c0_29 = arith.constant 0 : index
    %25 = vector.load %arg2[%c0_27, %c0_28, %c19, %c0_29] : memref<1x1x368x8xbf16, #tpu.memory_space<vmem>>, vector<1x1x324x8xbf16>
    %26 = vector.shape_cast %25 : vector<1x1x324x8xbf16> to vector<324x8xbf16>
    %c4 = arith.constant 4 : index
    %c0_30 = arith.constant 0 : index
    %c0_31 = arith.constant 0 : index
    %27 = vector.load %arg5[%c4, %c0_30, %c0_31] : memref<27x8x16xbf16, #tpu.memory_space<vmem>>, vector<1x8x16xbf16>
    %28 = vector.shape_cast %27 : vector<1x8x16xbf16> to vector<8x16xbf16>
    %cst_32 = arith.constant dense<0.000000e+00> : vector<324x16xf32>
    %29 = tpu.matmul %26, %28, %cst_32 {dimension_numbers = #tpu.dot_dimension_numbers<[1], [0], [0], [1], [0, 0, 1, 1], [], []>} : vector<324x8xbf16>, vector<8x16xbf16>, vector<324x16xf32> -> vector<324x16xf32>
    %30 = arith.addf %24, %29 : vector<324x16xf32>
    %c0_33 = arith.constant 0 : index
    %c0_34 = arith.constant 0 : index
    %c20 = arith.constant 20 : index
    %c0_35 = arith.constant 0 : index
    %31 = vector.load %arg2[%c0_33, %c0_34, %c20, %c0_35] : memref<1x1x368x8xbf16, #tpu.memory_space<vmem>>, vector<1x1x324x8xbf16>
    %32 = vector.shape_cast %31 : vector<1x1x324x8xbf16> to vector<324x8xbf16>
    %c5 = arith.constant 5 : index
    %c0_36 = arith.constant 0 : index
    %c0_37 = arith.constant 0 : index
    %33 = vector.load %arg5[%c5, %c0_36, %c0_37] : memref<27x8x16xbf16, #tpu.memory_space<vmem>>, vector<1x8x16xbf16>
    %34 = vector.shape_cast %33 : vector<1x8x16xbf16> to vector<8x16xbf16>
    %cst_38 = arith.constant dense<0.000000e+00> : vector<324x16xf32>
    %35 = tpu.matmul %32, %34, %cst_38 {dimension_numbers = #tpu.dot_dimension_numbers<[1], [0], [0], [1], [0, 0, 1, 1], [], []>} : vector<324x8xbf16>, vector<8x16xbf16>, vector<324x16xf32> -> vector<324x16xf32>
    %36 = arith.addf %30, %35 : vector<324x16xf32>
    %c0_39 = arith.constant 0 : index
    %c0_40 = arith.constant 0 : index
    %c36 = arith.constant 36 : index
    %c0_41 = arith.constant 0 : index
    %37 = vector.load %arg2[%c0_39, %c0_40, %c36, %c0_41] : memref<1x1x368x8xbf16, #tpu.memory_space<vmem>>, vector<1x1x324x8xbf16>
    %38 = vector.shape_cast %37 : vector<1x1x324x8xbf16> to vector<324x8xbf16>
    %c6 = arith.constant 6 : index
    %c0_42 = arith.constant 0 : index
    %c0_43 = arith.constant 0 : index
    %39 = vector.load %arg5[%c6, %c0_42, %c0_43] : memref<27x8x16xbf16, #tpu.memory_space<vmem>>, vector<1x8x16xbf16>
    %40 = vector.shape_cast %39 : vector<1x8x16xbf16> to vector<8x16xbf16>
    %cst_44 = arith.constant dense<0.000000e+00> : vector<324x16xf32>
    %41 = tpu.matmul %38, %40, %cst_44 {dimension_numbers = #tpu.dot_dimension_numbers<[1], [0], [0], [1], [0, 0, 1, 1], [], []>} : vector<324x8xbf16>, vector<8x16xbf16>, vector<324x16xf32> -> vector<324x16xf32>
    %42 = arith.addf %36, %41 : vector<324x16xf32>
    %c0_45 = arith.constant 0 : index
    %c0_46 = arith.constant 0 : index
    %c37 = arith.constant 37 : index
    %c0_47 = arith.constant 0 : index
    %43 = vector.load %arg2[%c0_45, %c0_46, %c37, %c0_47] : memref<1x1x368x8xbf16, #tpu.memory_space<vmem>>, vector<1x1x324x8xbf16>
    %44 = vector.shape_cast %43 : vector<1x1x324x8xbf16> to vector<324x8xbf16>
    %c7 = arith.constant 7 : index
    %c0_48 = arith.constant 0 : index
    %c0_49 = arith.constant 0 : index
    %45 = vector.load %arg5[%c7, %c0_48, %c0_49] : memref<27x8x16xbf16, #tpu.memory_space<vmem>>, vector<1x8x16xbf16>
    %46 = vector.shape_cast %45 : vector<1x8x16xbf16> to vector<8x16xbf16>
    %cst_50 = arith.constant dense<0.000000e+00> : vector<324x16xf32>
    %47 = tpu.matmul %44, %46, %cst_50 {dimension_numbers = #tpu.dot_dimension_numbers<[1], [0], [0], [1], [0, 0, 1, 1], [], []>} : vector<324x8xbf16>, vector<8x16xbf16>, vector<324x16xf32> -> vector<324x16xf32>
    %48 = arith.addf %42, %47 : vector<324x16xf32>
    %c0_51 = arith.constant 0 : index
    %c0_52 = arith.constant 0 : index
    %c38 = arith.constant 38 : index
    %c0_53 = arith.constant 0 : index
    %49 = vector.load %arg2[%c0_51, %c0_52, %c38, %c0_53] : memref<1x1x368x8xbf16, #tpu.memory_space<vmem>>, vector<1x1x324x8xbf16>
    %50 = vector.shape_cast %49 : vector<1x1x324x8xbf16> to vector<324x8xbf16>
    %c8 = arith.constant 8 : index
    %c0_54 = arith.constant 0 : index
    %c0_55 = arith.constant 0 : index
    %51 = vector.load %arg5[%c8, %c0_54, %c0_55] : memref<27x8x16xbf16, #tpu.memory_space<vmem>>, vector<1x8x16xbf16>
    %52 = vector.shape_cast %51 : vector<1x8x16xbf16> to vector<8x16xbf16>
    %cst_56 = arith.constant dense<0.000000e+00> : vector<324x16xf32>
    %53 = tpu.matmul %50, %52, %cst_56 {dimension_numbers = #tpu.dot_dimension_numbers<[1], [0], [0], [1], [0, 0, 1, 1], [], []>} : vector<324x8xbf16>, vector<8x16xbf16>, vector<324x16xf32> -> vector<324x16xf32>
    %54 = arith.addf %48, %53 : vector<324x16xf32>
    %c0_57 = arith.constant 0 : index
    %c0_58 = arith.constant 0 : index
    %c0_59 = arith.constant 0 : index
    %c0_60 = arith.constant 0 : index
    %55 = vector.load %arg3[%c0_57, %c0_58, %c0_59, %c0_60] : memref<1x1x368x8xbf16, #tpu.memory_space<vmem>>, vector<1x1x324x8xbf16>
    %56 = vector.shape_cast %55 : vector<1x1x324x8xbf16> to vector<324x8xbf16>
    %c9 = arith.constant 9 : index
    %c0_61 = arith.constant 0 : index
    %c0_62 = arith.constant 0 : index
    %57 = vector.load %arg5[%c9, %c0_61, %c0_62] : memref<27x8x16xbf16, #tpu.memory_space<vmem>>, vector<1x8x16xbf16>
    %58 = vector.shape_cast %57 : vector<1x8x16xbf16> to vector<8x16xbf16>
    %cst_63 = arith.constant dense<0.000000e+00> : vector<324x16xf32>
    %59 = tpu.matmul %56, %58, %cst_63 {dimension_numbers = #tpu.dot_dimension_numbers<[1], [0], [0], [1], [0, 0, 1, 1], [], []>} : vector<324x8xbf16>, vector<8x16xbf16>, vector<324x16xf32> -> vector<324x16xf32>
    %60 = arith.addf %54, %59 : vector<324x16xf32>
    %c0_64 = arith.constant 0 : index
    %c0_65 = arith.constant 0 : index
    %c1_66 = arith.constant 1 : index
    %c0_67 = arith.constant 0 : index
    %61 = vector.load %arg3[%c0_64, %c0_65, %c1_66, %c0_67] : memref<1x1x368x8xbf16, #tpu.memory_space<vmem>>, vector<1x1x324x8xbf16>
    %62 = vector.shape_cast %61 : vector<1x1x324x8xbf16> to vector<324x8xbf16>
    %c10 = arith.constant 10 : index
    %c0_68 = arith.constant 0 : index
    %c0_69 = arith.constant 0 : index
    %63 = vector.load %arg5[%c10, %c0_68, %c0_69] : memref<27x8x16xbf16, #tpu.memory_space<vmem>>, vector<1x8x16xbf16>
    %64 = vector.shape_cast %63 : vector<1x8x16xbf16> to vector<8x16xbf16>
    %cst_70 = arith.constant dense<0.000000e+00> : vector<324x16xf32>
    %65 = tpu.matmul %62, %64, %cst_70 {dimension_numbers = #tpu.dot_dimension_numbers<[1], [0], [0], [1], [0, 0, 1, 1], [], []>} : vector<324x8xbf16>, vector<8x16xbf16>, vector<324x16xf32> -> vector<324x16xf32>
    %66 = arith.addf %60, %65 : vector<324x16xf32>
    %c0_71 = arith.constant 0 : index
    %c0_72 = arith.constant 0 : index
    %c2_73 = arith.constant 2 : index
    %c0_74 = arith.constant 0 : index
    %67 = vector.load %arg3[%c0_71, %c0_72, %c2_73, %c0_74] : memref<1x1x368x8xbf16, #tpu.memory_space<vmem>>, vector<1x1x324x8xbf16>
    %68 = vector.shape_cast %67 : vector<1x1x324x8xbf16> to vector<324x8xbf16>
    %c11 = arith.constant 11 : index
    %c0_75 = arith.constant 0 : index
    %c0_76 = arith.constant 0 : index
    %69 = vector.load %arg5[%c11, %c0_75, %c0_76] : memref<27x8x16xbf16, #tpu.memory_space<vmem>>, vector<1x8x16xbf16>
    %70 = vector.shape_cast %69 : vector<1x8x16xbf16> to vector<8x16xbf16>
    %cst_77 = arith.constant dense<0.000000e+00> : vector<324x16xf32>
    %71 = tpu.matmul %68, %70, %cst_77 {dimension_numbers = #tpu.dot_dimension_numbers<[1], [0], [0], [1], [0, 0, 1, 1], [], []>} : vector<324x8xbf16>, vector<8x16xbf16>, vector<324x16xf32> -> vector<324x16xf32>
    %72 = arith.addf %66, %71 : vector<324x16xf32>
    %c0_78 = arith.constant 0 : index
    %c0_79 = arith.constant 0 : index
    %c18_80 = arith.constant 18 : index
    %c0_81 = arith.constant 0 : index
    %73 = vector.load %arg3[%c0_78, %c0_79, %c18_80, %c0_81] : memref<1x1x368x8xbf16, #tpu.memory_space<vmem>>, vector<1x1x324x8xbf16>
    %74 = vector.shape_cast %73 : vector<1x1x324x8xbf16> to vector<324x8xbf16>
    %c12 = arith.constant 12 : index
    %c0_82 = arith.constant 0 : index
    %c0_83 = arith.constant 0 : index
    %75 = vector.load %arg5[%c12, %c0_82, %c0_83] : memref<27x8x16xbf16, #tpu.memory_space<vmem>>, vector<1x8x16xbf16>
    %76 = vector.shape_cast %75 : vector<1x8x16xbf16> to vector<8x16xbf16>
    %cst_84 = arith.constant dense<0.000000e+00> : vector<324x16xf32>
    %77 = tpu.matmul %74, %76, %cst_84 {dimension_numbers = #tpu.dot_dimension_numbers<[1], [0], [0], [1], [0, 0, 1, 1], [], []>} : vector<324x8xbf16>, vector<8x16xbf16>, vector<324x16xf32> -> vector<324x16xf32>
    %78 = arith.addf %72, %77 : vector<324x16xf32>
    %c0_85 = arith.constant 0 : index
    %c0_86 = arith.constant 0 : index
    %c19_87 = arith.constant 19 : index
    %c0_88 = arith.constant 0 : index
    %79 = vector.load %arg3[%c0_85, %c0_86, %c19_87, %c0_88] : memref<1x1x368x8xbf16, #tpu.memory_space<vmem>>, vector<1x1x324x8xbf16>
    %80 = vector.shape_cast %79 : vector<1x1x324x8xbf16> to vector<324x8xbf16>
    %c13 = arith.constant 13 : index
    %c0_89 = arith.constant 0 : index
    %c0_90 = arith.constant 0 : index
    %81 = vector.load %arg5[%c13, %c0_89, %c0_90] : memref<27x8x16xbf16, #tpu.memory_space<vmem>>, vector<1x8x16xbf16>
    %82 = vector.shape_cast %81 : vector<1x8x16xbf16> to vector<8x16xbf16>
    %cst_91 = arith.constant dense<0.000000e+00> : vector<324x16xf32>
    %83 = tpu.matmul %80, %82, %cst_91 {dimension_numbers = #tpu.dot_dimension_numbers<[1], [0], [0], [1], [0, 0, 1, 1], [], []>} : vector<324x8xbf16>, vector<8x16xbf16>, vector<324x16xf32> -> vector<324x16xf32>
    %84 = arith.addf %78, %83 : vector<324x16xf32>
    %c0_92 = arith.constant 0 : index
    %c0_93 = arith.constant 0 : index
    %c20_94 = arith.constant 20 : index
    %c0_95 = arith.constant 0 : index
    %85 = vector.load %arg3[%c0_92, %c0_93, %c20_94, %c0_95] : memref<1x1x368x8xbf16, #tpu.memory_space<vmem>>, vector<1x1x324x8xbf16>
    %86 = vector.shape_cast %85 : vector<1x1x324x8xbf16> to vector<324x8xbf16>
    %c14 = arith.constant 14 : index
    %c0_96 = arith.constant 0 : index
    %c0_97 = arith.constant 0 : index
    %87 = vector.load %arg5[%c14, %c0_96, %c0_97] : memref<27x8x16xbf16, #tpu.memory_space<vmem>>, vector<1x8x16xbf16>
    %88 = vector.shape_cast %87 : vector<1x8x16xbf16> to vector<8x16xbf16>
    %cst_98 = arith.constant dense<0.000000e+00> : vector<324x16xf32>
    %89 = tpu.matmul %86, %88, %cst_98 {dimension_numbers = #tpu.dot_dimension_numbers<[1], [0], [0], [1], [0, 0, 1, 1], [], []>} : vector<324x8xbf16>, vector<8x16xbf16>, vector<324x16xf32> -> vector<324x16xf32>
    %90 = arith.addf %84, %89 : vector<324x16xf32>
    %c0_99 = arith.constant 0 : index
    %c0_100 = arith.constant 0 : index
    %c36_101 = arith.constant 36 : index
    %c0_102 = arith.constant 0 : index
    %91 = vector.load %arg3[%c0_99, %c0_100, %c36_101, %c0_102] : memref<1x1x368x8xbf16, #tpu.memory_space<vmem>>, vector<1x1x324x8xbf16>
    %92 = vector.shape_cast %91 : vector<1x1x324x8xbf16> to vector<324x8xbf16>
    %c15 = arith.constant 15 : index
    %c0_103 = arith.constant 0 : index
    %c0_104 = arith.constant 0 : index
    %93 = vector.load %arg5[%c15, %c0_103, %c0_104] : memref<27x8x16xbf16, #tpu.memory_space<vmem>>, vector<1x8x16xbf16>
    %94 = vector.shape_cast %93 : vector<1x8x16xbf16> to vector<8x16xbf16>
    %cst_105 = arith.constant dense<0.000000e+00> : vector<324x16xf32>
    %95 = tpu.matmul %92, %94, %cst_105 {dimension_numbers = #tpu.dot_dimension_numbers<[1], [0], [0], [1], [0, 0, 1, 1], [], []>} : vector<324x8xbf16>, vector<8x16xbf16>, vector<324x16xf32> -> vector<324x16xf32>
    %96 = arith.addf %90, %95 : vector<324x16xf32>
    %c0_106 = arith.constant 0 : index
    %c0_107 = arith.constant 0 : index
    %c37_108 = arith.constant 37 : index
    %c0_109 = arith.constant 0 : index
    %97 = vector.load %arg3[%c0_106, %c0_107, %c37_108, %c0_109] : memref<1x1x368x8xbf16, #tpu.memory_space<vmem>>, vector<1x1x324x8xbf16>
    %98 = vector.shape_cast %97 : vector<1x1x324x8xbf16> to vector<324x8xbf16>
    %c16 = arith.constant 16 : index
    %c0_110 = arith.constant 0 : index
    %c0_111 = arith.constant 0 : index
    %99 = vector.load %arg5[%c16, %c0_110, %c0_111] : memref<27x8x16xbf16, #tpu.memory_space<vmem>>, vector<1x8x16xbf16>
    %100 = vector.shape_cast %99 : vector<1x8x16xbf16> to vector<8x16xbf16>
    %cst_112 = arith.constant dense<0.000000e+00> : vector<324x16xf32>
    %101 = tpu.matmul %98, %100, %cst_112 {dimension_numbers = #tpu.dot_dimension_numbers<[1], [0], [0], [1], [0, 0, 1, 1], [], []>} : vector<324x8xbf16>, vector<8x16xbf16>, vector<324x16xf32> -> vector<324x16xf32>
    %102 = arith.addf %96, %101 : vector<324x16xf32>
    %c0_113 = arith.constant 0 : index
    %c0_114 = arith.constant 0 : index
    %c38_115 = arith.constant 38 : index
    %c0_116 = arith.constant 0 : index
    %103 = vector.load %arg3[%c0_113, %c0_114, %c38_115, %c0_116] : memref<1x1x368x8xbf16, #tpu.memory_space<vmem>>, vector<1x1x324x8xbf16>
    %104 = vector.shape_cast %103 : vector<1x1x324x8xbf16> to vector<324x8xbf16>
    %c17 = arith.constant 17 : index
    %c0_117 = arith.constant 0 : index
    %c0_118 = arith.constant 0 : index
    %105 = vector.load %arg5[%c17, %c0_117, %c0_118] : memref<27x8x16xbf16, #tpu.memory_space<vmem>>, vector<1x8x16xbf16>
    %106 = vector.shape_cast %105 : vector<1x8x16xbf16> to vector<8x16xbf16>
    %cst_119 = arith.constant dense<0.000000e+00> : vector<324x16xf32>
    %107 = tpu.matmul %104, %106, %cst_119 {dimension_numbers = #tpu.dot_dimension_numbers<[1], [0], [0], [1], [0, 0, 1, 1], [], []>} : vector<324x8xbf16>, vector<8x16xbf16>, vector<324x16xf32> -> vector<324x16xf32>
    %108 = arith.addf %102, %107 : vector<324x16xf32>
    %c0_120 = arith.constant 0 : index
    %c0_121 = arith.constant 0 : index
    %c0_122 = arith.constant 0 : index
    %c0_123 = arith.constant 0 : index
    %109 = vector.load %arg4[%c0_120, %c0_121, %c0_122, %c0_123] : memref<1x1x368x8xbf16, #tpu.memory_space<vmem>>, vector<1x1x324x8xbf16>
    %110 = vector.shape_cast %109 : vector<1x1x324x8xbf16> to vector<324x8xbf16>
    %c18_124 = arith.constant 18 : index
    %c0_125 = arith.constant 0 : index
    %c0_126 = arith.constant 0 : index
    %111 = vector.load %arg5[%c18_124, %c0_125, %c0_126] : memref<27x8x16xbf16, #tpu.memory_space<vmem>>, vector<1x8x16xbf16>
    %112 = vector.shape_cast %111 : vector<1x8x16xbf16> to vector<8x16xbf16>
    %cst_127 = arith.constant dense<0.000000e+00> : vector<324x16xf32>
    %113 = tpu.matmul %110, %112, %cst_127 {dimension_numbers = #tpu.dot_dimension_numbers<[1], [0], [0], [1], [0, 0, 1, 1], [], []>} : vector<324x8xbf16>, vector<8x16xbf16>, vector<324x16xf32> -> vector<324x16xf32>
    %114 = arith.addf %108, %113 : vector<324x16xf32>
    %c0_128 = arith.constant 0 : index
    %c0_129 = arith.constant 0 : index
    %c1_130 = arith.constant 1 : index
    %c0_131 = arith.constant 0 : index
    %115 = vector.load %arg4[%c0_128, %c0_129, %c1_130, %c0_131] : memref<1x1x368x8xbf16, #tpu.memory_space<vmem>>, vector<1x1x324x8xbf16>
    %116 = vector.shape_cast %115 : vector<1x1x324x8xbf16> to vector<324x8xbf16>
    %c19_132 = arith.constant 19 : index
    %c0_133 = arith.constant 0 : index
    %c0_134 = arith.constant 0 : index
    %117 = vector.load %arg5[%c19_132, %c0_133, %c0_134] : memref<27x8x16xbf16, #tpu.memory_space<vmem>>, vector<1x8x16xbf16>
    %118 = vector.shape_cast %117 : vector<1x8x16xbf16> to vector<8x16xbf16>
    %cst_135 = arith.constant dense<0.000000e+00> : vector<324x16xf32>
    %119 = tpu.matmul %116, %118, %cst_135 {dimension_numbers = #tpu.dot_dimension_numbers<[1], [0], [0], [1], [0, 0, 1, 1], [], []>} : vector<324x8xbf16>, vector<8x16xbf16>, vector<324x16xf32> -> vector<324x16xf32>
    %120 = arith.addf %114, %119 : vector<324x16xf32>
    %c0_136 = arith.constant 0 : index
    %c0_137 = arith.constant 0 : index
    %c2_138 = arith.constant 2 : index
    %c0_139 = arith.constant 0 : index
    %121 = vector.load %arg4[%c0_136, %c0_137, %c2_138, %c0_139] : memref<1x1x368x8xbf16, #tpu.memory_space<vmem>>, vector<1x1x324x8xbf16>
    %122 = vector.shape_cast %121 : vector<1x1x324x8xbf16> to vector<324x8xbf16>
    %c20_140 = arith.constant 20 : index
    %c0_141 = arith.constant 0 : index
    %c0_142 = arith.constant 0 : index
    %123 = vector.load %arg5[%c20_140, %c0_141, %c0_142] : memref<27x8x16xbf16, #tpu.memory_space<vmem>>, vector<1x8x16xbf16>
    %124 = vector.shape_cast %123 : vector<1x8x16xbf16> to vector<8x16xbf16>
    %cst_143 = arith.constant dense<0.000000e+00> : vector<324x16xf32>
    %125 = tpu.matmul %122, %124, %cst_143 {dimension_numbers = #tpu.dot_dimension_numbers<[1], [0], [0], [1], [0, 0, 1, 1], [], []>} : vector<324x8xbf16>, vector<8x16xbf16>, vector<324x16xf32> -> vector<324x16xf32>
    %126 = arith.addf %120, %125 : vector<324x16xf32>
    %c0_144 = arith.constant 0 : index
    %c0_145 = arith.constant 0 : index
    %c18_146 = arith.constant 18 : index
    %c0_147 = arith.constant 0 : index
    %127 = vector.load %arg4[%c0_144, %c0_145, %c18_146, %c0_147] : memref<1x1x368x8xbf16, #tpu.memory_space<vmem>>, vector<1x1x324x8xbf16>
    %128 = vector.shape_cast %127 : vector<1x1x324x8xbf16> to vector<324x8xbf16>
    %c21 = arith.constant 21 : index
    %c0_148 = arith.constant 0 : index
    %c0_149 = arith.constant 0 : index
    %129 = vector.load %arg5[%c21, %c0_148, %c0_149] : memref<27x8x16xbf16, #tpu.memory_space<vmem>>, vector<1x8x16xbf16>
    %130 = vector.shape_cast %129 : vector<1x8x16xbf16> to vector<8x16xbf16>
    %cst_150 = arith.constant dense<0.000000e+00> : vector<324x16xf32>
    %131 = tpu.matmul %128, %130, %cst_150 {dimension_numbers = #tpu.dot_dimension_numbers<[1], [0], [0], [1], [0, 0, 1, 1], [], []>} : vector<324x8xbf16>, vector<8x16xbf16>, vector<324x16xf32> -> vector<324x16xf32>
    %132 = arith.addf %126, %131 : vector<324x16xf32>
    %c0_151 = arith.constant 0 : index
    %c0_152 = arith.constant 0 : index
    %c19_153 = arith.constant 19 : index
    %c0_154 = arith.constant 0 : index
    %133 = vector.load %arg4[%c0_151, %c0_152, %c19_153, %c0_154] : memref<1x1x368x8xbf16, #tpu.memory_space<vmem>>, vector<1x1x324x8xbf16>
    %134 = vector.shape_cast %133 : vector<1x1x324x8xbf16> to vector<324x8xbf16>
    %c22 = arith.constant 22 : index
    %c0_155 = arith.constant 0 : index
    %c0_156 = arith.constant 0 : index
    %135 = vector.load %arg5[%c22, %c0_155, %c0_156] : memref<27x8x16xbf16, #tpu.memory_space<vmem>>, vector<1x8x16xbf16>
    %136 = vector.shape_cast %135 : vector<1x8x16xbf16> to vector<8x16xbf16>
    %cst_157 = arith.constant dense<0.000000e+00> : vector<324x16xf32>
    %137 = tpu.matmul %134, %136, %cst_157 {dimension_numbers = #tpu.dot_dimension_numbers<[1], [0], [0], [1], [0, 0, 1, 1], [], []>} : vector<324x8xbf16>, vector<8x16xbf16>, vector<324x16xf32> -> vector<324x16xf32>
    %138 = arith.addf %132, %137 : vector<324x16xf32>
    %c0_158 = arith.constant 0 : index
    %c0_159 = arith.constant 0 : index
    %c20_160 = arith.constant 20 : index
    %c0_161 = arith.constant 0 : index
    %139 = vector.load %arg4[%c0_158, %c0_159, %c20_160, %c0_161] : memref<1x1x368x8xbf16, #tpu.memory_space<vmem>>, vector<1x1x324x8xbf16>
    %140 = vector.shape_cast %139 : vector<1x1x324x8xbf16> to vector<324x8xbf16>
    %c23 = arith.constant 23 : index
    %c0_162 = arith.constant 0 : index
    %c0_163 = arith.constant 0 : index
    %141 = vector.load %arg5[%c23, %c0_162, %c0_163] : memref<27x8x16xbf16, #tpu.memory_space<vmem>>, vector<1x8x16xbf16>
    %142 = vector.shape_cast %141 : vector<1x8x16xbf16> to vector<8x16xbf16>
    %cst_164 = arith.constant dense<0.000000e+00> : vector<324x16xf32>
    %143 = tpu.matmul %140, %142, %cst_164 {dimension_numbers = #tpu.dot_dimension_numbers<[1], [0], [0], [1], [0, 0, 1, 1], [], []>} : vector<324x8xbf16>, vector<8x16xbf16>, vector<324x16xf32> -> vector<324x16xf32>
    %144 = arith.addf %138, %143 : vector<324x16xf32>
    %c0_165 = arith.constant 0 : index
    %c0_166 = arith.constant 0 : index
    %c36_167 = arith.constant 36 : index
    %c0_168 = arith.constant 0 : index
    %145 = vector.load %arg4[%c0_165, %c0_166, %c36_167, %c0_168] : memref<1x1x368x8xbf16, #tpu.memory_space<vmem>>, vector<1x1x324x8xbf16>
    %146 = vector.shape_cast %145 : vector<1x1x324x8xbf16> to vector<324x8xbf16>
    %c24 = arith.constant 24 : index
    %c0_169 = arith.constant 0 : index
    %c0_170 = arith.constant 0 : index
    %147 = vector.load %arg5[%c24, %c0_169, %c0_170] : memref<27x8x16xbf16, #tpu.memory_space<vmem>>, vector<1x8x16xbf16>
    %148 = vector.shape_cast %147 : vector<1x8x16xbf16> to vector<8x16xbf16>
    %cst_171 = arith.constant dense<0.000000e+00> : vector<324x16xf32>
    %149 = tpu.matmul %146, %148, %cst_171 {dimension_numbers = #tpu.dot_dimension_numbers<[1], [0], [0], [1], [0, 0, 1, 1], [], []>} : vector<324x8xbf16>, vector<8x16xbf16>, vector<324x16xf32> -> vector<324x16xf32>
    %150 = arith.addf %144, %149 : vector<324x16xf32>
    %c0_172 = arith.constant 0 : index
    %c0_173 = arith.constant 0 : index
    %c37_174 = arith.constant 37 : index
    %c0_175 = arith.constant 0 : index
    %151 = vector.load %arg4[%c0_172, %c0_173, %c37_174, %c0_175] : memref<1x1x368x8xbf16, #tpu.memory_space<vmem>>, vector<1x1x324x8xbf16>
    %152 = vector.shape_cast %151 : vector<1x1x324x8xbf16> to vector<324x8xbf16>
    %c25 = arith.constant 25 : index
    %c0_176 = arith.constant 0 : index
    %c0_177 = arith.constant 0 : index
    %153 = vector.load %arg5[%c25, %c0_176, %c0_177] : memref<27x8x16xbf16, #tpu.memory_space<vmem>>, vector<1x8x16xbf16>
    %154 = vector.shape_cast %153 : vector<1x8x16xbf16> to vector<8x16xbf16>
    %cst_178 = arith.constant dense<0.000000e+00> : vector<324x16xf32>
    %155 = tpu.matmul %152, %154, %cst_178 {dimension_numbers = #tpu.dot_dimension_numbers<[1], [0], [0], [1], [0, 0, 1, 1], [], []>} : vector<324x8xbf16>, vector<8x16xbf16>, vector<324x16xf32> -> vector<324x16xf32>
    %156 = arith.addf %150, %155 : vector<324x16xf32>
    %c0_179 = arith.constant 0 : index
    %c0_180 = arith.constant 0 : index
    %c38_181 = arith.constant 38 : index
    %c0_182 = arith.constant 0 : index
    %157 = vector.load %arg4[%c0_179, %c0_180, %c38_181, %c0_182] : memref<1x1x368x8xbf16, #tpu.memory_space<vmem>>, vector<1x1x324x8xbf16>
    %158 = vector.shape_cast %157 : vector<1x1x324x8xbf16> to vector<324x8xbf16>
    %c26 = arith.constant 26 : index
    %c0_183 = arith.constant 0 : index
    %c0_184 = arith.constant 0 : index
    %159 = vector.load %arg5[%c26, %c0_183, %c0_184] : memref<27x8x16xbf16, #tpu.memory_space<vmem>>, vector<1x8x16xbf16>
    %160 = vector.shape_cast %159 : vector<1x8x16xbf16> to vector<8x16xbf16>
    %cst_185 = arith.constant dense<0.000000e+00> : vector<324x16xf32>
    %161 = tpu.matmul %158, %160, %cst_185 {dimension_numbers = #tpu.dot_dimension_numbers<[1], [0], [0], [1], [0, 0, 1, 1], [], []>} : vector<324x8xbf16>, vector<8x16xbf16>, vector<324x16xf32> -> vector<324x16xf32>
    %162 = arith.addf %156, %161 : vector<324x16xf32>
    %c0_186 = arith.constant 0 : index
    %c0_187 = arith.constant 0 : index
    %163 = vector.load %arg6[%c0_186, %c0_187] : memref<1x16xf32, #tpu.memory_space<vmem>>, vector<1x16xf32>
    %164 = vector.broadcast %163 : vector<1x16xf32> to vector<324x16xf32>
    %165 = arith.addf %162, %164 : vector<324x16xf32>
    %166 = arith.truncf %165 : vector<324x16xf32> to vector<324x16xbf16>
    %c0_188 = arith.constant 0 : index
    %c0_189 = arith.constant 0 : index
    %c0_190 = arith.constant 0 : index
    %c0_191 = arith.constant 0 : index
    %167 = vector.load %arg7[%c0_188, %c0_189, %c0_190, %c0_191] : memref<1x1x324x16xbf16, #tpu.memory_space<vmem>>, vector<1x1x324x16xbf16>
    %168 = vector.shape_cast %167 : vector<1x1x324x16xbf16> to vector<324x16xbf16>
    %169 = vector.shape_cast %166 : vector<324x16xbf16> to vector<1x1x324x16xbf16>
    tpu.vector_store %arg7[%c0_188, %c0_189, %c0_190, %c0_191], %169 {strides = array<i32>} : memref<1x1x324x16xbf16, #tpu.memory_space<vmem>>, vector<1x1x324x16xbf16>,
    return
  }
  func.func @transform_0(%arg0: i32, %arg1: i32) -> (i32, i32, i32, i32) {
    %c0_i32 = arith.constant 0 : i32
    %c0_i32_0 = arith.constant 0 : i32
    %c0_i32_1 = arith.constant 0 : i32
    return %arg0, %arg1, %c0_i32, %c0_i32_0 : i32, i32, i32, i32
  }
  func.func @transform_1(%arg0: i32, %arg1: i32) -> (i32, i32, i32, i32) {
    %c1_i32 = arith.constant 1 : i32
    %0 = arith.addi %arg1, %c1_i32 : i32
    %c0_i32 = arith.constant 0 : i32
    %c0_i32_0 = arith.constant 0 : i32
    %c0_i32_1 = arith.constant 0 : i32
    return %arg0, %0, %c0_i32, %c0_i32_0 : i32, i32, i32, i32
  }
  func.func @transform_2(%arg0: i32, %arg1: i32) -> (i32, i32, i32, i32) {
    %c2_i32 = arith.constant 2 : i32
    %0 = arith.addi %arg1, %c2_i32 : i32
    %c0_i32 = arith.constant 0 : i32
    %c0_i32_0 = arith.constant 0 : i32
    %c0_i32_1 = arith.constant 0 : i32
    return %arg0, %0, %c0_i32, %c0_i32_0 : i32, i32, i32, i32
  }
  func.func @transform_3(%arg0: i32, %arg1: i32) -> (i32, i32, i32) {
    %c0_i32 = arith.constant 0 : i32
    %c0_i32_0 = arith.constant 0 : i32
    %c0_i32_1 = arith.constant 0 : i32
    %c0_i32_2 = arith.constant 0 : i32
    return %c0_i32, %c0_i32_0, %c0_i32_1 : i32, i32, i32
  }
  func.func @transform_4(%arg0: i32, %arg1: i32) -> (i32, i32) {
    %c0_i32 = arith.constant 0 : i32
    %c0_i32_0 = arith.constant 0 : i32
    %c0_i32_1 = arith.constant 0 : i32
    return %c0_i32, %c0_i32_0 : i32, i32
  }
  func.func @transform_5(%arg0: i32, %arg1: i32) -> (i32, i32, i32, i32) {
    %c0_i32 = arith.constant 0 : i32
    %c0_i32_0 = arith.constant 0 : i32
    %c0_i32_1 = arith.constant 0 : i32
    return %arg0, %arg1, %c0_i32, %c0_i32_0 : i32, i32, i32, i32
  }
}

</mosaic_0001>

<llo_original>
// kernel: tpu_custom_call.1
$region0: #{tpu_custom_call.1}
  #allocation0 [shape = 'u32[]', space=smem, size = 0x4, offset = 0x4, fixed_abs, tag = 'smem constant byte address 0x4 - core index']
  #allocation1 [shape = 'u32[144,128]{1,0:T(1,128)}', space=vmem, size = 0x12000, scoped, tag = 'internal scratch']
  %s0 = inlined_call_operand.vmem [shape: bf16[2,18,368,8], index: 0, kind: input, shape index: {}]
  %s1 = inlined_call_operand.vmem [shape: bf16[2,18,368,8], index: 1, kind: input, shape index: {}]
  %s2 = inlined_call_operand.vmem [shape: bf16[2,18,368,8], index: 2, kind: input, shape index: {}]
  %s3 = inlined_call_operand.vmem [shape: bf16[27,8,16], index: 3, kind: input, shape index: {}]
  %s4 = inlined_call_operand.vmem [shape: f32[1,16], index: 4, kind: input, shape index: {}]
  %s5 = inlined_call_operand.vmem [shape: bf16[2,16,324,16], index: 5, kind: output, shape index: {}]
  %s6 = sld [smem:[#allocation0]]
  $region53: #{tpu_custom_call.1} parent=0
    _
  %s8 = ssub.s32 1, %s6
  %s9 = scalar_select 0, %s8, %s6
  loop: start=0, step=1, limit=34
  $region2: #{tpu_custom_call.1} parent=0 // loop_pre_header
    _
  $region3: #{tpu_custom_call.1} parent=0 // loop_header
    %s11 = sphi 0, %s15
    %p12 = scmp.ge.s32.totalorder %s11, 34
    %s18 = sphi 0, %s30
    %s19 = sphi 0, %s26
    %s20 = sphi 0, %s18
    %s21 = sphi 0, %s19
    %s22 = sphi 0, %s20
    %s23 = sphi 0, %s21
    %s35 = sphi 0, %s37
    %s38 = sphi 0, %s35
    %s39 = sphi 0, %s38
    %s55 = sphi 0, %s39
    %s65 = sphi 0, %s67
    %s68 = sphi 0, %s65
    %s69 = sphi 0, %s68
    %s85 = sphi 0, %s69
    %s95 = sphi 0, %s97
    %s98 = sphi 0, %s95
    %s99 = sphi 0, %s98
    %s115 = sphi 0, %s99
    %s119 = sphi 0, %s119
    %s121 = sphi 0, %s119
    %s122 = sphi 0, %s121
    %s136 = sphi 0, %s122
    %s140 = sphi 0, %s140
    %s142 = sphi 0, %s140
    %s143 = sphi 0, %s142
    %s157 = sphi 0, %s143
    %s165 = sphi 0, %s167
    %s168 = sphi 0, %s165
    %s169 = sphi 0, %s168
    %s185 = sphi 0, %s169
  $region4: #{tpu_custom_call.1} parent=0 // loop_header_branch
    %14 = sbr.rel (%p12) target = $region8
  $region5: #{tpu_custom_call.1} parent=0 // loop_body
    %s16 = ssub.s32 %s11, 1
    %s17 = ssub.s32 %s11, 2
    %s24 = sadd.s32 1, %s19
    %p25 = scmp.ge.s32.totalorder %s24, 16
    %s26 = scalar_select %p25, 0, %s24
    %s27 = sadd.s32 1, %s18
    %s28 = scalar_select %p25, %s27, %s18
    %p29 = scmp.ge.s32.totalorder %s28, 2
    %s30 = scalar_select %p29, 0, %s28
    %s31 = ssub.s32 %s18, %s30
    %s32 = ssub.s32 %s19, %s26
    %s33 = sor.u32 %s31, %s32
    %p34 = scmp.eq.s32.totalorder %s33, 0
    %s36 = sadd.s32 %s35, 1
    %s37 = scalar_select %p34, %s35, %s36
    %p40 = pneg %p34
    %p41 = scmp.eq.s32.totalorder %s11, 31
    %p42 = por %p40, %p41
    %p43 = scmp.ne.s32.totalorder %s35, %s38
    %p44 = scmp.eq.s32.totalorder %s11, 0
    %p45 = por %p43, %p44
    %p46 = scmp.ne.s32.totalorder %s35, %s38
    %p47 = scmp.eq.s32.totalorder %s16, 31
    %p48 = por %p46, %p47
    %p49 = scmp.ne.s32.totalorder %s38, %s39
    %p50 = scmp.eq.s32.totalorder %s16, 0
    %p51 = por %p49, %p50
    %p52 = scmp.ne.s32.totalorder %s38, %s39
    %p53 = scmp.eq.s32.totalorder %s17, 31
    %p54 = por %p52, %p53
    %p56 = scmp.ne.s32.totalorder %s39, %s55
    %p57 = scmp.eq.s32.totalorder %s17, 0
    %p58 = por %p56, %p57
    %s59 = sadd.s32 %s19, 1
    %s60 = sadd.s32 %s26, 1
    %s61 = ssub.s32 %s18, %s30
    %s62 = ssub.s32 %s59, %s60
    %s63 = sor.u32 %s61, %s62
    %p64 = scmp.eq.s32.totalorder %s63, 0
    %s66 = sadd.s32 %s65, 1
    %s67 = scalar_select %p64, %s65, %s66
    %p70 = pneg %p64
    %p71 = scmp.eq.s32.totalorder %s11, 31
    %p72 = por %p70, %p71
    %p73 = scmp.ne.s32.totalorder %s65, %s68
    %p74 = scmp.eq.s32.totalorder %s11, 0
    %p75 = por %p73, %p74
    %p76 = scmp.ne.s32.totalorder %s65, %s68
    %p77 = scmp.eq.s32.totalorder %s16, 31
    %p78 = por %p76, %p77
    %p79 = scmp.ne.s32.totalorder %s68, %s69
    %p80 = scmp.eq.s32.totalorder %s16, 0
    %p81 = por %p79, %p80
    %p82 = scmp.ne.s32.totalorder %s68, %s69
    %p83 = scmp.eq.s32.totalorder %s17, 31
    %p84 = por %p82, %p83
    %p86 = scmp.ne.s32.totalorder %s69, %s85
    %p87 = scmp.eq.s32.totalorder %s17, 0
    %p88 = por %p86, %p87
    %s89 = sadd.s32 %s19, 2
    %s90 = sadd.s32 %s26, 2
    %s91 = ssub.s32 %s18, %s30
    %s92 = ssub.s32 %s89, %s90
    %s93 = sor.u32 %s91, %s92
    %p94 = scmp.eq.s32.totalorder %s93, 0
    %s96 = sadd.s32 %s95, 1
    %s97 = scalar_select %p94, %s95, %s96
    %p100 = pneg %p94
    %p101 = scmp.eq.s32.totalorder %s11, 31
    %p102 = por %p100, %p101
    %p103 = scmp.ne.s32.totalorder %s95, %s98
    %p104 = scmp.eq.s32.totalorder %s11, 0
    %p105 = por %p103, %p104
    %p106 = scmp.ne.s32.totalorder %s95, %s98
    %p107 = scmp.eq.s32.totalorder %s16, 31
    %p108 = por %p106, %p107
    %p109 = scmp.ne.s32.totalorder %s98, %s99
    %p110 = scmp.eq.s32.totalorder %s16, 0
    %p111 = por %p109, %p110
    %p112 = scmp.ne.s32.totalorder %s98, %s99
    %p113 = scmp.eq.s32.totalorder %s17, 31
    %p114 = por %p112, %p113
    %p116 = scmp.ne.s32.totalorder %s99, %s115
    %p117 = scmp.eq.s32.totalorder %s17, 0
    %p118 = por %p116, %p117
    %s120 = sadd.s32 %s119, 1
    %p123 = scmp.eq.s32.totalorder %s11, 31
    %p124 = scmp.ne.s32.totalorder %s119, %s121
    %p125 = scmp.eq.s32.totalorder %s11, 0
    %p126 = por %p124, %p125
    %p127 = scmp.ne.s32.totalorder %s119, %s121
    %p128 = scmp.eq.s32.totalorder %s16, 31
    %p129 = por %p127, %p128
    %p130 = scmp.ne.s32.totalorder %s121, %s122
    %p131 = scmp.eq.s32.totalorder %s16, 0
    %p132 = por %p130, %p131
    %p133 = scmp.ne.s32.totalorder %s121, %s122
    %p134 = scmp.eq.s32.totalorder %s17, 31
    %p135 = por %p133, %p134
    %p137 = scmp.ne.s32.totalorder %s122, %s136
    %p138 = scmp.eq.s32.totalorder %s17, 0
    %p139 = por %p137, %p138
    %s141 = sadd.s32 %s140, 1
    %p144 = scmp.eq.s32.totalorder %s11, 31
    %p145 = scmp.ne.s32.totalorder %s140, %s142
    %p146 = scmp.eq.s32.totalorder %s11, 0
    %p147 = por %p145, %p146
    %p148 = scmp.ne.s32.totalorder %s140, %s142
    %p149 = scmp.eq.s32.totalorder %s16, 31
    %p150 = por %p148, %p149
    %p151 = scmp.ne.s32.totalorder %s142, %s143
    %p152 = scmp.eq.s32.totalorder %s16, 0
    %p153 = por %p151, %p152
    %p154 = scmp.ne.s32.totalorder %s142, %s143
    %p155 = scmp.eq.s32.totalorder %s17, 31
    %p156 = por %p154, %p155
    %p158 = scmp.ne.s32.totalorder %s143, %s157
    %p159 = scmp.eq.s32.totalorder %s17, 0
    %p160 = por %p158, %p159
    %s161 = ssub.s32 %s18, %s30
    %s162 = ssub.s32 %s19, %s26
    %s163 = sor.u32 %s161, %s162
    %p164 = scmp.eq.s32.totalorder %s163, 0
    %s166 = sadd.s32 %s165, 1
    %s167 = scalar_select %p164, %s165, %s166
    %p170 = pneg %p164
    %p171 = scmp.eq.s32.totalorder %s11, 31
    %p172 = por %p170, %p171
    %p173 = scmp.ne.s32.totalorder %s165, %s168
    %p174 = scmp.eq.s32.totalorder %s11, 0
    %p175 = por %p173, %p174
    %p176 = scmp.ne.s32.totalorder %s165, %s168
    %p177 = scmp.eq.s32.totalorder %s16, 31
    %p178 = por %p176, %p177
    %p179 = scmp.ne.s32.totalorder %s168, %s169
    %p180 = scmp.eq.s32.totalorder %s16, 0
    %p181 = por %p179, %p180
    %p182 = scmp.ne.s32.totalorder %s168, %s169
    %p183 = scmp.eq.s32.totalorder %s17, 31
    %p184 = por %p182, %p183
    %p186 = scmp.ne.s32.totalorder %s169, %s185
    %p187 = scmp.eq.s32.totalorder %s17, 0
    %p188 = por %p186, %p187
    %p189 = scmp.le.s32.totalorder 1, %s11
    %p190 = scmp.lt.s32.totalorder %s11, 33
    %p191 = pnand %p189, %p190
    %p192 = pneg %p191
    // Predicated region
    $region9: #{tpu_custom_call.1} parent=5 // pred_check
      _
    $region10: #{tpu_custom_call.1} parent=5 // pred_check_branch
      %194 = sbr.rel (%p191) target = $region12
    $region11: #{tpu_custom_call.1} parent=5 // pred_region
      %s195 = ssub.s32 %s11, 1
      // Predicated region
      $region13: #{tpu_custom_call.1} parent=11 // pred_check
        %p196 = pneg %p132
      $region14: #{tpu_custom_call.1} parent=11 // pred_check_branch
        %198 = sbr.rel (%p196) target = $region16
      $region15: #{tpu_custom_call.1} parent=11 // pred_region
        _
      $region16: #{tpu_custom_call.1} parent=11 // pred_fallthru
        _
      // Predicated region
      $region17: #{tpu_custom_call.1} parent=11 // pred_check
        %p199 = pneg %p153
      $region18: #{tpu_custom_call.1} parent=11 // pred_check_branch
        %201 = sbr.rel (%p199) target = $region20
      $region19: #{tpu_custom_call.1} parent=11 // pred_region
        _
      $region20: #{tpu_custom_call.1} parent=11 // pred_fallthru
        _
    $region12: #{tpu_custom_call.1} parent=5 // pred_fallthru
      _
    %p202 = scmp.lt.s32.totalorder %s11, 32
    // Predicated region
    $region21: #{tpu_custom_call.1} parent=5 // pred_check
      %p203 = pneg %p202
    $region22: #{tpu_custom_call.1} parent=5 // pred_check_branch
      %205 = sbr.rel (%p203) target = $region24
    $region23: #{tpu_custom_call.1} parent=5 // pred_region
      // Predicated region
      $region25: #{tpu_custom_call.1} parent=23 // pred_check
        %p206 = pneg %p45
      $region26: #{tpu_custom_call.1} parent=23 // pred_check_branch
        %208 = sbr.rel (%p206) target = $region28
      $region27: #{tpu_custom_call.1} parent=23 // pred_region
        %p209 = scmp.lt.s32.totalorder %s18, 1
        %s210 = scalar_select %p209, %s18, 1
        %p211 = scmp.lt.s32.totalorder %s19, 17
        %s212 = scalar_select %p211, %s19, 17
        %s213 = smul.addr %s212, 46
        %s214 = smul.addr %s210, 828
        %s215 = sadd.s32 %s213, %s214
        %s216 = smul.addr %s215, 4
        %s217 = scalar_lea.vmem %s0, %s216
      $region28: #{tpu_custom_call.1} parent=23 // pred_fallthru
        _
      // Predicated region
      $region29: #{tpu_custom_call.1} parent=23 // pred_check
        %p218 = pneg %p75
      $region30: #{tpu_custom_call.1} parent=23 // pred_check_branch
        %220 = sbr.rel (%p218) target = $region32
      $region31: #{tpu_custom_call.1} parent=23 // pred_region
        %s221 = sadd.s32 %s19, 1
        %p222 = scmp.lt.s32.totalorder %s18, 1
        %s223 = scalar_select %p222, %s18, 1
        %p224 = scmp.lt.s32.totalorder %s221, 17
        %s225 = scalar_select %p224, %s221, 17
        %s226 = smul.addr %s225, 46
        %s227 = smul.addr %s223, 828
        %s228 = sadd.s32 %s226, %s227
        %s229 = smul.addr %s228, 4
        %s230 = scalar_lea.vmem %s1, %s229
        %s231 = sadd.s32 %s19, 1
      $region32: #{tpu_custom_call.1} parent=23 // pred_fallthru
        _
      // Predicated region
      $region33: #{tpu_custom_call.1} parent=23 // pred_check
        %p232 = pneg %p105
      $region34: #{tpu_custom_call.1} parent=23 // pred_check_branch
        %234 = sbr.rel (%p232) target = $region36
      $region35: #{tpu_custom_call.1} parent=23 // pred_region
        %s235 = sadd.s32 %s19, 2
        %p236 = scmp.lt.s32.totalorder %s18, 1
        %s237 = scalar_select %p236, %s18, 1
        %p238 = scmp.lt.s32.totalorder %s235, 17
        %s239 = scalar_select %p238, %s235, 17
        %s240 = smul.addr %s239, 46
        %s241 = smul.addr %s237, 828
        %s242 = sadd.s32 %s240, %s241
        %s243 = smul.addr %s242, 4
        %s244 = scalar_lea.vmem %s2, %s243
        %s245 = sadd.s32 %s19, 2
      $region36: #{tpu_custom_call.1} parent=23 // pred_fallthru
        _
    $region24: #{tpu_custom_call.1} parent=5 // pred_fallthru
      _
    %p246 = scmp.le.s32.totalorder 1, %s11
    %p247 = scmp.lt.s32.totalorder %s11, 33
    %p248 = pnand %p246, %p247
    %p249 = pneg %p248
    // Predicated region
    $region37: #{tpu_custom_call.1} parent=5 // pred_check
      _
    $region38: #{tpu_custom_call.1} parent=5 // pred_check_branch
      %251 = sbr.rel (%p248) target = $region40
    $region39: #{tpu_custom_call.1} parent=5 // pred_region
      %s252 = ssub.s32 %s11, 1
      %p253 = scmp.lt.s32.totalorder %s20, 1
      %s254 = scalar_select %p253, %s20, 1
      %p255 = scmp.lt.s32.totalorder %s21, 17
      %s256 = scalar_select %p255, %s21, 17
      %s257 = smul.addr %s256, 46
      %s258 = smul.addr %s254, 828
      %s259 = sadd.s32 %s257, %s258
      %s260 = smul.addr %s259, 4
      %s261 = scalar_lea.vmem %s0, %s260
      %p262 = pneg %p51
      %p263 = pneg %p48
      %s264 = sadd.s32 %s21, 1
      %p265 = scmp.lt.s32.totalorder %s20, 1
      %s266 = scalar_select %p265, %s20, 1
      %p267 = scmp.lt.s32.totalorder %s264, 17
      %s268 = scalar_select %p267, %s264, 17
      %s269 = smul.addr %s268, 46
      %s270 = smul.addr %s266, 828
      %s271 = sadd.s32 %s269, %s270
      %s272 = smul.addr %s271, 4
      %s273 = scalar_lea.vmem %s1, %s272
      %p274 = pneg %p81
      %p275 = pneg %p78
      %s276 = sadd.s32 %s21, 2
      %p277 = scmp.lt.s32.totalorder %s20, 1
      %s278 = scalar_select %p277, %s20, 1
      %p279 = scmp.lt.s32.totalorder %s276, 17
      %s280 = scalar_select %p279, %s276, 17
      %s281 = smul.addr %s280, 46
      %s282 = smul.addr %s278, 828
      %s283 = sadd.s32 %s281, %s282
      %s284 = smul.addr %s283, 4
      %s285 = scalar_lea.vmem %s2, %s284
      %p286 = pneg %p111
      %p287 = pneg %p108
      %p288 = pneg %p132
      %p289 = pneg %p129
      %p290 = pneg %p153
      %p291 = pneg %p150
      %p292 = pneg %p181
      %p293 = pneg %p178
      %p294 = scmp.lt.s32.totalorder %s20, 1
      %s295 = scalar_select %p294, %s20, 1
      %p296 = scmp.lt.s32.totalorder %s21, 15
      %s297 = scalar_select %p296, %s21, 15
      %s298 = smul.addr %s297, 41
      %s299 = smul.addr %s295, 656
      %s300 = sadd.s32 %s298, %s299
      %s301 = smul.addr %s300, 4
      %s302 = scalar_lea.vmem %s5, %s301
      %p303 = scmp.lt.s32.totalorder %s20, 1
      %s304 = scalar_select %p303, %s20, 1
      %p305 = scmp.lt.s32.totalorder %s21, 17
      %s306 = scalar_select %p305, %s21, 17
      %s307 = smul.addr %s306, 46
      %s308 = smul.addr %s304, 828
      %s309 = sadd.s32 %s307, %s308
      %s310 = smul.addr %s309, 4
      %s311 = scalar_lea.vmem %s0, %s310
      %s312 = sadd.s32 %s21, 1
      %p313 = scmp.lt.s32.totalorder %s20, 1
      %s314 = scalar_select %p313, %s20, 1
      %p315 = scmp.lt.s32.totalorder %s312, 17
      %s316 = scalar_select %p315, %s312, 17
      %s317 = smul.addr %s316, 46
      %s318 = smul.addr %s314, 828
      %s319 = sadd.s32 %s317, %s318
      %s320 = smul.addr %s319, 4
      %s321 = scalar_lea.vmem %s1, %s320
      %s322 = sadd.s32 %s21, 1
      %s323 = sadd.s32 %s21, 2
      %p324 = scmp.lt.s32.totalorder %s20, 1
      %s325 = scalar_select %p324, %s20, 1
      %p326 = scmp.lt.s32.totalorder %s323, 17
      %s327 = scalar_select %p326, %s323, 17
      %s328 = smul.addr %s327, 46
      %s329 = smul.addr %s325, 828
      %s330 = sadd.s32 %s328, %s329
      %s331 = smul.addr %s330, 4
      %s332 = scalar_lea.vmem %s2, %s331
      %s333 = sadd.s32 %s21, 2
      %p334 = scmp.lt.s32.totalorder %s20, 1
      %s335 = scalar_select %p334, %s20, 1
      %p336 = scmp.lt.s32.totalorder %s21, 15
      %s337 = scalar_select %p336, %s21, 15
      %s338 = smul.addr %s337, 41
      %s339 = smul.addr %s335, 656
      %s340 = sadd.s32 %s338, %s339
      %s341 = smul.addr %s340, 4
      %s342 = scalar_lea.vmem %s5, %s341
      %v344 = vld [vmem:[%s311] sm:$0xf]
      %v345 = vld [vmem:[%s311 + $0x4] sm:$0xf]
      %v346 = vld [vmem:[%s311 + $0x8] sm:$0xf]
      %v347 = vld [vmem:[%s311 + $0xc] sm:$0xf]
      %v348 = vld [vmem:[%s311 + $0x10] sm:$0xf]
      %v349 = vld [vmem:[%s311 + $0x14] sm:$0xf]
      %v350 = vld [vmem:[%s311 + $0x18] sm:$0xf]
      %v351 = vld [vmem:[%s311 + $0x1c] sm:$0xf]
      %v352 = vld [vmem:[%s311 + $0x20] sm:$0xf]
      %v353 = vld [vmem:[%s311 + $0x24] sm:$0xf]
      %v354 = vld [vmem:[%s311 + $0x28] sm:$0xf]
      %v355 = vld [vmem:[%s311 + $0x2c] sm:$0xf]
      %v356 = vld [vmem:[%s311 + $0x30] sm:$0xf]
      %v357 = vld [vmem:[%s311 + $0x34] sm:$0xf]
      %v358 = vld [vmem:[%s311 + $0x38] sm:$0xf]
      %v359 = vld [vmem:[%s311 + $0x3c] sm:$0xf]
      %v360 = vld [vmem:[%s311 + $0x40] sm:$0xf]
      %v361 = vld [vmem:[%s311 + $0x44] sm:$0xf]
      %v362 = vld [vmem:[%s311 + $0x48] sm:$0xf]
      %v363 = vld [vmem:[%s311 + $0x4c] sm:$0xf]
      %v364 = vld [vmem:[%s311 + $0x50] sm:$0xf]
      %v365 = vld [vmem:[%s311 + $0x54] sm:$0xf]
      %v366 = vld [vmem:[%s311 + $0x58] sm:$0xf]
      %v367 = vld [vmem:[%s311 + $0x5c] sm:$0xf]
      %v368 = vld [vmem:[%s311 + $0x60] sm:$0xf]
      %v369 = vld [vmem:[%s311 + $0x64] sm:$0xf]
      %v370 = vld [vmem:[%s311 + $0x68] sm:$0xf]
      %v371 = vld [vmem:[%s311 + $0x6c] sm:$0xf]
      %v372 = vld [vmem:[%s311 + $0x70] sm:$0xf]
      %v373 = vld [vmem:[%s311 + $0x74] sm:$0xf]
      %v374 = vld [vmem:[%s311 + $0x78] sm:$0xf]
      %v375 = vld [vmem:[%s311 + $0x7c] sm:$0xf]
      %v376 = vld [vmem:[%s311 + $0x80] sm:$0xf]
      %v377 = vld [vmem:[%s311 + $0x84] sm:$0xf]
      %v378 = vld [vmem:[%s311 + $0x88] sm:$0xf]
      %v379 = vld [vmem:[%s311 + $0x8c] sm:$0xf]
      %v380 = vld [vmem:[%s311 + $0x90] sm:$0xf]
      %v381 = vld [vmem:[%s311 + $0x94] sm:$0xf]
      %v382 = vld [vmem:[%s311 + $0x98] sm:$0xf]
      %v383 = vld [vmem:[%s311 + $0x9c] sm:$0xf]
      %v384 = vld [vmem:[%s311 + $0xa0] sm:$0x3]
      %v385 = vld [vmem:[%s3] sm:$0xf]
      %v386 = vld [vmem:[%s311 + $0xa0] sm:$0x7]
      %s387 = scalar_lea.vmem %s3, 4
      %v388 = vld [vmem:[%s387] sm:$0xf]
      %v430 = vunpack.c.l.b16 %v344
      %v431 = vunpack.c.l.b16 %v345
      %v432 = vunpack.c.l.b16 %v346
      %v433 = vunpack.c.l.b16 %v347
      %v434 = vunpack.c.l.b16 %v348
      %v435 = vunpack.c.l.b16 %v349
      %v436 = vunpack.c.l.b16 %v350
      %v437 = vunpack.c.l.b16 %v351
      %v438 = vunpack.c.l.b16 %v352
      %v439 = vunpack.c.l.b16 %v353
      %v440 = vunpack.c.l.b16 %v354
      %v441 = vunpack.c.l.b16 %v355
      %v442 = vunpack.c.l.b16 %v356
      %v443 = vunpack.c.l.b16 %v357
      %v444 = vunpack.c.l.b16 %v358
      %v445 = vunpack.c.l.b16 %v359
      %v446 = vunpack.c.l.b16 %v360
      %v447 = vunpack.c.l.b16 %v361
      %v448 = vunpack.c.l.b16 %v362
      %v449 = vunpack.c.l.b16 %v363
      %v450 = vunpack.c.l.b16 %v364
      %v451 = vunpack.c.l.b16 %v365
      %v452 = vunpack.c.l.b16 %v366
      %v453 = vunpack.c.l.b16 %v367
      %v454 = vunpack.c.l.b16 %v368
      %v455 = vunpack.c.l.b16 %v369
      %v456 = vunpack.c.l.b16 %v370
      %v457 = vunpack.c.l.b16 %v371
      %v458 = vunpack.c.l.b16 %v372
      %v459 = vunpack.c.l.b16 %v373
      %v460 = vunpack.c.l.b16 %v374
      %v461 = vunpack.c.l.b16 %v375
      %v462 = vunpack.c.l.b16 %v376
      %v463 = vunpack.c.l.b16 %v377
      %v464 = vunpack.c.l.b16 %v378
      %v465 = vunpack.c.l.b16 %v379
      %v466 = vunpack.c.l.b16 %v380
      %v467 = vunpack.c.l.b16 %v381
      %v468 = vunpack.c.l.b16 %v382
      %v469 = vunpack.c.l.b16 %v383
      %v470 = vunpack.c.l.b16 %v386
      %v471 = vpack.c.b16 %v431, %v430
      %v472 = vpack.c.b16 %v433, %v432
      %v473 = vpack.c.b16 %v435, %v434
      %v474 = vpack.c.b16 %v437, %v436
      %v475 = vpack.c.b16 %v439, %v438
      %v476 = vpack.c.b16 %v441, %v440
      %v477 = vpack.c.b16 %v443, %v442
      %v478 = vpack.c.b16 %v445, %v444
      %v479 = vpack.c.b16 %v447, %v446
      %v480 = vpack.c.b16 %v449, %v448
      %v481 = vpack.c.b16 %v451, %v450
      %v482 = vpack.c.b16 %v453, %v452
      %v483 = vpack.c.b16 %v455, %v454
      %v484 = vpack.c.b16 %v457, %v456
      %v485 = vpack.c.b16 %v459, %v458
      %v486 = vpack.c.b16 %v461, %v460
      %v487 = vpack.c.b16 %v463, %v462
      %v488 = vpack.c.b16 %v465, %v464
      %v489 = vpack.c.b16 %v467, %v466
      %v490 = vpack.c.b16 %v469, %v468
      %v491 = vpack.c.b16 %v470, %v470
      %vm492 = vsmask.f32 7424
      %v494 = vshrl.u32 %v471, 16
      %v496 = vshll.u32 %v471, 16
      %v498 = vrot.slane %v496, 1
      %v499 = vor.u32 %v494, %v498
      %v501 = vshll.u32 %v472, 16
      %v503 = vrot.slane %v501, 1
      %v504 = vsel %vm492, %v499, %v503
      %v505 = vshrl.u32 %v472, 16
      %v507 = vor.u32 %v505, %v503
      %v509 = vshll.u32 %v473, 16
      %v511 = vrot.slane %v509, 1
      %v512 = vsel %vm492, %v507, %v511
      %v513 = vshrl.u32 %v473, 16
      %v515 = vor.u32 %v513, %v511
      %v517 = vshll.u32 %v474, 16
      %v519 = vrot.slane %v517, 1
      %v520 = vsel %vm492, %v515, %v519
      %v521 = vshrl.u32 %v474, 16
      %v523 = vor.u32 %v521, %v519
      %v525 = vshll.u32 %v475, 16
      %v527 = vrot.slane %v525, 1
      %v528 = vsel %vm492, %v523, %v527
      %v529 = vshrl.u32 %v475, 16
      %v531 = vor.u32 %v529, %v527
      %v533 = vshll.u32 %v476, 16
      %v535 = vrot.slane %v533, 1
      %v536 = vsel %vm492, %v531, %v535
      %v537 = vshrl.u32 %v476, 16
      %v539 = vor.u32 %v537, %v535
      %v541 = vshll.u32 %v477, 16
      %v543 = vrot.slane %v541, 1
      %v544 = vsel %vm492, %v539, %v543
      %v545 = vshrl.u32 %v477, 16
      %v547 = vor.u32 %v545, %v543
      %v549 = vshll.u32 %v478, 16
      %v551 = vrot.slane %v549, 1
      %v552 = vsel %vm492, %v547, %v551
      %v553 = vshrl.u32 %v478, 16
      %v555 = vor.u32 %v553, %v551
      %v557 = vshll.u32 %v479, 16
      %v559 = vrot.slane %v557, 1
      %v560 = vsel %vm492, %v555, %v559
      %v561 = vshrl.u32 %v479, 16
      %v563 = vor.u32 %v561, %v559
      %v565 = vshll.u32 %v480, 16
      %v567 = vrot.slane %v565, 1
      %v568 = vsel %vm492, %v563, %v567
      %v569 = vshrl.u32 %v480, 16
      %v571 = vor.u32 %v569, %v567
      %v573 = vshll.u32 %v481, 16
      %v575 = vrot.slane %v573, 1
      %v576 = vsel %vm492, %v571, %v575
      %v577 = vshrl.u32 %v481, 16
      %v579 = vor.u32 %v577, %v575
      %v581 = vshll.u32 %v482, 16
      %v583 = vrot.slane %v581, 1
      %v584 = vsel %vm492, %v579, %v583
      %v585 = vshrl.u32 %v482, 16
      %v587 = vor.u32 %v585, %v583
      %v589 = vshll.u32 %v483, 16
      %v591 = vrot.slane %v589, 1
      %v592 = vsel %vm492, %v587, %v591
      %v593 = vshrl.u32 %v483, 16
      %v595 = vor.u32 %v593, %v591
      %v597 = vshll.u32 %v484, 16
      %v599 = vrot.slane %v597, 1
      %v600 = vsel %vm492, %v595, %v599
      %v601 = vshrl.u32 %v484, 16
      %v603 = vor.u32 %v601, %v599
      %v605 = vshll.u32 %v485, 16
      %v607 = vrot.slane %v605, 1
      %v608 = vsel %vm492, %v603, %v607
      %v609 = vshrl.u32 %v485, 16
      %v611 = vor.u32 %v609, %v607
      %v613 = vshll.u32 %v486, 16
      %v615 = vrot.slane %v613, 1
      %v616 = vsel %vm492, %v611, %v615
      %v617 = vshrl.u32 %v486, 16
      %v619 = vor.u32 %v617, %v615
      %v621 = vshll.u32 %v487, 16
      %v623 = vrot.slane %v621, 1
      %v624 = vsel %vm492, %v619, %v623
      %v625 = vshrl.u32 %v487, 16
      %v627 = vor.u32 %v625, %v623
      %v629 = vshll.u32 %v488, 16
      %v631 = vrot.slane %v629, 1
      %v632 = vsel %vm492, %v627, %v631
      %v633 = vshrl.u32 %v488, 16
      %v635 = vor.u32 %v633, %v631
      %v637 = vshll.u32 %v489, 16
      %v639 = vrot.slane %v637, 1
      %v640 = vsel %vm492, %v635, %v639
      %v641 = vshrl.u32 %v489, 16
      %v643 = vor.u32 %v641, %v639
      %v645 = vshll.u32 %v490, 16
      %v647 = vrot.slane %v645, 1
      %v648 = vsel %vm492, %v643, %v647
      %v649 = vshrl.u32 %v490, 16
      %v651 = vor.u32 %v649, %v647
      %v653 = vshll.u32 %v491, 16
      %v655 = vrot.slane %v653, 1
      %v656 = vsel %vm492, %v651, %v655
      %v657 = vshrl.u32 %v491, 16
      %v659 = vor.u32 %v657, %v655
      %vm660 = vcmask 64512
      %v662 = vsel %vm660, %v504, 0
      %v665 = vsel %vm660, %v512, 0
      %v668 = vsel %vm660, %v520, 0
      %v671 = vsel %vm660, %v528, 0
      %v674 = vsel %vm660, %v536, 0
      %v677 = vsel %vm660, %v544, 0
      %v680 = vsel %vm660, %v552, 0
      %v683 = vsel %vm660, %v560, 0
      %v686 = vsel %vm660, %v568, 0
      %v689 = vsel %vm660, %v576, 0
      %v692 = vsel %vm660, %v584, 0
      %v695 = vsel %vm660, %v592, 0
      %v698 = vsel %vm660, %v600, 0
      %v701 = vsel %vm660, %v608, 0
      %v704 = vsel %vm660, %v616, 0
      %v707 = vsel %vm660, %v624, 0
      %v710 = vsel %vm660, %v632, 0
      %v713 = vsel %vm660, %v640, 0
      %v716 = vsel %vm660, %v648, 0
      %v719 = vsel %vm660, %v656, 0
      %v722 = vsel %vm660, %v659, 0
      %vm724 = vcmask 1043456
      %v726 = vsel %vm724, %v388, 0
      %728 = vmatprep.subr.bf16.mxu0 0
      %729 = vmatpush1.bf16.msra.mxu0 0
      %730 = vmatprep.subr.bf16.mxu0 0
      %731 = vmatpush1.bf16.msra.mxu0 0
      %732 = vmatprep.subr.bf16.mxu0 0
      %733 = vmatpush1.bf16.msra.mxu0 0
      %734 = vmatprep.subr.bf16.mxu0 0
      %735 = vmatpush1.bf16.msra.mxu0 0
      %736 = vmatprep.subr.bf16.mxu0 0
      %737 = vmatpush1.bf16.msra.mxu0 0
      %738 = vmatprep.subr.bf16.mxu0 0
      %739 = vmatpush1.bf16.msra.mxu0 0
      %740 = vmatprep.subr.bf16.mxu0 0
      %741 = vmatpush1.bf16.msra.mxu0 0
      %742 = vmatprep.subr.bf16.mxu0 0
      %743 = vmatpush1.bf16.msra.mxu0 %v726
      %744 = vmatprep.subr.bf16.mxu0 0
      %745 = vmatpush2.bf16.msra.mxu0 0
      %746 = vmatprep.subr.bf16.mxu0 0
      %747 = vmatpush2.bf16.msra.mxu0 0
      %748 = vmatprep.subr.bf16.mxu0 0
      %749 = vmatpush2.bf16.msra.mxu0 0
      %750 = vmatprep.subr.bf16.mxu0 0
      %751 = vmatpush2.bf16.msra.mxu0 0
      %752 = vmatprep.subr.bf16.mxu0 0
      %753 = vmatpush2.bf16.msra.mxu0 0
      %754 = vmatprep.subr.bf16.mxu0 0
      %755 = vmatpush2.bf16.msra.mxu0 0
      %756 = vmatprep.subr.bf16.mxu0 0
      %757 = vmatpush2.bf16.msra.mxu0 0
      %758 = vmatprep.subr.bf16.mxu0 0
      %759 = vmatpush2.bf16.msra.mxu0 0
      %760 = vmatprep.mubr.bf16.mxu0 0
      %761 = vmatmul.mubr.bf16.gmra.mxu0 %v662
      %v762 = vpop.f32.mrf.mxu0
      %v763 = vadd.f32 0.0, %v762
      %v764 = vpop.f32.mrf.mxu0
      %v765 = vpop.f32.mrf.mxu0
      %v766 = vadd.f32 0.0, %v765
      %v767 = vpop.f32.mrf.mxu0
      %768 = vmatprep.mubr.bf16.mxu0 0
      %769 = vmatmul.mubr.bf16.gmra.mxu0 %v665
      %v770 = vpop.f32.mrf.mxu0
      %v771 = vadd.f32 0.0, %v770
      %v772 = vpop.f32.mrf.mxu0
      %v773 = vpop.f32.mrf.mxu0
      %v774 = vadd.f32 0.0, %v773
      %v775 = vpop.f32.mrf.mxu0
      %776 = vmatprep.mubr.bf16.mxu0 0
      %777 = vmatmul.mubr.bf16.gmra.mxu0 %v668
      %v778 = vpop.f32.mrf.mxu0
      %v779 = vadd.f32 0.0, %v778
      %v780 = vpop.f32.mrf.mxu0
      %v781 = vpop.f32.mrf.mxu0
      %v782 = vadd.f32 0.0, %v781
      %v783 = vpop.f32.mrf.mxu0
      %784 = vmatprep.mubr.bf16.mxu0 0
      %785 = vmatmul.mubr.bf16.gmra.mxu0 %v671
      %v786 = vpop.f32.mrf.mxu0
      %v787 = vadd.f32 0.0, %v786
      %v788 = vpop.f32.mrf.mxu0
      %v789 = vpop.f32.mrf.mxu0
      %v790 = vadd.f32 0.0, %v789
      %v791 = vpop.f32.mrf.mxu0
      %792 = vmatprep.mubr.bf16.mxu0 0
      %793 = vmatmul.mubr.bf16.gmra.mxu0 %v674
      %v794 = vpop.f32.mrf.mxu0
      %v795 = vadd.f32 0.0, %v794
      %v796 = vpop.f32.mrf.mxu0
      %v797 = vpop.f32.mrf.mxu0
      %v798 = vadd.f32 0.0, %v797
      %v799 = vpop.f32.mrf.mxu0
      %800 = vmatprep.mubr.bf16.mxu0 0
      %801 = vmatmul.mubr.bf16.gmra.mxu0 %v677
      %v802 = vpop.f32.mrf.mxu0
      %v803 = vadd.f32 0.0, %v802
      %v804 = vpop.f32.mrf.mxu0
      %v805 = vpop.f32.mrf.mxu0
      %v806 = vadd.f32 0.0, %v805
      %v807 = vpop.f32.mrf.mxu0
      %808 = vmatprep.mubr.bf16.mxu0 0
      %809 = vmatmul.mubr.bf16.gmra.mxu0 %v680
      %v810 = vpop.f32.mrf.mxu0
      %v811 = vadd.f32 0.0, %v810
      %v812 = vpop.f32.mrf.mxu0
      %v813 = vpop.f32.mrf.mxu0
      %v814 = vadd.f32 0.0, %v813
      %v815 = vpop.f32.mrf.mxu0
      %816 = vmatprep.mubr.bf16.mxu0 0
      %817 = vmatmul.mubr.bf16.gmra.mxu0 %v683
      %v818 = vpop.f32.mrf.mxu0
      %v819 = vadd.f32 0.0, %v818
      %v820 = vpop.f32.mrf.mxu0
      %v821 = vpop.f32.mrf.mxu0
      %v822 = vadd.f32 0.0, %v821
      %v823 = vpop.f32.mrf.mxu0
      %824 = vmatprep.mubr.bf16.mxu0 0
      %825 = vmatmul.mubr.bf16.gmra.mxu0 %v686
      %v826 = vpop.f32.mrf.mxu0
      %v827 = vadd.f32 0.0, %v826
      %v828 = vpop.f32.mrf.mxu0
      %v829 = vpop.f32.mrf.mxu0
      %v830 = vadd.f32 0.0, %v829
      %v831 = vpop.f32.mrf.mxu0
      %832 = vmatprep.mubr.bf16.mxu0 0
      %833 = vmatmul.mubr.bf16.gmra.mxu0 %v689
      %v834 = vpop.f32.mrf.mxu0
      %v835 = vadd.f32 0.0, %v834
      %v836 = vpop.f32.mrf.mxu0
      %v837 = vpop.f32.mrf.mxu0
      %v838 = vadd.f32 0.0, %v837
      %v839 = vpop.f32.mrf.mxu0
      %840 = vmatprep.mubr.bf16.mxu0 0
      %841 = vmatmul.mubr.bf16.gmra.mxu0 %v692
      %v842 = vpop.f32.mrf.mxu0
      %v843 = vadd.f32 0.0, %v842
      %v844 = vpop.f32.mrf.mxu0
      %v845 = vpop.f32.mrf.mxu0
      %v846 = vadd.f32 0.0, %v845
      %v847 = vpop.f32.mrf.mxu0
      %848 = vmatprep.mubr.bf16.mxu0 0
      %849 = vmatmul.mubr.bf16.gmra.mxu0 %v695
      %v850 = vpop.f32.mrf.mxu0
      %v851 = vadd.f32 0.0, %v850
      %v852 = vpop.f32.mrf.mxu0
      %v853 = vpop.f32.mrf.mxu0
      %v854 = vadd.f32 0.0, %v853
      %v855 = vpop.f32.mrf.mxu0
      %856 = vmatprep.mubr.bf16.mxu0 0
      %857 = vmatmul.mubr.bf16.gmra.mxu0 %v698
      %v858 = vpop.f32.mrf.mxu0
      %v859 = vadd.f32 0.0, %v858
      %v860 = vpop.f32.mrf.mxu0
      %v861 = vpop.f32.mrf.mxu0
      %v862 = vadd.f32 0.0, %v861
      %v863 = vpop.f32.mrf.mxu0
      %864 = vmatprep.mubr.bf16.mxu0 0
      %865 = vmatmul.mubr.bf16.gmra.mxu0 %v701
      %v866 = vpop.f32.mrf.mxu0
      %v867 = vadd.f32 0.0, %v866
      %v868 = vpop.f32.mrf.mxu0
      %v869 = vpop.f32.mrf.mxu0
      %v870 = vadd.f32 0.0, %v869
      %v871 = vpop.f32.mrf.mxu0
      %872 = vmatprep.mubr.bf16.mxu0 0
      %873 = vmatmul.mubr.bf16.gmra.mxu0 %v704
      %v874 = vpop.f32.mrf.mxu0
      %v875 = vadd.f32 0.0, %v874
      %v876 = vpop.f32.mrf.mxu0
      %v877 = vpop.f32.mrf.mxu0
      %v878 = vadd.f32 0.0, %v877
      %v879 = vpop.f32.mrf.mxu0
      %880 = vmatprep.mubr.bf16.mxu0 0
      %881 = vmatmul.mubr.bf16.gmra.mxu0 %v707
      %v882 = vpop.f32.mrf.mxu0
      %v883 = vadd.f32 0.0, %v882
      %v884 = vpop.f32.mrf.mxu0
      %v885 = vpop.f32.mrf.mxu0
      %v886 = vadd.f32 0.0, %v885
      %v887 = vpop.f32.mrf.mxu0
      %888 = vmatprep.mubr.bf16.mxu0 0
      %889 = vmatmul.mubr.bf16.gmra.mxu0 %v710
      %v890 = vpop.f32.mrf.mxu0
      %v891 = vadd.f32 0.0, %v890
      %v892 = vpop.f32.mrf.mxu0
      %v893 = vpop.f32.mrf.mxu0
      %v894 = vadd.f32 0.0, %v893
      %v895 = vpop.f32.mrf.mxu0
      %896 = vmatprep.mubr.bf16.mxu0 0
      %897 = vmatmul.mubr.bf16.gmra.mxu0 %v713
      %v898 = vpop.f32.mrf.mxu0
      %v899 = vadd.f32 0.0, %v898
      %v900 = vpop.f32.mrf.mxu0
      %v901 = vpop.f32.mrf.mxu0
      %v902 = vadd.f32 0.0, %v901
      %v903 = vpop.f32.mrf.mxu0
      %904 = vmatprep.mubr.bf16.mxu0 0
      %905 = vmatmul.mubr.bf16.gmra.mxu0 %v716
      %v906 = vpop.f32.mrf.mxu0
      %v907 = vadd.f32 0.0, %v906
      %v908 = vpop.f32.mrf.mxu0
      %v909 = vpop.f32.mrf.mxu0
      %v910 = vadd.f32 0.0, %v909
      %v911 = vpop.f32.mrf.mxu0
      %912 = vmatprep.mubr.bf16.mxu0 0
      %913 = vmatmul.mubr.bf16.gmra.mxu0 %v719
      %v914 = vpop.f32.mrf.mxu0
      %v915 = vadd.f32 0.0, %v914
      %v916 = vpop.f32.mrf.mxu0
      %v917 = vpop.f32.mrf.mxu0
      %v918 = vadd.f32 0.0, %v917
      %v919 = vpop.f32.mrf.mxu0
      %920 = vmatprep.mubr.bf16.mxu0 0
      %921 = vmatmul.mubr.bf16.gmra.mxu0 %v722
      %v922 = vpop.f32.mrf.mxu0
      %v923 = vadd.f32 0.0, %v922
      %v924 = vpop.f32.mrf.mxu0
      %v925 = vpop.f32.mrf.mxu0
      %v926 = vpop.f32.mrf.mxu0
      %927 = vdwg.mxu0
      %v929 = vunpack.c.l.b16 %v384
      %v930 = vpack.c.b16 %v929, %v929
      %v931 = vsel %vm660, %v471, 0
      %v933 = vsel %vm660, %v472, 0
      %v935 = vsel %vm660, %v473, 0
      %v937 = vsel %vm660, %v474, 0
      %v939 = vsel %vm660, %v475, 0
      %v941 = vsel %vm660, %v476, 0
      %v943 = vsel %vm660, %v477, 0
      %v945 = vsel %vm660, %v478, 0
      %v947 = vsel %vm660, %v479, 0
      %v949 = vsel %vm660, %v480, 0
      %v951 = vsel %vm660, %v481, 0
      %v953 = vsel %vm660, %v482, 0
      %v955 = vsel %vm660, %v483, 0
      %v957 = vsel %vm660, %v484, 0
      %v959 = vsel %vm660, %v485, 0
      %v961 = vsel %vm660, %v486, 0
      %v963 = vsel %vm660, %v487, 0
      %v965 = vsel %vm660, %v488, 0
      %v967 = vsel %vm660, %v489, 0
      %v969 = vsel %vm660, %v490, 0
      %v972 = vsel %vm660, %v930, 0
      %v975 = vsel %vm724, %v385, 0
      %977 = vmatprep.subr.bf16.mxu0 0
      %978 = vmatpush1.bf16.msra.mxu0 0
      %979 = vmatprep.subr.bf16.mxu0 0
      %980 = vmatpush1.bf16.msra.mxu0 0
      %981 = vmatprep.subr.bf16.mxu0 0
      %982 = vmatpush1.bf16.msra.mxu0 0
      %983 = vmatprep.subr.bf16.mxu0 0
      %984 = vmatpush1.bf16.msra.mxu0 0
      %985 = vmatprep.subr.bf16.mxu0 0
      %986 = vmatpush1.bf16.msra.mxu0 0
      %987 = vmatprep.subr.bf16.mxu0 0
      %988 = vmatpush1.bf16.msra.mxu0 0
      %989 = vmatprep.subr.bf16.mxu0 0
      %990 = vmatpush1.bf16.msra.mxu0 0
      %991 = vmatprep.subr.bf16.mxu0 0
      %992 = vmatpush1.bf16.msra.mxu0 %v975
      %993 = vmatprep.subr.bf16.mxu0 0
      %994 = vmatpush2.bf16.msra.mxu0 0
      %995 = vmatprep.subr.bf16.mxu0 0
      %996 = vmatpush2.bf16.msra.mxu0 0
      %997 = vmatprep.subr.bf16.mxu0 0
      %998 = vmatpush2.bf16.msra.mxu0 0
      %999 = vmatprep.subr.bf16.mxu0 0
      %1000 = vmatpush2.bf16.msra.mxu0 0
      %1001 = vmatprep.subr.bf16.mxu0 0
      %1002 = vmatpush2.bf16.msra.mxu0 0
      %1003 = vmatprep.subr.bf16.mxu0 0
      %1004 = vmatpush2.bf16.msra.mxu0 0
      %1005 = vmatprep.subr.bf16.mxu0 0
      %1006 = vmatpush2.bf16.msra.mxu0 0
      %1007 = vmatprep.subr.bf16.mxu0 0
      %1008 = vmatpush2.bf16.msra.mxu0 0
      %1009 = vmatprep.mubr.bf16.mxu0 0
      %1010 = vmatmul.mubr.bf16.gmra.mxu0 %v931
      %v1011 = vpop.f32.mrf.mxu0
      %v1012 = vadd.f32 %v763, %v1011
      %v1013 = vpop.f32.mrf.mxu0
      %v1014 = vpop.f32.mrf.mxu0
      %v1015 = vadd.f32 %v766, %v1014
      %v1016 = vpop.f32.mrf.mxu0
      %1017 = vmatprep.mubr.bf16.mxu0 0
      %1018 = vmatmul.mubr.bf16.gmra.mxu0 %v933
      %v1019 = vpop.f32.mrf.mxu0
      %v1020 = vadd.f32 %v771, %v1019
      %v1021 = vpop.f32.mrf.mxu0
      %v1022 = vpop.f32.mrf.mxu0
      %v1023 = vadd.f32 %v774, %v1022
      %v1024 = vpop.f32.mrf.mxu0
      %1025 = vmatprep.mubr.bf16.mxu0 0
      %1026 = vmatmul.mubr.bf16.gmra.mxu0 %v935
      %v1027 = vpop.f32.mrf.mxu0
      %v1028 = vadd.f32 %v779, %v1027
      %v1029 = vpop.f32.mrf.mxu0
      %v1030 = vpop.f32.mrf.mxu0
      %v1031 = vadd.f32 %v782, %v1030
      %v1032 = vpop.f32.mrf.mxu0
      %1033 = vmatprep.mubr.bf16.mxu0 0
      %1034 = vmatmul.mubr.bf16.gmra.mxu0 %v937
      %v1035 = vpop.f32.mrf.mxu0
      %v1036 = vadd.f32 %v787, %v1035
      %v1037 = vpop.f32.mrf.mxu0
      %v1038 = vpop.f32.mrf.mxu0
      %v1039 = vadd.f32 %v790, %v1038
      %v1040 = vpop.f32.mrf.mxu0
      %1041 = vmatprep.mubr.bf16.mxu0 0
      %1042 = vmatmul.mubr.bf16.gmra.mxu0 %v939
      %v1043 = vpop.f32.mrf.mxu0
      %v1044 = vadd.f32 %v795, %v1043
      %v1045 = vpop.f32.mrf.mxu0
      %v1046 = vpop.f32.mrf.mxu0
      %v1047 = vadd.f32 %v798, %v1046
      %v1048 = vpop.f32.mrf.mxu0
      %1049 = vmatprep.mubr.bf16.mxu0 0
      %1050 = vmatmul.mubr.bf16.gmra.mxu0 %v941
      %v1051 = vpop.f32.mrf.mxu0
      %v1052 = vadd.f32 %v803, %v1051
      %v1053 = vpop.f32.mrf.mxu0
      %v1054 = vpop.f32.mrf.mxu0
      %v1055 = vadd.f32 %v806, %v1054
      %v1056 = vpop.f32.mrf.mxu0
      %1057 = vmatprep.mubr.bf16.mxu0 0
      %1058 = vmatmul.mubr.bf16.gmra.mxu0 %v943
      %v1059 = vpop.f32.mrf.mxu0
      %v1060 = vadd.f32 %v811, %v1059
      %v1061 = vpop.f32.mrf.mxu0
      %v1062 = vpop.f32.mrf.mxu0
      %v1063 = vadd.f32 %v814, %v1062
      %v1064 = vpop.f32.mrf.mxu0
      %1065 = vmatprep.mubr.bf16.mxu0 0
      %1066 = vmatmul.mubr.bf16.gmra.mxu0 %v945
      %v1067 = vpop.f32.mrf.mxu0
      %v1068 = vadd.f32 %v819, %v1067
      %v1069 = vpop.f32.mrf.mxu0
      %v1070 = vpop.f32.mrf.mxu0
      %v1071 = vadd.f32 %v822, %v1070
      %v1072 = vpop.f32.mrf.mxu0
      %1073 = vmatprep.mubr.bf16.mxu0 0
      %1074 = vmatmul.mubr.bf16.gmra.mxu0 %v947
      %v1075 = vpop.f32.mrf.mxu0
      %v1076 = vadd.f32 %v827, %v1075
      %v1077 = vpop.f32.mrf.mxu0
      %v1078 = vpop.f32.mrf.mxu0
      %v1079 = vadd.f32 %v830, %v1078
      %v1080 = vpop.f32.mrf.mxu0
      %1081 = vmatprep.mubr.bf16.mxu0 0
      %1082 = vmatmul.mubr.bf16.gmra.mxu0 %v949
      %v1083 = vpop.f32.mrf.mxu0
      %v1084 = vadd.f32 %v835, %v1083
      %v1085 = vpop.f32.mrf.mxu0
      %v1086 = vpop.f32.mrf.mxu0
      %v1087 = vadd.f32 %v838, %v1086
      %v1088 = vpop.f32.mrf.mxu0
      %1089 = vmatprep.mubr.bf16.mxu0 0
      %1090 = vmatmul.mubr.bf16.gmra.mxu0 %v951
      %v1091 = vpop.f32.mrf.mxu0
      %v1092 = vadd.f32 %v843, %v1091
      %v1093 = vpop.f32.mrf.mxu0
      %v1094 = vpop.f32.mrf.mxu0
      %v1095 = vadd.f32 %v846, %v1094
      %v1096 = vpop.f32.mrf.mxu0
      %1097 = vmatprep.mubr.bf16.mxu0 0
      %1098 = vmatmul.mubr.bf16.gmra.mxu0 %v953
      %v1099 = vpop.f32.mrf.mxu0
      %v1100 = vadd.f32 %v851, %v1099
      %v1101 = vpop.f32.mrf.mxu0
      %v1102 = vpop.f32.mrf.mxu0
      %v1103 = vadd.f32 %v854, %v1102
      %v1104 = vpop.f32.mrf.mxu0
      %1105 = vmatprep.mubr.bf16.mxu0 0
      %1106 = vmatmul.mubr.bf16.gmra.mxu0 %v955
      %v1107 = vpop.f32.mrf.mxu0
      %v1108 = vadd.f32 %v859, %v1107
      %v1109 = vpop.f32.mrf.mxu0
      %v1110 = vpop.f32.mrf.mxu0
      %v1111 = vadd.f32 %v862, %v1110
      %v1112 = vpop.f32.mrf.mxu0
      %1113 = vmatprep.mubr.bf16.mxu0 0
      %1114 = vmatmul.mubr.bf16.gmra.mxu0 %v957
      %v1115 = vpop.f32.mrf.mxu0
      %v1116 = vadd.f32 %v867, %v1115
      %v1117 = vpop.f32.mrf.mxu0
      %v1118 = vpop.f32.mrf.mxu0
      %v1119 = vadd.f32 %v870, %v1118
      %v1120 = vpop.f32.mrf.mxu0
      %1121 = vmatprep.mubr.bf16.mxu0 0
      %1122 = vmatmul.mubr.bf16.gmra.mxu0 %v959
      %v1123 = vpop.f32.mrf.mxu0
      %v1124 = vadd.f32 %v875, %v1123
      %v1125 = vpop.f32.mrf.mxu0
      %v1126 = vpop.f32.mrf.mxu0
      %v1127 = vadd.f32 %v878, %v1126
      %v1128 = vpop.f32.mrf.mxu0
      %1129 = vmatprep.mubr.bf16.mxu0 0
      %1130 = vmatmul.mubr.bf16.gmra.mxu0 %v961
      %v1131 = vpop.f32.mrf.mxu0
      %v1132 = vadd.f32 %v883, %v1131
      %v1133 = vpop.f32.mrf.mxu0
      %v1134 = vpop.f32.mrf.mxu0
      %v1135 = vadd.f32 %v886, %v1134
      %v1136 = vpop.f32.mrf.mxu0
      %1137 = vmatprep.mubr.bf16.mxu0 0
      %1138 = vmatmul.mubr.bf16.gmra.mxu0 %v963
      %v1139 = vpop.f32.mrf.mxu0
      %v1140 = vadd.f32 %v891, %v1139
      %v1141 = vpop.f32.mrf.mxu0
      %v1142 = vpop.f32.mrf.mxu0
      %v1143 = vadd.f32 %v894, %v1142
      %v1144 = vpop.f32.mrf.mxu0
      %1145 = vmatprep.mubr.bf16.mxu0 0
      %1146 = vmatmul.mubr.bf16.gmra.mxu0 %v965
      %v1147 = vpop.f32.mrf.mxu0
      %v1148 = vadd.f32 %v899, %v1147
      %v1149 = vpop.f32.mrf.mxu0
      %v1150 = vpop.f32.mrf.mxu0
      %v1151 = vadd.f32 %v902, %v1150
      %v1152 = vpop.f32.mrf.mxu0
      %1153 = vmatprep.mubr.bf16.mxu0 0
      %1154 = vmatmul.mubr.bf16.gmra.mxu0 %v967
      %v1155 = vpop.f32.mrf.mxu0
      %v1156 = vadd.f32 %v907, %v1155
      %v1157 = vpop.f32.mrf.mxu0
      %v1158 = vpop.f32.mrf.mxu0
      %v1159 = vadd.f32 %v910, %v1158
      %v1160 = vpop.f32.mrf.mxu0
      %1161 = vmatprep.mubr.bf16.mxu0 0
      %1162 = vmatmul.mubr.bf16.gmra.mxu0 %v969
      %v1163 = vpop.f32.mrf.mxu0
      %v1164 = vadd.f32 %v915, %v1163
      %v1165 = vpop.f32.mrf.mxu0
      %v1166 = vpop.f32.mrf.mxu0
      %v1167 = vadd.f32 %v918, %v1166
      %v1168 = vpop.f32.mrf.mxu0
      %1169 = vmatprep.mubr.bf16.mxu0 0
      %1170 = vmatmul.mubr.bf16.gmra.mxu0 %v972
      %v1171 = vpop.f32.mrf.mxu0
      %v1172 = vadd.f32 %v923, %v1171
      %v1173 = vpop.f32.mrf.mxu0
      %v1174 = vpop.f32.mrf.mxu0
      %v1175 = vpop.f32.mrf.mxu0
      %1176 = vdwg.mxu0
      %v1177 = vld [vmem:[%s311] sm:$0xe]
      %s1178 = scalar_lea.vmem %s3, 8
      %v1179 = vld [vmem:[%s1178] sm:$0xf]
      %v1181 = vunpack.c.l.b16 %v1177
      %v1182 = vpack.c.b16 %v431, %v1181
      %vm1183 = vcmask 1046528
      %v1184 = vrot.slane %v1182, 1
      %v1185 = vrot.slane %v472, 1
      %v1186 = vsel %vm1183, %v1184, %v1185
      %v1187 = vrot.slane %v473, 1
      %v1188 = vsel %vm1183, %v1185, %v1187
      %v1189 = vrot.slane %v474, 1
      %v1190 = vsel %vm1183, %v1187, %v1189
      %v1191 = vrot.slane %v475, 1
      %v1192 = vsel %vm1183, %v1189, %v1191
      %v1193 = vrot.slane %v476, 1
      %v1194 = vsel %vm1183, %v1191, %v1193
      %v1195 = vrot.slane %v477, 1
      %v1196 = vsel %vm1183, %v1193, %v1195
      %v1197 = vrot.slane %v478, 1
      %v1198 = vsel %vm1183, %v1195, %v1197
      %v1199 = vrot.slane %v479, 1
      %v1200 = vsel %vm1183, %v1197, %v1199
      %v1201 = vrot.slane %v480, 1
      %v1202 = vsel %vm1183, %v1199, %v1201
      %v1203 = vrot.slane %v481, 1
      %v1204 = vsel %vm1183, %v1201, %v1203
      %v1205 = vrot.slane %v482, 1
      %v1206 = vsel %vm1183, %v1203, %v1205
      %v1207 = vrot.slane %v483, 1
      %v1208 = vsel %vm1183, %v1205, %v1207
      %v1209 = vrot.slane %v484, 1
      %v1210 = vsel %vm1183, %v1207, %v1209
      %v1211 = vrot.slane %v485, 1
      %v1212 = vsel %vm1183, %v1209, %v1211
      %v1213 = vrot.slane %v486, 1
      %v1214 = vsel %vm1183, %v1211, %v1213
      %v1215 = vrot.slane %v487, 1
      %v1216 = vsel %vm1183, %v1213, %v1215
      %v1217 = vrot.slane %v488, 1
      %v1218 = vsel %vm1183, %v1215, %v1217
      %v1219 = vrot.slane %v489, 1
      %v1220 = vsel %vm1183, %v1217, %v1219
      %v1221 = vrot.slane %v490, 1
      %v1222 = vsel %vm1183, %v1219, %v1221
      %v1223 = vrot.slane %v491, 1
      %v1224 = vsel %vm1183, %v1221, %v1223
      %v1226 = vsel %vm660, %v1186, 0
      %v1229 = vsel %vm660, %v1188, 0
      %v1232 = vsel %vm660, %v1190, 0
      %v1235 = vsel %vm660, %v1192, 0
      %v1238 = vsel %vm660, %v1194, 0
      %v1241 = vsel %vm660, %v1196, 0
      %v1244 = vsel %vm660, %v1198, 0
      %v1247 = vsel %vm660, %v1200, 0
      %v1250 = vsel %vm660, %v1202, 0
      %v1253 = vsel %vm660, %v1204, 0
      %v1256 = vsel %vm660, %v1206, 0
      %v1259 = vsel %vm660, %v1208, 0
      %v1262 = vsel %vm660, %v1210, 0
      %v1265 = vsel %vm660, %v1212, 0
      %v1268 = vsel %vm660, %v1214, 0
      %v1271 = vsel %vm660, %v1216, 0
      %v1274 = vsel %vm660, %v1218, 0
      %v1277 = vsel %vm660, %v1220, 0
      %v1280 = vsel %vm660, %v1222, 0
      %v1283 = vsel %vm660, %v1224, 0
      %v1286 = vsel %vm660, %v1223, 0
      %v1289 = vsel %vm724, %v1179, 0
      %1291 = vmatprep.subr.bf16.mxu0 0
      %1292 = vmatpush1.bf16.msra.mxu0 0
      %1293 = vmatprep.subr.bf16.mxu0 0
      %1294 = vmatpush1.bf16.msra.mxu0 0
      %1295 = vmatprep.subr.bf16.mxu0 0
      %1296 = vmatpush1.bf16.msra.mxu0 0
      %1297 = vmatprep.subr.bf16.mxu0 0
      %1298 = vmatpush1.bf16.msra.mxu0 0
      %1299 = vmatprep.subr.bf16.mxu0 0
      %1300 = vmatpush1.bf16.msra.mxu0 0
      %1301 = vmatprep.subr.bf16.mxu0 0
      %1302 = vmatpush1.bf16.msra.mxu0 0
      %1303 = vmatprep.subr.bf16.mxu0 0
      %1304 = vmatpush1.bf16.msra.mxu0 0
      %1305 = vmatprep.subr.bf16.mxu0 0
      %1306 = vmatpush1.bf16.msra.mxu0 %v1289
      %1307 = vmatprep.subr.bf16.mxu0 0
      %1308 = vmatpush2.bf16.msra.mxu0 0
      %1309 = vmatprep.subr.bf16.mxu0 0
      %1310 = vmatpush2.bf16.msra.mxu0 0
      %1311 = vmatprep.subr.bf16.mxu0 0
      %1312 = vmatpush2.bf16.msra.mxu0 0
      %1313 = vmatprep.subr.bf16.mxu0 0
      %1314 = vmatpush2.bf16.msra.mxu0 0
      %1315 = vmatprep.subr.bf16.mxu0 0
      %1316 = vmatpush2.bf16.msra.mxu0 0
      %1317 = vmatprep.subr.bf16.mxu0 0
      %1318 = vmatpush2.bf16.msra.mxu0 0
      %1319 = vmatprep.subr.bf16.mxu0 0
      %1320 = vmatpush2.bf16.msra.mxu0 0
      %1321 = vmatprep.subr.bf16.mxu0 0
      %1322 = vmatpush2.bf16.msra.mxu0 0
      %1323 = vmatprep.mubr.bf16.mxu0 0
      %1324 = vmatmul.mubr.bf16.gmra.mxu0 %v1226
      %v1325 = vpop.f32.mrf.mxu0
      %v1326 = vadd.f32 0.0, %v1325
      %v1327 = vpop.f32.mrf.mxu0
      %v1328 = vpop.f32.mrf.mxu0
      %v1329 = vadd.f32 0.0, %v1328
      %v1330 = vpop.f32.mrf.mxu0
      %1331 = vmatprep.mubr.bf16.mxu0 0
      %1332 = vmatmul.mubr.bf16.gmra.mxu0 %v1229
      %v1333 = vpop.f32.mrf.mxu0
      %v1334 = vadd.f32 0.0, %v1333
      %v1335 = vpop.f32.mrf.mxu0
      %v1336 = vpop.f32.mrf.mxu0
      %v1337 = vadd.f32 0.0, %v1336
      %v1338 = vpop.f32.mrf.mxu0
      %1339 = vmatprep.mubr.bf16.mxu0 0
      %1340 = vmatmul.mubr.bf16.gmra.mxu0 %v1232
      %v1341 = vpop.f32.mrf.mxu0
      %v1342 = vadd.f32 0.0, %v1341
      %v1343 = vpop.f32.mrf.mxu0
      %v1344 = vpop.f32.mrf.mxu0
      %v1345 = vadd.f32 0.0, %v1344
      %v1346 = vpop.f32.mrf.mxu0
      %1347 = vmatprep.mubr.bf16.mxu0 0
      %1348 = vmatmul.mubr.bf16.gmra.mxu0 %v1235
      %v1349 = vpop.f32.mrf.mxu0
      %v1350 = vadd.f32 0.0, %v1349
      %v1351 = vpop.f32.mrf.mxu0
      %v1352 = vpop.f32.mrf.mxu0
      %v1353 = vadd.f32 0.0, %v1352
      %v1354 = vpop.f32.mrf.mxu0
      %1355 = vmatprep.mubr.bf16.mxu0 0
      %1356 = vmatmul.mubr.bf16.gmra.mxu0 %v1238
      %v1357 = vpop.f32.mrf.mxu0
      %v1358 = vadd.f32 0.0, %v1357
      %v1359 = vpop.f32.mrf.mxu0
      %v1360 = vpop.f32.mrf.mxu0
      %v1361 = vadd.f32 0.0, %v1360
      %v1362 = vpop.f32.mrf.mxu0
      %1363 = vmatprep.mubr.bf16.mxu0 0
      %1364 = vmatmul.mubr.bf16.gmra.mxu0 %v1241
      %v1365 = vpop.f32.mrf.mxu0
      %v1366 = vadd.f32 0.0, %v1365
      %v1367 = vpop.f32.mrf.mxu0
      %v1368 = vpop.f32.mrf.mxu0
      %v1369 = vadd.f32 0.0, %v1368
      %v1370 = vpop.f32.mrf.mxu0
      %1371 = vmatprep.mubr.bf16.mxu0 0
      %1372 = vmatmul.mubr.bf16.gmra.mxu0 %v1244
      %v1373 = vpop.f32.mrf.mxu0
      %v1374 = vadd.f32 0.0, %v1373
      %v1375 = vpop.f32.mrf.mxu0
      %v1376 = vpop.f32.mrf.mxu0
      %v1377 = vadd.f32 0.0, %v1376
      %v1378 = vpop.f32.mrf.mxu0
      %1379 = vmatprep.mubr.bf16.mxu0 0
      %1380 = vmatmul.mubr.bf16.gmra.mxu0 %v1247
      %v1381 = vpop.f32.mrf.mxu0
      %v1382 = vadd.f32 0.0, %v1381
      %v1383 = vpop.f32.mrf.mxu0
      %v1384 = vpop.f32.mrf.mxu0
      %v1385 = vadd.f32 0.0, %v1384
      %v1386 = vpop.f32.mrf.mxu0
      %1387 = vmatprep.mubr.bf16.mxu0 0
      %1388 = vmatmul.mubr.bf16.gmra.mxu0 %v1250
      %v1389 = vpop.f32.mrf.mxu0
      %v1390 = vadd.f32 0.0, %v1389
      %v1391 = vpop.f32.mrf.mxu0
      %v1392 = vpop.f32.mrf.mxu0
      %v1393 = vadd.f32 0.0, %v1392
      %v1394 = vpop.f32.mrf.mxu0
      %1395 = vmatprep.mubr.bf16.mxu0 0
      %1396 = vmatmul.mubr.bf16.gmra.mxu0 %v1253
      %v1397 = vpop.f32.mrf.mxu0
      %v1398 = vadd.f32 0.0, %v1397
      %v1399 = vpop.f32.mrf.mxu0
      %v1400 = vpop.f32.mrf.mxu0
      %v1401 = vadd.f32 0.0, %v1400
      %v1402 = vpop.f32.mrf.mxu0
      %1403 = vmatprep.mubr.bf16.mxu0 0
      %1404 = vmatmul.mubr.bf16.gmra.mxu0 %v1256
      %v1405 = vpop.f32.mrf.mxu0
      %v1406 = vadd.f32 0.0, %v1405
      %v1407 = vpop.f32.mrf.mxu0
      %v1408 = vpop.f32.mrf.mxu0
      %v1409 = vadd.f32 0.0, %v1408
      %v1410 = vpop.f32.mrf.mxu0
      %1411 = vmatprep.mubr.bf16.mxu0 0
      %1412 = vmatmul.mubr.bf16.gmra.mxu0 %v1259
      %v1413 = vpop.f32.mrf.mxu0
      %v1414 = vadd.f32 0.0, %v1413
      %v1415 = vpop.f32.mrf.mxu0
      %v1416 = vpop.f32.mrf.mxu0
      %v1417 = vadd.f32 0.0, %v1416
      %v1418 = vpop.f32.mrf.mxu0
      %1419 = vmatprep.mubr.bf16.mxu0 0
      %1420 = vmatmul.mubr.bf16.gmra.mxu0 %v1262
      %v1421 = vpop.f32.mrf.mxu0
      %v1422 = vadd.f32 0.0, %v1421
      %v1423 = vpop.f32.mrf.mxu0
      %v1424 = vpop.f32.mrf.mxu0
      %v1425 = vadd.f32 0.0, %v1424
      %v1426 = vpop.f32.mrf.mxu0
      %1427 = vmatprep.mubr.bf16.mxu0 0
      %1428 = vmatmul.mubr.bf16.gmra.mxu0 %v1265
      %v1429 = vpop.f32.mrf.mxu0
      %v1430 = vadd.f32 0.0, %v1429
      %v1431 = vpop.f32.mrf.mxu0
      %v1432 = vpop.f32.mrf.mxu0
      %v1433 = vadd.f32 0.0, %v1432
      %v1434 = vpop.f32.mrf.mxu0
      %1435 = vmatprep.mubr.bf16.mxu0 0
      %1436 = vmatmul.mubr.bf16.gmra.mxu0 %v1268
      %v1437 = vpop.f32.mrf.mxu0
      %v1438 = vadd.f32 0.0, %v1437
      %v1439 = vpop.f32.mrf.mxu0
      %v1440 = vpop.f32.mrf.mxu0
      %v1441 = vadd.f32 0.0, %v1440
      %v1442 = vpop.f32.mrf.mxu0
      %1443 = vmatprep.mubr.bf16.mxu0 0
      %1444 = vmatmul.mubr.bf16.gmra.mxu0 %v1271
      %v1445 = vpop.f32.mrf.mxu0
      %v1446 = vadd.f32 0.0, %v1445
      %v1447 = vpop.f32.mrf.mxu0
      %v1448 = vpop.f32.mrf.mxu0
      %v1449 = vadd.f32 0.0, %v1448
      %v1450 = vpop.f32.mrf.mxu0
      %1451 = vmatprep.mubr.bf16.mxu0 0
      %1452 = vmatmul.mubr.bf16.gmra.mxu0 %v1274
      %v1453 = vpop.f32.mrf.mxu0
      %v1454 = vadd.f32 0.0, %v1453
      %v1455 = vpop.f32.mrf.mxu0
      %v1456 = vpop.f32.mrf.mxu0
      %v1457 = vadd.f32 0.0, %v1456
      %v1458 = vpop.f32.mrf.mxu0
      %1459 = vmatprep.mubr.bf16.mxu0 0
      %1460 = vmatmul.mubr.bf16.gmra.mxu0 %v1277
      %v1461 = vpop.f32.mrf.mxu0
      %v1462 = vadd.f32 0.0, %v1461
      %v1463 = vpop.f32.mrf.mxu0
      %v1464 = vpop.f32.mrf.mxu0
      %v1465 = vadd.f32 0.0, %v1464
      %v1466 = vpop.f32.mrf.mxu0
      %1467 = vmatprep.mubr.bf16.mxu0 0
      %1468 = vmatmul.mubr.bf16.gmra.mxu0 %v1280
      %v1469 = vpop.f32.mrf.mxu0
      %v1470 = vadd.f32 0.0, %v1469
      %v1471 = vpop.f32.mrf.mxu0
      %v1472 = vpop.f32.mrf.mxu0
      %v1473 = vadd.f32 0.0, %v1472
      %v1474 = vpop.f32.mrf.mxu0
      %1475 = vmatprep.mubr.bf16.mxu0 0
      %1476 = vmatmul.mubr.bf16.gmra.mxu0 %v1283
      %v1477 = vpop.f32.mrf.mxu0
      %v1478 = vadd.f32 0.0, %v1477
      %v1479 = vpop.f32.mrf.mxu0
      %v1480 = vpop.f32.mrf.mxu0
      %v1481 = vadd.f32 0.0, %v1480
      %v1482 = vpop.f32.mrf.mxu0
      %1483 = vmatprep.mubr.bf16.mxu0 0
      %1484 = vmatmul.mubr.bf16.gmra.mxu0 %v1286
      %v1485 = vpop.f32.mrf.mxu0
      %v1486 = vadd.f32 0.0, %v1485
      %v1487 = vpop.f32.mrf.mxu0
      %v1488 = vpop.f32.mrf.mxu0
      %v1489 = vpop.f32.mrf.mxu0
      %1490 = vdwg.mxu0
      %v1491 = vadd.f32 %v1012, %v1326
      %v1492 = vadd.f32 %v1015, %v1329
      %v1493 = vadd.f32 %v1020, %v1334
      %v1494 = vadd.f32 %v1023, %v1337
      %v1495 = vadd.f32 %v1028, %v1342
      %v1496 = vadd.f32 %v1031, %v1345
      %v1497 = vadd.f32 %v1036, %v1350
      %v1498 = vadd.f32 %v1039, %v1353
      %v1499 = vadd.f32 %v1044, %v1358
      %v1500 = vadd.f32 %v1047, %v1361
      %v1501 = vadd.f32 %v1052, %v1366
      %v1502 = vadd.f32 %v1055, %v1369
      %v1503 = vadd.f32 %v1060, %v1374
      %v1504 = vadd.f32 %v1063, %v1377
      %v1505 = vadd.f32 %v1068, %v1382
      %v1506 = vadd.f32 %v1071, %v1385
      %v1507 = vadd.f32 %v1076, %v1390
      %v1508 = vadd.f32 %v1079, %v1393
      %v1509 = vadd.f32 %v1084, %v1398
      %v1510 = vadd.f32 %v1087, %v1401
      %v1511 = vadd.f32 %v1092, %v1406
      %v1512 = vadd.f32 %v1095, %v1409
      %v1513 = vadd.f32 %v1100, %v1414
      %v1514 = vadd.f32 %v1103, %v1417
      %v1515 = vadd.f32 %v1108, %v1422
      %v1516 = vadd.f32 %v1111, %v1425
      %v1517 = vadd.f32 %v1116, %v1430
      %v1518 = vadd.f32 %v1119, %v1433
      %v1519 = vadd.f32 %v1124, %v1438
      %v1520 = vadd.f32 %v1127, %v1441
      %v1521 = vadd.f32 %v1132, %v1446
      %v1522 = vadd.f32 %v1135, %v1449
      %v1523 = vadd.f32 %v1140, %v1454
      %v1524 = vadd.f32 %v1143, %v1457
      %v1525 = vadd.f32 %v1148, %v1462
      %v1526 = vadd.f32 %v1151, %v1465
      %v1527 = vadd.f32 %v1156, %v1470
      %v1528 = vadd.f32 %v1159, %v1473
      %v1529 = vadd.f32 %v1164, %v1478
      %v1530 = vadd.f32 %v1167, %v1481
      %v1531 = vadd.f32 %v1172, %v1486
      %v1532 = vld [vmem:[%s311 + $0x8] sm:$0xe]
      %v1533 = vld [vmem:[%s311 + $0xc] sm:$0xf]
      %v1534 = vld [vmem:[%s311 + $0x10] sm:$0xf]
      %v1535 = vld [vmem:[%s311 + $0x14] sm:$0xf]
      %v1536 = vld [vmem:[%s311 + $0x18] sm:$0xf]
      %v1537 = vld [vmem:[%s311 + $0x1c] sm:$0xf]
      %v1538 = vld [vmem:[%s311 + $0x20] sm:$0xf]
      %v1539 = vld [vmem:[%s311 + $0x24] sm:$0xf]
      %v1540 = vld [vmem:[%s311 + $0x28] sm:$0xf]
      %v1541 = vld [vmem:[%s311 + $0x2c] sm:$0xf]
      %v1542 = vld [vmem:[%s311 + $0x30] sm:$0xf]
      %v1543 = vld [vmem:[%s311 + $0x34] sm:$0xf]
      %v1544 = vld [vmem:[%s311 + $0x38] sm:$0xf]
      %v1545 = vld [vmem:[%s311 + $0x3c] sm:$0xf]
      %v1546 = vld [vmem:[%s311 + $0x40] sm:$0xf]
      %v1547 = vld [vmem:[%s311 + $0x44] sm:$0xf]
      %v1548 = vld [vmem:[%s311 + $0x48] sm:$0xf]
      %v1549 = vld [vmem:[%s311 + $0x4c] sm:$0xf]
      %v1550 = vld [vmem:[%s311 + $0x50] sm:$0xf]
      %v1551 = vld [vmem:[%s311 + $0x54] sm:$0xf]
      %v1552 = vld [vmem:[%s311 + $0x58] sm:$0xf]
      %v1553 = vld [vmem:[%s311 + $0x5c] sm:$0xf]
      %v1554 = vld [vmem:[%s311 + $0x60] sm:$0xf]
      %v1555 = vld [vmem:[%s311 + $0x64] sm:$0xf]
      %v1556 = vld [vmem:[%s311 + $0x68] sm:$0xf]
      %v1557 = vld [vmem:[%s311 + $0x6c] sm:$0xf]
      %v1558 = vld [vmem:[%s311 + $0x70] sm:$0xf]
      %v1559 = vld [vmem:[%s311 + $0x74] sm:$0xf]
      %v1560 = vld [vmem:[%s311 + $0x78] sm:$0xf]
      %v1561 = vld [vmem:[%s311 + $0x7c] sm:$0xf]
      %v1562 = vld [vmem:[%s311 + $0x80] sm:$0xf]
      %v1563 = vld [vmem:[%s311 + $0x84] sm:$0xf]
      %v1564 = vld [vmem:[%s311 + $0x88] sm:$0xf]
      %v1565 = vld [vmem:[%s311 + $0x8c] sm:$0xf]
      %v1566 = vld [vmem:[%s311 + $0x90] sm:$0xf]
      %v1567 = vld [vmem:[%s311 + $0x94] sm:$0xf]
      %v1568 = vld [vmem:[%s311 + $0x98] sm:$0xf]
      %v1569 = vld [vmem:[%s311 + $0x9c] sm:$0xf]
      %v1570 = vld [vmem:[%s311 + $0xa0] sm:$0xf]
      %v1571 = vld [vmem:[%s311 + $0xa4] sm:$0xf]
      %v1572 = vld [vmem:[%s311 + $0xa8] sm:$0x7]
      %s1573 = scalar_lea.vmem %s3, 12
      %v1574 = vld [vmem:[%s1573] sm:$0xf]
      %v1616 = vunpack.c.l.b16 %v1532
      %v1617 = vunpack.c.l.b16 %v1533
      %v1618 = vunpack.c.l.b16 %v1534
      %v1619 = vunpack.c.l.b16 %v1535
      %v1620 = vunpack.c.l.b16 %v1536
      %v1621 = vunpack.c.l.b16 %v1537
      %v1622 = vunpack.c.l.b16 %v1538
      %v1623 = vunpack.c.l.b16 %v1539
      %v1624 = vunpack.c.l.b16 %v1540
      %v1625 = vunpack.c.l.b16 %v1541
      %v1626 = vunpack.c.l.b16 %v1542
      %v1627 = vunpack.c.l.b16 %v1543
      %v1628 = vunpack.c.l.b16 %v1544
      %v1629 = vunpack.c.l.b16 %v1545
      %v1630 = vunpack.c.l.b16 %v1546
      %v1631 = vunpack.c.l.b16 %v1547
      %v1632 = vunpack.c.l.b16 %v1548
      %v1633 = vunpack.c.l.b16 %v1549
      %v1634 = vunpack.c.l.b16 %v1550
      %v1635 = vunpack.c.l.b16 %v1551
      %v1636 = vunpack.c.l.b16 %v1552
      %v1637 = vunpack.c.l.b16 %v1553
      %v1638 = vunpack.c.l.b16 %v1554
      %v1639 = vunpack.c.l.b16 %v1555
      %v1640 = vunpack.c.l.b16 %v1556
      %v1641 = vunpack.c.l.b16 %v1557
      %v1642 = vunpack.c.l.b16 %v1558
      %v1643 = vunpack.c.l.b16 %v1559
      %v1644 = vunpack.c.l.b16 %v1560
      %v1645 = vunpack.c.l.b16 %v1561
      %v1646 = vunpack.c.l.b16 %v1562
      %v1647 = vunpack.c.l.b16 %v1563
      %v1648 = vunpack.c.l.b16 %v1564
      %v1649 = vunpack.c.l.b16 %v1565
      %v1650 = vunpack.c.l.b16 %v1566
      %v1651 = vunpack.c.l.b16 %v1567
      %v1652 = vunpack.c.l.b16 %v1568
      %v1653 = vunpack.c.l.b16 %v1569
      %v1654 = vunpack.c.l.b16 %v1570
      %v1655 = vunpack.c.l.b16 %v1571
      %v1656 = vunpack.c.l.b16 %v1572
      %v1657 = vpack.c.b16 %v1617, %v1616
      %v1658 = vpack.c.b16 %v1619, %v1618
      %v1659 = vpack.c.b16 %v1621, %v1620
      %v1660 = vpack.c.b16 %v1623, %v1622
      %v1661 = vpack.c.b16 %v1625, %v1624
      %v1662 = vpack.c.b16 %v1627, %v1626
      %v1663 = vpack.c.b16 %v1629, %v1628
      %v1664 = vpack.c.b16 %v1631, %v1630
      %v1665 = vpack.c.b16 %v1633, %v1632
      %v1666 = vpack.c.b16 %v1635, %v1634
      %v1667 = vpack.c.b16 %v1637, %v1636
      %v1668 = vpack.c.b16 %v1639, %v1638
      %v1669 = vpack.c.b16 %v1641, %v1640
      %v1670 = vpack.c.b16 %v1643, %v1642
      %v1671 = vpack.c.b16 %v1645, %v1644
      %v1672 = vpack.c.b16 %v1647, %v1646
      %v1673 = vpack.c.b16 %v1649, %v1648
      %v1674 = vpack.c.b16 %v1651, %v1650
      %v1675 = vpack.c.b16 %v1653, %v1652
      %v1676 = vpack.c.b16 %v1655, %v1654
      %v1677 = vpack.c.b16 %v1656, %v1656
      %v1678 = vrot.slane %v1657, 1
      %v1679 = vrot.slane %v1658, 1
      %v1680 = vsel %vm1183, %v1678, %v1679
      %v1681 = vrot.slane %v1659, 1
      %v1682 = vsel %vm1183, %v1679, %v1681
      %v1683 = vrot.slane %v1660, 1
      %v1684 = vsel %vm1183, %v1681, %v1683
      %v1685 = vrot.slane %v1661, 1
      %v1686 = vsel %vm1183, %v1683, %v1685
      %v1687 = vrot.slane %v1662, 1
      %v1688 = vsel %vm1183, %v1685, %v1687
      %v1689 = vrot.slane %v1663, 1
      %v1690 = vsel %vm1183, %v1687, %v1689
      %v1691 = vrot.slane %v1664, 1
      %v1692 = vsel %vm1183, %v1689, %v1691
      %v1693 = vrot.slane %v1665, 1
      %v1694 = vsel %vm1183, %v1691, %v1693
      %v1695 = vrot.slane %v1666, 1
      %v1696 = vsel %vm1183, %v1693, %v1695
      %v1697 = vrot.slane %v1667, 1
      %v1698 = vsel %vm1183, %v1695, %v1697
      %v1699 = vrot.slane %v1668, 1
      %v1700 = vsel %vm1183, %v1697, %v1699
      %v1701 = vrot.slane %v1669, 1
      %v1702 = vsel %vm1183, %v1699, %v1701
      %v1703 = vrot.slane %v1670, 1
      %v1704 = vsel %vm1183, %v1701, %v1703
      %v1705 = vrot.slane %v1671, 1
      %v1706 = vsel %vm1183, %v1703, %v1705
      %v1707 = vrot.slane %v1672, 1
      %v1708 = vsel %vm1183, %v1705, %v1707
      %v1709 = vrot.slane %v1673, 1
      %v1710 = vsel %vm1183, %v1707, %v1709
      %v1711 = vrot.slane %v1674, 1
      %v1712 = vsel %vm1183, %v1709, %v1711
      %v1713 = vrot.slane %v1675, 1
      %v1714 = vsel %vm1183, %v1711, %v1713
      %v1715 = vrot.slane %v1676, 1
      %v1716 = vsel %vm1183, %v1713, %v1715
      %v1717 = vrot.slane %v1677, 1
      %v1718 = vsel %vm1183, %v1715, %v1717
      %v1720 = vsel %vm660, %v1680, 0
      %v1723 = vsel %vm660, %v1682, 0
      %v1726 = vsel %vm660, %v1684, 0
      %v1729 = vsel %vm660, %v1686, 0
      %v1732 = vsel %vm660, %v1688, 0
      %v1735 = vsel %vm660, %v1690, 0
      %v1738 = vsel %vm660, %v1692, 0
      %v1741 = vsel %vm660, %v1694, 0
      %v1744 = vsel %vm660, %v1696, 0
      %v1747 = vsel %vm660, %v1698, 0
      %v1750 = vsel %vm660, %v1700, 0
      %v1753 = vsel %vm660, %v1702, 0
      %v1756 = vsel %vm660, %v1704, 0
      %v1759 = vsel %vm660, %v1706, 0
      %v1762 = vsel %vm660, %v1708, 0
      %v1765 = vsel %vm660, %v1710, 0
      %v1768 = vsel %vm660, %v1712, 0
      %v1771 = vsel %vm660, %v1714, 0
      %v1774 = vsel %vm660, %v1716, 0
      %v1777 = vsel %vm660, %v1718, 0
      %v1780 = vsel %vm660, %v1717, 0
      %v1783 = vsel %vm724, %v1574, 0
      %1785 = vmatprep.subr.bf16.mxu0 0
      %1786 = vmatpush1.bf16.msra.mxu0 0
      %1787 = vmatprep.subr.bf16.mxu0 0
      %1788 = vmatpush1.bf16.msra.mxu0 0
      %1789 = vmatprep.subr.bf16.mxu0 0
      %1790 = vmatpush1.bf16.msra.mxu0 0
      %1791 = vmatprep.subr.bf16.mxu0 0
      %1792 = vmatpush1.bf16.msra.mxu0 0
      %1793 = vmatprep.subr.bf16.mxu0 0
      %1794 = vmatpush1.bf16.msra.mxu0 0
      %1795 = vmatprep.subr.bf16.mxu0 0
      %1796 = vmatpush1.bf16.msra.mxu0 0
      %1797 = vmatprep.subr.bf16.mxu0 0
      %1798 = vmatpush1.bf16.msra.mxu0 0
      %1799 = vmatprep.subr.bf16.mxu0 0
      %1800 = vmatpush1.bf16.msra.mxu0 %v1783
      %1801 = vmatprep.subr.bf16.mxu0 0
      %1802 = vmatpush2.bf16.msra.mxu0 0
      %1803 = vmatprep.subr.bf16.mxu0 0
      %1804 = vmatpush2.bf16.msra.mxu0 0
      %1805 = vmatprep.subr.bf16.mxu0 0
      %1806 = vmatpush2.bf16.msra.mxu0 0
      %1807 = vmatprep.subr.bf16.mxu0 0
      %1808 = vmatpush2.bf16.msra.mxu0 0
      %1809 = vmatprep.subr.bf16.mxu0 0
      %1810 = vmatpush2.bf16.msra.mxu0 0
      %1811 = vmatprep.subr.bf16.mxu0 0
      %1812 = vmatpush2.bf16.msra.mxu0 0
      %1813 = vmatprep.subr.bf16.mxu0 0
      %1814 = vmatpush2.bf16.msra.mxu0 0
      %1815 = vmatprep.subr.bf16.mxu0 0
      %1816 = vmatpush2.bf16.msra.mxu0 0
      %1817 = vmatprep.mubr.bf16.mxu0 0
      %1818 = vmatmul.mubr.bf16.gmra.mxu0 %v1720
      %v1819 = vpop.f32.mrf.mxu0
      %v1820 = vadd.f32 0.0, %v1819
      %v1821 = vpop.f32.mrf.mxu0
      %v1822 = vpop.f32.mrf.mxu0
      %v1823 = vadd.f32 0.0, %v1822
      %v1824 = vpop.f32.mrf.mxu0
      %1825 = vmatprep.mubr.bf16.mxu0 0
      %1826 = vmatmul.mubr.bf16.gmra.mxu0 %v1723
      %v1827 = vpop.f32.mrf.mxu0
      %v1828 = vadd.f32 0.0, %v1827
      %v1829 = vpop.f32.mrf.mxu0
      %v1830 = vpop.f32.mrf.mxu0
      %v1831 = vadd.f32 0.0, %v1830
      %v1832 = vpop.f32.mrf.mxu0
      %1833 = vmatprep.mubr.bf16.mxu0 0
      %1834 = vmatmul.mubr.bf16.gmra.mxu0 %v1726
      %v1835 = vpop.f32.mrf.mxu0
      %v1836 = vadd.f32 0.0, %v1835
      %v1837 = vpop.f32.mrf.mxu0
      %v1838 = vpop.f32.mrf.mxu0
      %v1839 = vadd.f32 0.0, %v1838
      %v1840 = vpop.f32.mrf.mxu0
      %1841 = vmatprep.mubr.bf16.mxu0 0
      %1842 = vmatmul.mubr.bf16.gmra.mxu0 %v1729
      %v1843 = vpop.f32.mrf.mxu0
      %v1844 = vadd.f32 0.0, %v1843
      %v1845 = vpop.f32.mrf.mxu0
      %v1846 = vpop.f32.mrf.mxu0
      %v1847 = vadd.f32 0.0, %v1846
      %v1848 = vpop.f32.mrf.mxu0
      %1849 = vmatprep.mubr.bf16.mxu0 0
      %1850 = vmatmul.mubr.bf16.gmra.mxu0 %v1732
      %v1851 = vpop.f32.mrf.mxu0
      %v1852 = vadd.f32 0.0, %v1851
      %v1853 = vpop.f32.mrf.mxu0
      %v1854 = vpop.f32.mrf.mxu0
      %v1855 = vadd.f32 0.0, %v1854
      %v1856 = vpop.f32.mrf.mxu0
      %1857 = vmatprep.mubr.bf16.mxu0 0
      %1858 = vmatmul.mubr.bf16.gmra.mxu0 %v1735
      %v1859 = vpop.f32.mrf.mxu0
      %v1860 = vadd.f32 0.0, %v1859
      %v1861 = vpop.f32.mrf.mxu0
      %v1862 = vpop.f32.mrf.mxu0
      %v1863 = vadd.f32 0.0, %v1862
      %v1864 = vpop.f32.mrf.mxu0
      %1865 = vmatprep.mubr.bf16.mxu0 0
      %1866 = vmatmul.mubr.bf16.gmra.mxu0 %v1738
      %v1867 = vpop.f32.mrf.mxu0
      %v1868 = vadd.f32 0.0, %v1867
      %v1869 = vpop.f32.mrf.mxu0
      %v1870 = vpop.f32.mrf.mxu0
      %v1871 = vadd.f32 0.0, %v1870
      %v1872 = vpop.f32.mrf.mxu0
      %1873 = vmatprep.mubr.bf16.mxu0 0
      %1874 = vmatmul.mubr.bf16.gmra.mxu0 %v1741
      %v1875 = vpop.f32.mrf.mxu0
      %v1876 = vadd.f32 0.0, %v1875
      %v1877 = vpop.f32.mrf.mxu0
      %v1878 = vpop.f32.mrf.mxu0
      %v1879 = vadd.f32 0.0, %v1878
      %v1880 = vpop.f32.mrf.mxu0
      %1881 = vmatprep.mubr.bf16.mxu0 0
      %1882 = vmatmul.mubr.bf16.gmra.mxu0 %v1744
      %v1883 = vpop.f32.mrf.mxu0
      %v1884 = vadd.f32 0.0, %v1883
      %v1885 = vpop.f32.mrf.mxu0
      %v1886 = vpop.f32.mrf.mxu0
      %v1887 = vadd.f32 0.0, %v1886
      %v1888 = vpop.f32.mrf.mxu0
      %1889 = vmatprep.mubr.bf16.mxu0 0
      %1890 = vmatmul.mubr.bf16.gmra.mxu0 %v1747
      %v1891 = vpop.f32.mrf.mxu0
      %v1892 = vadd.f32 0.0, %v1891
      %v1893 = vpop.f32.mrf.mxu0
      %v1894 = vpop.f32.mrf.mxu0
      %v1895 = vadd.f32 0.0, %v1894
      %v1896 = vpop.f32.mrf.mxu0
      %1897 = vmatprep.mubr.bf16.mxu0 0
      %1898 = vmatmul.mubr.bf16.gmra.mxu0 %v1750
      %v1899 = vpop.f32.mrf.mxu0
      %v1900 = vadd.f32 0.0, %v1899
      %v1901 = vpop.f32.mrf.mxu0
      %v1902 = vpop.f32.mrf.mxu0
      %v1903 = vadd.f32 0.0, %v1902
      %v1904 = vpop.f32.mrf.mxu0
      %1905 = vmatprep.mubr.bf16.mxu0 0
      %1906 = vmatmul.mubr.bf16.gmra.mxu0 %v1753
      %v1907 = vpop.f32.mrf.mxu0
      %v1908 = vadd.f32 0.0, %v1907
      %v1909 = vpop.f32.mrf.mxu0
      %v1910 = vpop.f32.mrf.mxu0
      %v1911 = vadd.f32 0.0, %v1910
      %v1912 = vpop.f32.mrf.mxu0
      %1913 = vmatprep.mubr.bf16.mxu0 0
      %1914 = vmatmul.mubr.bf16.gmra.mxu0 %v1756
      %v1915 = vpop.f32.mrf.mxu0
      %v1916 = vadd.f32 0.0, %v1915
      %v1917 = vpop.f32.mrf.mxu0
      %v1918 = vpop.f32.mrf.mxu0
      %v1919 = vadd.f32 0.0, %v1918
      %v1920 = vpop.f32.mrf.mxu0
      %1921 = vmatprep.mubr.bf16.mxu0 0
      %1922 = vmatmul.mubr.bf16.gmra.mxu0 %v1759
      %v1923 = vpop.f32.mrf.mxu0
      %v1924 = vadd.f32 0.0, %v1923
      %v1925 = vpop.f32.mrf.mxu0
      %v1926 = vpop.f32.mrf.mxu0
      %v1927 = vadd.f32 0.0, %v1926
      %v1928 = vpop.f32.mrf.mxu0
      %1929 = vmatprep.mubr.bf16.mxu0 0
      %1930 = vmatmul.mubr.bf16.gmra.mxu0 %v1762
      %v1931 = vpop.f32.mrf.mxu0
      %v1932 = vadd.f32 0.0, %v1931
      %v1933 = vpop.f32.mrf.mxu0
      %v1934 = vpop.f32.mrf.mxu0
      %v1935 = vadd.f32 0.0, %v1934
      %v1936 = vpop.f32.mrf.mxu0
      %1937 = vmatprep.mubr.bf16.mxu0 0
      %1938 = vmatmul.mubr.bf16.gmra.mxu0 %v1765
      %v1939 = vpop.f32.mrf.mxu0
      %v1940 = vadd.f32 0.0, %v1939
      %v1941 = vpop.f32.mrf.mxu0
      %v1942 = vpop.f32.mrf.mxu0
      %v1943 = vadd.f32 0.0, %v1942
      %v1944 = vpop.f32.mrf.mxu0
      %1945 = vmatprep.mubr.bf16.mxu0 0
      %1946 = vmatmul.mubr.bf16.gmra.mxu0 %v1768
      %v1947 = vpop.f32.mrf.mxu0
      %v1948 = vadd.f32 0.0, %v1947
      %v1949 = vpop.f32.mrf.mxu0
      %v1950 = vpop.f32.mrf.mxu0
      %v1951 = vadd.f32 0.0, %v1950
      %v1952 = vpop.f32.mrf.mxu0
      %1953 = vmatprep.mubr.bf16.mxu0 0
      %1954 = vmatmul.mubr.bf16.gmra.mxu0 %v1771
      %v1955 = vpop.f32.mrf.mxu0
      %v1956 = vadd.f32 0.0, %v1955
      %v1957 = vpop.f32.mrf.mxu0
      %v1958 = vpop.f32.mrf.mxu0
      %v1959 = vadd.f32 0.0, %v1958
      %v1960 = vpop.f32.mrf.mxu0
      %1961 = vmatprep.mubr.bf16.mxu0 0
      %1962 = vmatmul.mubr.bf16.gmra.mxu0 %v1774
      %v1963 = vpop.f32.mrf.mxu0
      %v1964 = vadd.f32 0.0, %v1963
      %v1965 = vpop.f32.mrf.mxu0
      %v1966 = vpop.f32.mrf.mxu0
      %v1967 = vadd.f32 0.0, %v1966
      %v1968 = vpop.f32.mrf.mxu0
      %1969 = vmatprep.mubr.bf16.mxu0 0
      %1970 = vmatmul.mubr.bf16.gmra.mxu0 %v1777
      %v1971 = vpop.f32.mrf.mxu0
      %v1972 = vadd.f32 0.0, %v1971
      %v1973 = vpop.f32.mrf.mxu0
      %v1974 = vpop.f32.mrf.mxu0
      %v1975 = vadd.f32 0.0, %v1974
      %v1976 = vpop.f32.mrf.mxu0
      %1977 = vmatprep.mubr.bf16.mxu0 0
      %1978 = vmatmul.mubr.bf16.gmra.mxu0 %v1780
      %v1979 = vpop.f32.mrf.mxu0
      %v1980 = vadd.f32 0.0, %v1979
      %v1981 = vpop.f32.mrf.mxu0
      %v1982 = vpop.f32.mrf.mxu0
      %v1983 = vpop.f32.mrf.mxu0
      %1984 = vdwg.mxu0
      %v1985 = vadd.f32 %v1491, %v1820
      %v1986 = vadd.f32 %v1492, %v1823
      %v1987 = vadd.f32 %v1493, %v1828
      %v1988 = vadd.f32 %v1494, %v1831
      %v1989 = vadd.f32 %v1495, %v1836
      %v1990 = vadd.f32 %v1496, %v1839
      %v1991 = vadd.f32 %v1497, %v1844
      %v1992 = vadd.f32 %v1498, %v1847
      %v1993 = vadd.f32 %v1499, %v1852
      %v1994 = vadd.f32 %v1500, %v1855
      %v1995 = vadd.f32 %v1501, %v1860
      %v1996 = vadd.f32 %v1502, %v1863
      %v1997 = vadd.f32 %v1503, %v1868
      %v1998 = vadd.f32 %v1504, %v1871
      %v1999 = vadd.f32 %v1505, %v1876
      %v2000 = vadd.f32 %v1506, %v1879
      %v2001 = vadd.f32 %v1507, %v1884
      %v2002 = vadd.f32 %v1508, %v1887
      %v2003 = vadd.f32 %v1509, %v1892
      %v2004 = vadd.f32 %v1510, %v1895
      %v2005 = vadd.f32 %v1511, %v1900
      %v2006 = vadd.f32 %v1512, %v1903
      %v2007 = vadd.f32 %v1513, %v1908
      %v2008 = vadd.f32 %v1514, %v1911
      %v2009 = vadd.f32 %v1515, %v1916
      %v2010 = vadd.f32 %v1516, %v1919
      %v2011 = vadd.f32 %v1517, %v1924
      %v2012 = vadd.f32 %v1518, %v1927
      %v2013 = vadd.f32 %v1519, %v1932
      %v2014 = vadd.f32 %v1520, %v1935
      %v2015 = vadd.f32 %v1521, %v1940
      %v2016 = vadd.f32 %v1522, %v1943
      %v2017 = vadd.f32 %v1523, %v1948
      %v2018 = vadd.f32 %v1524, %v1951
      %v2019 = vadd.f32 %v1525, %v1956
      %v2020 = vadd.f32 %v1526, %v1959
      %v2021 = vadd.f32 %v1527, %v1964
      %v2022 = vadd.f32 %v1528, %v1967
      %v2023 = vadd.f32 %v1529, %v1972
      %v2024 = vadd.f32 %v1530, %v1975
      %v2025 = vadd.f32 %v1531, %v1980
      %v2026 = vld [vmem:[%s311 + $0xa8] sm:$0xf]
      %s2027 = scalar_lea.vmem %s3, 16
      %v2028 = vld [vmem:[%s2027] sm:$0xf]
      %v2030 = vunpack.c.l.b16 %v2026
      %v2031 = vpack.c.b16 %v2030, %v2030
      %vm2032 = vsmask.f32 6400
      %v2034 = vshrl.u32 %v1657, 16
      %v2036 = vrot.slane %v2034, 1
      %v2037 = vshll.u32 %v1657, 16
      %v2039 = vrot.slane %v2037, 2
      %v2040 = vor.u32 %v2036, %v2039
      %v2042 = vshrl.u32 %v1658, 16
      %v2044 = vrot.slane %v2042, 1
      %v2045 = vshll.u32 %v1658, 16
      %v2047 = vrot.slane %v2045, 2
      %v2048 = vor.u32 %v2044, %v2047
      %v2049 = vsel %vm2032, %v2040, %v2048
      %v2051 = vshrl.u32 %v1659, 16
      %v2053 = vrot.slane %v2051, 1
      %v2054 = vshll.u32 %v1659, 16
      %v2056 = vrot.slane %v2054, 2
      %v2057 = vor.u32 %v2053, %v2056
      %v2058 = vsel %vm2032, %v2048, %v2057
      %v2060 = vshrl.u32 %v1660, 16
      %v2062 = vrot.slane %v2060, 1
      %v2063 = vshll.u32 %v1660, 16
      %v2065 = vrot.slane %v2063, 2
      %v2066 = vor.u32 %v2062, %v2065
      %v2067 = vsel %vm2032, %v2057, %v2066
      %v2069 = vshrl.u32 %v1661, 16
      %v2071 = vrot.slane %v2069, 1
      %v2072 = vshll.u32 %v1661, 16
      %v2074 = vrot.slane %v2072, 2
      %v2075 = vor.u32 %v2071, %v2074
      %v2076 = vsel %vm2032, %v2066, %v2075
      %v2078 = vshrl.u32 %v1662, 16
      %v2080 = vrot.slane %v2078, 1
      %v2081 = vshll.u32 %v1662, 16
      %v2083 = vrot.slane %v2081, 2
      %v2084 = vor.u32 %v2080, %v2083
      %v2085 = vsel %vm2032, %v2075, %v2084
      %v2087 = vshrl.u32 %v1663, 16
      %v2089 = vrot.slane %v2087, 1
      %v2090 = vshll.u32 %v1663, 16
      %v2092 = vrot.slane %v2090, 2
      %v2093 = vor.u32 %v2089, %v2092
      %v2094 = vsel %vm2032, %v2084, %v2093
      %v2096 = vshrl.u32 %v1664, 16
      %v2098 = vrot.slane %v2096, 1
      %v2099 = vshll.u32 %v1664, 16
      %v2101 = vrot.slane %v2099, 2
      %v2102 = vor.u32 %v2098, %v2101
      %v2103 = vsel %vm2032, %v2093, %v2102
      %v2105 = vshrl.u32 %v1665, 16
      %v2107 = vrot.slane %v2105, 1
      %v2108 = vshll.u32 %v1665, 16
      %v2110 = vrot.slane %v2108, 2
      %v2111 = vor.u32 %v2107, %v2110
      %v2112 = vsel %vm2032, %v2102, %v2111
      %v2114 = vshrl.u32 %v1666, 16
      %v2116 = vrot.slane %v2114, 1
      %v2117 = vshll.u32 %v1666, 16
      %v2119 = vrot.slane %v2117, 2
      %v2120 = vor.u32 %v2116, %v2119
      %v2121 = vsel %vm2032, %v2111, %v2120
      %v2123 = vshrl.u32 %v1667, 16
      %v2125 = vrot.slane %v2123, 1
      %v2126 = vshll.u32 %v1667, 16
      %v2128 = vrot.slane %v2126, 2
      %v2129 = vor.u32 %v2125, %v2128
      %v2130 = vsel %vm2032, %v2120, %v2129
      %v2132 = vshrl.u32 %v1668, 16
      %v2134 = vrot.slane %v2132, 1
      %v2135 = vshll.u32 %v1668, 16
      %v2137 = vrot.slane %v2135, 2
      %v2138 = vor.u32 %v2134, %v2137
      %v2139 = vsel %vm2032, %v2129, %v2138
      %v2141 = vshrl.u32 %v1669, 16
      %v2143 = vrot.slane %v2141, 1
      %v2144 = vshll.u32 %v1669, 16
      %v2146 = vrot.slane %v2144, 2
      %v2147 = vor.u32 %v2143, %v2146
      %v2148 = vsel %vm2032, %v2138, %v2147
      %v2150 = vshrl.u32 %v1670, 16
      %v2152 = vrot.slane %v2150, 1
      %v2153 = vshll.u32 %v1670, 16
      %v2155 = vrot.slane %v2153, 2
      %v2156 = vor.u32 %v2152, %v2155
      %v2157 = vsel %vm2032, %v2147, %v2156
      %v2159 = vshrl.u32 %v1671, 16
      %v2161 = vrot.slane %v2159, 1
      %v2162 = vshll.u32 %v1671, 16
      %v2164 = vrot.slane %v2162, 2
      %v2165 = vor.u32 %v2161, %v2164
      %v2166 = vsel %vm2032, %v2156, %v2165
      %v2168 = vshrl.u32 %v1672, 16
      %v2170 = vrot.slane %v2168, 1
      %v2171 = vshll.u32 %v1672, 16
      %v2173 = vrot.slane %v2171, 2
      %v2174 = vor.u32 %v2170, %v2173
      %v2175 = vsel %vm2032, %v2165, %v2174
      %v2177 = vshrl.u32 %v1673, 16
      %v2179 = vrot.slane %v2177, 1
      %v2180 = vshll.u32 %v1673, 16
      %v2182 = vrot.slane %v2180, 2
      %v2183 = vor.u32 %v2179, %v2182
      %v2184 = vsel %vm2032, %v2174, %v2183
      %v2186 = vshrl.u32 %v1674, 16
      %v2188 = vrot.slane %v2186, 1
      %v2189 = vshll.u32 %v1674, 16
      %v2191 = vrot.slane %v2189, 2
      %v2192 = vor.u32 %v2188, %v2191
      %v2193 = vsel %vm2032, %v2183, %v2192
      %v2195 = vshrl.u32 %v1675, 16
      %v2197 = vrot.slane %v2195, 1
      %v2198 = vshll.u32 %v1675, 16
      %v2200 = vrot.slane %v2198, 2
      %v2201 = vor.u32 %v2197, %v2200
      %v2202 = vsel %vm2032, %v2192, %v2201
      %v2204 = vshrl.u32 %v1676, 16
      %v2206 = vrot.slane %v2204, 1
      %v2207 = vshll.u32 %v1676, 16
      %v2209 = vrot.slane %v2207, 2
      %v2210 = vor.u32 %v2206, %v2209
      %v2211 = vsel %vm2032, %v2201, %v2210
      %v2213 = vshrl.u32 %v2031, 16
      %v2215 = vrot.slane %v2213, 1
      %v2216 = vshll.u32 %v2031, 16
      %v2218 = vrot.slane %v2216, 2
      %v2219 = vor.u32 %v2215, %v2218
      %v2220 = vsel %vm2032, %v2210, %v2219
      %v2222 = vsel %vm660, %v2049, 0
      %v2225 = vsel %vm660, %v2058, 0
      %v2228 = vsel %vm660, %v2067, 0
      %v2231 = vsel %vm660, %v2076, 0
      %v2234 = vsel %vm660, %v2085, 0
      %v2237 = vsel %vm660, %v2094, 0
      %v2240 = vsel %vm660, %v2103, 0
      %v2243 = vsel %vm660, %v2112, 0
      %v2246 = vsel %vm660, %v2121, 0
      %v2249 = vsel %vm660, %v2130, 0
      %v2252 = vsel %vm660, %v2139, 0
      %v2255 = vsel %vm660, %v2148, 0
      %v2258 = vsel %vm660, %v2157, 0
      %v2261 = vsel %vm660, %v2166, 0
      %v2264 = vsel %vm660, %v2175, 0
      %v2267 = vsel %vm660, %v2184, 0
      %v2270 = vsel %vm660, %v2193, 0
      %v2273 = vsel %vm660, %v2202, 0
      %v2276 = vsel %vm660, %v2211, 0
      %v2279 = vsel %vm660, %v2220, 0
      %v2282 = vsel %vm660, %v2219, 0
      %v2285 = vsel %vm724, %v2028, 0
      %2287 = vmatprep.subr.bf16.mxu0 0
      %2288 = vmatpush1.bf16.msra.mxu0 0
      %2289 = vmatprep.subr.bf16.mxu0 0
      %2290 = vmatpush1.bf16.msra.mxu0 0
      %2291 = vmatprep.subr.bf16.mxu0 0
      %2292 = vmatpush1.bf16.msra.mxu0 0
      %2293 = vmatprep.subr.bf16.mxu0 0
      %2294 = vmatpush1.bf16.msra.mxu0 0
      %2295 = vmatprep.subr.bf16.mxu0 0
      %2296 = vmatpush1.bf16.msra.mxu0 0
      %2297 = vmatprep.subr.bf16.mxu0 0
      %2298 = vmatpush1.bf16.msra.mxu0 0
      %2299 = vmatprep.subr.bf16.mxu0 0
      %2300 = vmatpush1.bf16.msra.mxu0 0
      %2301 = vmatprep.subr.bf16.mxu0 0
      %2302 = vmatpush1.bf16.msra.mxu0 %v2285
      %2303 = vmatprep.subr.bf16.mxu0 0
      %2304 = vmatpush2.bf16.msra.mxu0 0
      %2305 = vmatprep.subr.bf16.mxu0 0
      %2306 = vmatpush2.bf16.msra.mxu0 0
      %2307 = vmatprep.subr.bf16.mxu0 0
      %2308 = vmatpush2.bf16.msra.mxu0 0
      %2309 = vmatprep.subr.bf16.mxu0 0
      %2310 = vmatpush2.bf16.msra.mxu0 0
      %2311 = vmatprep.subr.bf16.mxu0 0
      %2312 = vmatpush2.bf16.msra.mxu0 0
      %2313 = vmatprep.subr.bf16.mxu0 0
      %2314 = vmatpush2.bf16.msra.mxu0 0
      %2315 = vmatprep.subr.bf16.mxu0 0
      %2316 = vmatpush2.bf16.msra.mxu0 0
      %2317 = vmatprep.subr.bf16.mxu0 0
      %2318 = vmatpush2.bf16.msra.mxu0 0
      %2319 = vmatprep.mubr.bf16.mxu0 0
      %2320 = vmatmul.mubr.bf16.gmra.mxu0 %v2222
      %v2321 = vpop.f32.mrf.mxu0
      %v2322 = vadd.f32 0.0, %v2321
      %v2323 = vpop.f32.mrf.mxu0
      %v2324 = vpop.f32.mrf.mxu0
      %v2325 = vadd.f32 0.0, %v2324
      %v2326 = vpop.f32.mrf.mxu0
      %2327 = vmatprep.mubr.bf16.mxu0 0
      %2328 = vmatmul.mubr.bf16.gmra.mxu0 %v2225
      %v2329 = vpop.f32.mrf.mxu0
      %v2330 = vadd.f32 0.0, %v2329
      %v2331 = vpop.f32.mrf.mxu0
      %v2332 = vpop.f32.mrf.mxu0
      %v2333 = vadd.f32 0.0, %v2332
      %v2334 = vpop.f32.mrf.mxu0
      %2335 = vmatprep.mubr.bf16.mxu0 0
      %2336 = vmatmul.mubr.bf16.gmra.mxu0 %v2228
      %v2337 = vpop.f32.mrf.mxu0
      %v2338 = vadd.f32 0.0, %v2337
      %v2339 = vpop.f32.mrf.mxu0
      %v2340 = vpop.f32.mrf.mxu0
      %v2341 = vadd.f32 0.0, %v2340
      %v2342 = vpop.f32.mrf.mxu0
      %2343 = vmatprep.mubr.bf16.mxu0 0
      %2344 = vmatmul.mubr.bf16.gmra.mxu0 %v2231
      %v2345 = vpop.f32.mrf.mxu0
      %v2346 = vadd.f32 0.0, %v2345
      %v2347 = vpop.f32.mrf.mxu0
      %v2348 = vpop.f32.mrf.mxu0
      %v2349 = vadd.f32 0.0, %v2348
      %v2350 = vpop.f32.mrf.mxu0
      %2351 = vmatprep.mubr.bf16.mxu0 0
      %2352 = vmatmul.mubr.bf16.gmra.mxu0 %v2234
      %v2353 = vpop.f32.mrf.mxu0
      %v2354 = vadd.f32 0.0, %v2353
      %v2355 = vpop.f32.mrf.mxu0
      %v2356 = vpop.f32.mrf.mxu0
      %v2357 = vadd.f32 0.0, %v2356
      %v2358 = vpop.f32.mrf.mxu0
      %2359 = vmatprep.mubr.bf16.mxu0 0
      %2360 = vmatmul.mubr.bf16.gmra.mxu0 %v2237
      %v2361 = vpop.f32.mrf.mxu0
      %v2362 = vadd.f32 0.0, %v2361
      %v2363 = vpop.f32.mrf.mxu0
      %v2364 = vpop.f32.mrf.mxu0
      %v2365 = vadd.f32 0.0, %v2364
      %v2366 = vpop.f32.mrf.mxu0
      %2367 = vmatprep.mubr.bf16.mxu0 0
      %2368 = vmatmul.mubr.bf16.gmra.mxu0 %v2240
      %v2369 = vpop.f32.mrf.mxu0
      %v2370 = vadd.f32 0.0, %v2369
      %v2371 = vpop.f32.mrf.mxu0
      %v2372 = vpop.f32.mrf.mxu0
      %v2373 = vadd.f32 0.0, %v2372
      %v2374 = vpop.f32.mrf.mxu0
      %2375 = vmatprep.mubr.bf16.mxu0 0
      %2376 = vmatmul.mubr.bf16.gmra.mxu0 %v2243
      %v2377 = vpop.f32.mrf.mxu0
      %v2378 = vadd.f32 0.0, %v2377
      %v2379 = vpop.f32.mrf.mxu0
      %v2380 = vpop.f32.mrf.mxu0
      %v2381 = vadd.f32 0.0, %v2380
      %v2382 = vpop.f32.mrf.mxu0
      %2383 = vmatprep.mubr.bf16.mxu0 0
      %2384 = vmatmul.mubr.bf16.gmra.mxu0 %v2246
      %v2385 = vpop.f32.mrf.mxu0
      %v2386 = vadd.f32 0.0, %v2385
      %v2387 = vpop.f32.mrf.mxu0
      %v2388 = vpop.f32.mrf.mxu0
      %v2389 = vadd.f32 0.0, %v2388
      %v2390 = vpop.f32.mrf.mxu0
      %2391 = vmatprep.mubr.bf16.mxu0 0
      %2392 = vmatmul.mubr.bf16.gmra.mxu0 %v2249
      %v2393 = vpop.f32.mrf.mxu0
      %v2394 = vadd.f32 0.0, %v2393
      %v2395 = vpop.f32.mrf.mxu0
      %v2396 = vpop.f32.mrf.mxu0
      %v2397 = vadd.f32 0.0, %v2396
      %v2398 = vpop.f32.mrf.mxu0
      %2399 = vmatprep.mubr.bf16.mxu0 0
      %2400 = vmatmul.mubr.bf16.gmra.mxu0 %v2252
      %v2401 = vpop.f32.mrf.mxu0
      %v2402 = vadd.f32 0.0, %v2401
      %v2403 = vpop.f32.mrf.mxu0
      %v2404 = vpop.f32.mrf.mxu0
      %v2405 = vadd.f32 0.0, %v2404
      %v2406 = vpop.f32.mrf.mxu0
      %2407 = vmatprep.mubr.bf16.mxu0 0
      %2408 = vmatmul.mubr.bf16.gmra.mxu0 %v2255
      %v2409 = vpop.f32.mrf.mxu0
      %v2410 = vadd.f32 0.0, %v2409
      %v2411 = vpop.f32.mrf.mxu0
      %v2412 = vpop.f32.mrf.mxu0
      %v2413 = vadd.f32 0.0, %v2412
      %v2414 = vpop.f32.mrf.mxu0
      %2415 = vmatprep.mubr.bf16.mxu0 0
      %2416 = vmatmul.mubr.bf16.gmra.mxu0 %v2258
      %v2417 = vpop.f32.mrf.mxu0
      %v2418 = vadd.f32 0.0, %v2417
      %v2419 = vpop.f32.mrf.mxu0
      %v2420 = vpop.f32.mrf.mxu0
      %v2421 = vadd.f32 0.0, %v2420
      %v2422 = vpop.f32.mrf.mxu0
      %2423 = vmatprep.mubr.bf16.mxu0 0
      %2424 = vmatmul.mubr.bf16.gmra.mxu0 %v2261
      %v2425 = vpop.f32.mrf.mxu0
      %v2426 = vadd.f32 0.0, %v2425
      %v2427 = vpop.f32.mrf.mxu0
      %v2428 = vpop.f32.mrf.mxu0
      %v2429 = vadd.f32 0.0, %v2428
      %v2430 = vpop.f32.mrf.mxu0
      %2431 = vmatprep.mubr.bf16.mxu0 0
      %2432 = vmatmul.mubr.bf16.gmra.mxu0 %v2264
      %v2433 = vpop.f32.mrf.mxu0
      %v2434 = vadd.f32 0.0, %v2433
      %v2435 = vpop.f32.mrf.mxu0
      %v2436 = vpop.f32.mrf.mxu0
      %v2437 = vadd.f32 0.0, %v2436
      %v2438 = vpop.f32.mrf.mxu0
      %2439 = vmatprep.mubr.bf16.mxu0 0
      %2440 = vmatmul.mubr.bf16.gmra.mxu0 %v2267
      %v2441 = vpop.f32.mrf.mxu0
      %v2442 = vadd.f32 0.0, %v2441
      %v2443 = vpop.f32.mrf.mxu0
      %v2444 = vpop.f32.mrf.mxu0
      %v2445 = vadd.f32 0.0, %v2444
      %v2446 = vpop.f32.mrf.mxu0
      %2447 = vmatprep.mubr.bf16.mxu0 0
      %2448 = vmatmul.mubr.bf16.gmra.mxu0 %v2270
      %v2449 = vpop.f32.mrf.mxu0
      %v2450 = vadd.f32 0.0, %v2449
      %v2451 = vpop.f32.mrf.mxu0
      %v2452 = vpop.f32.mrf.mxu0
      %v2453 = vadd.f32 0.0, %v2452
      %v2454 = vpop.f32.mrf.mxu0
      %2455 = vmatprep.mubr.bf16.mxu0 0
      %2456 = vmatmul.mubr.bf16.gmra.mxu0 %v2273
      %v2457 = vpop.f32.mrf.mxu0
      %v2458 = vadd.f32 0.0, %v2457
      %v2459 = vpop.f32.mrf.mxu0
      %v2460 = vpop.f32.mrf.mxu0
      %v2461 = vadd.f32 0.0, %v2460
      %v2462 = vpop.f32.mrf.mxu0
      %2463 = vmatprep.mubr.bf16.mxu0 0
      %2464 = vmatmul.mubr.bf16.gmra.mxu0 %v2276
      %v2465 = vpop.f32.mrf.mxu0
      %v2466 = vadd.f32 0.0, %v2465
      %v2467 = vpop.f32.mrf.mxu0
      %v2468 = vpop.f32.mrf.mxu0
      %v2469 = vadd.f32 0.0, %v2468
      %v2470 = vpop.f32.mrf.mxu0
      %2471 = vmatprep.mubr.bf16.mxu0 0
      %2472 = vmatmul.mubr.bf16.gmra.mxu0 %v2279
      %v2473 = vpop.f32.mrf.mxu0
      %v2474 = vadd.f32 0.0, %v2473
      %v2475 = vpop.f32.mrf.mxu0
      %v2476 = vpop.f32.mrf.mxu0
      %v2477 = vadd.f32 0.0, %v2476
      %v2478 = vpop.f32.mrf.mxu0
      %2479 = vmatprep.mubr.bf16.mxu0 0
      %2480 = vmatmul.mubr.bf16.gmra.mxu0 %v2282
      %v2481 = vpop.f32.mrf.mxu0
      %v2482 = vadd.f32 0.0, %v2481
      %v2483 = vpop.f32.mrf.mxu0
      %v2484 = vpop.f32.mrf.mxu0
      %v2485 = vpop.f32.mrf.mxu0
      %2486 = vdwg.mxu0
      %v2487 = vadd.f32 %v1985, %v2322
      %v2488 = vadd.f32 %v1986, %v2325
      %v2489 = vadd.f32 %v1987, %v2330
      %v2490 = vadd.f32 %v1988, %v2333
      %v2491 = vadd.f32 %v1989, %v2338
      %v2492 = vadd.f32 %v1990, %v2341
      %v2493 = vadd.f32 %v1991, %v2346
      %v2494 = vadd.f32 %v1992, %v2349
      %v2495 = vadd.f32 %v1993, %v2354
      %v2496 = vadd.f32 %v1994, %v2357
      %v2497 = vadd.f32 %v1995, %v2362
      %v2498 = vadd.f32 %v1996, %v2365
      %v2499 = vadd.f32 %v1997, %v2370
      %v2500 = vadd.f32 %v1998, %v2373
      %v2501 = vadd.f32 %v1999, %v2378
      %v2502 = vadd.f32 %v2000, %v2381
      %v2503 = vadd.f32 %v2001, %v2386
      %v2504 = vadd.f32 %v2002, %v2389
      %v2505 = vadd.f32 %v2003, %v2394
      %v2506 = vadd.f32 %v2004, %v2397
      %v2507 = vadd.f32 %v2005, %v2402
      %v2508 = vadd.f32 %v2006, %v2405
      %v2509 = vadd.f32 %v2007, %v2410
      %v2510 = vadd.f32 %v2008, %v2413
      %v2511 = vadd.f32 %v2009, %v2418
      %v2512 = vadd.f32 %v2010, %v2421
      %v2513 = vadd.f32 %v2011, %v2426
      %v2514 = vadd.f32 %v2012, %v2429
      %v2515 = vadd.f32 %v2013, %v2434
      %v2516 = vadd.f32 %v2014, %v2437
      %v2517 = vadd.f32 %v2015, %v2442
      %v2518 = vadd.f32 %v2016, %v2445
      %v2519 = vadd.f32 %v2017, %v2450
      %v2520 = vadd.f32 %v2018, %v2453
      %v2521 = vadd.f32 %v2019, %v2458
      %v2522 = vadd.f32 %v2020, %v2461
      %v2523 = vadd.f32 %v2021, %v2466
      %v2524 = vadd.f32 %v2022, %v2469
      %v2525 = vadd.f32 %v2023, %v2474
      %v2526 = vadd.f32 %v2024, %v2477
      %v2527 = vadd.f32 %v2025, %v2482
      %v2528 = vld [vmem:[%s311 + $0x8] sm:$0xc]
      %s2529 = scalar_lea.vmem %s3, 20
      %v2530 = vld [vmem:[%s2529] sm:$0xf]
      %v2532 = vunpack.c.l.b16 %v2528
      %v2533 = vpack.c.b16 %v1617, %v2532
      %vm2534 = vcmask 1045504
      %v2535 = vrot.slane %v2533, 2
      %v2536 = vrot.slane %v1658, 2
      %v2537 = vsel %vm2534, %v2535, %v2536
      %v2538 = vrot.slane %v1659, 2
      %v2539 = vsel %vm2534, %v2536, %v2538
      %v2540 = vrot.slane %v1660, 2
      %v2541 = vsel %vm2534, %v2538, %v2540
      %v2542 = vrot.slane %v1661, 2
      %v2543 = vsel %vm2534, %v2540, %v2542
      %v2544 = vrot.slane %v1662, 2
      %v2545 = vsel %vm2534, %v2542, %v2544
      %v2546 = vrot.slane %v1663, 2
      %v2547 = vsel %vm2534, %v2544, %v2546
      %v2548 = vrot.slane %v1664, 2
      %v2549 = vsel %vm2534, %v2546, %v2548
      %v2550 = vrot.slane %v1665, 2
      %v2551 = vsel %vm2534, %v2548, %v2550
      %v2552 = vrot.slane %v1666, 2
      %v2553 = vsel %vm2534, %v2550, %v2552
      %v2554 = vrot.slane %v1667, 2
      %v2555 = vsel %vm2534, %v2552, %v2554
      %v2556 = vrot.slane %v1668, 2
      %v2557 = vsel %vm2534, %v2554, %v2556
      %v2558 = vrot.slane %v1669, 2
      %v2559 = vsel %vm2534, %v2556, %v2558
      %v2560 = vrot.slane %v1670, 2
      %v2561 = vsel %vm2534, %v2558, %v2560
      %v2562 = vrot.slane %v1671, 2
      %v2563 = vsel %vm2534, %v2560, %v2562
      %v2564 = vrot.slane %v1672, 2
      %v2565 = vsel %vm2534, %v2562, %v2564
      %v2566 = vrot.slane %v1673, 2
      %v2567 = vsel %vm2534, %v2564, %v2566
      %v2568 = vrot.slane %v1674, 2
      %v2569 = vsel %vm2534, %v2566, %v2568
      %v2570 = vrot.slane %v1675, 2
      %v2571 = vsel %vm2534, %v2568, %v2570
      %v2572 = vrot.slane %v1676, 2
      %v2573 = vsel %vm2534, %v2570, %v2572
      %v2574 = vrot.slane %v2031, 2
      %v2575 = vsel %vm2534, %v2572, %v2574
      %v2577 = vsel %vm660, %v2537, 0
      %v2580 = vsel %vm660, %v2539, 0
      %v2583 = vsel %vm660, %v2541, 0
      %v2586 = vsel %vm660, %v2543, 0
      %v2589 = vsel %vm660, %v2545, 0
      %v2592 = vsel %vm660, %v2547, 0
      %v2595 = vsel %vm660, %v2549, 0
      %v2598 = vsel %vm660, %v2551, 0
      %v2601 = vsel %vm660, %v2553, 0
      %v2604 = vsel %vm660, %v2555, 0
      %v2607 = vsel %vm660, %v2557, 0
      %v2610 = vsel %vm660, %v2559, 0
      %v2613 = vsel %vm660, %v2561, 0
      %v2616 = vsel %vm660, %v2563, 0
      %v2619 = vsel %vm660, %v2565, 0
      %v2622 = vsel %vm660, %v2567, 0
      %v2625 = vsel %vm660, %v2569, 0
      %v2628 = vsel %vm660, %v2571, 0
      %v2631 = vsel %vm660, %v2573, 0
      %v2634 = vsel %vm660, %v2575, 0
      %v2637 = vsel %vm660, %v2574, 0
      %v2640 = vsel %vm724, %v2530, 0
      %2642 = vmatprep.subr.bf16.mxu0 0
      %2643 = vmatpush1.bf16.msra.mxu0 0
      %2644 = vmatprep.subr.bf16.mxu0 0
      %2645 = vmatpush1.bf16.msra.mxu0 0
      %2646 = vmatprep.subr.bf16.mxu0 0
      %2647 = vmatpush1.bf16.msra.mxu0 0
      %2648 = vmatprep.subr.bf16.mxu0 0
      %2649 = vmatpush1.bf16.msra.mxu0 0
      %2650 = vmatprep.subr.bf16.mxu0 0
      %2651 = vmatpush1.bf16.msra.mxu0 0
      %2652 = vmatprep.subr.bf16.mxu0 0
      %2653 = vmatpush1.bf16.msra.mxu0 0
      %2654 = vmatprep.subr.bf16.mxu0 0
      %2655 = vmatpush1.bf16.msra.mxu0 0
      %2656 = vmatprep.subr.bf16.mxu0 0
      %2657 = vmatpush1.bf16.msra.mxu0 %v2640
      %2658 = vmatprep.subr.bf16.mxu0 0
      %2659 = vmatpush2.bf16.msra.mxu0 0
      %2660 = vmatprep.subr.bf16.mxu0 0
      %2661 = vmatpush2.bf16.msra.mxu0 0
      %2662 = vmatprep.subr.bf16.mxu0 0
      %2663 = vmatpush2.bf16.msra.mxu0 0
      %2664 = vmatprep.subr.bf16.mxu0 0
      %2665 = vmatpush2.bf16.msra.mxu0 0
      %2666 = vmatprep.subr.bf16.mxu0 0
      %2667 = vmatpush2.bf16.msra.mxu0 0
      %2668 = vmatprep.subr.bf16.mxu0 0
      %2669 = vmatpush2.bf16.msra.mxu0 0
      %2670 = vmatprep.subr.bf16.mxu0 0
      %2671 = vmatpush2.bf16.msra.mxu0 0
      %2672 = vmatprep.subr.bf16.mxu0 0
      %2673 = vmatpush2.bf16.msra.mxu0 0
      %2674 = vmatprep.mubr.bf16.mxu0 0
      %2675 = vmatmul.mubr.bf16.gmra.mxu0 %v2577
      %v2676 = vpop.f32.mrf.mxu0
      %v2677 = vadd.f32 0.0, %v2676
      %v2678 = vpop.f32.mrf.mxu0
      %v2679 = vpop.f32.mrf.mxu0
      %v2680 = vadd.f32 0.0, %v2679
      %v2681 = vpop.f32.mrf.mxu0
      %2682 = vmatprep.mubr.bf16.mxu0 0
      %2683 = vmatmul.mubr.bf16.gmra.mxu0 %v2580
      %v2684 = vpop.f32.mrf.mxu0
      %v2685 = vadd.f32 0.0, %v2684
      %v2686 = vpop.f32.mrf.mxu0
      %v2687 = vpop.f32.mrf.mxu0
      %v2688 = vadd.f32 0.0, %v2687
      %v2689 = vpop.f32.mrf.mxu0
      %2690 = vmatprep.mubr.bf16.mxu0 0
      %2691 = vmatmul.mubr.bf16.gmra.mxu0 %v2583
      %v2692 = vpop.f32.mrf.mxu0
      %v2693 = vadd.f32 0.0, %v2692
      %v2694 = vpop.f32.mrf.mxu0
      %v2695 = vpop.f32.mrf.mxu0
      %v2696 = vadd.f32 0.0, %v2695
      %v2697 = vpop.f32.mrf.mxu0
      %2698 = vmatprep.mubr.bf16.mxu0 0
      %2699 = vmatmul.mubr.bf16.gmra.mxu0 %v2586
      %v2700 = vpop.f32.mrf.mxu0
      %v2701 = vadd.f32 0.0, %v2700
      %v2702 = vpop.f32.mrf.mxu0
      %v2703 = vpop.f32.mrf.mxu0
      %v2704 = vadd.f32 0.0, %v2703
      %v2705 = vpop.f32.mrf.mxu0
      %2706 = vmatprep.mubr.bf16.mxu0 0
      %2707 = vmatmul.mubr.bf16.gmra.mxu0 %v2589
      %v2708 = vpop.f32.mrf.mxu0
      %v2709 = vadd.f32 0.0, %v2708
      %v2710 = vpop.f32.mrf.mxu0
      %v2711 = vpop.f32.mrf.mxu0
      %v2712 = vadd.f32 0.0, %v2711
      %v2713 = vpop.f32.mrf.mxu0
      %2714 = vmatprep.mubr.bf16.mxu0 0
      %2715 = vmatmul.mubr.bf16.gmra.mxu0 %v2592
      %v2716 = vpop.f32.mrf.mxu0
      %v2717 = vadd.f32 0.0, %v2716
      %v2718 = vpop.f32.mrf.mxu0
      %v2719 = vpop.f32.mrf.mxu0
      %v2720 = vadd.f32 0.0, %v2719
      %v2721 = vpop.f32.mrf.mxu0
      %2722 = vmatprep.mubr.bf16.mxu0 0
      %2723 = vmatmul.mubr.bf16.gmra.mxu0 %v2595
      %v2724 = vpop.f32.mrf.mxu0
      %v2725 = vadd.f32 0.0, %v2724
      %v2726 = vpop.f32.mrf.mxu0
      %v2727 = vpop.f32.mrf.mxu0
      %v2728 = vadd.f32 0.0, %v2727
      %v2729 = vpop.f32.mrf.mxu0
      %2730 = vmatprep.mubr.bf16.mxu0 0
      %2731 = vmatmul.mubr.bf16.gmra.mxu0 %v2598
      %v2732 = vpop.f32.mrf.mxu0
      %v2733 = vadd.f32 0.0, %v2732
      %v2734 = vpop.f32.mrf.mxu0
      %v2735 = vpop.f32.mrf.mxu0
      %v2736 = vadd.f32 0.0, %v2735
      %v2737 = vpop.f32.mrf.mxu0
      %2738 = vmatprep.mubr.bf16.mxu0 0
      %2739 = vmatmul.mubr.bf16.gmra.mxu0 %v2601
      %v2740 = vpop.f32.mrf.mxu0
      %v2741 = vadd.f32 0.0, %v2740
      %v2742 = vpop.f32.mrf.mxu0
      %v2743 = vpop.f32.mrf.mxu0
      %v2744 = vadd.f32 0.0, %v2743
      %v2745 = vpop.f32.mrf.mxu0
      %2746 = vmatprep.mubr.bf16.mxu0 0
      %2747 = vmatmul.mubr.bf16.gmra.mxu0 %v2604
      %v2748 = vpop.f32.mrf.mxu0
      %v2749 = vadd.f32 0.0, %v2748
      %v2750 = vpop.f32.mrf.mxu0
      %v2751 = vpop.f32.mrf.mxu0
      %v2752 = vadd.f32 0.0, %v2751
      %v2753 = vpop.f32.mrf.mxu0
      %2754 = vmatprep.mubr.bf16.mxu0 0
      %2755 = vmatmul.mubr.bf16.gmra.mxu0 %v2607
      %v2756 = vpop.f32.mrf.mxu0
      %v2757 = vadd.f32 0.0, %v2756
      %v2758 = vpop.f32.mrf.mxu0
      %v2759 = vpop.f32.mrf.mxu0
      %v2760 = vadd.f32 0.0, %v2759
      %v2761 = vpop.f32.mrf.mxu0
      %2762 = vmatprep.mubr.bf16.mxu0 0
      %2763 = vmatmul.mubr.bf16.gmra.mxu0 %v2610
      %v2764 = vpop.f32.mrf.mxu0
      %v2765 = vadd.f32 0.0, %v2764
      %v2766 = vpop.f32.mrf.mxu0
      %v2767 = vpop.f32.mrf.mxu0
      %v2768 = vadd.f32 0.0, %v2767
      %v2769 = vpop.f32.mrf.mxu0
      %2770 = vmatprep.mubr.bf16.mxu0 0
      %2771 = vmatmul.mubr.bf16.gmra.mxu0 %v2613
      %v2772 = vpop.f32.mrf.mxu0
      %v2773 = vadd.f32 0.0, %v2772
      %v2774 = vpop.f32.mrf.mxu0
      %v2775 = vpop.f32.mrf.mxu0
      %v2776 = vadd.f32 0.0, %v2775
      %v2777 = vpop.f32.mrf.mxu0
      %2778 = vmatprep.mubr.bf16.mxu0 0
      %2779 = vmatmul.mubr.bf16.gmra.mxu0 %v2616
      %v2780 = vpop.f32.mrf.mxu0
      %v2781 = vadd.f32 0.0, %v2780
      %v2782 = vpop.f32.mrf.mxu0
      %v2783 = vpop.f32.mrf.mxu0
      %v2784 = vadd.f32 0.0, %v2783
      %v2785 = vpop.f32.mrf.mxu0
      %2786 = vmatprep.mubr.bf16.mxu0 0
      %2787 = vmatmul.mubr.bf16.gmra.mxu0 %v2619
      %v2788 = vpop.f32.mrf.mxu0
      %v2789 = vadd.f32 0.0, %v2788
      %v2790 = vpop.f32.mrf.mxu0
      %v2791 = vpop.f32.mrf.mxu0
      %v2792 = vadd.f32 0.0, %v2791
      %v2793 = vpop.f32.mrf.mxu0
      %2794 = vmatprep.mubr.bf16.mxu0 0
      %2795 = vmatmul.mubr.bf16.gmra.mxu0 %v2622
      %v2796 = vpop.f32.mrf.mxu0
      %v2797 = vadd.f32 0.0, %v2796
      %v2798 = vpop.f32.mrf.mxu0
      %v2799 = vpop.f32.mrf.mxu0
      %v2800 = vadd.f32 0.0, %v2799
      %v2801 = vpop.f32.mrf.mxu0
      %2802 = vmatprep.mubr.bf16.mxu0 0
      %2803 = vmatmul.mubr.bf16.gmra.mxu0 %v2625
      %v2804 = vpop.f32.mrf.mxu0
      %v2805 = vadd.f32 0.0, %v2804
      %v2806 = vpop.f32.mrf.mxu0
      %v2807 = vpop.f32.mrf.mxu0
      %v2808 = vadd.f32 0.0, %v2807
      %v2809 = vpop.f32.mrf.mxu0
      %2810 = vmatprep.mubr.bf16.mxu0 0
      %2811 = vmatmul.mubr.bf16.gmra.mxu0 %v2628
      %v2812 = vpop.f32.mrf.mxu0
      %v2813 = vadd.f32 0.0, %v2812
      %v2814 = vpop.f32.mrf.mxu0
      %v2815 = vpop.f32.mrf.mxu0
      %v2816 = vadd.f32 0.0, %v2815
      %v2817 = vpop.f32.mrf.mxu0
      %2818 = vmatprep.mubr.bf16.mxu0 0
      %2819 = vmatmul.mubr.bf16.gmra.mxu0 %v2631
      %v2820 = vpop.f32.mrf.mxu0
      %v2821 = vadd.f32 0.0, %v2820
      %v2822 = vpop.f32.mrf.mxu0
      %v2823 = vpop.f32.mrf.mxu0
      %v2824 = vadd.f32 0.0, %v2823
      %v2825 = vpop.f32.mrf.mxu0
      %2826 = vmatprep.mubr.bf16.mxu0 0
      %2827 = vmatmul.mubr.bf16.gmra.mxu0 %v2634
      %v2828 = vpop.f32.mrf.mxu0
      %v2829 = vadd.f32 0.0, %v2828
      %v2830 = vpop.f32.mrf.mxu0
      %v2831 = vpop.f32.mrf.mxu0
      %v2832 = vadd.f32 0.0, %v2831
      %v2833 = vpop.f32.mrf.mxu0
      %2834 = vmatprep.mubr.bf16.mxu0 0
      %2835 = vmatmul.mubr.bf16.gmra.mxu0 %v2637
      %v2836 = vpop.f32.mrf.mxu0
      %v2837 = vadd.f32 0.0, %v2836
      %v2838 = vpop.f32.mrf.mxu0
      %v2839 = vpop.f32.mrf.mxu0
      %v2840 = vpop.f32.mrf.mxu0
      %2841 = vdwg.mxu0
      %v2842 = vadd.f32 %v2487, %v2677
      %v2843 = vadd.f32 %v2488, %v2680
      %v2844 = vadd.f32 %v2489, %v2685
      %v2845 = vadd.f32 %v2490, %v2688
      %v2846 = vadd.f32 %v2491, %v2693
      %v2847 = vadd.f32 %v2492, %v2696
      %v2848 = vadd.f32 %v2493, %v2701
      %v2849 = vadd.f32 %v2494, %v2704
      %v2850 = vadd.f32 %v2495, %v2709
      %v2851 = vadd.f32 %v2496, %v2712
      %v2852 = vadd.f32 %v2497, %v2717
      %v2853 = vadd.f32 %v2498, %v2720
      %v2854 = vadd.f32 %v2499, %v2725
      %v2855 = vadd.f32 %v2500, %v2728
      %v2856 = vadd.f32 %v2501, %v2733
      %v2857 = vadd.f32 %v2502, %v2736
      %v2858 = vadd.f32 %v2503, %v2741
      %v2859 = vadd.f32 %v2504, %v2744
      %v2860 = vadd.f32 %v2505, %v2749
      %v2861 = vadd.f32 %v2506, %v2752
      %v2862 = vadd.f32 %v2507, %v2757
      %v2863 = vadd.f32 %v2508, %v2760
      %v2864 = vadd.f32 %v2509, %v2765
      %v2865 = vadd.f32 %v2510, %v2768
      %v2866 = vadd.f32 %v2511, %v2773
      %v2867 = vadd.f32 %v2512, %v2776
      %v2868 = vadd.f32 %v2513, %v2781
      %v2869 = vadd.f32 %v2514, %v2784
      %v2870 = vadd.f32 %v2515, %v2789
      %v2871 = vadd.f32 %v2516, %v2792
      %v2872 = vadd.f32 %v2517, %v2797
      %v2873 = vadd.f32 %v2518, %v2800
      %v2874 = vadd.f32 %v2519, %v2805
      %v2875 = vadd.f32 %v2520, %v2808
      %v2876 = vadd.f32 %v2521, %v2813
      %v2877 = vadd.f32 %v2522, %v2816
      %v2878 = vadd.f32 %v2523, %v2821
      %v2879 = vadd.f32 %v2524, %v2824
      %v2880 = vadd.f32 %v2525, %v2829
      %v2881 = vadd.f32 %v2526, %v2832
      %v2882 = vadd.f32 %v2527, %v2837
      %v2883 = vld [vmem:[%s311 + $0x10] sm:$0xc]
      %v2884 = vld [vmem:[%s311 + $0x14] sm:$0xf]
      %v2885 = vld [vmem:[%s311 + $0x18] sm:$0xf]
      %v2886 = vld [vmem:[%s311 + $0x1c] sm:$0xf]
      %v2887 = vld [vmem:[%s311 + $0x20] sm:$0xf]
      %v2888 = vld [vmem:[%s311 + $0x24] sm:$0xf]
      %v2889 = vld [vmem:[%s311 + $0x28] sm:$0xf]
      %v2890 = vld [vmem:[%s311 + $0x2c] sm:$0xf]
      %v2891 = vld [vmem:[%s311 + $0x30] sm:$0xf]
      %v2892 = vld [vmem:[%s311 + $0x34] sm:$0xf]
      %v2893 = vld [vmem:[%s311 + $0x38] sm:$0xf]
      %v2894 = vld [vmem:[%s311 + $0x3c] sm:$0xf]
      %v2895 = vld [vmem:[%s311 + $0x40] sm:$0xf]
      %v2896 = vld [vmem:[%s311 + $0x44] sm:$0xf]
      %v2897 = vld [vmem:[%s311 + $0x48] sm:$0xf]
      %v2898 = vld [vmem:[%s311 + $0x4c] sm:$0xf]
      %v2899 = vld [vmem:[%s311 + $0x50] sm:$0xf]
      %v2900 = vld [vmem:[%s311 + $0x54] sm:$0xf]
      %v2901 = vld [vmem:[%s311 + $0x58] sm:$0xf]
      %v2902 = vld [vmem:[%s311 + $0x5c] sm:$0xf]
      %v2903 = vld [vmem:[%s311 + $0x60] sm:$0xf]
      %v2904 = vld [vmem:[%s311 + $0x64] sm:$0xf]
      %v2905 = vld [vmem:[%s311 + $0x68] sm:$0xf]
      %v2906 = vld [vmem:[%s311 + $0x6c] sm:$0xf]
      %v2907 = vld [vmem:[%s311 + $0x70] sm:$0xf]
      %v2908 = vld [vmem:[%s311 + $0x74] sm:$0xf]
      %v2909 = vld [vmem:[%s311 + $0x78] sm:$0xf]
      %v2910 = vld [vmem:[%s311 + $0x7c] sm:$0xf]
      %v2911 = vld [vmem:[%s311 + $0x80] sm:$0xf]
      %v2912 = vld [vmem:[%s311 + $0x84] sm:$0xf]
      %v2913 = vld [vmem:[%s311 + $0x88] sm:$0xf]
      %v2914 = vld [vmem:[%s311 + $0x8c] sm:$0xf]
      %v2915 = vld [vmem:[%s311 + $0x90] sm:$0xf]
      %v2916 = vld [vmem:[%s311 + $0x94] sm:$0xf]
      %v2917 = vld [vmem:[%s311 + $0x98] sm:$0xf]
      %v2918 = vld [vmem:[%s311 + $0x9c] sm:$0xf]
      %v2919 = vld [vmem:[%s311 + $0xa0] sm:$0xf]
      %v2920 = vld [vmem:[%s311 + $0xa4] sm:$0xf]
      %v2921 = vld [vmem:[%s311 + $0xa8] sm:$0xf]
      %v2922 = vld [vmem:[%s311 + $0xac] sm:$0xf]
      %v2923 = vld [vmem:[%s311 + $0xb0] sm:$0xf]
      %s2924 = scalar_lea.vmem %s3, 24
      %v2925 = vld [vmem:[%s2924] sm:$0xf]
      %v2967 = vunpack.c.l.b16 %v2883
      %v2968 = vunpack.c.l.b16 %v2884
      %v2969 = vunpack.c.l.b16 %v2885
      %v2970 = vunpack.c.l.b16 %v2886
      %v2971 = vunpack.c.l.b16 %v2887
      %v2972 = vunpack.c.l.b16 %v2888
      %v2973 = vunpack.c.l.b16 %v2889
      %v2974 = vunpack.c.l.b16 %v2890
      %v2975 = vunpack.c.l.b16 %v2891
      %v2976 = vunpack.c.l.b16 %v2892
      %v2977 = vunpack.c.l.b16 %v2893
      %v2978 = vunpack.c.l.b16 %v2894
      %v2979 = vunpack.c.l.b16 %v2895
      %v2980 = vunpack.c.l.b16 %v2896
      %v2981 = vunpack.c.l.b16 %v2897
      %v2982 = vunpack.c.l.b16 %v2898
      %v2983 = vunpack.c.l.b16 %v2899
      %v2984 = vunpack.c.l.b16 %v2900
      %v2985 = vunpack.c.l.b16 %v2901
      %v2986 = vunpack.c.l.b16 %v2902
      %v2987 = vunpack.c.l.b16 %v2903
      %v2988 = vunpack.c.l.b16 %v2904
      %v2989 = vunpack.c.l.b16 %v2905
      %v2990 = vunpack.c.l.b16 %v2906
      %v2991 = vunpack.c.l.b16 %v2907
      %v2992 = vunpack.c.l.b16 %v2908
      %v2993 = vunpack.c.l.b16 %v2909
      %v2994 = vunpack.c.l.b16 %v2910
      %v2995 = vunpack.c.l.b16 %v2911
      %v2996 = vunpack.c.l.b16 %v2912
      %v2997 = vunpack.c.l.b16 %v2913
      %v2998 = vunpack.c.l.b16 %v2914
      %v2999 = vunpack.c.l.b16 %v2915
      %v3000 = vunpack.c.l.b16 %v2916
      %v3001 = vunpack.c.l.b16 %v2917
      %v3002 = vunpack.c.l.b16 %v2918
      %v3003 = vunpack.c.l.b16 %v2919
      %v3004 = vunpack.c.l.b16 %v2920
      %v3005 = vunpack.c.l.b16 %v2921
      %v3006 = vunpack.c.l.b16 %v2922
      %v3007 = vunpack.c.l.b16 %v2923
      %v3008 = vpack.c.b16 %v2968, %v2967
      %v3009 = vpack.c.b16 %v2970, %v2969
      %v3010 = vpack.c.b16 %v2972, %v2971
      %v3011 = vpack.c.b16 %v2974, %v2973
      %v3012 = vpack.c.b16 %v2976, %v2975
      %v3013 = vpack.c.b16 %v2978, %v2977
      %v3014 = vpack.c.b16 %v2980, %v2979
      %v3015 = vpack.c.b16 %v2982, %v2981
      %v3016 = vpack.c.b16 %v2984, %v2983
      %v3017 = vpack.c.b16 %v2986, %v2985
      %v3018 = vpack.c.b16 %v2988, %v2987
      %v3019 = vpack.c.b16 %v2990, %v2989
      %v3020 = vpack.c.b16 %v2992, %v2991
      %v3021 = vpack.c.b16 %v2994, %v2993
      %v3022 = vpack.c.b16 %v2996, %v2995
      %v3023 = vpack.c.b16 %v2998, %v2997
      %v3024 = vpack.c.b16 %v3000, %v2999
      %v3025 = vpack.c.b16 %v3002, %v3001
      %v3026 = vpack.c.b16 %v3004, %v3003
      %v3027 = vpack.c.b16 %v3006, %v3005
      %v3028 = vpack.c.b16 %v3007, %v3007
      %v3029 = vrot.slane %v3008, 2
      %v3030 = vrot.slane %v3009, 2
      %v3031 = vsel %vm2534, %v3029, %v3030
      %v3032 = vrot.slane %v3010, 2
      %v3033 = vsel %vm2534, %v3030, %v3032
      %v3034 = vrot.slane %v3011, 2
      %v3035 = vsel %vm2534, %v3032, %v3034
      %v3036 = vrot.slane %v3012, 2
      %v3037 = vsel %vm2534, %v3034, %v3036
      %v3038 = vrot.slane %v3013, 2
      %v3039 = vsel %vm2534, %v3036, %v3038
      %v3040 = vrot.slane %v3014, 2
      %v3041 = vsel %vm2534, %v3038, %v3040
      %v3042 = vrot.slane %v3015, 2
      %v3043 = vsel %vm2534, %v3040, %v3042
      %v3044 = vrot.slane %v3016, 2
      %v3045 = vsel %vm2534, %v3042, %v3044
      %v3046 = vrot.slane %v3017, 2
      %v3047 = vsel %vm2534, %v3044, %v3046
      %v3048 = vrot.slane %v3018, 2
      %v3049 = vsel %vm2534, %v3046, %v3048
      %v3050 = vrot.slane %v3019, 2
      %v3051 = vsel %vm2534, %v3048, %v3050
      %v3052 = vrot.slane %v3020, 2
      %v3053 = vsel %vm2534, %v3050, %v3052
      %v3054 = vrot.slane %v3021, 2
      %v3055 = vsel %vm2534, %v3052, %v3054
      %v3056 = vrot.slane %v3022, 2
      %v3057 = vsel %vm2534, %v3054, %v3056
      %v3058 = vrot.slane %v3023, 2
      %v3059 = vsel %vm2534, %v3056, %v3058
      %v3060 = vrot.slane %v3024, 2
      %v3061 = vsel %vm2534, %v3058, %v3060
      %v3062 = vrot.slane %v3025, 2
      %v3063 = vsel %vm2534, %v3060, %v3062
      %v3064 = vrot.slane %v3026, 2
      %v3065 = vsel %vm2534, %v3062, %v3064
      %v3066 = vrot.slane %v3027, 2
      %v3067 = vsel %vm2534, %v3064, %v3066
      %v3068 = vrot.slane %v3028, 2
      %v3069 = vsel %vm2534, %v3066, %v3068
      %v3071 = vsel %vm660, %v3031, 0
      %v3074 = vsel %vm660, %v3033, 0
      %v3077 = vsel %vm660, %v3035, 0
      %v3080 = vsel %vm660, %v3037, 0
      %v3083 = vsel %vm660, %v3039, 0
      %v3086 = vsel %vm660, %v3041, 0
      %v3089 = vsel %vm660, %v3043, 0
      %v3092 = vsel %vm660, %v3045, 0
      %v3095 = vsel %vm660, %v3047, 0
      %v3098 = vsel %vm660, %v3049, 0
      %v3101 = vsel %vm660, %v3051, 0
      %v3104 = vsel %vm660, %v3053, 0
      %v3107 = vsel %vm660, %v3055, 0
      %v3110 = vsel %vm660, %v3057, 0
      %v3113 = vsel %vm660, %v3059, 0
      %v3116 = vsel %vm660, %v3061, 0
      %v3119 = vsel %vm660, %v3063, 0
      %v3122 = vsel %vm660, %v3065, 0
      %v3125 = vsel %vm660, %v3067, 0
      %v3128 = vsel %vm660, %v3069, 0
      %v3131 = vsel %vm660, %v3068, 0
      %v3134 = vsel %vm724, %v2925, 0
      %3136 = vmatprep.subr.bf16.mxu0 0
      %3137 = vmatpush1.bf16.msra.mxu0 0
      %3138 = vmatprep.subr.bf16.mxu0 0
      %3139 = vmatpush1.bf16.msra.mxu0 0
      %3140 = vmatprep.subr.bf16.mxu0 0
      %3141 = vmatpush1.bf16.msra.mxu0 0
      %3142 = vmatprep.subr.bf16.mxu0 0
      %3143 = vmatpush1.bf16.msra.mxu0 0
      %3144 = vmatprep.subr.bf16.mxu0 0
      %3145 = vmatpush1.bf16.msra.mxu0 0
      %3146 = vmatprep.subr.bf16.mxu0 0
      %3147 = vmatpush1.bf16.msra.mxu0 0
      %3148 = vmatprep.subr.bf16.mxu0 0
      %3149 = vmatpush1.bf16.msra.mxu0 0
      %3150 = vmatprep.subr.bf16.mxu0 0
      %3151 = vmatpush1.bf16.msra.mxu0 %v3134
      %3152 = vmatprep.subr.bf16.mxu0 0
      %3153 = vmatpush2.bf16.msra.mxu0 0
      %3154 = vmatprep.subr.bf16.mxu0 0
      %3155 = vmatpush2.bf16.msra.mxu0 0
      %3156 = vmatprep.subr.bf16.mxu0 0
      %3157 = vmatpush2.bf16.msra.mxu0 0
      %3158 = vmatprep.subr.bf16.mxu0 0
      %3159 = vmatpush2.bf16.msra.mxu0 0
      %3160 = vmatprep.subr.bf16.mxu0 0
      %3161 = vmatpush2.bf16.msra.mxu0 0
      %3162 = vmatprep.subr.bf16.mxu0 0
      %3163 = vmatpush2.bf16.msra.mxu0 0
      %3164 = vmatprep.subr.bf16.mxu0 0
      %3165 = vmatpush2.bf16.msra.mxu0 0
      %3166 = vmatprep.subr.bf16.mxu0 0
      %3167 = vmatpush2.bf16.msra.mxu0 0
      %3168 = vmatprep.mubr.bf16.mxu0 0
      %3169 = vmatmul.mubr.bf16.gmra.mxu0 %v3071
      %v3170 = vpop.f32.mrf.mxu0
      %v3171 = vadd.f32 0.0, %v3170
      %v3172 = vpop.f32.mrf.mxu0
      %v3173 = vpop.f32.mrf.mxu0
      %v3174 = vadd.f32 0.0, %v3173
      %v3175 = vpop.f32.mrf.mxu0
      %3176 = vmatprep.mubr.bf16.mxu0 0
      %3177 = vmatmul.mubr.bf16.gmra.mxu0 %v3074
      %v3178 = vpop.f32.mrf.mxu0
      %v3179 = vadd.f32 0.0, %v3178
      %v3180 = vpop.f32.mrf.mxu0
      %v3181 = vpop.f32.mrf.mxu0
      %v3182 = vadd.f32 0.0, %v3181
      %v3183 = vpop.f32.mrf.mxu0
      %3184 = vmatprep.mubr.bf16.mxu0 0
      %3185 = vmatmul.mubr.bf16.gmra.mxu0 %v3077
      %v3186 = vpop.f32.mrf.mxu0
      %v3187 = vadd.f32 0.0, %v3186
      %v3188 = vpop.f32.mrf.mxu0
      %v3189 = vpop.f32.mrf.mxu0
      %v3190 = vadd.f32 0.0, %v3189
      %v3191 = vpop.f32.mrf.mxu0
      %3192 = vmatprep.mubr.bf16.mxu0 0
      %3193 = vmatmul.mubr.bf16.gmra.mxu0 %v3080
      %v3194 = vpop.f32.mrf.mxu0
      %v3195 = vadd.f32 0.0, %v3194
      %v3196 = vpop.f32.mrf.mxu0
      %v3197 = vpop.f32.mrf.mxu0
      %v3198 = vadd.f32 0.0, %v3197
      %v3199 = vpop.f32.mrf.mxu0
      %3200 = vmatprep.mubr.bf16.mxu0 0
      %3201 = vmatmul.mubr.bf16.gmra.mxu0 %v3083
      %v3202 = vpop.f32.mrf.mxu0
      %v3203 = vadd.f32 0.0, %v3202
      %v3204 = vpop.f32.mrf.mxu0
      %v3205 = vpop.f32.mrf.mxu0
      %v3206 = vadd.f32 0.0, %v3205
      %v3207 = vpop.f32.mrf.mxu0
      %3208 = vmatprep.mubr.bf16.mxu0 0
      %3209 = vmatmul.mubr.bf16.gmra.mxu0 %v3086
      %v3210 = vpop.f32.mrf.mxu0
      %v3211 = vadd.f32 0.0, %v3210
      %v3212 = vpop.f32.mrf.mxu0
      %v3213 = vpop.f32.mrf.mxu0
      %v3214 = vadd.f32 0.0, %v3213
      %v3215 = vpop.f32.mrf.mxu0
      %3216 = vmatprep.mubr.bf16.mxu0 0
      %3217 = vmatmul.mubr.bf16.gmra.mxu0 %v3089
      %v3218 = vpop.f32.mrf.mxu0
      %v3219 = vadd.f32 0.0, %v3218
      %v3220 = vpop.f32.mrf.mxu0
      %v3221 = vpop.f32.mrf.mxu0
      %v3222 = vadd.f32 0.0, %v3221
      %v3223 = vpop.f32.mrf.mxu0
      %3224 = vmatprep.mubr.bf16.mxu0 0
      %3225 = vmatmul.mubr.bf16.gmra.mxu0 %v3092
      %v3226 = vpop.f32.mrf.mxu0
      %v3227 = vadd.f32 0.0, %v3226
      %v3228 = vpop.f32.mrf.mxu0
      %v3229 = vpop.f32.mrf.mxu0
      %v3230 = vadd.f32 0.0, %v3229
      %v3231 = vpop.f32.mrf.mxu0
      %3232 = vmatprep.mubr.bf16.mxu0 0
      %3233 = vmatmul.mubr.bf16.gmra.mxu0 %v3095
      %v3234 = vpop.f32.mrf.mxu0
      %v3235 = vadd.f32 0.0, %v3234
      %v3236 = vpop.f32.mrf.mxu0
      %v3237 = vpop.f32.mrf.mxu0
      %v3238 = vadd.f32 0.0, %v3237
      %v3239 = vpop.f32.mrf.mxu0
      %3240 = vmatprep.mubr.bf16.mxu0 0
      %3241 = vmatmul.mubr.bf16.gmra.mxu0 %v3098
      %v3242 = vpop.f32.mrf.mxu0
      %v3243 = vadd.f32 0.0, %v3242
      %v3244 = vpop.f32.mrf.mxu0
      %v3245 = vpop.f32.mrf.mxu0
      %v3246 = vadd.f32 0.0, %v3245
      %v3247 = vpop.f32.mrf.mxu0
      %3248 = vmatprep.mubr.bf16.mxu0 0
      %3249 = vmatmul.mubr.bf16.gmra.mxu0 %v3101
      %v3250 = vpop.f32.mrf.mxu0
      %v3251 = vadd.f32 0.0, %v3250
      %v3252 = vpop.f32.mrf.mxu0
      %v3253 = vpop.f32.mrf.mxu0
      %v3254 = vadd.f32 0.0, %v3253
      %v3255 = vpop.f32.mrf.mxu0
      %3256 = vmatprep.mubr.bf16.mxu0 0
      %3257 = vmatmul.mubr.bf16.gmra.mxu0 %v3104
      %v3258 = vpop.f32.mrf.mxu0
      %v3259 = vadd.f32 0.0, %v3258
      %v3260 = vpop.f32.mrf.mxu0
      %v3261 = vpop.f32.mrf.mxu0
      %v3262 = vadd.f32 0.0, %v3261
      %v3263 = vpop.f32.mrf.mxu0
      %3264 = vmatprep.mubr.bf16.mxu0 0
      %3265 = vmatmul.mubr.bf16.gmra.mxu0 %v3107
      %v3266 = vpop.f32.mrf.mxu0
      %v3267 = vadd.f32 0.0, %v3266
      %v3268 = vpop.f32.mrf.mxu0
      %v3269 = vpop.f32.mrf.mxu0
      %v3270 = vadd.f32 0.0, %v3269
      %v3271 = vpop.f32.mrf.mxu0
      %3272 = vmatprep.mubr.bf16.mxu0 0
      %3273 = vmatmul.mubr.bf16.gmra.mxu0 %v3110
      %v3274 = vpop.f32.mrf.mxu0
      %v3275 = vadd.f32 0.0, %v3274
      %v3276 = vpop.f32.mrf.mxu0
      %v3277 = vpop.f32.mrf.mxu0
      %v3278 = vadd.f32 0.0, %v3277
      %v3279 = vpop.f32.mrf.mxu0
      %3280 = vmatprep.mubr.bf16.mxu0 0
      %3281 = vmatmul.mubr.bf16.gmra.mxu0 %v3113
      %v3282 = vpop.f32.mrf.mxu0
      %v3283 = vadd.f32 0.0, %v3282
      %v3284 = vpop.f32.mrf.mxu0
      %v3285 = vpop.f32.mrf.mxu0
      %v3286 = vadd.f32 0.0, %v3285
      %v3287 = vpop.f32.mrf.mxu0
      %3288 = vmatprep.mubr.bf16.mxu0 0
      %3289 = vmatmul.mubr.bf16.gmra.mxu0 %v3116
      %v3290 = vpop.f32.mrf.mxu0
      %v3291 = vadd.f32 0.0, %v3290
      %v3292 = vpop.f32.mrf.mxu0
      %v3293 = vpop.f32.mrf.mxu0
      %v3294 = vadd.f32 0.0, %v3293
      %v3295 = vpop.f32.mrf.mxu0
      %3296 = vmatprep.mubr.bf16.mxu0 0
      %3297 = vmatmul.mubr.bf16.gmra.mxu0 %v3119
      %v3298 = vpop.f32.mrf.mxu0
      %v3299 = vadd.f32 0.0, %v3298
      %v3300 = vpop.f32.mrf.mxu0
      %v3301 = vpop.f32.mrf.mxu0
      %v3302 = vadd.f32 0.0, %v3301
      %v3303 = vpop.f32.mrf.mxu0
      %3304 = vmatprep.mubr.bf16.mxu0 0
      %3305 = vmatmul.mubr.bf16.gmra.mxu0 %v3122
      %v3306 = vpop.f32.mrf.mxu0
      %v3307 = vadd.f32 0.0, %v3306
      %v3308 = vpop.f32.mrf.mxu0
      %v3309 = vpop.f32.mrf.mxu0
      %v3310 = vadd.f32 0.0, %v3309
      %v3311 = vpop.f32.mrf.mxu0
      %3312 = vmatprep.mubr.bf16.mxu0 0
      %3313 = vmatmul.mubr.bf16.gmra.mxu0 %v3125
      %v3314 = vpop.f32.mrf.mxu0
      %v3315 = vadd.f32 0.0, %v3314
      %v3316 = vpop.f32.mrf.mxu0
      %v3317 = vpop.f32.mrf.mxu0
      %v3318 = vadd.f32 0.0, %v3317
      %v3319 = vpop.f32.mrf.mxu0
      %3320 = vmatprep.mubr.bf16.mxu0 0
      %3321 = vmatmul.mubr.bf16.gmra.mxu0 %v3128
      %v3322 = vpop.f32.mrf.mxu0
      %v3323 = vadd.f32 0.0, %v3322
      %v3324 = vpop.f32.mrf.mxu0
      %v3325 = vpop.f32.mrf.mxu0
      %v3326 = vadd.f32 0.0, %v3325
      %v3327 = vpop.f32.mrf.mxu0
      %3328 = vmatprep.mubr.bf16.mxu0 0
      %3329 = vmatmul.mubr.bf16.gmra.mxu0 %v3131
      %v3330 = vpop.f32.mrf.mxu0
      %v3331 = vadd.f32 0.0, %v3330
      %v3332 = vpop.f32.mrf.mxu0
      %v3333 = vpop.f32.mrf.mxu0
      %v3334 = vpop.f32.mrf.mxu0
      %3335 = vdwg.mxu0
      %v3336 = vadd.f32 %v2842, %v3171
      %v3337 = vadd.f32 %v2843, %v3174
      %v3338 = vadd.f32 %v2844, %v3179
      %v3339 = vadd.f32 %v2845, %v3182
      %v3340 = vadd.f32 %v2846, %v3187
      %v3341 = vadd.f32 %v2847, %v3190
      %v3342 = vadd.f32 %v2848, %v3195
      %v3343 = vadd.f32 %v2849, %v3198
      %v3344 = vadd.f32 %v2850, %v3203
      %v3345 = vadd.f32 %v2851, %v3206
      %v3346 = vadd.f32 %v2852, %v3211
      %v3347 = vadd.f32 %v2853, %v3214
      %v3348 = vadd.f32 %v2854, %v3219
      %v3349 = vadd.f32 %v2855, %v3222
      %v3350 = vadd.f32 %v2856, %v3227
      %v3351 = vadd.f32 %v2857, %v3230
      %v3352 = vadd.f32 %v2858, %v3235
      %v3353 = vadd.f32 %v2859, %v3238
      %v3354 = vadd.f32 %v2860, %v3243
      %v3355 = vadd.f32 %v2861, %v3246
      %v3356 = vadd.f32 %v2862, %v3251
      %v3357 = vadd.f32 %v2863, %v3254
      %v3358 = vadd.f32 %v2864, %v3259
      %v3359 = vadd.f32 %v2865, %v3262
      %v3360 = vadd.f32 %v2866, %v3267
      %v3361 = vadd.f32 %v2867, %v3270
      %v3362 = vadd.f32 %v2868, %v3275
      %v3363 = vadd.f32 %v2869, %v3278
      %v3364 = vadd.f32 %v2870, %v3283
      %v3365 = vadd.f32 %v2871, %v3286
      %v3366 = vadd.f32 %v2872, %v3291
      %v3367 = vadd.f32 %v2873, %v3294
      %v3368 = vadd.f32 %v2874, %v3299
      %v3369 = vadd.f32 %v2875, %v3302
      %v3370 = vadd.f32 %v2876, %v3307
      %v3371 = vadd.f32 %v2877, %v3310
      %v3372 = vadd.f32 %v2878, %v3315
      %v3373 = vadd.f32 %v2879, %v3318
      %v3374 = vadd.f32 %v2880, %v3323
      %v3375 = vadd.f32 %v2881, %v3326
      %v3376 = vadd.f32 %v2882, %v3331
      %v3377 = vld [vmem:[%s311 + $0x10] sm:$0xc]
      %v3378 = vld [vmem:[%s311 + $0x14] sm:$0xf]
      %v3379 = vld [vmem:[%s311 + $0x18] sm:$0xf]
      %v3380 = vld [vmem:[%s311 + $0x1c] sm:$0xf]
      %v3381 = vld [vmem:[%s311 + $0x20] sm:$0xf]
      %v3382 = vld [vmem:[%s311 + $0x24] sm:$0xf]
      %v3383 = vld [vmem:[%s311 + $0x28] sm:$0xf]
      %v3384 = vld [vmem:[%s311 + $0x2c] sm:$0xf]
      %v3385 = vld [vmem:[%s311 + $0x30] sm:$0xf]
      %v3386 = vld [vmem:[%s311 + $0x34] sm:$0xf]
      %v3387 = vld [vmem:[%s311 + $0x38] sm:$0xf]
      %v3388 = vld [vmem:[%s311 + $0x3c] sm:$0xf]
      %v3389 = vld [vmem:[%s311 + $0x40] sm:$0xf]
      %v3390 = vld [vmem:[%s311 + $0x44] sm:$0xf]
      %v3391 = vld [vmem:[%s311 + $0x48] sm:$0xf]
      %v3392 = vld [vmem:[%s311 + $0x4c] sm:$0xf]
      %v3393 = vld [vmem:[%s311 + $0x50] sm:$0xf]
      %v3394 = vld [vmem:[%s311 + $0x54] sm:$0xf]
      %v3395 = vld [vmem:[%s311 + $0x58] sm:$0xf]
      %v3396 = vld [vmem:[%s311 + $0x5c] sm:$0xf]
      %v3397 = vld [vmem:[%s311 + $0x60] sm:$0xf]
      %v3398 = vld [vmem:[%s311 + $0x64] sm:$0xf]
      %v3399 = vld [vmem:[%s311 + $0x68] sm:$0xf]
      %v3400 = vld [vmem:[%s311 + $0x6c] sm:$0xf]
      %v3401 = vld [vmem:[%s311 + $0x70] sm:$0xf]
      %v3402 = vld [vmem:[%s311 + $0x74] sm:$0xf]
      %v3403 = vld [vmem:[%s311 + $0x78] sm:$0xf]
      %v3404 = vld [vmem:[%s311 + $0x7c] sm:$0xf]
      %v3405 = vld [vmem:[%s311 + $0x80] sm:$0xf]
      %v3406 = vld [vmem:[%s311 + $0x84] sm:$0xf]
      %v3407 = vld [vmem:[%s311 + $0x88] sm:$0xf]
      %v3408 = vld [vmem:[%s311 + $0x8c] sm:$0xf]
      %v3409 = vld [vmem:[%s311 + $0x90] sm:$0xf]
      %v3410 = vld [vmem:[%s311 + $0x94] sm:$0xf]
      %v3411 = vld [vmem:[%s311 + $0x98] sm:$0xf]
      %v3412 = vld [vmem:[%s311 + $0x9c] sm:$0xf]
      %v3413 = vld [vmem:[%s311 + $0xa0] sm:$0xf]
      %v3414 = vld [vmem:[%s311 + $0xa4] sm:$0xf]
      %v3415 = vld [vmem:[%s311 + $0xa8] sm:$0xf]
      %v3416 = vld [vmem:[%s311 + $0xac] sm:$0xf]
      %v3417 = vld [vmem:[%s311 + $0xb0] sm:$0xf]
      %v3418 = vld [vmem:[%s311 + $0xb4] sm:$0x1]
      %s3419 = scalar_lea.vmem %s3, 28
      %v3420 = vld [vmem:[%s3419] sm:$0xf]
      %v3463 = vunpack.c.l.b16 %v3377
      %v3464 = vunpack.c.l.b16 %v3378
      %v3465 = vunpack.c.l.b16 %v3379
      %v3466 = vunpack.c.l.b16 %v3380
      %v3467 = vunpack.c.l.b16 %v3381
      %v3468 = vunpack.c.l.b16 %v3382
      %v3469 = vunpack.c.l.b16 %v3383
      %v3470 = vunpack.c.l.b16 %v3384
      %v3471 = vunpack.c.l.b16 %v3385
      %v3472 = vunpack.c.l.b16 %v3386
      %v3473 = vunpack.c.l.b16 %v3387
      %v3474 = vunpack.c.l.b16 %v3388
      %v3475 = vunpack.c.l.b16 %v3389
      %v3476 = vunpack.c.l.b16 %v3390
      %v3477 = vunpack.c.l.b16 %v3391
      %v3478 = vunpack.c.l.b16 %v3392
      %v3479 = vunpack.c.l.b16 %v3393
      %v3480 = vunpack.c.l.b16 %v3394
      %v3481 = vunpack.c.l.b16 %v3395
      %v3482 = vunpack.c.l.b16 %v3396
      %v3483 = vunpack.c.l.b16 %v3397
      %v3484 = vunpack.c.l.b16 %v3398
      %v3485 = vunpack.c.l.b16 %v3399
      %v3486 = vunpack.c.l.b16 %v3400
      %v3487 = vunpack.c.l.b16 %v3401
      %v3488 = vunpack.c.l.b16 %v3402
      %v3489 = vunpack.c.l.b16 %v3403
      %v3490 = vunpack.c.l.b16 %v3404
      %v3491 = vunpack.c.l.b16 %v3405
      %v3492 = vunpack.c.l.b16 %v3406
      %v3493 = vunpack.c.l.b16 %v3407
      %v3494 = vunpack.c.l.b16 %v3408
      %v3495 = vunpack.c.l.b16 %v3409
      %v3496 = vunpack.c.l.b16 %v3410
      %v3497 = vunpack.c.l.b16 %v3411
      %v3498 = vunpack.c.l.b16 %v3412
      %v3499 = vunpack.c.l.b16 %v3413
      %v3500 = vunpack.c.l.b16 %v3414
      %v3501 = vunpack.c.l.b16 %v3415
      %v3502 = vunpack.c.l.b16 %v3416
      %v3503 = vunpack.c.l.b16 %v3417
      %v3504 = vunpack.c.l.b16 %v3418
      %v3505 = vpack.c.b16 %v3464, %v3463
      %v3506 = vpack.c.b16 %v3466, %v3465
      %v3507 = vpack.c.b16 %v3468, %v3467
      %v3508 = vpack.c.b16 %v3470, %v3469
      %v3509 = vpack.c.b16 %v3472, %v3471
      %v3510 = vpack.c.b16 %v3474, %v3473
      %v3511 = vpack.c.b16 %v3476, %v3475
      %v3512 = vpack.c.b16 %v3478, %v3477
      %v3513 = vpack.c.b16 %v3480, %v3479
      %v3514 = vpack.c.b16 %v3482, %v3481
      %v3515 = vpack.c.b16 %v3484, %v3483
      %v3516 = vpack.c.b16 %v3486, %v3485
      %v3517 = vpack.c.b16 %v3488, %v3487
      %v3518 = vpack.c.b16 %v3490, %v3489
      %v3519 = vpack.c.b16 %v3492, %v3491
      %v3520 = vpack.c.b16 %v3494, %v3493
      %v3521 = vpack.c.b16 %v3496, %v3495
      %v3522 = vpack.c.b16 %v3498, %v3497
      %v3523 = vpack.c.b16 %v3500, %v3499
      %v3524 = vpack.c.b16 %v3502, %v3501
      %v3525 = vpack.c.b16 %v3504, %v3503
      %vm3526 = vsmask.f32 5376
      %v3528 = vshrl.u32 %v3505, 16
      %v3530 = vrot.slane %v3528, 2
      %v3531 = vshll.u32 %v3505, 16
      %v3533 = vrot.slane %v3531, 3
      %v3534 = vor.u32 %v3530, %v3533
      %v3536 = vshrl.u32 %v3506, 16
      %v3538 = vrot.slane %v3536, 2
      %v3539 = vshll.u32 %v3506, 16
      %v3541 = vrot.slane %v3539, 3
      %v3542 = vor.u32 %v3538, %v3541
      %v3543 = vsel %vm3526, %v3534, %v3542
      %v3545 = vshrl.u32 %v3507, 16
      %v3547 = vrot.slane %v3545, 2
      %v3548 = vshll.u32 %v3507, 16
      %v3550 = vrot.slane %v3548, 3
      %v3551 = vor.u32 %v3547, %v3550
      %v3552 = vsel %vm3526, %v3542, %v3551
      %v3554 = vshrl.u32 %v3508, 16
      %v3556 = vrot.slane %v3554, 2
      %v3557 = vshll.u32 %v3508, 16
      %v3559 = vrot.slane %v3557, 3
      %v3560 = vor.u32 %v3556, %v3559
      %v3561 = vsel %vm3526, %v3551, %v3560
      %v3563 = vshrl.u32 %v3509, 16
      %v3565 = vrot.slane %v3563, 2
      %v3566 = vshll.u32 %v3509, 16
      %v3568 = vrot.slane %v3566, 3
      %v3569 = vor.u32 %v3565, %v3568
      %v3570 = vsel %vm3526, %v3560, %v3569
      %v3572 = vshrl.u32 %v3510, 16
      %v3574 = vrot.slane %v3572, 2
      %v3575 = vshll.u32 %v3510, 16
      %v3577 = vrot.slane %v3575, 3
      %v3578 = vor.u32 %v3574, %v3577
      %v3579 = vsel %vm3526, %v3569, %v3578
      %v3581 = vshrl.u32 %v3511, 16
      %v3583 = vrot.slane %v3581, 2
      %v3584 = vshll.u32 %v3511, 16
      %v3586 = vrot.slane %v3584, 3
      %v3587 = vor.u32 %v3583, %v3586
      %v3588 = vsel %vm3526, %v3578, %v3587
      %v3590 = vshrl.u32 %v3512, 16
      %v3592 = vrot.slane %v3590, 2
      %v3593 = vshll.u32 %v3512, 16
      %v3595 = vrot.slane %v3593, 3
      %v3596 = vor.u32 %v3592, %v3595
      %v3597 = vsel %vm3526, %v3587, %v3596
      %v3599 = vshrl.u32 %v3513, 16
      %v3601 = vrot.slane %v3599, 2
      %v3602 = vshll.u32 %v3513, 16
      %v3604 = vrot.slane %v3602, 3
      %v3605 = vor.u32 %v3601, %v3604
      %v3606 = vsel %vm3526, %v3596, %v3605
      %v3608 = vshrl.u32 %v3514, 16
      %v3610 = vrot.slane %v3608, 2
      %v3611 = vshll.u32 %v3514, 16
      %v3613 = vrot.slane %v3611, 3
      %v3614 = vor.u32 %v3610, %v3613
      %v3615 = vsel %vm3526, %v3605, %v3614
      %v3617 = vshrl.u32 %v3515, 16
      %v3619 = vrot.slane %v3617, 2
      %v3620 = vshll.u32 %v3515, 16
      %v3622 = vrot.slane %v3620, 3
      %v3623 = vor.u32 %v3619, %v3622
      %v3624 = vsel %vm3526, %v3614, %v3623
      %v3626 = vshrl.u32 %v3516, 16
      %v3628 = vrot.slane %v3626, 2
      %v3629 = vshll.u32 %v3516, 16
      %v3631 = vrot.slane %v3629, 3
      %v3632 = vor.u32 %v3628, %v3631
      %v3633 = vsel %vm3526, %v3623, %v3632
      %v3635 = vshrl.u32 %v3517, 16
      %v3637 = vrot.slane %v3635, 2
      %v3638 = vshll.u32 %v3517, 16
      %v3640 = vrot.slane %v3638, 3
      %v3641 = vor.u32 %v3637, %v3640
      %v3642 = vsel %vm3526, %v3632, %v3641
      %v3644 = vshrl.u32 %v3518, 16
      %v3646 = vrot.slane %v3644, 2
      %v3647 = vshll.u32 %v3518, 16
      %v3649 = vrot.slane %v3647, 3
      %v3650 = vor.u32 %v3646, %v3649
      %v3651 = vsel %vm3526, %v3641, %v3650
      %v3653 = vshrl.u32 %v3519, 16
      %v3655 = vrot.slane %v3653, 2
      %v3656 = vshll.u32 %v3519, 16
      %v3658 = vrot.slane %v3656, 3
      %v3659 = vor.u32 %v3655, %v3658
      %v3660 = vsel %vm3526, %v3650, %v3659
      %v3662 = vshrl.u32 %v3520, 16
      %v3664 = vrot.slane %v3662, 2
      %v3665 = vshll.u32 %v3520, 16
      %v3667 = vrot.slane %v3665, 3
      %v3668 = vor.u32 %v3664, %v3667
      %v3669 = vsel %vm3526, %v3659, %v3668
      %v3671 = vshrl.u32 %v3521, 16
      %v3673 = vrot.slane %v3671, 2
      %v3674 = vshll.u32 %v3521, 16
      %v3676 = vrot.slane %v3674, 3
      %v3677 = vor.u32 %v3673, %v3676
      %v3678 = vsel %vm3526, %v3668, %v3677
      %v3680 = vshrl.u32 %v3522, 16
      %v3682 = vrot.slane %v3680, 2
      %v3683 = vshll.u32 %v3522, 16
      %v3685 = vrot.slane %v3683, 3
      %v3686 = vor.u32 %v3682, %v3685
      %v3687 = vsel %vm3526, %v3677, %v3686
      %v3689 = vshrl.u32 %v3523, 16
      %v3691 = vrot.slane %v3689, 2
      %v3692 = vshll.u32 %v3523, 16
      %v3694 = vrot.slane %v3692, 3
      %v3695 = vor.u32 %v3691, %v3694
      %v3696 = vsel %vm3526, %v3686, %v3695
      %v3698 = vshrl.u32 %v3524, 16
      %v3700 = vrot.slane %v3698, 2
      %v3701 = vshll.u32 %v3524, 16
      %v3703 = vrot.slane %v3701, 3
      %v3704 = vor.u32 %v3700, %v3703
      %v3705 = vsel %vm3526, %v3695, %v3704
      %v3707 = vshrl.u32 %v3525, 16
      %v3709 = vrot.slane %v3707, 2
      %v3710 = vshll.u32 %v3525, 16
      %v3712 = vrot.slane %v3710, 3
      %v3713 = vor.u32 %v3709, %v3712
      %v3714 = vsel %vm3526, %v3704, %v3713
      %v3716 = vsel %vm660, %v3543, 0
      %v3719 = vsel %vm660, %v3552, 0
      %v3722 = vsel %vm660, %v3561, 0
      %v3725 = vsel %vm660, %v3570, 0
      %v3728 = vsel %vm660, %v3579, 0
      %v3731 = vsel %vm660, %v3588, 0
      %v3734 = vsel %vm660, %v3597, 0
      %v3737 = vsel %vm660, %v3606, 0
      %v3740 = vsel %vm660, %v3615, 0
      %v3743 = vsel %vm660, %v3624, 0
      %v3746 = vsel %vm660, %v3633, 0
      %v3749 = vsel %vm660, %v3642, 0
      %v3752 = vsel %vm660, %v3651, 0
      %v3755 = vsel %vm660, %v3660, 0
      %v3758 = vsel %vm660, %v3669, 0
      %v3761 = vsel %vm660, %v3678, 0
      %v3764 = vsel %vm660, %v3687, 0
      %v3767 = vsel %vm660, %v3696, 0
      %v3770 = vsel %vm660, %v3705, 0
      %v3773 = vsel %vm660, %v3714, 0
      %v3776 = vsel %vm660, %v3713, 0
      %v3779 = vsel %vm724, %v3420, 0
      %3781 = vmatprep.subr.bf16.mxu0 0
      %3782 = vmatpush1.bf16.msra.mxu0 0
      %3783 = vmatprep.subr.bf16.mxu0 0
      %3784 = vmatpush1.bf16.msra.mxu0 0
      %3785 = vmatprep.subr.bf16.mxu0 0
      %3786 = vmatpush1.bf16.msra.mxu0 0
      %3787 = vmatprep.subr.bf16.mxu0 0
      %3788 = vmatpush1.bf16.msra.mxu0 0
      %3789 = vmatprep.subr.bf16.mxu0 0
      %3790 = vmatpush1.bf16.msra.mxu0 0
      %3791 = vmatprep.subr.bf16.mxu0 0
      %3792 = vmatpush1.bf16.msra.mxu0 0
      %3793 = vmatprep.subr.bf16.mxu0 0
      %3794 = vmatpush1.bf16.msra.mxu0 0
      %3795 = vmatprep.subr.bf16.mxu0 0
      %3796 = vmatpush1.bf16.msra.mxu0 %v3779
      %3797 = vmatprep.subr.bf16.mxu0 0
      %3798 = vmatpush2.bf16.msra.mxu0 0
      %3799 = vmatprep.subr.bf16.mxu0 0
      %3800 = vmatpush2.bf16.msra.mxu0 0
      %3801 = vmatprep.subr.bf16.mxu0 0
      %3802 = vmatpush2.bf16.msra.mxu0 0
      %3803 = vmatprep.subr.bf16.mxu0 0
      %3804 = vmatpush2.bf16.msra.mxu0 0
      %3805 = vmatprep.subr.bf16.mxu0 0
      %3806 = vmatpush2.bf16.msra.mxu0 0
      %3807 = vmatprep.subr.bf16.mxu0 0
      %3808 = vmatpush2.bf16.msra.mxu0 0
      %3809 = vmatprep.subr.bf16.mxu0 0
      %3810 = vmatpush2.bf16.msra.mxu0 0
      %3811 = vmatprep.subr.bf16.mxu0 0
      %3812 = vmatpush2.bf16.msra.mxu0 0
      %3813 = vmatprep.mubr.bf16.mxu0 0
      %3814 = vmatmul.mubr.bf16.gmra.mxu0 %v3716
      %v3815 = vpop.f32.mrf.mxu0
      %v3816 = vadd.f32 0.0, %v3815
      %v3817 = vpop.f32.mrf.mxu0
      %v3818 = vpop.f32.mrf.mxu0
      %v3819 = vadd.f32 0.0, %v3818
      %v3820 = vpop.f32.mrf.mxu0
      %3821 = vmatprep.mubr.bf16.mxu0 0
      %3822 = vmatmul.mubr.bf16.gmra.mxu0 %v3719
      %v3823 = vpop.f32.mrf.mxu0
      %v3824 = vadd.f32 0.0, %v3823
      %v3825 = vpop.f32.mrf.mxu0
      %v3826 = vpop.f32.mrf.mxu0
      %v3827 = vadd.f32 0.0, %v3826
      %v3828 = vpop.f32.mrf.mxu0
      %3829 = vmatprep.mubr.bf16.mxu0 0
      %3830 = vmatmul.mubr.bf16.gmra.mxu0 %v3722
      %v3831 = vpop.f32.mrf.mxu0
      %v3832 = vadd.f32 0.0, %v3831
      %v3833 = vpop.f32.mrf.mxu0
      %v3834 = vpop.f32.mrf.mxu0
      %v3835 = vadd.f32 0.0, %v3834
      %v3836 = vpop.f32.mrf.mxu0
      %3837 = vmatprep.mubr.bf16.mxu0 0
      %3838 = vmatmul.mubr.bf16.gmra.mxu0 %v3725
      %v3839 = vpop.f32.mrf.mxu0
      %v3840 = vadd.f32 0.0, %v3839
      %v3841 = vpop.f32.mrf.mxu0
      %v3842 = vpop.f32.mrf.mxu0
      %v3843 = vadd.f32 0.0, %v3842
      %v3844 = vpop.f32.mrf.mxu0
      %3845 = vmatprep.mubr.bf16.mxu0 0
      %3846 = vmatmul.mubr.bf16.gmra.mxu0 %v3728
      %v3847 = vpop.f32.mrf.mxu0
      %v3848 = vadd.f32 0.0, %v3847
      %v3849 = vpop.f32.mrf.mxu0
      %v3850 = vpop.f32.mrf.mxu0
      %v3851 = vadd.f32 0.0, %v3850
      %v3852 = vpop.f32.mrf.mxu0
      %3853 = vmatprep.mubr.bf16.mxu0 0
      %3854 = vmatmul.mubr.bf16.gmra.mxu0 %v3731
      %v3855 = vpop.f32.mrf.mxu0
      %v3856 = vadd.f32 0.0, %v3855
      %v3857 = vpop.f32.mrf.mxu0
      %v3858 = vpop.f32.mrf.mxu0
      %v3859 = vadd.f32 0.0, %v3858
      %v3860 = vpop.f32.mrf.mxu0
      %3861 = vmatprep.mubr.bf16.mxu0 0
      %3862 = vmatmul.mubr.bf16.gmra.mxu0 %v3734
      %v3863 = vpop.f32.mrf.mxu0
      %v3864 = vadd.f32 0.0, %v3863
      %v3865 = vpop.f32.mrf.mxu0
      %v3866 = vpop.f32.mrf.mxu0
      %v3867 = vadd.f32 0.0, %v3866
      %v3868 = vpop.f32.mrf.mxu0
      %3869 = vmatprep.mubr.bf16.mxu0 0
      %3870 = vmatmul.mubr.bf16.gmra.mxu0 %v3737
      %v3871 = vpop.f32.mrf.mxu0
      %v3872 = vadd.f32 0.0, %v3871
      %v3873 = vpop.f32.mrf.mxu0
      %v3874 = vpop.f32.mrf.mxu0
      %v3875 = vadd.f32 0.0, %v3874
      %v3876 = vpop.f32.mrf.mxu0
      %3877 = vmatprep.mubr.bf16.mxu0 0
      %3878 = vmatmul.mubr.bf16.gmra.mxu0 %v3740
      %v3879 = vpop.f32.mrf.mxu0
      %v3880 = vadd.f32 0.0, %v3879
      %v3881 = vpop.f32.mrf.mxu0
      %v3882 = vpop.f32.mrf.mxu0
      %v3883 = vadd.f32 0.0, %v3882
      %v3884 = vpop.f32.mrf.mxu0
      %3885 = vmatprep.mubr.bf16.mxu0 0
      %3886 = vmatmul.mubr.bf16.gmra.mxu0 %v3743
      %v3887 = vpop.f32.mrf.mxu0
      %v3888 = vadd.f32 0.0, %v3887
      %v3889 = vpop.f32.mrf.mxu0
      %v3890 = vpop.f32.mrf.mxu0
      %v3891 = vadd.f32 0.0, %v3890
      %v3892 = vpop.f32.mrf.mxu0
      %3893 = vmatprep.mubr.bf16.mxu0 0
      %3894 = vmatmul.mubr.bf16.gmra.mxu0 %v3746
      %v3895 = vpop.f32.mrf.mxu0
      %v3896 = vadd.f32 0.0, %v3895
      %v3897 = vpop.f32.mrf.mxu0
      %v3898 = vpop.f32.mrf.mxu0
      %v3899 = vadd.f32 0.0, %v3898
      %v3900 = vpop.f32.mrf.mxu0
      %3901 = vmatprep.mubr.bf16.mxu0 0
      %3902 = vmatmul.mubr.bf16.gmra.mxu0 %v3749
      %v3903 = vpop.f32.mrf.mxu0
      %v3904 = vadd.f32 0.0, %v3903
      %v3905 = vpop.f32.mrf.mxu0
      %v3906 = vpop.f32.mrf.mxu0
      %v3907 = vadd.f32 0.0, %v3906
      %v3908 = vpop.f32.mrf.mxu0
      %3909 = vmatprep.mubr.bf16.mxu0 0
      %3910 = vmatmul.mubr.bf16.gmra.mxu0 %v3752
      %v3911 = vpop.f32.mrf.mxu0
      %v3912 = vadd.f32 0.0, %v3911
      %v3913 = vpop.f32.mrf.mxu0
      %v3914 = vpop.f32.mrf.mxu0
      %v3915 = vadd.f32 0.0, %v3914
      %v3916 = vpop.f32.mrf.mxu0
      %3917 = vmatprep.mubr.bf16.mxu0 0
      %3918 = vmatmul.mubr.bf16.gmra.mxu0 %v3755
      %v3919 = vpop.f32.mrf.mxu0
      %v3920 = vadd.f32 0.0, %v3919
      %v3921 = vpop.f32.mrf.mxu0
      %v3922 = vpop.f32.mrf.mxu0
      %v3923 = vadd.f32 0.0, %v3922
      %v3924 = vpop.f32.mrf.mxu0
      %3925 = vmatprep.mubr.bf16.mxu0 0
      %3926 = vmatmul.mubr.bf16.gmra.mxu0 %v3758
      %v3927 = vpop.f32.mrf.mxu0
      %v3928 = vadd.f32 0.0, %v3927
      %v3929 = vpop.f32.mrf.mxu0
      %v3930 = vpop.f32.mrf.mxu0
      %v3931 = vadd.f32 0.0, %v3930
      %v3932 = vpop.f32.mrf.mxu0
      %3933 = vmatprep.mubr.bf16.mxu0 0
      %3934 = vmatmul.mubr.bf16.gmra.mxu0 %v3761
      %v3935 = vpop.f32.mrf.mxu0
      %v3936 = vadd.f32 0.0, %v3935
      %v3937 = vpop.f32.mrf.mxu0
      %v3938 = vpop.f32.mrf.mxu0
      %v3939 = vadd.f32 0.0, %v3938
      %v3940 = vpop.f32.mrf.mxu0
      %3941 = vmatprep.mubr.bf16.mxu0 0
      %3942 = vmatmul.mubr.bf16.gmra.mxu0 %v3764
      %v3943 = vpop.f32.mrf.mxu0
      %v3944 = vadd.f32 0.0, %v3943
      %v3945 = vpop.f32.mrf.mxu0
      %v3946 = vpop.f32.mrf.mxu0
      %v3947 = vadd.f32 0.0, %v3946
      %v3948 = vpop.f32.mrf.mxu0
      %3949 = vmatprep.mubr.bf16.mxu0 0
      %3950 = vmatmul.mubr.bf16.gmra.mxu0 %v3767
      %v3951 = vpop.f32.mrf.mxu0
      %v3952 = vadd.f32 0.0, %v3951
      %v3953 = vpop.f32.mrf.mxu0
      %v3954 = vpop.f32.mrf.mxu0
      %v3955 = vadd.f32 0.0, %v3954
      %v3956 = vpop.f32.mrf.mxu0
      %3957 = vmatprep.mubr.bf16.mxu0 0
      %3958 = vmatmul.mubr.bf16.gmra.mxu0 %v3770
      %v3959 = vpop.f32.mrf.mxu0
      %v3960 = vadd.f32 0.0, %v3959
      %v3961 = vpop.f32.mrf.mxu0
      %v3962 = vpop.f32.mrf.mxu0
      %v3963 = vadd.f32 0.0, %v3962
      %v3964 = vpop.f32.mrf.mxu0
      %3965 = vmatprep.mubr.bf16.mxu0 0
      %3966 = vmatmul.mubr.bf16.gmra.mxu0 %v3773
      %v3967 = vpop.f32.mrf.mxu0
      %v3968 = vadd.f32 0.0, %v3967
      %v3969 = vpop.f32.mrf.mxu0
      %v3970 = vpop.f32.mrf.mxu0
      %v3971 = vadd.f32 0.0, %v3970
      %v3972 = vpop.f32.mrf.mxu0
      %3973 = vmatprep.mubr.bf16.mxu0 0
      %3974 = vmatmul.mubr.bf16.gmra.mxu0 %v3776
      %v3975 = vpop.f32.mrf.mxu0
      %v3976 = vadd.f32 0.0, %v3975
      %v3977 = vpop.f32.mrf.mxu0
      %v3978 = vpop.f32.mrf.mxu0
      %v3979 = vpop.f32.mrf.mxu0
      %3980 = vdwg.mxu0
      %v3981 = vadd.f32 %v3336, %v3816
      %v3982 = vadd.f32 %v3337, %v3819
      %v3983 = vadd.f32 %v3338, %v3824
      %v3984 = vadd.f32 %v3339, %v3827
      %v3985 = vadd.f32 %v3340, %v3832
      %v3986 = vadd.f32 %v3341, %v3835
      %v3987 = vadd.f32 %v3342, %v3840
      %v3988 = vadd.f32 %v3343, %v3843
      %v3989 = vadd.f32 %v3344, %v3848
      %v3990 = vadd.f32 %v3345, %v3851
      %v3991 = vadd.f32 %v3346, %v3856
      %v3992 = vadd.f32 %v3347, %v3859
      %v3993 = vadd.f32 %v3348, %v3864
      %v3994 = vadd.f32 %v3349, %v3867
      %v3995 = vadd.f32 %v3350, %v3872
      %v3996 = vadd.f32 %v3351, %v3875
      %v3997 = vadd.f32 %v3352, %v3880
      %v3998 = vadd.f32 %v3353, %v3883
      %v3999 = vadd.f32 %v3354, %v3888
      %v4000 = vadd.f32 %v3355, %v3891
      %v4001 = vadd.f32 %v3356, %v3896
      %v4002 = vadd.f32 %v3357, %v3899
      %v4003 = vadd.f32 %v3358, %v3904
      %v4004 = vadd.f32 %v3359, %v3907
      %v4005 = vadd.f32 %v3360, %v3912
      %v4006 = vadd.f32 %v3361, %v3915
      %v4007 = vadd.f32 %v3362, %v3920
      %v4008 = vadd.f32 %v3363, %v3923
      %v4009 = vadd.f32 %v3364, %v3928
      %v4010 = vadd.f32 %v3365, %v3931
      %v4011 = vadd.f32 %v3366, %v3936
      %v4012 = vadd.f32 %v3367, %v3939
      %v4013 = vadd.f32 %v3368, %v3944
      %v4014 = vadd.f32 %v3369, %v3947
      %v4015 = vadd.f32 %v3370, %v3952
      %v4016 = vadd.f32 %v3371, %v3955
      %v4017 = vadd.f32 %v3372, %v3960
      %v4018 = vadd.f32 %v3373, %v3963
      %v4019 = vadd.f32 %v3374, %v3968
      %v4020 = vadd.f32 %v3375, %v3971
      %v4021 = vadd.f32 %v3376, %v3976
      %v4022 = vld [vmem:[%s311 + $0x10] sm:$0x8]
      %s4023 = scalar_lea.vmem %s3, 32
      %v4024 = vld [vmem:[%s4023] sm:$0xf]
      %v4026 = vunpack.c.l.b16 %v4022
      %v4027 = vpack.c.b16 %v3464, %v4026
      %vm4028 = vcmask 1044480
      %v4029 = vrot.slane %v4027, 3
      %v4030 = vrot.slane %v3506, 3
      %v4031 = vsel %vm4028, %v4029, %v4030
      %v4032 = vrot.slane %v3507, 3
      %v4033 = vsel %vm4028, %v4030, %v4032
      %v4034 = vrot.slane %v3508, 3
      %v4035 = vsel %vm4028, %v4032, %v4034
      %v4036 = vrot.slane %v3509, 3
      %v4037 = vsel %vm4028, %v4034, %v4036
      %v4038 = vrot.slane %v3510, 3
      %v4039 = vsel %vm4028, %v4036, %v4038
      %v4040 = vrot.slane %v3511, 3
      %v4041 = vsel %vm4028, %v4038, %v4040
      %v4042 = vrot.slane %v3512, 3
      %v4043 = vsel %vm4028, %v4040, %v4042
      %v4044 = vrot.slane %v3513, 3
      %v4045 = vsel %vm4028, %v4042, %v4044
      %v4046 = vrot.slane %v3514, 3
      %v4047 = vsel %vm4028, %v4044, %v4046
      %v4048 = vrot.slane %v3515, 3
      %v4049 = vsel %vm4028, %v4046, %v4048
      %v4050 = vrot.slane %v3516, 3
      %v4051 = vsel %vm4028, %v4048, %v4050
      %v4052 = vrot.slane %v3517, 3
      %v4053 = vsel %vm4028, %v4050, %v4052
      %v4054 = vrot.slane %v3518, 3
      %v4055 = vsel %vm4028, %v4052, %v4054
      %v4056 = vrot.slane %v3519, 3
      %v4057 = vsel %vm4028, %v4054, %v4056
      %v4058 = vrot.slane %v3520, 3
      %v4059 = vsel %vm4028, %v4056, %v4058
      %v4060 = vrot.slane %v3521, 3
      %v4061 = vsel %vm4028, %v4058, %v4060
      %v4062 = vrot.slane %v3522, 3
      %v4063 = vsel %vm4028, %v4060, %v4062
      %v4064 = vrot.slane %v3523, 3
      %v4065 = vsel %vm4028, %v4062, %v4064
      %v4066 = vrot.slane %v3524, 3
      %v4067 = vsel %vm4028, %v4064, %v4066
      %v4068 = vrot.slane %v3525, 3
      %v4069 = vsel %vm4028, %v4066, %v4068
      %v4071 = vsel %vm660, %v4031, 0
      %v4074 = vsel %vm660, %v4033, 0
      %v4077 = vsel %vm660, %v4035, 0
      %v4080 = vsel %vm660, %v4037, 0
      %v4083 = vsel %vm660, %v4039, 0
      %v4086 = vsel %vm660, %v4041, 0
      %v4089 = vsel %vm660, %v4043, 0
      %v4092 = vsel %vm660, %v4045, 0
      %v4095 = vsel %vm660, %v4047, 0
      %v4098 = vsel %vm660, %v4049, 0
      %v4101 = vsel %vm660, %v4051, 0
      %v4104 = vsel %vm660, %v4053, 0
      %v4107 = vsel %vm660, %v4055, 0
      %v4110 = vsel %vm660, %v4057, 0
      %v4113 = vsel %vm660, %v4059, 0
      %v4116 = vsel %vm660, %v4061, 0
      %v4119 = vsel %vm660, %v4063, 0
      %v4122 = vsel %vm660, %v4065, 0
      %v4125 = vsel %vm660, %v4067, 0
      %v4128 = vsel %vm660, %v4069, 0
      %v4131 = vsel %vm660, %v4068, 0
      %v4134 = vsel %vm724, %v4024, 0
      %4136 = vmatprep.subr.bf16.mxu0 0
      %4137 = vmatpush1.bf16.msra.mxu0 0
      %4138 = vmatprep.subr.bf16.mxu0 0
      %4139 = vmatpush1.bf16.msra.mxu0 0
      %4140 = vmatprep.subr.bf16.mxu0 0
      %4141 = vmatpush1.bf16.msra.mxu0 0
      %4142 = vmatprep.subr.bf16.mxu0 0
      %4143 = vmatpush1.bf16.msra.mxu0 0
      %4144 = vmatprep.subr.bf16.mxu0 0
      %4145 = vmatpush1.bf16.msra.mxu0 0
      %4146 = vmatprep.subr.bf16.mxu0 0
      %4147 = vmatpush1.bf16.msra.mxu0 0
      %4148 = vmatprep.subr.bf16.mxu0 0
      %4149 = vmatpush1.bf16.msra.mxu0 0
      %4150 = vmatprep.subr.bf16.mxu0 0
      %4151 = vmatpush1.bf16.msra.mxu0 %v4134
      %4152 = vmatprep.subr.bf16.mxu0 0
      %4153 = vmatpush2.bf16.msra.mxu0 0
      %4154 = vmatprep.subr.bf16.mxu0 0
      %4155 = vmatpush2.bf16.msra.mxu0 0
      %4156 = vmatprep.subr.bf16.mxu0 0
      %4157 = vmatpush2.bf16.msra.mxu0 0
      %4158 = vmatprep.subr.bf16.mxu0 0
      %4159 = vmatpush2.bf16.msra.mxu0 0
      %4160 = vmatprep.subr.bf16.mxu0 0
      %4161 = vmatpush2.bf16.msra.mxu0 0
      %4162 = vmatprep.subr.bf16.mxu0 0
      %4163 = vmatpush2.bf16.msra.mxu0 0
      %4164 = vmatprep.subr.bf16.mxu0 0
      %4165 = vmatpush2.bf16.msra.mxu0 0
      %4166 = vmatprep.subr.bf16.mxu0 0
      %4167 = vmatpush2.bf16.msra.mxu0 0
      %4168 = vmatprep.mubr.bf16.mxu0 0
      %4169 = vmatmul.mubr.bf16.gmra.mxu0 %v4071
      %v4170 = vpop.f32.mrf.mxu0
      %v4171 = vadd.f32 0.0, %v4170
      %v4172 = vpop.f32.mrf.mxu0
      %v4173 = vpop.f32.mrf.mxu0
      %v4174 = vadd.f32 0.0, %v4173
      %v4175 = vpop.f32.mrf.mxu0
      %4176 = vmatprep.mubr.bf16.mxu0 0
      %4177 = vmatmul.mubr.bf16.gmra.mxu0 %v4074
      %v4178 = vpop.f32.mrf.mxu0
      %v4179 = vadd.f32 0.0, %v4178
      %v4180 = vpop.f32.mrf.mxu0
      %v4181 = vpop.f32.mrf.mxu0
      %v4182 = vadd.f32 0.0, %v4181
      %v4183 = vpop.f32.mrf.mxu0
      %4184 = vmatprep.mubr.bf16.mxu0 0
      %4185 = vmatmul.mubr.bf16.gmra.mxu0 %v4077
      %v4186 = vpop.f32.mrf.mxu0
      %v4187 = vadd.f32 0.0, %v4186
      %v4188 = vpop.f32.mrf.mxu0
      %v4189 = vpop.f32.mrf.mxu0
      %v4190 = vadd.f32 0.0, %v4189
      %v4191 = vpop.f32.mrf.mxu0
      %4192 = vmatprep.mubr.bf16.mxu0 0
      %4193 = vmatmul.mubr.bf16.gmra.mxu0 %v4080
      %v4194 = vpop.f32.mrf.mxu0
      %v4195 = vadd.f32 0.0, %v4194
      %v4196 = vpop.f32.mrf.mxu0
      %v4197 = vpop.f32.mrf.mxu0
      %v4198 = vadd.f32 0.0, %v4197
      %v4199 = vpop.f32.mrf.mxu0
      %4200 = vmatprep.mubr.bf16.mxu0 0
      %4201 = vmatmul.mubr.bf16.gmra.mxu0 %v4083
      %v4202 = vpop.f32.mrf.mxu0
      %v4203 = vadd.f32 0.0, %v4202
      %v4204 = vpop.f32.mrf.mxu0
      %v4205 = vpop.f32.mrf.mxu0
      %v4206 = vadd.f32 0.0, %v4205
      %v4207 = vpop.f32.mrf.mxu0
      %4208 = vmatprep.mubr.bf16.mxu0 0
      %4209 = vmatmul.mubr.bf16.gmra.mxu0 %v4086
      %v4210 = vpop.f32.mrf.mxu0
      %v4211 = vadd.f32 0.0, %v4210
      %v4212 = vpop.f32.mrf.mxu0
      %v4213 = vpop.f32.mrf.mxu0
      %v4214 = vadd.f32 0.0, %v4213
      %v4215 = vpop.f32.mrf.mxu0
      %4216 = vmatprep.mubr.bf16.mxu0 0
      %4217 = vmatmul.mubr.bf16.gmra.mxu0 %v4089
      %v4218 = vpop.f32.mrf.mxu0
      %v4219 = vadd.f32 0.0, %v4218
      %v4220 = vpop.f32.mrf.mxu0
      %v4221 = vpop.f32.mrf.mxu0
      %v4222 = vadd.f32 0.0, %v4221
      %v4223 = vpop.f32.mrf.mxu0
      %4224 = vmatprep.mubr.bf16.mxu0 0
      %4225 = vmatmul.mubr.bf16.gmra.mxu0 %v4092
      %v4226 = vpop.f32.mrf.mxu0
      %v4227 = vadd.f32 0.0, %v4226
      %v4228 = vpop.f32.mrf.mxu0
      %v4229 = vpop.f32.mrf.mxu0
      %v4230 = vadd.f32 0.0, %v4229
      %v4231 = vpop.f32.mrf.mxu0
      %4232 = vmatprep.mubr.bf16.mxu0 0
      %4233 = vmatmul.mubr.bf16.gmra.mxu0 %v4095
      %v4234 = vpop.f32.mrf.mxu0
      %v4235 = vadd.f32 0.0, %v4234
      %v4236 = vpop.f32.mrf.mxu0
      %v4237 = vpop.f32.mrf.mxu0
      %v4238 = vadd.f32 0.0, %v4237
      %v4239 = vpop.f32.mrf.mxu0
      %4240 = vmatprep.mubr.bf16.mxu0 0
      %4241 = vmatmul.mubr.bf16.gmra.mxu0 %v4098
      %v4242 = vpop.f32.mrf.mxu0
      %v4243 = vadd.f32 0.0, %v4242
      %v4244 = vpop.f32.mrf.mxu0
      %v4245 = vpop.f32.mrf.mxu0
      %v4246 = vadd.f32 0.0, %v4245
      %v4247 = vpop.f32.mrf.mxu0
      %4248 = vmatprep.mubr.bf16.mxu0 0
      %4249 = vmatmul.mubr.bf16.gmra.mxu0 %v4101
      %v4250 = vpop.f32.mrf.mxu0
      %v4251 = vadd.f32 0.0, %v4250
      %v4252 = vpop.f32.mrf.mxu0
      %v4253 = vpop.f32.mrf.mxu0
      %v4254 = vadd.f32 0.0, %v4253
      %v4255 = vpop.f32.mrf.mxu0
      %4256 = vmatprep.mubr.bf16.mxu0 0
      %4257 = vmatmul.mubr.bf16.gmra.mxu0 %v4104
      %v4258 = vpop.f32.mrf.mxu0
      %v4259 = vadd.f32 0.0, %v4258
      %v4260 = vpop.f32.mrf.mxu0
      %v4261 = vpop.f32.mrf.mxu0
      %v4262 = vadd.f32 0.0, %v4261
      %v4263 = vpop.f32.mrf.mxu0
      %4264 = vmatprep.mubr.bf16.mxu0 0
      %4265 = vmatmul.mubr.bf16.gmra.mxu0 %v4107
      %v4266 = vpop.f32.mrf.mxu0
      %v4267 = vadd.f32 0.0, %v4266
      %v4268 = vpop.f32.mrf.mxu0
      %v4269 = vpop.f32.mrf.mxu0
      %v4270 = vadd.f32 0.0, %v4269
      %v4271 = vpop.f32.mrf.mxu0
      %4272 = vmatprep.mubr.bf16.mxu0 0
      %4273 = vmatmul.mubr.bf16.gmra.mxu0 %v4110
      %v4274 = vpop.f32.mrf.mxu0
      %v4275 = vadd.f32 0.0, %v4274
      %v4276 = vpop.f32.mrf.mxu0
      %v4277 = vpop.f32.mrf.mxu0
      %v4278 = vadd.f32 0.0, %v4277
      %v4279 = vpop.f32.mrf.mxu0
      %4280 = vmatprep.mubr.bf16.mxu0 0
      %4281 = vmatmul.mubr.bf16.gmra.mxu0 %v4113
      %v4282 = vpop.f32.mrf.mxu0
      %v4283 = vadd.f32 0.0, %v4282
      %v4284 = vpop.f32.mrf.mxu0
      %v4285 = vpop.f32.mrf.mxu0
      %v4286 = vadd.f32 0.0, %v4285
      %v4287 = vpop.f32.mrf.mxu0
      %4288 = vmatprep.mubr.bf16.mxu0 0
      %4289 = vmatmul.mubr.bf16.gmra.mxu0 %v4116
      %v4290 = vpop.f32.mrf.mxu0
      %v4291 = vadd.f32 0.0, %v4290
      %v4292 = vpop.f32.mrf.mxu0
      %v4293 = vpop.f32.mrf.mxu0
      %v4294 = vadd.f32 0.0, %v4293
      %v4295 = vpop.f32.mrf.mxu0
      %4296 = vmatprep.mubr.bf16.mxu0 0
      %4297 = vmatmul.mubr.bf16.gmra.mxu0 %v4119
      %v4298 = vpop.f32.mrf.mxu0
      %v4299 = vadd.f32 0.0, %v4298
      %v4300 = vpop.f32.mrf.mxu0
      %v4301 = vpop.f32.mrf.mxu0
      %v4302 = vadd.f32 0.0, %v4301
      %v4303 = vpop.f32.mrf.mxu0
      %4304 = vmatprep.mubr.bf16.mxu0 0
      %4305 = vmatmul.mubr.bf16.gmra.mxu0 %v4122
      %v4306 = vpop.f32.mrf.mxu0
      %v4307 = vadd.f32 0.0, %v4306
      %v4308 = vpop.f32.mrf.mxu0
      %v4309 = vpop.f32.mrf.mxu0
      %v4310 = vadd.f32 0.0, %v4309
      %v4311 = vpop.f32.mrf.mxu0
      %4312 = vmatprep.mubr.bf16.mxu0 0
      %4313 = vmatmul.mubr.bf16.gmra.mxu0 %v4125
      %v4314 = vpop.f32.mrf.mxu0
      %v4315 = vadd.f32 0.0, %v4314
      %v4316 = vpop.f32.mrf.mxu0
      %v4317 = vpop.f32.mrf.mxu0
      %v4318 = vadd.f32 0.0, %v4317
      %v4319 = vpop.f32.mrf.mxu0
      %4320 = vmatprep.mubr.bf16.mxu0 0
      %4321 = vmatmul.mubr.bf16.gmra.mxu0 %v4128
      %v4322 = vpop.f32.mrf.mxu0
      %v4323 = vadd.f32 0.0, %v4322
      %v4324 = vpop.f32.mrf.mxu0
      %v4325 = vpop.f32.mrf.mxu0
      %v4326 = vadd.f32 0.0, %v4325
      %v4327 = vpop.f32.mrf.mxu0
      %4328 = vmatprep.mubr.bf16.mxu0 0
      %4329 = vmatmul.mubr.bf16.gmra.mxu0 %v4131
      %v4330 = vpop.f32.mrf.mxu0
      %v4331 = vadd.f32 0.0, %v4330
      %v4332 = vpop.f32.mrf.mxu0
      %v4333 = vpop.f32.mrf.mxu0
      %v4334 = vpop.f32.mrf.mxu0
      %4335 = vdwg.mxu0
      %v4336 = vadd.f32 %v3981, %v4171
      %v4337 = vadd.f32 %v3982, %v4174
      %v4338 = vadd.f32 %v3983, %v4179
      %v4339 = vadd.f32 %v3984, %v4182
      %v4340 = vadd.f32 %v3985, %v4187
      %v4341 = vadd.f32 %v3986, %v4190
      %v4342 = vadd.f32 %v3987, %v4195
      %v4343 = vadd.f32 %v3988, %v4198
      %v4344 = vadd.f32 %v3989, %v4203
      %v4345 = vadd.f32 %v3990, %v4206
      %v4346 = vadd.f32 %v3991, %v4211
      %v4347 = vadd.f32 %v3992, %v4214
      %v4348 = vadd.f32 %v3993, %v4219
      %v4349 = vadd.f32 %v3994, %v4222
      %v4350 = vadd.f32 %v3995, %v4227
      %v4351 = vadd.f32 %v3996, %v4230
      %v4352 = vadd.f32 %v3997, %v4235
      %v4353 = vadd.f32 %v3998, %v4238
      %v4354 = vadd.f32 %v3999, %v4243
      %v4355 = vadd.f32 %v4000, %v4246
      %v4356 = vadd.f32 %v4001, %v4251
      %v4357 = vadd.f32 %v4002, %v4254
      %v4358 = vadd.f32 %v4003, %v4259
      %v4359 = vadd.f32 %v4004, %v4262
      %v4360 = vadd.f32 %v4005, %v4267
      %v4361 = vadd.f32 %v4006, %v4270
      %v4362 = vadd.f32 %v4007, %v4275
      %v4363 = vadd.f32 %v4008, %v4278
      %v4364 = vadd.f32 %v4009, %v4283
      %v4365 = vadd.f32 %v4010, %v4286
      %v4366 = vadd.f32 %v4011, %v4291
      %v4367 = vadd.f32 %v4012, %v4294
      %v4368 = vadd.f32 %v4013, %v4299
      %v4369 = vadd.f32 %v4014, %v4302
      %v4370 = vadd.f32 %v4015, %v4307
      %v4371 = vadd.f32 %v4016, %v4310
      %v4372 = vadd.f32 %v4017, %v4315
      %v4373 = vadd.f32 %v4018, %v4318
      %v4374 = vadd.f32 %v4019, %v4323
      %v4375 = vadd.f32 %v4020, %v4326
      %v4376 = vadd.f32 %v4021, %v4331
      %v4377 = vld [vmem:[%s321] sm:$0xf]
      %v4378 = vld [vmem:[%s321 + $0x4] sm:$0xf]
      %v4379 = vld [vmem:[%s321 + $0x8] sm:$0xf]
      %v4380 = vld [vmem:[%s321 + $0xc] sm:$0xf]
      %v4381 = vld [vmem:[%s321 + $0x10] sm:$0xf]
      %v4382 = vld [vmem:[%s321 + $0x14] sm:$0xf]
      %v4383 = vld [vmem:[%s321 + $0x18] sm:$0xf]
      %v4384 = vld [vmem:[%s321 + $0x1c] sm:$0xf]
      %v4385 = vld [vmem:[%s321 + $0x20] sm:$0xf]
      %v4386 = vld [vmem:[%s321 + $0x24] sm:$0xf]
      %v4387 = vld [vmem:[%s321 + $0x28] sm:$0xf]
      %v4388 = vld [vmem:[%s321 + $0x2c] sm:$0xf]
      %v4389 = vld [vmem:[%s321 + $0x30] sm:$0xf]
      %v4390 = vld [vmem:[%s321 + $0x34] sm:$0xf]
      %v4391 = vld [vmem:[%s321 + $0x38] sm:$0xf]
      %v4392 = vld [vmem:[%s321 + $0x3c] sm:$0xf]
      %v4393 = vld [vmem:[%s321 + $0x40] sm:$0xf]
      %v4394 = vld [vmem:[%s321 + $0x44] sm:$0xf]
      %v4395 = vld [vmem:[%s321 + $0x48] sm:$0xf]
      %v4396 = vld [vmem:[%s321 + $0x4c] sm:$0xf]
      %v4397 = vld [vmem:[%s321 + $0x50] sm:$0xf]
      %v4398 = vld [vmem:[%s321 + $0x54] sm:$0xf]
      %v4399 = vld [vmem:[%s321 + $0x58] sm:$0xf]
      %v4400 = vld [vmem:[%s321 + $0x5c] sm:$0xf]
      %v4401 = vld [vmem:[%s321 + $0x60] sm:$0xf]
      %v4402 = vld [vmem:[%s321 + $0x64] sm:$0xf]
      %v4403 = vld [vmem:[%s321 + $0x68] sm:$0xf]
      %v4404 = vld [vmem:[%s321 + $0x6c] sm:$0xf]
      %v4405 = vld [vmem:[%s321 + $0x70] sm:$0xf]
      %v4406 = vld [vmem:[%s321 + $0x74] sm:$0xf]
      %v4407 = vld [vmem:[%s321 + $0x78] sm:$0xf]
      %v4408 = vld [vmem:[%s321 + $0x7c] sm:$0xf]
      %v4409 = vld [vmem:[%s321 + $0x80] sm:$0xf]
      %v4410 = vld [vmem:[%s321 + $0x84] sm:$0xf]
      %v4411 = vld [vmem:[%s321 + $0x88] sm:$0xf]
      %v4412 = vld [vmem:[%s321 + $0x8c] sm:$0xf]
      %v4413 = vld [vmem:[%s321 + $0x90] sm:$0xf]
      %v4414 = vld [vmem:[%s321 + $0x94] sm:$0xf]
      %v4415 = vld [vmem:[%s321 + $0x98] sm:$0xf]
      %v4416 = vld [vmem:[%s321 + $0x9c] sm:$0xf]
      %v4417 = vld [vmem:[%s321 + $0xa0] sm:$0x3]
      %s4418 = scalar_lea.vmem %s3, 36
      %v4419 = vld [vmem:[%s4418] sm:$0xf]
      %v4461 = vunpack.c.l.b16 %v4377
      %v4462 = vunpack.c.l.b16 %v4378
      %v4463 = vunpack.c.l.b16 %v4379
      %v4464 = vunpack.c.l.b16 %v4380
      %v4465 = vunpack.c.l.b16 %v4381
      %v4466 = vunpack.c.l.b16 %v4382
      %v4467 = vunpack.c.l.b16 %v4383
      %v4468 = vunpack.c.l.b16 %v4384
      %v4469 = vunpack.c.l.b16 %v4385
      %v4470 = vunpack.c.l.b16 %v4386
      %v4471 = vunpack.c.l.b16 %v4387
      %v4472 = vunpack.c.l.b16 %v4388
      %v4473 = vunpack.c.l.b16 %v4389
      %v4474 = vunpack.c.l.b16 %v4390
      %v4475 = vunpack.c.l.b16 %v4391
      %v4476 = vunpack.c.l.b16 %v4392
      %v4477 = vunpack.c.l.b16 %v4393
      %v4478 = vunpack.c.l.b16 %v4394
      %v4479 = vunpack.c.l.b16 %v4395
      %v4480 = vunpack.c.l.b16 %v4396
      %v4481 = vunpack.c.l.b16 %v4397
      %v4482 = vunpack.c.l.b16 %v4398
      %v4483 = vunpack.c.l.b16 %v4399
      %v4484 = vunpack.c.l.b16 %v4400
      %v4485 = vunpack.c.l.b16 %v4401
      %v4486 = vunpack.c.l.b16 %v4402
      %v4487 = vunpack.c.l.b16 %v4403
      %v4488 = vunpack.c.l.b16 %v4404
      %v4489 = vunpack.c.l.b16 %v4405
      %v4490 = vunpack.c.l.b16 %v4406
      %v4491 = vunpack.c.l.b16 %v4407
      %v4492 = vunpack.c.l.b16 %v4408
      %v4493 = vunpack.c.l.b16 %v4409
      %v4494 = vunpack.c.l.b16 %v4410
      %v4495 = vunpack.c.l.b16 %v4411
      %v4496 = vunpack.c.l.b16 %v4412
      %v4497 = vunpack.c.l.b16 %v4413
      %v4498 = vunpack.c.l.b16 %v4414
      %v4499 = vunpack.c.l.b16 %v4415
      %v4500 = vunpack.c.l.b16 %v4416
      %v4501 = vunpack.c.l.b16 %v4417
      %v4502 = vpack.c.b16 %v4462, %v4461
      %v4503 = vpack.c.b16 %v4464, %v4463
      %v4504 = vpack.c.b16 %v4466, %v4465
      %v4505 = vpack.c.b16 %v4468, %v4467
      %v4506 = vpack.c.b16 %v4470, %v4469
      %v4507 = vpack.c.b16 %v4472, %v4471
      %v4508 = vpack.c.b16 %v4474, %v4473
      %v4509 = vpack.c.b16 %v4476, %v4475
      %v4510 = vpack.c.b16 %v4478, %v4477
      %v4511 = vpack.c.b16 %v4480, %v4479
      %v4512 = vpack.c.b16 %v4482, %v4481
      %v4513 = vpack.c.b16 %v4484, %v4483
      %v4514 = vpack.c.b16 %v4486, %v4485
      %v4515 = vpack.c.b16 %v4488, %v4487
      %v4516 = vpack.c.b16 %v4490, %v4489
      %v4517 = vpack.c.b16 %v4492, %v4491
      %v4518 = vpack.c.b16 %v4494, %v4493
      %v4519 = vpack.c.b16 %v4496, %v4495
      %v4520 = vpack.c.b16 %v4498, %v4497
      %v4521 = vpack.c.b16 %v4500, %v4499
      %v4522 = vpack.c.b16 %v4501, %v4501
      %v4524 = vsel %vm660, %v4502, 0
      %v4527 = vsel %vm660, %v4503, 0
      %v4530 = vsel %vm660, %v4504, 0
      %v4533 = vsel %vm660, %v4505, 0
      %v4536 = vsel %vm660, %v4506, 0
      %v4539 = vsel %vm660, %v4507, 0
      %v4542 = vsel %vm660, %v4508, 0
      %v4545 = vsel %vm660, %v4509, 0
      %v4548 = vsel %vm660, %v4510, 0
      %v4551 = vsel %vm660, %v4511, 0
      %v4554 = vsel %vm660, %v4512, 0
      %v4557 = vsel %vm660, %v4513, 0
      %v4560 = vsel %vm660, %v4514, 0
      %v4563 = vsel %vm660, %v4515, 0
      %v4566 = vsel %vm660, %v4516, 0
      %v4569 = vsel %vm660, %v4517, 0
      %v4572 = vsel %vm660, %v4518, 0
      %v4575 = vsel %vm660, %v4519, 0
      %v4578 = vsel %vm660, %v4520, 0
      %v4581 = vsel %vm660, %v4521, 0
      %v4584 = vsel %vm660, %v4522, 0
      %v4587 = vsel %vm724, %v4419, 0
      %4589 = vmatprep.subr.bf16.mxu0 0
      %4590 = vmatpush1.bf16.msra.mxu0 0
      %4591 = vmatprep.subr.bf16.mxu0 0
      %4592 = vmatpush1.bf16.msra.mxu0 0
      %4593 = vmatprep.subr.bf16.mxu0 0
      %4594 = vmatpush1.bf16.msra.mxu0 0
      %4595 = vmatprep.subr.bf16.mxu0 0
      %4596 = vmatpush1.bf16.msra.mxu0 0
      %4597 = vmatprep.subr.bf16.mxu0 0
      %4598 = vmatpush1.bf16.msra.mxu0 0
      %4599 = vmatprep.subr.bf16.mxu0 0
      %4600 = vmatpush1.bf16.msra.mxu0 0
      %4601 = vmatprep.subr.bf16.mxu0 0
      %4602 = vmatpush1.bf16.msra.mxu0 0
      %4603 = vmatprep.subr.bf16.mxu0 0
      %4604 = vmatpush1.bf16.msra.mxu0 %v4587
      %4605 = vmatprep.subr.bf16.mxu0 0
      %4606 = vmatpush2.bf16.msra.mxu0 0
      %4607 = vmatprep.subr.bf16.mxu0 0
      %4608 = vmatpush2.bf16.msra.mxu0 0
      %4609 = vmatprep.subr.bf16.mxu0 0
      %4610 = vmatpush2.bf16.msra.mxu0 0
      %4611 = vmatprep.subr.bf16.mxu0 0
      %4612 = vmatpush2.bf16.msra.mxu0 0
      %4613 = vmatprep.subr.bf16.mxu0 0
      %4614 = vmatpush2.bf16.msra.mxu0 0
      %4615 = vmatprep.subr.bf16.mxu0 0
      %4616 = vmatpush2.bf16.msra.mxu0 0
      %4617 = vmatprep.subr.bf16.mxu0 0
      %4618 = vmatpush2.bf16.msra.mxu0 0
      %4619 = vmatprep.subr.bf16.mxu0 0
      %4620 = vmatpush2.bf16.msra.mxu0 0
      %4621 = vmatprep.mubr.bf16.mxu0 0
      %4622 = vmatmul.mubr.bf16.gmra.mxu0 %v4524
      %v4623 = vpop.f32.mrf.mxu0
      %v4624 = vadd.f32 0.0, %v4623
      %v4625 = vpop.f32.mrf.mxu0
      %v4626 = vpop.f32.mrf.mxu0
      %v4627 = vadd.f32 0.0, %v4626
      %v4628 = vpop.f32.mrf.mxu0
      %4629 = vmatprep.mubr.bf16.mxu0 0
      %4630 = vmatmul.mubr.bf16.gmra.mxu0 %v4527
      %v4631 = vpop.f32.mrf.mxu0
      %v4632 = vadd.f32 0.0, %v4631
      %v4633 = vpop.f32.mrf.mxu0
      %v4634 = vpop.f32.mrf.mxu0
      %v4635 = vadd.f32 0.0, %v4634
      %v4636 = vpop.f32.mrf.mxu0
      %4637 = vmatprep.mubr.bf16.mxu0 0
      %4638 = vmatmul.mubr.bf16.gmra.mxu0 %v4530
      %v4639 = vpop.f32.mrf.mxu0
      %v4640 = vadd.f32 0.0, %v4639
      %v4641 = vpop.f32.mrf.mxu0
      %v4642 = vpop.f32.mrf.mxu0
      %v4643 = vadd.f32 0.0, %v4642
      %v4644 = vpop.f32.mrf.mxu0
      %4645 = vmatprep.mubr.bf16.mxu0 0
      %4646 = vmatmul.mubr.bf16.gmra.mxu0 %v4533
      %v4647 = vpop.f32.mrf.mxu0
      %v4648 = vadd.f32 0.0, %v4647
      %v4649 = vpop.f32.mrf.mxu0
      %v4650 = vpop.f32.mrf.mxu0
      %v4651 = vadd.f32 0.0, %v4650
      %v4652 = vpop.f32.mrf.mxu0
      %4653 = vmatprep.mubr.bf16.mxu0 0
      %4654 = vmatmul.mubr.bf16.gmra.mxu0 %v4536
      %v4655 = vpop.f32.mrf.mxu0
      %v4656 = vadd.f32 0.0, %v4655
      %v4657 = vpop.f32.mrf.mxu0
      %v4658 = vpop.f32.mrf.mxu0
      %v4659 = vadd.f32 0.0, %v4658
      %v4660 = vpop.f32.mrf.mxu0
      %4661 = vmatprep.mubr.bf16.mxu0 0
      %4662 = vmatmul.mubr.bf16.gmra.mxu0 %v4539
      %v4663 = vpop.f32.mrf.mxu0
      %v4664 = vadd.f32 0.0, %v4663
      %v4665 = vpop.f32.mrf.mxu0
      %v4666 = vpop.f32.mrf.mxu0
      %v4667 = vadd.f32 0.0, %v4666
      %v4668 = vpop.f32.mrf.mxu0
      %4669 = vmatprep.mubr.bf16.mxu0 0
      %4670 = vmatmul.mubr.bf16.gmra.mxu0 %v4542
      %v4671 = vpop.f32.mrf.mxu0
      %v4672 = vadd.f32 0.0, %v4671
      %v4673 = vpop.f32.mrf.mxu0
      %v4674 = vpop.f32.mrf.mxu0
      %v4675 = vadd.f32 0.0, %v4674
      %v4676 = vpop.f32.mrf.mxu0
      %4677 = vmatprep.mubr.bf16.mxu0 0
      %4678 = vmatmul.mubr.bf16.gmra.mxu0 %v4545
      %v4679 = vpop.f32.mrf.mxu0
      %v4680 = vadd.f32 0.0, %v4679
      %v4681 = vpop.f32.mrf.mxu0
      %v4682 = vpop.f32.mrf.mxu0
      %v4683 = vadd.f32 0.0, %v4682
      %v4684 = vpop.f32.mrf.mxu0
      %4685 = vmatprep.mubr.bf16.mxu0 0
      %4686 = vmatmul.mubr.bf16.gmra.mxu0 %v4548
      %v4687 = vpop.f32.mrf.mxu0
      %v4688 = vadd.f32 0.0, %v4687
      %v4689 = vpop.f32.mrf.mxu0
      %v4690 = vpop.f32.mrf.mxu0
      %v4691 = vadd.f32 0.0, %v4690
      %v4692 = vpop.f32.mrf.mxu0
      %4693 = vmatprep.mubr.bf16.mxu0 0
      %4694 = vmatmul.mubr.bf16.gmra.mxu0 %v4551
      %v4695 = vpop.f32.mrf.mxu0
      %v4696 = vadd.f32 0.0, %v4695
      %v4697 = vpop.f32.mrf.mxu0
      %v4698 = vpop.f32.mrf.mxu0
      %v4699 = vadd.f32 0.0, %v4698
      %v4700 = vpop.f32.mrf.mxu0
      %4701 = vmatprep.mubr.bf16.mxu0 0
      %4702 = vmatmul.mubr.bf16.gmra.mxu0 %v4554
      %v4703 = vpop.f32.mrf.mxu0
      %v4704 = vadd.f32 0.0, %v4703
      %v4705 = vpop.f32.mrf.mxu0
      %v4706 = vpop.f32.mrf.mxu0
      %v4707 = vadd.f32 0.0, %v4706
      %v4708 = vpop.f32.mrf.mxu0
      %4709 = vmatprep.mubr.bf16.mxu0 0
      %4710 = vmatmul.mubr.bf16.gmra.mxu0 %v4557
      %v4711 = vpop.f32.mrf.mxu0
      %v4712 = vadd.f32 0.0, %v4711
      %v4713 = vpop.f32.mrf.mxu0
      %v4714 = vpop.f32.mrf.mxu0
      %v4715 = vadd.f32 0.0, %v4714
      %v4716 = vpop.f32.mrf.mxu0
      %4717 = vmatprep.mubr.bf16.mxu0 0
      %4718 = vmatmul.mubr.bf16.gmra.mxu0 %v4560
      %v4719 = vpop.f32.mrf.mxu0
      %v4720 = vadd.f32 0.0, %v4719
      %v4721 = vpop.f32.mrf.mxu0
      %v4722 = vpop.f32.mrf.mxu0
      %v4723 = vadd.f32 0.0, %v4722
      %v4724 = vpop.f32.mrf.mxu0
      %4725 = vmatprep.mubr.bf16.mxu0 0
      %4726 = vmatmul.mubr.bf16.gmra.mxu0 %v4563
      %v4727 = vpop.f32.mrf.mxu0
      %v4728 = vadd.f32 0.0, %v4727
      %v4729 = vpop.f32.mrf.mxu0
      %v4730 = vpop.f32.mrf.mxu0
      %v4731 = vadd.f32 0.0, %v4730
      %v4732 = vpop.f32.mrf.mxu0
      %4733 = vmatprep.mubr.bf16.mxu0 0
      %4734 = vmatmul.mubr.bf16.gmra.mxu0 %v4566
      %v4735 = vpop.f32.mrf.mxu0
      %v4736 = vadd.f32 0.0, %v4735
      %v4737 = vpop.f32.mrf.mxu0
      %v4738 = vpop.f32.mrf.mxu0
      %v4739 = vadd.f32 0.0, %v4738
      %v4740 = vpop.f32.mrf.mxu0
      %4741 = vmatprep.mubr.bf16.mxu0 0
      %4742 = vmatmul.mubr.bf16.gmra.mxu0 %v4569
      %v4743 = vpop.f32.mrf.mxu0
      %v4744 = vadd.f32 0.0, %v4743
      %v4745 = vpop.f32.mrf.mxu0
      %v4746 = vpop.f32.mrf.mxu0
      %v4747 = vadd.f32 0.0, %v4746
      %v4748 = vpop.f32.mrf.mxu0
      %4749 = vmatprep.mubr.bf16.mxu0 0
      %4750 = vmatmul.mubr.bf16.gmra.mxu0 %v4572
      %v4751 = vpop.f32.mrf.mxu0
      %v4752 = vadd.f32 0.0, %v4751
      %v4753 = vpop.f32.mrf.mxu0
      %v4754 = vpop.f32.mrf.mxu0
      %v4755 = vadd.f32 0.0, %v4754
      %v4756 = vpop.f32.mrf.mxu0
      %4757 = vmatprep.mubr.bf16.mxu0 0
      %4758 = vmatmul.mubr.bf16.gmra.mxu0 %v4575
      %v4759 = vpop.f32.mrf.mxu0
      %v4760 = vadd.f32 0.0, %v4759
      %v4761 = vpop.f32.mrf.mxu0
      %v4762 = vpop.f32.mrf.mxu0
      %v4763 = vadd.f32 0.0, %v4762
      %v4764 = vpop.f32.mrf.mxu0
      %4765 = vmatprep.mubr.bf16.mxu0 0
      %4766 = vmatmul.mubr.bf16.gmra.mxu0 %v4578
      %v4767 = vpop.f32.mrf.mxu0
      %v4768 = vadd.f32 0.0, %v4767
      %v4769 = vpop.f32.mrf.mxu0
      %v4770 = vpop.f32.mrf.mxu0
      %v4771 = vadd.f32 0.0, %v4770
      %v4772 = vpop.f32.mrf.mxu0
      %4773 = vmatprep.mubr.bf16.mxu0 0
      %4774 = vmatmul.mubr.bf16.gmra.mxu0 %v4581
      %v4775 = vpop.f32.mrf.mxu0
      %v4776 = vadd.f32 0.0, %v4775
      %v4777 = vpop.f32.mrf.mxu0
      %v4778 = vpop.f32.mrf.mxu0
      %v4779 = vadd.f32 0.0, %v4778
      %v4780 = vpop.f32.mrf.mxu0
      %4781 = vmatprep.mubr.bf16.mxu0 0
      %4782 = vmatmul.mubr.bf16.gmra.mxu0 %v4584
      %v4783 = vpop.f32.mrf.mxu0
      %v4784 = vadd.f32 0.0, %v4783
      %v4785 = vpop.f32.mrf.mxu0
      %v4786 = vpop.f32.mrf.mxu0
      %v4787 = vpop.f32.mrf.mxu0
      %4788 = vdwg.mxu0
      %v4789 = vadd.f32 %v4336, %v4624
      %v4790 = vadd.f32 %v4337, %v4627
      %v4791 = vadd.f32 %v4338, %v4632
      %v4792 = vadd.f32 %v4339, %v4635
      %v4793 = vadd.f32 %v4340, %v4640
      %v4794 = vadd.f32 %v4341, %v4643
      %v4795 = vadd.f32 %v4342, %v4648
      %v4796 = vadd.f32 %v4343, %v4651
      %v4797 = vadd.f32 %v4344, %v4656
      %v4798 = vadd.f32 %v4345, %v4659
      %v4799 = vadd.f32 %v4346, %v4664
      %v4800 = vadd.f32 %v4347, %v4667
      %v4801 = vadd.f32 %v4348, %v4672
      %v4802 = vadd.f32 %v4349, %v4675
      %v4803 = vadd.f32 %v4350, %v4680
      %v4804 = vadd.f32 %v4351, %v4683
      %v4805 = vadd.f32 %v4352, %v4688
      %v4806 = vadd.f32 %v4353, %v4691
      %v4807 = vadd.f32 %v4354, %v4696
      %v4808 = vadd.f32 %v4355, %v4699
      %v4809 = vadd.f32 %v4356, %v4704
      %v4810 = vadd.f32 %v4357, %v4707
      %v4811 = vadd.f32 %v4358, %v4712
      %v4812 = vadd.f32 %v4359, %v4715
      %v4813 = vadd.f32 %v4360, %v4720
      %v4814 = vadd.f32 %v4361, %v4723
      %v4815 = vadd.f32 %v4362, %v4728
      %v4816 = vadd.f32 %v4363, %v4731
      %v4817 = vadd.f32 %v4364, %v4736
      %v4818 = vadd.f32 %v4365, %v4739
      %v4819 = vadd.f32 %v4366, %v4744
      %v4820 = vadd.f32 %v4367, %v4747
      %v4821 = vadd.f32 %v4368, %v4752
      %v4822 = vadd.f32 %v4369, %v4755
      %v4823 = vadd.f32 %v4370, %v4760
      %v4824 = vadd.f32 %v4371, %v4763
      %v4825 = vadd.f32 %v4372, %v4768
      %v4826 = vadd.f32 %v4373, %v4771
      %v4827 = vadd.f32 %v4374, %v4776
      %v4828 = vadd.f32 %v4375, %v4779
      %v4829 = vadd.f32 %v4376, %v4784
      %v4830 = vld [vmem:[%s321 + $0xa0] sm:$0x7]
      %s4831 = scalar_lea.vmem %s3, 40
      %v4832 = vld [vmem:[%s4831] sm:$0xf]
      %v4834 = vunpack.c.l.b16 %v4830
      %v4835 = vpack.c.b16 %v4834, %v4834
      %v4836 = vshrl.u32 %v4502, 16
      %v4838 = vshll.u32 %v4502, 16
      %v4840 = vrot.slane %v4838, 1
      %v4841 = vor.u32 %v4836, %v4840
      %v4842 = vshll.u32 %v4503, 16
      %v4844 = vrot.slane %v4842, 1
      %v4845 = vsel %vm492, %v4841, %v4844
      %v4846 = vshrl.u32 %v4503, 16
      %v4848 = vor.u32 %v4846, %v4844
      %v4849 = vshll.u32 %v4504, 16
      %v4851 = vrot.slane %v4849, 1
      %v4852 = vsel %vm492, %v4848, %v4851
      %v4853 = vshrl.u32 %v4504, 16
      %v4855 = vor.u32 %v4853, %v4851
      %v4856 = vshll.u32 %v4505, 16
      %v4858 = vrot.slane %v4856, 1
      %v4859 = vsel %vm492, %v4855, %v4858
      %v4860 = vshrl.u32 %v4505, 16
      %v4862 = vor.u32 %v4860, %v4858
      %v4863 = vshll.u32 %v4506, 16
      %v4865 = vrot.slane %v4863, 1
      %v4866 = vsel %vm492, %v4862, %v4865
      %v4867 = vshrl.u32 %v4506, 16
      %v4869 = vor.u32 %v4867, %v4865
      %v4870 = vshll.u32 %v4507, 16
      %v4872 = vrot.slane %v4870, 1
      %v4873 = vsel %vm492, %v4869, %v4872
      %v4874 = vshrl.u32 %v4507, 16
      %v4876 = vor.u32 %v4874, %v4872
      %v4877 = vshll.u32 %v4508, 16
      %v4879 = vrot.slane %v4877, 1
      %v4880 = vsel %vm492, %v4876, %v4879
      %v4881 = vshrl.u32 %v4508, 16
      %v4883 = vor.u32 %v4881, %v4879
      %v4884 = vshll.u32 %v4509, 16
      %v4886 = vrot.slane %v4884, 1
      %v4887 = vsel %vm492, %v4883, %v4886
      %v4888 = vshrl.u32 %v4509, 16
      %v4890 = vor.u32 %v4888, %v4886
      %v4891 = vshll.u32 %v4510, 16
      %v4893 = vrot.slane %v4891, 1
      %v4894 = vsel %vm492, %v4890, %v4893
      %v4895 = vshrl.u32 %v4510, 16
      %v4897 = vor.u32 %v4895, %v4893
      %v4898 = vshll.u32 %v4511, 16
      %v4900 = vrot.slane %v4898, 1
      %v4901 = vsel %vm492, %v4897, %v4900
      %v4902 = vshrl.u32 %v4511, 16
      %v4904 = vor.u32 %v4902, %v4900
      %v4905 = vshll.u32 %v4512, 16
      %v4907 = vrot.slane %v4905, 1
      %v4908 = vsel %vm492, %v4904, %v4907
      %v4909 = vshrl.u32 %v4512, 16
      %v4911 = vor.u32 %v4909, %v4907
      %v4912 = vshll.u32 %v4513, 16
      %v4914 = vrot.slane %v4912, 1
      %v4915 = vsel %vm492, %v4911, %v4914
      %v4916 = vshrl.u32 %v4513, 16
      %v4918 = vor.u32 %v4916, %v4914
      %v4919 = vshll.u32 %v4514, 16
      %v4921 = vrot.slane %v4919, 1
      %v4922 = vsel %vm492, %v4918, %v4921
      %v4923 = vshrl.u32 %v4514, 16
      %v4925 = vor.u32 %v4923, %v4921
      %v4926 = vshll.u32 %v4515, 16
      %v4928 = vrot.slane %v4926, 1
      %v4929 = vsel %vm492, %v4925, %v4928
      %v4930 = vshrl.u32 %v4515, 16
      %v4932 = vor.u32 %v4930, %v4928
      %v4933 = vshll.u32 %v4516, 16
      %v4935 = vrot.slane %v4933, 1
      %v4936 = vsel %vm492, %v4932, %v4935
      %v4937 = vshrl.u32 %v4516, 16
      %v4939 = vor.u32 %v4937, %v4935
      %v4940 = vshll.u32 %v4517, 16
      %v4942 = vrot.slane %v4940, 1
      %v4943 = vsel %vm492, %v4939, %v4942
      %v4944 = vshrl.u32 %v4517, 16
      %v4946 = vor.u32 %v4944, %v4942
      %v4947 = vshll.u32 %v4518, 16
      %v4949 = vrot.slane %v4947, 1
      %v4950 = vsel %vm492, %v4946, %v4949
      %v4951 = vshrl.u32 %v4518, 16
      %v4953 = vor.u32 %v4951, %v4949
      %v4954 = vshll.u32 %v4519, 16
      %v4956 = vrot.slane %v4954, 1
      %v4957 = vsel %vm492, %v4953, %v4956
      %v4958 = vshrl.u32 %v4519, 16
      %v4960 = vor.u32 %v4958, %v4956
      %v4961 = vshll.u32 %v4520, 16
      %v4963 = vrot.slane %v4961, 1
      %v4964 = vsel %vm492, %v4960, %v4963
      %v4965 = vshrl.u32 %v4520, 16
      %v4967 = vor.u32 %v4965, %v4963
      %v4968 = vshll.u32 %v4521, 16
      %v4970 = vrot.slane %v4968, 1
      %v4971 = vsel %vm492, %v4967, %v4970
      %v4972 = vshrl.u32 %v4521, 16
      %v4974 = vor.u32 %v4972, %v4970
      %v4976 = vshll.u32 %v4835, 16
      %v4978 = vrot.slane %v4976, 1
      %v4979 = vsel %vm492, %v4974, %v4978
      %v4980 = vshrl.u32 %v4835, 16
      %v4982 = vor.u32 %v4980, %v4978
      %v4984 = vsel %vm660, %v4845, 0
      %v4987 = vsel %vm660, %v4852, 0
      %v4990 = vsel %vm660, %v4859, 0
      %v4993 = vsel %vm660, %v4866, 0
      %v4996 = vsel %vm660, %v4873, 0
      %v4999 = vsel %vm660, %v4880, 0
      %v5002 = vsel %vm660, %v4887, 0
      %v5005 = vsel %vm660, %v4894, 0
      %v5008 = vsel %vm660, %v4901, 0
      %v5011 = vsel %vm660, %v4908, 0
      %v5014 = vsel %vm660, %v4915, 0
      %v5017 = vsel %vm660, %v4922, 0
      %v5020 = vsel %vm660, %v4929, 0
      %v5023 = vsel %vm660, %v4936, 0
      %v5026 = vsel %vm660, %v4943, 0
      %v5029 = vsel %vm660, %v4950, 0
      %v5032 = vsel %vm660, %v4957, 0
      %v5035 = vsel %vm660, %v4964, 0
      %v5038 = vsel %vm660, %v4971, 0
      %v5041 = vsel %vm660, %v4979, 0
      %v5044 = vsel %vm660, %v4982, 0
      %v5047 = vsel %vm724, %v4832, 0
      %5049 = vmatprep.subr.bf16.mxu0 0
      %5050 = vmatpush1.bf16.msra.mxu0 0
      %5051 = vmatprep.subr.bf16.mxu0 0
      %5052 = vmatpush1.bf16.msra.mxu0 0
      %5053 = vmatprep.subr.bf16.mxu0 0
      %5054 = vmatpush1.bf16.msra.mxu0 0
      %5055 = vmatprep.subr.bf16.mxu0 0
      %5056 = vmatpush1.bf16.msra.mxu0 0
      %5057 = vmatprep.subr.bf16.mxu0 0
      %5058 = vmatpush1.bf16.msra.mxu0 0
      %5059 = vmatprep.subr.bf16.mxu0 0
      %5060 = vmatpush1.bf16.msra.mxu0 0
      %5061 = vmatprep.subr.bf16.mxu0 0
      %5062 = vmatpush1.bf16.msra.mxu0 0
      %5063 = vmatprep.subr.bf16.mxu0 0
      %5064 = vmatpush1.bf16.msra.mxu0 %v5047
      %5065 = vmatprep.subr.bf16.mxu0 0
      %5066 = vmatpush2.bf16.msra.mxu0 0
      %5067 = vmatprep.subr.bf16.mxu0 0
      %5068 = vmatpush2.bf16.msra.mxu0 0
      %5069 = vmatprep.subr.bf16.mxu0 0
      %5070 = vmatpush2.bf16.msra.mxu0 0
      %5071 = vmatprep.subr.bf16.mxu0 0
      %5072 = vmatpush2.bf16.msra.mxu0 0
      %5073 = vmatprep.subr.bf16.mxu0 0
      %5074 = vmatpush2.bf16.msra.mxu0 0
      %5075 = vmatprep.subr.bf16.mxu0 0
      %5076 = vmatpush2.bf16.msra.mxu0 0
      %5077 = vmatprep.subr.bf16.mxu0 0
      %5078 = vmatpush2.bf16.msra.mxu0 0
      %5079 = vmatprep.subr.bf16.mxu0 0
      %5080 = vmatpush2.bf16.msra.mxu0 0
      %5081 = vmatprep.mubr.bf16.mxu0 0
      %5082 = vmatmul.mubr.bf16.gmra.mxu0 %v4984
      %v5083 = vpop.f32.mrf.mxu0
      %v5084 = vadd.f32 0.0, %v5083
      %v5085 = vpop.f32.mrf.mxu0
      %v5086 = vpop.f32.mrf.mxu0
      %v5087 = vadd.f32 0.0, %v5086
      %v5088 = vpop.f32.mrf.mxu0
      %5089 = vmatprep.mubr.bf16.mxu0 0
      %5090 = vmatmul.mubr.bf16.gmra.mxu0 %v4987
      %v5091 = vpop.f32.mrf.mxu0
      %v5092 = vadd.f32 0.0, %v5091
      %v5093 = vpop.f32.mrf.mxu0
      %v5094 = vpop.f32.mrf.mxu0
      %v5095 = vadd.f32 0.0, %v5094
      %v5096 = vpop.f32.mrf.mxu0
      %5097 = vmatprep.mubr.bf16.mxu0 0
      %5098 = vmatmul.mubr.bf16.gmra.mxu0 %v4990
      %v5099 = vpop.f32.mrf.mxu0
      %v5100 = vadd.f32 0.0, %v5099
      %v5101 = vpop.f32.mrf.mxu0
      %v5102 = vpop.f32.mrf.mxu0
      %v5103 = vadd.f32 0.0, %v5102
      %v5104 = vpop.f32.mrf.mxu0
      %5105 = vmatprep.mubr.bf16.mxu0 0
      %5106 = vmatmul.mubr.bf16.gmra.mxu0 %v4993
      %v5107 = vpop.f32.mrf.mxu0
      %v5108 = vadd.f32 0.0, %v5107
      %v5109 = vpop.f32.mrf.mxu0
      %v5110 = vpop.f32.mrf.mxu0
      %v5111 = vadd.f32 0.0, %v5110
      %v5112 = vpop.f32.mrf.mxu0
      %5113 = vmatprep.mubr.bf16.mxu0 0
      %5114 = vmatmul.mubr.bf16.gmra.mxu0 %v4996
      %v5115 = vpop.f32.mrf.mxu0
      %v5116 = vadd.f32 0.0, %v5115
      %v5117 = vpop.f32.mrf.mxu0
      %v5118 = vpop.f32.mrf.mxu0
      %v5119 = vadd.f32 0.0, %v5118
      %v5120 = vpop.f32.mrf.mxu0
      %5121 = vmatprep.mubr.bf16.mxu0 0
      %5122 = vmatmul.mubr.bf16.gmra.mxu0 %v4999
      %v5123 = vpop.f32.mrf.mxu0
      %v5124 = vadd.f32 0.0, %v5123
      %v5125 = vpop.f32.mrf.mxu0
      %v5126 = vpop.f32.mrf.mxu0
      %v5127 = vadd.f32 0.0, %v5126
      %v5128 = vpop.f32.mrf.mxu0
      %5129 = vmatprep.mubr.bf16.mxu0 0
      %5130 = vmatmul.mubr.bf16.gmra.mxu0 %v5002
      %v5131 = vpop.f32.mrf.mxu0
      %v5132 = vadd.f32 0.0, %v5131
      %v5133 = vpop.f32.mrf.mxu0
      %v5134 = vpop.f32.mrf.mxu0
      %v5135 = vadd.f32 0.0, %v5134
      %v5136 = vpop.f32.mrf.mxu0
      %5137 = vmatprep.mubr.bf16.mxu0 0
      %5138 = vmatmul.mubr.bf16.gmra.mxu0 %v5005
      %v5139 = vpop.f32.mrf.mxu0
      %v5140 = vadd.f32 0.0, %v5139
      %v5141 = vpop.f32.mrf.mxu0
      %v5142 = vpop.f32.mrf.mxu0
      %v5143 = vadd.f32 0.0, %v5142
      %v5144 = vpop.f32.mrf.mxu0
      %5145 = vmatprep.mubr.bf16.mxu0 0
      %5146 = vmatmul.mubr.bf16.gmra.mxu0 %v5008
      %v5147 = vpop.f32.mrf.mxu0
      %v5148 = vadd.f32 0.0, %v5147
      %v5149 = vpop.f32.mrf.mxu0
      %v5150 = vpop.f32.mrf.mxu0
      %v5151 = vadd.f32 0.0, %v5150
      %v5152 = vpop.f32.mrf.mxu0
      %5153 = vmatprep.mubr.bf16.mxu0 0
      %5154 = vmatmul.mubr.bf16.gmra.mxu0 %v5011
      %v5155 = vpop.f32.mrf.mxu0
      %v5156 = vadd.f32 0.0, %v5155
      %v5157 = vpop.f32.mrf.mxu0
      %v5158 = vpop.f32.mrf.mxu0
      %v5159 = vadd.f32 0.0, %v5158
      %v5160 = vpop.f32.mrf.mxu0
      %5161 = vmatprep.mubr.bf16.mxu0 0
      %5162 = vmatmul.mubr.bf16.gmra.mxu0 %v5014
      %v5163 = vpop.f32.mrf.mxu0
      %v5164 = vadd.f32 0.0, %v5163
      %v5165 = vpop.f32.mrf.mxu0
      %v5166 = vpop.f32.mrf.mxu0
      %v5167 = vadd.f32 0.0, %v5166
      %v5168 = vpop.f32.mrf.mxu0
      %5169 = vmatprep.mubr.bf16.mxu0 0
      %5170 = vmatmul.mubr.bf16.gmra.mxu0 %v5017
      %v5171 = vpop.f32.mrf.mxu0
      %v5172 = vadd.f32 0.0, %v5171
      %v5173 = vpop.f32.mrf.mxu0
      %v5174 = vpop.f32.mrf.mxu0
      %v5175 = vadd.f32 0.0, %v5174
      %v5176 = vpop.f32.mrf.mxu0
      %5177 = vmatprep.mubr.bf16.mxu0 0
      %5178 = vmatmul.mubr.bf16.gmra.mxu0 %v5020
      %v5179 = vpop.f32.mrf.mxu0
      %v5180 = vadd.f32 0.0, %v5179
      %v5181 = vpop.f32.mrf.mxu0
      %v5182 = vpop.f32.mrf.mxu0
      %v5183 = vadd.f32 0.0, %v5182
      %v5184 = vpop.f32.mrf.mxu0
      %5185 = vmatprep.mubr.bf16.mxu0 0
      %5186 = vmatmul.mubr.bf16.gmra.mxu0 %v5023
      %v5187 = vpop.f32.mrf.mxu0
      %v5188 = vadd.f32 0.0, %v5187
      %v5189 = vpop.f32.mrf.mxu0
      %v5190 = vpop.f32.mrf.mxu0
      %v5191 = vadd.f32 0.0, %v5190
      %v5192 = vpop.f32.mrf.mxu0
      %5193 = vmatprep.mubr.bf16.mxu0 0
      %5194 = vmatmul.mubr.bf16.gmra.mxu0 %v5026
      %v5195 = vpop.f32.mrf.mxu0
      %v5196 = vadd.f32 0.0, %v5195
      %v5197 = vpop.f32.mrf.mxu0
      %v5198 = vpop.f32.mrf.mxu0
      %v5199 = vadd.f32 0.0, %v5198
      %v5200 = vpop.f32.mrf.mxu0
      %5201 = vmatprep.mubr.bf16.mxu0 0
      %5202 = vmatmul.mubr.bf16.gmra.mxu0 %v5029
      %v5203 = vpop.f32.mrf.mxu0
      %v5204 = vadd.f32 0.0, %v5203
      %v5205 = vpop.f32.mrf.mxu0
      %v5206 = vpop.f32.mrf.mxu0
      %v5207 = vadd.f32 0.0, %v5206
      %v5208 = vpop.f32.mrf.mxu0
      %5209 = vmatprep.mubr.bf16.mxu0 0
      %5210 = vmatmul.mubr.bf16.gmra.mxu0 %v5032
      %v5211 = vpop.f32.mrf.mxu0
      %v5212 = vadd.f32 0.0, %v5211
      %v5213 = vpop.f32.mrf.mxu0
      %v5214 = vpop.f32.mrf.mxu0
      %v5215 = vadd.f32 0.0, %v5214
      %v5216 = vpop.f32.mrf.mxu0
      %5217 = vmatprep.mubr.bf16.mxu0 0
      %5218 = vmatmul.mubr.bf16.gmra.mxu0 %v5035
      %v5219 = vpop.f32.mrf.mxu0
      %v5220 = vadd.f32 0.0, %v5219
      %v5221 = vpop.f32.mrf.mxu0
      %v5222 = vpop.f32.mrf.mxu0
      %v5223 = vadd.f32 0.0, %v5222
      %v5224 = vpop.f32.mrf.mxu0
      %5225 = vmatprep.mubr.bf16.mxu0 0
      %5226 = vmatmul.mubr.bf16.gmra.mxu0 %v5038
      %v5227 = vpop.f32.mrf.mxu0
      %v5228 = vadd.f32 0.0, %v5227
      %v5229 = vpop.f32.mrf.mxu0
      %v5230 = vpop.f32.mrf.mxu0
      %v5231 = vadd.f32 0.0, %v5230
      %v5232 = vpop.f32.mrf.mxu0
      %5233 = vmatprep.mubr.bf16.mxu0 0
      %5234 = vmatmul.mubr.bf16.gmra.mxu0 %v5041
      %v5235 = vpop.f32.mrf.mxu0
      %v5236 = vadd.f32 0.0, %v5235
      %v5237 = vpop.f32.mrf.mxu0
      %v5238 = vpop.f32.mrf.mxu0
      %v5239 = vadd.f32 0.0, %v5238
      %v5240 = vpop.f32.mrf.mxu0
      %5241 = vmatprep.mubr.bf16.mxu0 0
      %5242 = vmatmul.mubr.bf16.gmra.mxu0 %v5044
      %v5243 = vpop.f32.mrf.mxu0
      %v5244 = vadd.f32 0.0, %v5243
      %v5245 = vpop.f32.mrf.mxu0
      %v5246 = vpop.f32.mrf.mxu0
      %v5247 = vpop.f32.mrf.mxu0
      %5248 = vdwg.mxu0
      %v5249 = vadd.f32 %v4789, %v5084
      %v5250 = vadd.f32 %v4790, %v5087
      %v5251 = vadd.f32 %v4791, %v5092
      %v5252 = vadd.f32 %v4792, %v5095
      %v5253 = vadd.f32 %v4793, %v5100
      %v5254 = vadd.f32 %v4794, %v5103
      %v5255 = vadd.f32 %v4795, %v5108
      %v5256 = vadd.f32 %v4796, %v5111
      %v5257 = vadd.f32 %v4797, %v5116
      %v5258 = vadd.f32 %v4798, %v5119
      %v5259 = vadd.f32 %v4799, %v5124
      %v5260 = vadd.f32 %v4800, %v5127
      %v5261 = vadd.f32 %v4801, %v5132
      %v5262 = vadd.f32 %v4802, %v5135
      %v5263 = vadd.f32 %v4803, %v5140
      %v5264 = vadd.f32 %v4804, %v5143
      %v5265 = vadd.f32 %v4805, %v5148
      %v5266 = vadd.f32 %v4806, %v5151
      %v5267 = vadd.f32 %v4807, %v5156
      %v5268 = vadd.f32 %v4808, %v5159
      %v5269 = vadd.f32 %v4809, %v5164
      %v5270 = vadd.f32 %v4810, %v5167
      %v5271 = vadd.f32 %v4811, %v5172
      %v5272 = vadd.f32 %v4812, %v5175
      %v5273 = vadd.f32 %v4813, %v5180
      %v5274 = vadd.f32 %v4814, %v5183
      %v5275 = vadd.f32 %v4815, %v5188
      %v5276 = vadd.f32 %v4816, %v5191
      %v5277 = vadd.f32 %v4817, %v5196
      %v5278 = vadd.f32 %v4818, %v5199
      %v5279 = vadd.f32 %v4819, %v5204
      %v5280 = vadd.f32 %v4820, %v5207
      %v5281 = vadd.f32 %v4821, %v5212
      %v5282 = vadd.f32 %v4822, %v5215
      %v5283 = vadd.f32 %v4823, %v5220
      %v5284 = vadd.f32 %v4824, %v5223
      %v5285 = vadd.f32 %v4825, %v5228
      %v5286 = vadd.f32 %v4826, %v5231
      %v5287 = vadd.f32 %v4827, %v5236
      %v5288 = vadd.f32 %v4828, %v5239
      %v5289 = vadd.f32 %v4829, %v5244
      %v5290 = vld [vmem:[%s321] sm:$0xe]
      %s5291 = scalar_lea.vmem %s3, 44
      %v5292 = vld [vmem:[%s5291] sm:$0xf]
      %v5294 = vunpack.c.l.b16 %v5290
      %v5295 = vpack.c.b16 %v4462, %v5294
      %v5296 = vrot.slane %v5295, 1
      %v5297 = vrot.slane %v4503, 1
      %v5298 = vsel %vm1183, %v5296, %v5297
      %v5299 = vrot.slane %v4504, 1
      %v5300 = vsel %vm1183, %v5297, %v5299
      %v5301 = vrot.slane %v4505, 1
      %v5302 = vsel %vm1183, %v5299, %v5301
      %v5303 = vrot.slane %v4506, 1
      %v5304 = vsel %vm1183, %v5301, %v5303
      %v5305 = vrot.slane %v4507, 1
      %v5306 = vsel %vm1183, %v5303, %v5305
      %v5307 = vrot.slane %v4508, 1
      %v5308 = vsel %vm1183, %v5305, %v5307
      %v5309 = vrot.slane %v4509, 1
      %v5310 = vsel %vm1183, %v5307, %v5309
      %v5311 = vrot.slane %v4510, 1
      %v5312 = vsel %vm1183, %v5309, %v5311
      %v5313 = vrot.slane %v4511, 1
      %v5314 = vsel %vm1183, %v5311, %v5313
      %v5315 = vrot.slane %v4512, 1
      %v5316 = vsel %vm1183, %v5313, %v5315
      %v5317 = vrot.slane %v4513, 1
      %v5318 = vsel %vm1183, %v5315, %v5317
      %v5319 = vrot.slane %v4514, 1
      %v5320 = vsel %vm1183, %v5317, %v5319
      %v5321 = vrot.slane %v4515, 1
      %v5322 = vsel %vm1183, %v5319, %v5321
      %v5323 = vrot.slane %v4516, 1
      %v5324 = vsel %vm1183, %v5321, %v5323
      %v5325 = vrot.slane %v4517, 1
      %v5326 = vsel %vm1183, %v5323, %v5325
      %v5327 = vrot.slane %v4518, 1
      %v5328 = vsel %vm1183, %v5325, %v5327
      %v5329 = vrot.slane %v4519, 1
      %v5330 = vsel %vm1183, %v5327, %v5329
      %v5331 = vrot.slane %v4520, 1
      %v5332 = vsel %vm1183, %v5329, %v5331
      %v5333 = vrot.slane %v4521, 1
      %v5334 = vsel %vm1183, %v5331, %v5333
      %v5335 = vrot.slane %v4835, 1
      %v5336 = vsel %vm1183, %v5333, %v5335
      %v5338 = vsel %vm660, %v5298, 0
      %v5341 = vsel %vm660, %v5300, 0
      %v5344 = vsel %vm660, %v5302, 0
      %v5347 = vsel %vm660, %v5304, 0
      %v5350 = vsel %vm660, %v5306, 0
      %v5353 = vsel %vm660, %v5308, 0
      %v5356 = vsel %vm660, %v5310, 0
      %v5359 = vsel %vm660, %v5312, 0
      %v5362 = vsel %vm660, %v5314, 0
      %v5365 = vsel %vm660, %v5316, 0
      %v5368 = vsel %vm660, %v5318, 0
      %v5371 = vsel %vm660, %v5320, 0
      %v5374 = vsel %vm660, %v5322, 0
      %v5377 = vsel %vm660, %v5324, 0
      %v5380 = vsel %vm660, %v5326, 0
      %v5383 = vsel %vm660, %v5328, 0
      %v5386 = vsel %vm660, %v5330, 0
      %v5389 = vsel %vm660, %v5332, 0
      %v5392 = vsel %vm660, %v5334, 0
      %v5395 = vsel %vm660, %v5336, 0
      %v5398 = vsel %vm660, %v5335, 0
      %v5401 = vsel %vm724, %v5292, 0
      %5403 = vmatprep.subr.bf16.mxu0 0
      %5404 = vmatpush1.bf16.msra.mxu0 0
      %5405 = vmatprep.subr.bf16.mxu0 0
      %5406 = vmatpush1.bf16.msra.mxu0 0
      %5407 = vmatprep.subr.bf16.mxu0 0
      %5408 = vmatpush1.bf16.msra.mxu0 0
      %5409 = vmatprep.subr.bf16.mxu0 0
      %5410 = vmatpush1.bf16.msra.mxu0 0
      %5411 = vmatprep.subr.bf16.mxu0 0
      %5412 = vmatpush1.bf16.msra.mxu0 0
      %5413 = vmatprep.subr.bf16.mxu0 0
      %5414 = vmatpush1.bf16.msra.mxu0 0
      %5415 = vmatprep.subr.bf16.mxu0 0
      %5416 = vmatpush1.bf16.msra.mxu0 0
      %5417 = vmatprep.subr.bf16.mxu0 0
      %5418 = vmatpush1.bf16.msra.mxu0 %v5401
      %5419 = vmatprep.subr.bf16.mxu0 0
      %5420 = vmatpush2.bf16.msra.mxu0 0
      %5421 = vmatprep.subr.bf16.mxu0 0
      %5422 = vmatpush2.bf16.msra.mxu0 0
      %5423 = vmatprep.subr.bf16.mxu0 0
      %5424 = vmatpush2.bf16.msra.mxu0 0
      %5425 = vmatprep.subr.bf16.mxu0 0
      %5426 = vmatpush2.bf16.msra.mxu0 0
      %5427 = vmatprep.subr.bf16.mxu0 0
      %5428 = vmatpush2.bf16.msra.mxu0 0
      %5429 = vmatprep.subr.bf16.mxu0 0
      %5430 = vmatpush2.bf16.msra.mxu0 0
      %5431 = vmatprep.subr.bf16.mxu0 0
      %5432 = vmatpush2.bf16.msra.mxu0 0
      %5433 = vmatprep.subr.bf16.mxu0 0
      %5434 = vmatpush2.bf16.msra.mxu0 0
      %5435 = vmatprep.mubr.bf16.mxu0 0
      %5436 = vmatmul.mubr.bf16.gmra.mxu0 %v5338
      %v5437 = vpop.f32.mrf.mxu0
      %v5438 = vadd.f32 0.0, %v5437
      %v5439 = vpop.f32.mrf.mxu0
      %v5440 = vpop.f32.mrf.mxu0
      %v5441 = vadd.f32 0.0, %v5440
      %v5442 = vpop.f32.mrf.mxu0
      %5443 = vmatprep.mubr.bf16.mxu0 0
      %5444 = vmatmul.mubr.bf16.gmra.mxu0 %v5341
      %v5445 = vpop.f32.mrf.mxu0
      %v5446 = vadd.f32 0.0, %v5445
      %v5447 = vpop.f32.mrf.mxu0
      %v5448 = vpop.f32.mrf.mxu0
      %v5449 = vadd.f32 0.0, %v5448
      %v5450 = vpop.f32.mrf.mxu0
      %5451 = vmatprep.mubr.bf16.mxu0 0
      %5452 = vmatmul.mubr.bf16.gmra.mxu0 %v5344
      %v5453 = vpop.f32.mrf.mxu0
      %v5454 = vadd.f32 0.0, %v5453
      %v5455 = vpop.f32.mrf.mxu0
      %v5456 = vpop.f32.mrf.mxu0
      %v5457 = vadd.f32 0.0, %v5456
      %v5458 = vpop.f32.mrf.mxu0
      %5459 = vmatprep.mubr.bf16.mxu0 0
      %5460 = vmatmul.mubr.bf16.gmra.mxu0 %v5347
      %v5461 = vpop.f32.mrf.mxu0
      %v5462 = vadd.f32 0.0, %v5461
      %v5463 = vpop.f32.mrf.mxu0
      %v5464 = vpop.f32.mrf.mxu0
      %v5465 = vadd.f32 0.0, %v5464
      %v5466 = vpop.f32.mrf.mxu0
      %5467 = vmatprep.mubr.bf16.mxu0 0
      %5468 = vmatmul.mubr.bf16.gmra.mxu0 %v5350
      %v5469 = vpop.f32.mrf.mxu0
      %v5470 = vadd.f32 0.0, %v5469
      %v5471 = vpop.f32.mrf.mxu0
      %v5472 = vpop.f32.mrf.mxu0
      %v5473 = vadd.f32 0.0, %v5472
      %v5474 = vpop.f32.mrf.mxu0
      %5475 = vmatprep.mubr.bf16.mxu0 0
      %5476 = vmatmul.mubr.bf16.gmra.mxu0 %v5353
      %v5477 = vpop.f32.mrf.mxu0
      %v5478 = vadd.f32 0.0, %v5477
      %v5479 = vpop.f32.mrf.mxu0
      %v5480 = vpop.f32.mrf.mxu0
      %v5481 = vadd.f32 0.0, %v5480
      %v5482 = vpop.f32.mrf.mxu0
      %5483 = vmatprep.mubr.bf16.mxu0 0
      %5484 = vmatmul.mubr.bf16.gmra.mxu0 %v5356
      %v5485 = vpop.f32.mrf.mxu0
      %v5486 = vadd.f32 0.0, %v5485
      %v5487 = vpop.f32.mrf.mxu0
      %v5488 = vpop.f32.mrf.mxu0
      %v5489 = vadd.f32 0.0, %v5488
      %v5490 = vpop.f32.mrf.mxu0
      %5491 = vmatprep.mubr.bf16.mxu0 0
      %5492 = vmatmul.mubr.bf16.gmra.mxu0 %v5359
      %v5493 = vpop.f32.mrf.mxu0
      %v5494 = vadd.f32 0.0, %v5493
      %v5495 = vpop.f32.mrf.mxu0
      %v5496 = vpop.f32.mrf.mxu0
      %v5497 = vadd.f32 0.0, %v5496
      %v5498 = vpop.f32.mrf.mxu0
      %5499 = vmatprep.mubr.bf16.mxu0 0
      %5500 = vmatmul.mubr.bf16.gmra.mxu0 %v5362
      %v5501 = vpop.f32.mrf.mxu0
      %v5502 = vadd.f32 0.0, %v5501
      %v5503 = vpop.f32.mrf.mxu0
      %v5504 = vpop.f32.mrf.mxu0
      %v5505 = vadd.f32 0.0, %v5504
      %v5506 = vpop.f32.mrf.mxu0
      %5507 = vmatprep.mubr.bf16.mxu0 0
      %5508 = vmatmul.mubr.bf16.gmra.mxu0 %v5365
      %v5509 = vpop.f32.mrf.mxu0
      %v5510 = vadd.f32 0.0, %v5509
      %v5511 = vpop.f32.mrf.mxu0
      %v5512 = vpop.f32.mrf.mxu0
      %v5513 = vadd.f32 0.0, %v5512
      %v5514 = vpop.f32.mrf.mxu0
      %5515 = vmatprep.mubr.bf16.mxu0 0
      %5516 = vmatmul.mubr.bf16.gmra.mxu0 %v5368
      %v5517 = vpop.f32.mrf.mxu0
      %v5518 = vadd.f32 0.0, %v5517
      %v5519 = vpop.f32.mrf.mxu0
      %v5520 = vpop.f32.mrf.mxu0
      %v5521 = vadd.f32 0.0, %v5520
      %v5522 = vpop.f32.mrf.mxu0
      %5523 = vmatprep.mubr.bf16.mxu0 0
      %5524 = vmatmul.mubr.bf16.gmra.mxu0 %v5371
      %v5525 = vpop.f32.mrf.mxu0
      %v5526 = vadd.f32 0.0, %v5525
      %v5527 = vpop.f32.mrf.mxu0
      %v5528 = vpop.f32.mrf.mxu0
      %v5529 = vadd.f32 0.0, %v5528
      %v5530 = vpop.f32.mrf.mxu0
      %5531 = vmatprep.mubr.bf16.mxu0 0
      %5532 = vmatmul.mubr.bf16.gmra.mxu0 %v5374
      %v5533 = vpop.f32.mrf.mxu0
      %v5534 = vadd.f32 0.0, %v5533
      %v5535 = vpop.f32.mrf.mxu0
      %v5536 = vpop.f32.mrf.mxu0
      %v5537 = vadd.f32 0.0, %v5536
      %v5538 = vpop.f32.mrf.mxu0
      %5539 = vmatprep.mubr.bf16.mxu0 0
      %5540 = vmatmul.mubr.bf16.gmra.mxu0 %v5377
      %v5541 = vpop.f32.mrf.mxu0
      %v5542 = vadd.f32 0.0, %v5541
      %v5543 = vpop.f32.mrf.mxu0
      %v5544 = vpop.f32.mrf.mxu0
      %v5545 = vadd.f32 0.0, %v5544
      %v5546 = vpop.f32.mrf.mxu0
      %5547 = vmatprep.mubr.bf16.mxu0 0
      %5548 = vmatmul.mubr.bf16.gmra.mxu0 %v5380
      %v5549 = vpop.f32.mrf.mxu0
      %v5550 = vadd.f32 0.0, %v5549
      %v5551 = vpop.f32.mrf.mxu0
      %v5552 = vpop.f32.mrf.mxu0
      %v5553 = vadd.f32 0.0, %v5552
      %v5554 = vpop.f32.mrf.mxu0
      %5555 = vmatprep.mubr.bf16.mxu0 0
      %5556 = vmatmul.mubr.bf16.gmra.mxu0 %v5383
      %v5557 = vpop.f32.mrf.mxu0
      %v5558 = vadd.f32 0.0, %v5557
      %v5559 = vpop.f32.mrf.mxu0
      %v5560 = vpop.f32.mrf.mxu0
      %v5561 = vadd.f32 0.0, %v5560
      %v5562 = vpop.f32.mrf.mxu0
      %5563 = vmatprep.mubr.bf16.mxu0 0
      %5564 = vmatmul.mubr.bf16.gmra.mxu0 %v5386
      %v5565 = vpop.f32.mrf.mxu0
      %v5566 = vadd.f32 0.0, %v5565
      %v5567 = vpop.f32.mrf.mxu0
      %v5568 = vpop.f32.mrf.mxu0
      %v5569 = vadd.f32 0.0, %v5568
      %v5570 = vpop.f32.mrf.mxu0
      %5571 = vmatprep.mubr.bf16.mxu0 0
      %5572 = vmatmul.mubr.bf16.gmra.mxu0 %v5389
      %v5573 = vpop.f32.mrf.mxu0
      %v5574 = vadd.f32 0.0, %v5573
      %v5575 = vpop.f32.mrf.mxu0
      %v5576 = vpop.f32.mrf.mxu0
      %v5577 = vadd.f32 0.0, %v5576
      %v5578 = vpop.f32.mrf.mxu0
      %5579 = vmatprep.mubr.bf16.mxu0 0
      %5580 = vmatmul.mubr.bf16.gmra.mxu0 %v5392
      %v5581 = vpop.f32.mrf.mxu0
      %v5582 = vadd.f32 0.0, %v5581
      %v5583 = vpop.f32.mrf.mxu0
      %v5584 = vpop.f32.mrf.mxu0
      %v5585 = vadd.f32 0.0, %v5584
      %v5586 = vpop.f32.mrf.mxu0
      %5587 = vmatprep.mubr.bf16.mxu0 0
      %5588 = vmatmul.mubr.bf16.gmra.mxu0 %v5395
      %v5589 = vpop.f32.mrf.mxu0
      %v5590 = vadd.f32 0.0, %v5589
      %v5591 = vpop.f32.mrf.mxu0
      %v5592 = vpop.f32.mrf.mxu0
      %v5593 = vadd.f32 0.0, %v5592
      %v5594 = vpop.f32.mrf.mxu0
      %5595 = vmatprep.mubr.bf16.mxu0 0
      %5596 = vmatmul.mubr.bf16.gmra.mxu0 %v5398
      %v5597 = vpop.f32.mrf.mxu0
      %v5598 = vadd.f32 0.0, %v5597
      %v5599 = vpop.f32.mrf.mxu0
      %v5600 = vpop.f32.mrf.mxu0
      %v5601 = vpop.f32.mrf.mxu0
      %5602 = vdwg.mxu0
      %v5603 = vadd.f32 %v5249, %v5438
      %v5604 = vadd.f32 %v5250, %v5441
      %v5605 = vadd.f32 %v5251, %v5446
      %v5606 = vadd.f32 %v5252, %v5449
      %v5607 = vadd.f32 %v5253, %v5454
      %v5608 = vadd.f32 %v5254, %v5457
      %v5609 = vadd.f32 %v5255, %v5462
      %v5610 = vadd.f32 %v5256, %v5465
      %v5611 = vadd.f32 %v5257, %v5470
      %v5612 = vadd.f32 %v5258, %v5473
      %v5613 = vadd.f32 %v5259, %v5478
      %v5614 = vadd.f32 %v5260, %v5481
      %v5615 = vadd.f32 %v5261, %v5486
      %v5616 = vadd.f32 %v5262, %v5489
      %v5617 = vadd.f32 %v5263, %v5494
      %v5618 = vadd.f32 %v5264, %v5497
      %v5619 = vadd.f32 %v5265, %v5502
      %v5620 = vadd.f32 %v5266, %v5505
      %v5621 = vadd.f32 %v5267, %v5510
      %v5622 = vadd.f32 %v5268, %v5513
      %v5623 = vadd.f32 %v5269, %v5518
      %v5624 = vadd.f32 %v5270, %v5521
      %v5625 = vadd.f32 %v5271, %v5526
      %v5626 = vadd.f32 %v5272, %v5529
      %v5627 = vadd.f32 %v5273, %v5534
      %v5628 = vadd.f32 %v5274, %v5537
      %v5629 = vadd.f32 %v5275, %v5542
      %v5630 = vadd.f32 %v5276, %v5545
      %v5631 = vadd.f32 %v5277, %v5550
      %v5632 = vadd.f32 %v5278, %v5553
      %v5633 = vadd.f32 %v5279, %v5558
      %v5634 = vadd.f32 %v5280, %v5561
      %v5635 = vadd.f32 %v5281, %v5566
      %v5636 = vadd.f32 %v5282, %v5569
      %v5637 = vadd.f32 %v5283, %v5574
      %v5638 = vadd.f32 %v5284, %v5577
      %v5639 = vadd.f32 %v5285, %v5582
      %v5640 = vadd.f32 %v5286, %v5585
      %v5641 = vadd.f32 %v5287, %v5590
      %v5642 = vadd.f32 %v5288, %v5593
      %v5643 = vadd.f32 %v5289, %v5598
      %v5644 = vld [vmem:[%s321 + $0x8] sm:$0xe]
      %v5645 = vld [vmem:[%s321 + $0xc] sm:$0xf]
      %v5646 = vld [vmem:[%s321 + $0x10] sm:$0xf]
      %v5647 = vld [vmem:[%s321 + $0x14] sm:$0xf]
      %v5648 = vld [vmem:[%s321 + $0x18] sm:$0xf]
      %v5649 = vld [vmem:[%s321 + $0x1c] sm:$0xf]
      %v5650 = vld [vmem:[%s321 + $0x20] sm:$0xf]
      %v5651 = vld [vmem:[%s321 + $0x24] sm:$0xf]
      %v5652 = vld [vmem:[%s321 + $0x28] sm:$0xf]
      %v5653 = vld [vmem:[%s321 + $0x2c] sm:$0xf]
      %v5654 = vld [vmem:[%s321 + $0x30] sm:$0xf]
      %v5655 = vld [vmem:[%s321 + $0x34] sm:$0xf]
      %v5656 = vld [vmem:[%s321 + $0x38] sm:$0xf]
      %v5657 = vld [vmem:[%s321 + $0x3c] sm:$0xf]
      %v5658 = vld [vmem:[%s321 + $0x40] sm:$0xf]
      %v5659 = vld [vmem:[%s321 + $0x44] sm:$0xf]
      %v5660 = vld [vmem:[%s321 + $0x48] sm:$0xf]
      %v5661 = vld [vmem:[%s321 + $0x4c] sm:$0xf]
      %v5662 = vld [vmem:[%s321 + $0x50] sm:$0xf]
      %v5663 = vld [vmem:[%s321 + $0x54] sm:$0xf]
      %v5664 = vld [vmem:[%s321 + $0x58] sm:$0xf]
      %v5665 = vld [vmem:[%s321 + $0x5c] sm:$0xf]
      %v5666 = vld [vmem:[%s321 + $0x60] sm:$0xf]
      %v5667 = vld [vmem:[%s321 + $0x64] sm:$0xf]
      %v5668 = vld [vmem:[%s321 + $0x68] sm:$0xf]
      %v5669 = vld [vmem:[%s321 + $0x6c] sm:$0xf]
      %v5670 = vld [vmem:[%s321 + $0x70] sm:$0xf]
      %v5671 = vld [vmem:[%s321 + $0x74] sm:$0xf]
      %v5672 = vld [vmem:[%s321 + $0x78] sm:$0xf]
      %v5673 = vld [vmem:[%s321 + $0x7c] sm:$0xf]
      %v5674 = vld [vmem:[%s321 + $0x80] sm:$0xf]
      %v5675 = vld [vmem:[%s321 + $0x84] sm:$0xf]
      %v5676 = vld [vmem:[%s321 + $0x88] sm:$0xf]
      %v5677 = vld [vmem:[%s321 + $0x8c] sm:$0xf]
      %v5678 = vld [vmem:[%s321 + $0x90] sm:$0xf]
      %v5679 = vld [vmem:[%s321 + $0x94] sm:$0xf]
      %v5680 = vld [vmem:[%s321 + $0x98] sm:$0xf]
      %v5681 = vld [vmem:[%s321 + $0x9c] sm:$0xf]
      %v5682 = vld [vmem:[%s321 + $0xa0] sm:$0xf]
      %v5683 = vld [vmem:[%s321 + $0xa4] sm:$0xf]
      %v5684 = vld [vmem:[%s321 + $0xa8] sm:$0x7]
      %s5685 = scalar_lea.vmem %s3, 48
      %v5686 = vld [vmem:[%s5685] sm:$0xf]
      %v5728 = vunpack.c.l.b16 %v5644
      %v5729 = vunpack.c.l.b16 %v5645
      %v5730 = vunpack.c.l.b16 %v5646
      %v5731 = vunpack.c.l.b16 %v5647
      %v5732 = vunpack.c.l.b16 %v5648
      %v5733 = vunpack.c.l.b16 %v5649
      %v5734 = vunpack.c.l.b16 %v5650
      %v5735 = vunpack.c.l.b16 %v5651
      %v5736 = vunpack.c.l.b16 %v5652
      %v5737 = vunpack.c.l.b16 %v5653
      %v5738 = vunpack.c.l.b16 %v5654
      %v5739 = vunpack.c.l.b16 %v5655
      %v5740 = vunpack.c.l.b16 %v5656
      %v5741 = vunpack.c.l.b16 %v5657
      %v5742 = vunpack.c.l.b16 %v5658
      %v5743 = vunpack.c.l.b16 %v5659
      %v5744 = vunpack.c.l.b16 %v5660
      %v5745 = vunpack.c.l.b16 %v5661
      %v5746 = vunpack.c.l.b16 %v5662
      %v5747 = vunpack.c.l.b16 %v5663
      %v5748 = vunpack.c.l.b16 %v5664
      %v5749 = vunpack.c.l.b16 %v5665
      %v5750 = vunpack.c.l.b16 %v5666
      %v5751 = vunpack.c.l.b16 %v5667
      %v5752 = vunpack.c.l.b16 %v5668
      %v5753 = vunpack.c.l.b16 %v5669
      %v5754 = vunpack.c.l.b16 %v5670
      %v5755 = vunpack.c.l.b16 %v5671
      %v5756 = vunpack.c.l.b16 %v5672
      %v5757 = vunpack.c.l.b16 %v5673
      %v5758 = vunpack.c.l.b16 %v5674
      %v5759 = vunpack.c.l.b16 %v5675
      %v5760 = vunpack.c.l.b16 %v5676
      %v5761 = vunpack.c.l.b16 %v5677
      %v5762 = vunpack.c.l.b16 %v5678
      %v5763 = vunpack.c.l.b16 %v5679
      %v5764 = vunpack.c.l.b16 %v5680
      %v5765 = vunpack.c.l.b16 %v5681
      %v5766 = vunpack.c.l.b16 %v5682
      %v5767 = vunpack.c.l.b16 %v5683
      %v5768 = vunpack.c.l.b16 %v5684
      %v5769 = vpack.c.b16 %v5729, %v5728
      %v5770 = vpack.c.b16 %v5731, %v5730
      %v5771 = vpack.c.b16 %v5733, %v5732
      %v5772 = vpack.c.b16 %v5735, %v5734
      %v5773 = vpack.c.b16 %v5737, %v5736
      %v5774 = vpack.c.b16 %v5739, %v5738
      %v5775 = vpack.c.b16 %v5741, %v5740
      %v5776 = vpack.c.b16 %v5743, %v5742
      %v5777 = vpack.c.b16 %v5745, %v5744
      %v5778 = vpack.c.b16 %v5747, %v5746
      %v5779 = vpack.c.b16 %v5749, %v5748
      %v5780 = vpack.c.b16 %v5751, %v5750
      %v5781 = vpack.c.b16 %v5753, %v5752
      %v5782 = vpack.c.b16 %v5755, %v5754
      %v5783 = vpack.c.b16 %v5757, %v5756
      %v5784 = vpack.c.b16 %v5759, %v5758
      %v5785 = vpack.c.b16 %v5761, %v5760
      %v5786 = vpack.c.b16 %v5763, %v5762
      %v5787 = vpack.c.b16 %v5765, %v5764
      %v5788 = vpack.c.b16 %v5767, %v5766
      %v5789 = vpack.c.b16 %v5768, %v5768
      %v5790 = vrot.slane %v5769, 1
      %v5791 = vrot.slane %v5770, 1
      %v5792 = vsel %vm1183, %v5790, %v5791
      %v5793 = vrot.slane %v5771, 1
      %v5794 = vsel %vm1183, %v5791, %v5793
      %v5795 = vrot.slane %v5772, 1
      %v5796 = vsel %vm1183, %v5793, %v5795
      %v5797 = vrot.slane %v5773, 1
      %v5798 = vsel %vm1183, %v5795, %v5797
      %v5799 = vrot.slane %v5774, 1
      %v5800 = vsel %vm1183, %v5797, %v5799
      %v5801 = vrot.slane %v5775, 1
      %v5802 = vsel %vm1183, %v5799, %v5801
      %v5803 = vrot.slane %v5776, 1
      %v5804 = vsel %vm1183, %v5801, %v5803
      %v5805 = vrot.slane %v5777, 1
      %v5806 = vsel %vm1183, %v5803, %v5805
      %v5807 = vrot.slane %v5778, 1
      %v5808 = vsel %vm1183, %v5805, %v5807
      %v5809 = vrot.slane %v5779, 1
      %v5810 = vsel %vm1183, %v5807, %v5809
      %v5811 = vrot.slane %v5780, 1
      %v5812 = vsel %vm1183, %v5809, %v5811
      %v5813 = vrot.slane %v5781, 1
      %v5814 = vsel %vm1183, %v5811, %v5813
      %v5815 = vrot.slane %v5782, 1
      %v5816 = vsel %vm1183, %v5813, %v5815
      %v5817 = vrot.slane %v5783, 1
      %v5818 = vsel %vm1183, %v5815, %v5817
      %v5819 = vrot.slane %v5784, 1
      %v5820 = vsel %vm1183, %v5817, %v5819
      %v5821 = vrot.slane %v5785, 1
      %v5822 = vsel %vm1183, %v5819, %v5821
      %v5823 = vrot.slane %v5786, 1
      %v5824 = vsel %vm1183, %v5821, %v5823
      %v5825 = vrot.slane %v5787, 1
      %v5826 = vsel %vm1183, %v5823, %v5825
      %v5827 = vrot.slane %v5788, 1
      %v5828 = vsel %vm1183, %v5825, %v5827
      %v5829 = vrot.slane %v5789, 1
      %v5830 = vsel %vm1183, %v5827, %v5829
      %v5832 = vsel %vm660, %v5792, 0
      %v5835 = vsel %vm660, %v5794, 0
      %v5838 = vsel %vm660, %v5796, 0
      %v5841 = vsel %vm660, %v5798, 0
      %v5844 = vsel %vm660, %v5800, 0
      %v5847 = vsel %vm660, %v5802, 0
      %v5850 = vsel %vm660, %v5804, 0
      %v5853 = vsel %vm660, %v5806, 0
      %v5856 = vsel %vm660, %v5808, 0
      %v5859 = vsel %vm660, %v5810, 0
      %v5862 = vsel %vm660, %v5812, 0
      %v5865 = vsel %vm660, %v5814, 0
      %v5868 = vsel %vm660, %v5816, 0
      %v5871 = vsel %vm660, %v5818, 0
      %v5874 = vsel %vm660, %v5820, 0
      %v5877 = vsel %vm660, %v5822, 0
      %v5880 = vsel %vm660, %v5824, 0
      %v5883 = vsel %vm660, %v5826, 0
      %v5886 = vsel %vm660, %v5828, 0
      %v5889 = vsel %vm660, %v5830, 0
      %v5892 = vsel %vm660, %v5829, 0
      %v5895 = vsel %vm724, %v5686, 0
      %5897 = vmatprep.subr.bf16.mxu0 0
      %5898 = vmatpush1.bf16.msra.mxu0 0
      %5899 = vmatprep.subr.bf16.mxu0 0
      %5900 = vmatpush1.bf16.msra.mxu0 0
      %5901 = vmatprep.subr.bf16.mxu0 0
      %5902 = vmatpush1.bf16.msra.mxu0 0
      %5903 = vmatprep.subr.bf16.mxu0 0
      %5904 = vmatpush1.bf16.msra.mxu0 0
      %5905 = vmatprep.subr.bf16.mxu0 0
      %5906 = vmatpush1.bf16.msra.mxu0 0
      %5907 = vmatprep.subr.bf16.mxu0 0
      %5908 = vmatpush1.bf16.msra.mxu0 0
      %5909 = vmatprep.subr.bf16.mxu0 0
      %5910 = vmatpush1.bf16.msra.mxu0 0
      %5911 = vmatprep.subr.bf16.mxu0 0
      %5912 = vmatpush1.bf16.msra.mxu0 %v5895
      %5913 = vmatprep.subr.bf16.mxu0 0
      %5914 = vmatpush2.bf16.msra.mxu0 0
      %5915 = vmatprep.subr.bf16.mxu0 0
      %5916 = vmatpush2.bf16.msra.mxu0 0
      %5917 = vmatprep.subr.bf16.mxu0 0
      %5918 = vmatpush2.bf16.msra.mxu0 0
      %5919 = vmatprep.subr.bf16.mxu0 0
      %5920 = vmatpush2.bf16.msra.mxu0 0
      %5921 = vmatprep.subr.bf16.mxu0 0
      %5922 = vmatpush2.bf16.msra.mxu0 0
      %5923 = vmatprep.subr.bf16.mxu0 0
      %5924 = vmatpush2.bf16.msra.mxu0 0
      %5925 = vmatprep.subr.bf16.mxu0 0
      %5926 = vmatpush2.bf16.msra.mxu0 0
      %5927 = vmatprep.subr.bf16.mxu0 0
      %5928 = vmatpush2.bf16.msra.mxu0 0
      %5929 = vmatprep.mubr.bf16.mxu0 0
      %5930 = vmatmul.mubr.bf16.gmra.mxu0 %v5832
      %v5931 = vpop.f32.mrf.mxu0
      %v5932 = vadd.f32 0.0, %v5931
      %v5933 = vpop.f32.mrf.mxu0
      %v5934 = vpop.f32.mrf.mxu0
      %v5935 = vadd.f32 0.0, %v5934
      %v5936 = vpop.f32.mrf.mxu0
      %5937 = vmatprep.mubr.bf16.mxu0 0
      %5938 = vmatmul.mubr.bf16.gmra.mxu0 %v5835
      %v5939 = vpop.f32.mrf.mxu0
      %v5940 = vadd.f32 0.0, %v5939
      %v5941 = vpop.f32.mrf.mxu0
      %v5942 = vpop.f32.mrf.mxu0
      %v5943 = vadd.f32 0.0, %v5942
      %v5944 = vpop.f32.mrf.mxu0
      %5945 = vmatprep.mubr.bf16.mxu0 0
      %5946 = vmatmul.mubr.bf16.gmra.mxu0 %v5838
      %v5947 = vpop.f32.mrf.mxu0
      %v5948 = vadd.f32 0.0, %v5947
      %v5949 = vpop.f32.mrf.mxu0
      %v5950 = vpop.f32.mrf.mxu0
      %v5951 = vadd.f32 0.0, %v5950
      %v5952 = vpop.f32.mrf.mxu0
      %5953 = vmatprep.mubr.bf16.mxu0 0
      %5954 = vmatmul.mubr.bf16.gmra.mxu0 %v5841
      %v5955 = vpop.f32.mrf.mxu0
      %v5956 = vadd.f32 0.0, %v5955
      %v5957 = vpop.f32.mrf.mxu0
      %v5958 = vpop.f32.mrf.mxu0
      %v5959 = vadd.f32 0.0, %v5958
      %v5960 = vpop.f32.mrf.mxu0
      %5961 = vmatprep.mubr.bf16.mxu0 0
      %5962 = vmatmul.mubr.bf16.gmra.mxu0 %v5844
      %v5963 = vpop.f32.mrf.mxu0
      %v5964 = vadd.f32 0.0, %v5963
      %v5965 = vpop.f32.mrf.mxu0
      %v5966 = vpop.f32.mrf.mxu0
      %v5967 = vadd.f32 0.0, %v5966
      %v5968 = vpop.f32.mrf.mxu0
      %5969 = vmatprep.mubr.bf16.mxu0 0
      %5970 = vmatmul.mubr.bf16.gmra.mxu0 %v5847
      %v5971 = vpop.f32.mrf.mxu0
      %v5972 = vadd.f32 0.0, %v5971
      %v5973 = vpop.f32.mrf.mxu0
      %v5974 = vpop.f32.mrf.mxu0
      %v5975 = vadd.f32 0.0, %v5974
      %v5976 = vpop.f32.mrf.mxu0
      %5977 = vmatprep.mubr.bf16.mxu0 0
      %5978 = vmatmul.mubr.bf16.gmra.mxu0 %v5850
      %v5979 = vpop.f32.mrf.mxu0
      %v5980 = vadd.f32 0.0, %v5979
      %v5981 = vpop.f32.mrf.mxu0
      %v5982 = vpop.f32.mrf.mxu0
      %v5983 = vadd.f32 0.0, %v5982
      %v5984 = vpop.f32.mrf.mxu0
      %5985 = vmatprep.mubr.bf16.mxu0 0
      %5986 = vmatmul.mubr.bf16.gmra.mxu0 %v5853
      %v5987 = vpop.f32.mrf.mxu0
      %v5988 = vadd.f32 0.0, %v5987
      %v5989 = vpop.f32.mrf.mxu0
      %v5990 = vpop.f32.mrf.mxu0
      %v5991 = vadd.f32 0.0, %v5990
      %v5992 = vpop.f32.mrf.mxu0
      %5993 = vmatprep.mubr.bf16.mxu0 0
      %5994 = vmatmul.mubr.bf16.gmra.mxu0 %v5856
      %v5995 = vpop.f32.mrf.mxu0
      %v5996 = vadd.f32 0.0, %v5995
      %v5997 = vpop.f32.mrf.mxu0
      %v5998 = vpop.f32.mrf.mxu0
      %v5999 = vadd.f32 0.0, %v5998
      %v6000 = vpop.f32.mrf.mxu0
      %6001 = vmatprep.mubr.bf16.mxu0 0
      %6002 = vmatmul.mubr.bf16.gmra.mxu0 %v5859
      %v6003 = vpop.f32.mrf.mxu0
      %v6004 = vadd.f32 0.0, %v6003
      %v6005 = vpop.f32.mrf.mxu0
      %v6006 = vpop.f32.mrf.mxu0
      %v6007 = vadd.f32 0.0, %v6006
      %v6008 = vpop.f32.mrf.mxu0
      %6009 = vmatprep.mubr.bf16.mxu0 0
      %6010 = vmatmul.mubr.bf16.gmra.mxu0 %v5862
      %v6011 = vpop.f32.mrf.mxu0
      %v6012 = vadd.f32 0.0, %v6011
      %v6013 = vpop.f32.mrf.mxu0
      %v6014 = vpop.f32.mrf.mxu0
      %v6015 = vadd.f32 0.0, %v6014
      %v6016 = vpop.f32.mrf.mxu0
      %6017 = vmatprep.mubr.bf16.mxu0 0
      %6018 = vmatmul.mubr.bf16.gmra.mxu0 %v5865
      %v6019 = vpop.f32.mrf.mxu0
      %v6020 = vadd.f32 0.0, %v6019
      %v6021 = vpop.f32.mrf.mxu0
      %v6022 = vpop.f32.mrf.mxu0
      %v6023 = vadd.f32 0.0, %v6022
      %v6024 = vpop.f32.mrf.mxu0
      %6025 = vmatprep.mubr.bf16.mxu0 0
      %6026 = vmatmul.mubr.bf16.gmra.mxu0 %v5868
      %v6027 = vpop.f32.mrf.mxu0
      %v6028 = vadd.f32 0.0, %v6027
      %v6029 = vpop.f32.mrf.mxu0
      %v6030 = vpop.f32.mrf.mxu0
      %v6031 = vadd.f32 0.0, %v6030
      %v6032 = vpop.f32.mrf.mxu0
      %6033 = vmatprep.mubr.bf16.mxu0 0
      %6034 = vmatmul.mubr.bf16.gmra.mxu0 %v5871
      %v6035 = vpop.f32.mrf.mxu0
      %v6036 = vadd.f32 0.0, %v6035
      %v6037 = vpop.f32.mrf.mxu0
      %v6038 = vpop.f32.mrf.mxu0
      %v6039 = vadd.f32 0.0, %v6038
      %v6040 = vpop.f32.mrf.mxu0
      %6041 = vmatprep.mubr.bf16.mxu0 0
      %6042 = vmatmul.mubr.bf16.gmra.mxu0 %v5874
      %v6043 = vpop.f32.mrf.mxu0
      %v6044 = vadd.f32 0.0, %v6043
      %v6045 = vpop.f32.mrf.mxu0
      %v6046 = vpop.f32.mrf.mxu0
      %v6047 = vadd.f32 0.0, %v6046
      %v6048 = vpop.f32.mrf.mxu0
      %6049 = vmatprep.mubr.bf16.mxu0 0
      %6050 = vmatmul.mubr.bf16.gmra.mxu0 %v5877
      %v6051 = vpop.f32.mrf.mxu0
      %v6052 = vadd.f32 0.0, %v6051
      %v6053 = vpop.f32.mrf.mxu0
      %v6054 = vpop.f32.mrf.mxu0
      %v6055 = vadd.f32 0.0, %v6054
      %v6056 = vpop.f32.mrf.mxu0
      %6057 = vmatprep.mubr.bf16.mxu0 0
      %6058 = vmatmul.mubr.bf16.gmra.mxu0 %v5880
      %v6059 = vpop.f32.mrf.mxu0
      %v6060 = vadd.f32 0.0, %v6059
      %v6061 = vpop.f32.mrf.mxu0
      %v6062 = vpop.f32.mrf.mxu0
      %v6063 = vadd.f32 0.0, %v6062
      %v6064 = vpop.f32.mrf.mxu0
      %6065 = vmatprep.mubr.bf16.mxu0 0
      %6066 = vmatmul.mubr.bf16.gmra.mxu0 %v5883
      %v6067 = vpop.f32.mrf.mxu0
      %v6068 = vadd.f32 0.0, %v6067
      %v6069 = vpop.f32.mrf.mxu0
      %v6070 = vpop.f32.mrf.mxu0
      %v6071 = vadd.f32 0.0, %v6070
      %v6072 = vpop.f32.mrf.mxu0
      %6073 = vmatprep.mubr.bf16.mxu0 0
      %6074 = vmatmul.mubr.bf16.gmra.mxu0 %v5886
      %v6075 = vpop.f32.mrf.mxu0
      %v6076 = vadd.f32 0.0, %v6075
      %v6077 = vpop.f32.mrf.mxu0
      %v6078 = vpop.f32.mrf.mxu0
      %v6079 = vadd.f32 0.0, %v6078
      %v6080 = vpop.f32.mrf.mxu0
      %6081 = vmatprep.mubr.bf16.mxu0 0
      %6082 = vmatmul.mubr.bf16.gmra.mxu0 %v5889
      %v6083 = vpop.f32.mrf.mxu0
      %v6084 = vadd.f32 0.0, %v6083
      %v6085 = vpop.f32.mrf.mxu0
      %v6086 = vpop.f32.mrf.mxu0
      %v6087 = vadd.f32 0.0, %v6086
      %v6088 = vpop.f32.mrf.mxu0
      %6089 = vmatprep.mubr.bf16.mxu0 0
      %6090 = vmatmul.mubr.bf16.gmra.mxu0 %v5892
      %v6091 = vpop.f32.mrf.mxu0
      %v6092 = vadd.f32 0.0, %v6091
      %v6093 = vpop.f32.mrf.mxu0
      %v6094 = vpop.f32.mrf.mxu0
      %v6095 = vpop.f32.mrf.mxu0
      %6096 = vdwg.mxu0
      %v6097 = vadd.f32 %v5603, %v5932
      %v6098 = vadd.f32 %v5604, %v5935
      %v6099 = vadd.f32 %v5605, %v5940
      %v6100 = vadd.f32 %v5606, %v5943
      %v6101 = vadd.f32 %v5607, %v5948
      %v6102 = vadd.f32 %v5608, %v5951
      %v6103 = vadd.f32 %v5609, %v5956
      %v6104 = vadd.f32 %v5610, %v5959
      %v6105 = vadd.f32 %v5611, %v5964
      %v6106 = vadd.f32 %v5612, %v5967
      %v6107 = vadd.f32 %v5613, %v5972
      %v6108 = vadd.f32 %v5614, %v5975
      %v6109 = vadd.f32 %v5615, %v5980
      %v6110 = vadd.f32 %v5616, %v5983
      %v6111 = vadd.f32 %v5617, %v5988
      %v6112 = vadd.f32 %v5618, %v5991
      %v6113 = vadd.f32 %v5619, %v5996
      %v6114 = vadd.f32 %v5620, %v5999
      %v6115 = vadd.f32 %v5621, %v6004
      %v6116 = vadd.f32 %v5622, %v6007
      %v6117 = vadd.f32 %v5623, %v6012
      %v6118 = vadd.f32 %v5624, %v6015
      %v6119 = vadd.f32 %v5625, %v6020
      %v6120 = vadd.f32 %v5626, %v6023
      %v6121 = vadd.f32 %v5627, %v6028
      %v6122 = vadd.f32 %v5628, %v6031
      %v6123 = vadd.f32 %v5629, %v6036
      %v6124 = vadd.f32 %v5630, %v6039
      %v6125 = vadd.f32 %v5631, %v6044
      %v6126 = vadd.f32 %v5632, %v6047
      %v6127 = vadd.f32 %v5633, %v6052
      %v6128 = vadd.f32 %v5634, %v6055
      %v6129 = vadd.f32 %v5635, %v6060
      %v6130 = vadd.f32 %v5636, %v6063
      %v6131 = vadd.f32 %v5637, %v6068
      %v6132 = vadd.f32 %v5638, %v6071
      %v6133 = vadd.f32 %v5639, %v6076
      %v6134 = vadd.f32 %v5640, %v6079
      %v6135 = vadd.f32 %v5641, %v6084
      %v6136 = vadd.f32 %v5642, %v6087
      %v6137 = vadd.f32 %v5643, %v6092
      %v6138 = vld [vmem:[%s321 + $0xa8] sm:$0xf]
      %s6139 = scalar_lea.vmem %s3, 52
      %v6140 = vld [vmem:[%s6139] sm:$0xf]
      %v6142 = vunpack.c.l.b16 %v6138
      %v6143 = vpack.c.b16 %v6142, %v6142
      %v6145 = vshrl.u32 %v5769, 16
      %v6147 = vrot.slane %v6145, 1
      %v6148 = vshll.u32 %v5769, 16
      %v6150 = vrot.slane %v6148, 2
      %v6151 = vor.u32 %v6147, %v6150
      %v6153 = vshrl.u32 %v5770, 16
      %v6155 = vrot.slane %v6153, 1
      %v6156 = vshll.u32 %v5770, 16
      %v6158 = vrot.slane %v6156, 2
      %v6159 = vor.u32 %v6155, %v6158
      %v6160 = vsel %vm2032, %v6151, %v6159
      %v6162 = vshrl.u32 %v5771, 16
      %v6164 = vrot.slane %v6162, 1
      %v6165 = vshll.u32 %v5771, 16
      %v6167 = vrot.slane %v6165, 2
      %v6168 = vor.u32 %v6164, %v6167
      %v6169 = vsel %vm2032, %v6159, %v6168
      %v6171 = vshrl.u32 %v5772, 16
      %v6173 = vrot.slane %v6171, 1
      %v6174 = vshll.u32 %v5772, 16
      %v6176 = vrot.slane %v6174, 2
      %v6177 = vor.u32 %v6173, %v6176
      %v6178 = vsel %vm2032, %v6168, %v6177
      %v6180 = vshrl.u32 %v5773, 16
      %v6182 = vrot.slane %v6180, 1
      %v6183 = vshll.u32 %v5773, 16
      %v6185 = vrot.slane %v6183, 2
      %v6186 = vor.u32 %v6182, %v6185
      %v6187 = vsel %vm2032, %v6177, %v6186
      %v6189 = vshrl.u32 %v5774, 16
      %v6191 = vrot.slane %v6189, 1
      %v6192 = vshll.u32 %v5774, 16
      %v6194 = vrot.slane %v6192, 2
      %v6195 = vor.u32 %v6191, %v6194
      %v6196 = vsel %vm2032, %v6186, %v6195
      %v6198 = vshrl.u32 %v5775, 16
      %v6200 = vrot.slane %v6198, 1
      %v6201 = vshll.u32 %v5775, 16
      %v6203 = vrot.slane %v6201, 2
      %v6204 = vor.u32 %v6200, %v6203
      %v6205 = vsel %vm2032, %v6195, %v6204
      %v6207 = vshrl.u32 %v5776, 16
      %v6209 = vrot.slane %v6207, 1
      %v6210 = vshll.u32 %v5776, 16
      %v6212 = vrot.slane %v6210, 2
      %v6213 = vor.u32 %v6209, %v6212
      %v6214 = vsel %vm2032, %v6204, %v6213
      %v6216 = vshrl.u32 %v5777, 16
      %v6218 = vrot.slane %v6216, 1
      %v6219 = vshll.u32 %v5777, 16
      %v6221 = vrot.slane %v6219, 2
      %v6222 = vor.u32 %v6218, %v6221
      %v6223 = vsel %vm2032, %v6213, %v6222
      %v6225 = vshrl.u32 %v5778, 16
      %v6227 = vrot.slane %v6225, 1
      %v6228 = vshll.u32 %v5778, 16
      %v6230 = vrot.slane %v6228, 2
      %v6231 = vor.u32 %v6227, %v6230
      %v6232 = vsel %vm2032, %v6222, %v6231
      %v6234 = vshrl.u32 %v5779, 16
      %v6236 = vrot.slane %v6234, 1
      %v6237 = vshll.u32 %v5779, 16
      %v6239 = vrot.slane %v6237, 2
      %v6240 = vor.u32 %v6236, %v6239
      %v6241 = vsel %vm2032, %v6231, %v6240
      %v6243 = vshrl.u32 %v5780, 16
      %v6245 = vrot.slane %v6243, 1
      %v6246 = vshll.u32 %v5780, 16
      %v6248 = vrot.slane %v6246, 2
      %v6249 = vor.u32 %v6245, %v6248
      %v6250 = vsel %vm2032, %v6240, %v6249
      %v6252 = vshrl.u32 %v5781, 16
      %v6254 = vrot.slane %v6252, 1
      %v6255 = vshll.u32 %v5781, 16
      %v6257 = vrot.slane %v6255, 2
      %v6258 = vor.u32 %v6254, %v6257
      %v6259 = vsel %vm2032, %v6249, %v6258
      %v6261 = vshrl.u32 %v5782, 16
      %v6263 = vrot.slane %v6261, 1
      %v6264 = vshll.u32 %v5782, 16
      %v6266 = vrot.slane %v6264, 2
      %v6267 = vor.u32 %v6263, %v6266
      %v6268 = vsel %vm2032, %v6258, %v6267
      %v6270 = vshrl.u32 %v5783, 16
      %v6272 = vrot.slane %v6270, 1
      %v6273 = vshll.u32 %v5783, 16
      %v6275 = vrot.slane %v6273, 2
      %v6276 = vor.u32 %v6272, %v6275
      %v6277 = vsel %vm2032, %v6267, %v6276
      %v6279 = vshrl.u32 %v5784, 16
      %v6281 = vrot.slane %v6279, 1
      %v6282 = vshll.u32 %v5784, 16
      %v6284 = vrot.slane %v6282, 2
      %v6285 = vor.u32 %v6281, %v6284
      %v6286 = vsel %vm2032, %v6276, %v6285
      %v6288 = vshrl.u32 %v5785, 16
      %v6290 = vrot.slane %v6288, 1
      %v6291 = vshll.u32 %v5785, 16
      %v6293 = vrot.slane %v6291, 2
      %v6294 = vor.u32 %v6290, %v6293
      %v6295 = vsel %vm2032, %v6285, %v6294
      %v6297 = vshrl.u32 %v5786, 16
      %v6299 = vrot.slane %v6297, 1
      %v6300 = vshll.u32 %v5786, 16
      %v6302 = vrot.slane %v6300, 2
      %v6303 = vor.u32 %v6299, %v6302
      %v6304 = vsel %vm2032, %v6294, %v6303
      %v6306 = vshrl.u32 %v5787, 16
      %v6308 = vrot.slane %v6306, 1
      %v6309 = vshll.u32 %v5787, 16
      %v6311 = vrot.slane %v6309, 2
      %v6312 = vor.u32 %v6308, %v6311
      %v6313 = vsel %vm2032, %v6303, %v6312
      %v6315 = vshrl.u32 %v5788, 16
      %v6317 = vrot.slane %v6315, 1
      %v6318 = vshll.u32 %v5788, 16
      %v6320 = vrot.slane %v6318, 2
      %v6321 = vor.u32 %v6317, %v6320
      %v6322 = vsel %vm2032, %v6312, %v6321
      %v6324 = vshrl.u32 %v6143, 16
      %v6326 = vrot.slane %v6324, 1
      %v6327 = vshll.u32 %v6143, 16
      %v6329 = vrot.slane %v6327, 2
      %v6330 = vor.u32 %v6326, %v6329
      %v6331 = vsel %vm2032, %v6321, %v6330
      %v6333 = vsel %vm660, %v6160, 0
      %v6336 = vsel %vm660, %v6169, 0
      %v6339 = vsel %vm660, %v6178, 0
      %v6342 = vsel %vm660, %v6187, 0
      %v6345 = vsel %vm660, %v6196, 0
      %v6348 = vsel %vm660, %v6205, 0
      %v6351 = vsel %vm660, %v6214, 0
      %v6354 = vsel %vm660, %v6223, 0
      %v6357 = vsel %vm660, %v6232, 0
      %v6360 = vsel %vm660, %v6241, 0
      %v6363 = vsel %vm660, %v6250, 0
      %v6366 = vsel %vm660, %v6259, 0
      %v6369 = vsel %vm660, %v6268, 0
      %v6372 = vsel %vm660, %v6277, 0
      %v6375 = vsel %vm660, %v6286, 0
      %v6378 = vsel %vm660, %v6295, 0
      %v6381 = vsel %vm660, %v6304, 0
      %v6384 = vsel %vm660, %v6313, 0
      %v6387 = vsel %vm660, %v6322, 0
      %v6390 = vsel %vm660, %v6331, 0
      %v6393 = vsel %vm660, %v6330, 0
      %v6396 = vsel %vm724, %v6140, 0
      %6398 = vmatprep.subr.bf16.mxu0 0
      %6399 = vmatpush1.bf16.msra.mxu0 0
      %6400 = vmatprep.subr.bf16.mxu0 0
      %6401 = vmatpush1.bf16.msra.mxu0 0
      %6402 = vmatprep.subr.bf16.mxu0 0
      %6403 = vmatpush1.bf16.msra.mxu0 0
      %6404 = vmatprep.subr.bf16.mxu0 0
      %6405 = vmatpush1.bf16.msra.mxu0 0
      %6406 = vmatprep.subr.bf16.mxu0 0
      %6407 = vmatpush1.bf16.msra.mxu0 0
      %6408 = vmatprep.subr.bf16.mxu0 0
      %6409 = vmatpush1.bf16.msra.mxu0 0
      %6410 = vmatprep.subr.bf16.mxu0 0
      %6411 = vmatpush1.bf16.msra.mxu0 0
      %6412 = vmatprep.subr.bf16.mxu0 0
      %6413 = vmatpush1.bf16.msra.mxu0 %v6396
      %6414 = vmatprep.subr.bf16.mxu0 0
      %6415 = vmatpush2.bf16.msra.mxu0 0
      %6416 = vmatprep.subr.bf16.mxu0 0
      %6417 = vmatpush2.bf16.msra.mxu0 0
      %6418 = vmatprep.subr.bf16.mxu0 0
      %6419 = vmatpush2.bf16.msra.mxu0 0
      %6420 = vmatprep.subr.bf16.mxu0 0
      %6421 = vmatpush2.bf16.msra.mxu0 0
      %6422 = vmatprep.subr.bf16.mxu0 0
      %6423 = vmatpush2.bf16.msra.mxu0 0
      %6424 = vmatprep.subr.bf16.mxu0 0
      %6425 = vmatpush2.bf16.msra.mxu0 0
      %6426 = vmatprep.subr.bf16.mxu0 0
      %6427 = vmatpush2.bf16.msra.mxu0 0
      %6428 = vmatprep.subr.bf16.mxu0 0
      %6429 = vmatpush2.bf16.msra.mxu0 0
      %6430 = vmatprep.mubr.bf16.mxu0 0
      %6431 = vmatmul.mubr.bf16.gmra.mxu0 %v6333
      %v6432 = vpop.f32.mrf.mxu0
      %v6433 = vadd.f32 0.0, %v6432
      %v6434 = vpop.f32.mrf.mxu0
      %v6435 = vpop.f32.mrf.mxu0
      %v6436 = vadd.f32 0.0, %v6435
      %v6437 = vpop.f32.mrf.mxu0
      %6438 = vmatprep.mubr.bf16.mxu0 0
      %6439 = vmatmul.mubr.bf16.gmra.mxu0 %v6336
      %v6440 = vpop.f32.mrf.mxu0
      %v6441 = vadd.f32 0.0, %v6440
      %v6442 = vpop.f32.mrf.mxu0
      %v6443 = vpop.f32.mrf.mxu0
      %v6444 = vadd.f32 0.0, %v6443
      %v6445 = vpop.f32.mrf.mxu0
      %6446 = vmatprep.mubr.bf16.mxu0 0
      %6447 = vmatmul.mubr.bf16.gmra.mxu0 %v6339
      %v6448 = vpop.f32.mrf.mxu0
      %v6449 = vadd.f32 0.0, %v6448
      %v6450 = vpop.f32.mrf.mxu0
      %v6451 = vpop.f32.mrf.mxu0
      %v6452 = vadd.f32 0.0, %v6451
      %v6453 = vpop.f32.mrf.mxu0
      %6454 = vmatprep.mubr.bf16.mxu0 0
      %6455 = vmatmul.mubr.bf16.gmra.mxu0 %v6342
      %v6456 = vpop.f32.mrf.mxu0
      %v6457 = vadd.f32 0.0, %v6456
      %v6458 = vpop.f32.mrf.mxu0
      %v6459 = vpop.f32.mrf.mxu0
      %v6460 = vadd.f32 0.0, %v6459
      %v6461 = vpop.f32.mrf.mxu0
      %6462 = vmatprep.mubr.bf16.mxu0 0
      %6463 = vmatmul.mubr.bf16.gmra.mxu0 %v6345
      %v6464 = vpop.f32.mrf.mxu0
      %v6465 = vadd.f32 0.0, %v6464
      %v6466 = vpop.f32.mrf.mxu0
      %v6467 = vpop.f32.mrf.mxu0
      %v6468 = vadd.f32 0.0, %v6467
      %v6469 = vpop.f32.mrf.mxu0
      %6470 = vmatprep.mubr.bf16.mxu0 0
      %6471 = vmatmul.mubr.bf16.gmra.mxu0 %v6348
      %v6472 = vpop.f32.mrf.mxu0
      %v6473 = vadd.f32 0.0, %v6472
      %v6474 = vpop.f32.mrf.mxu0
      %v6475 = vpop.f32.mrf.mxu0
      %v6476 = vadd.f32 0.0, %v6475
      %v6477 = vpop.f32.mrf.mxu0
      %6478 = vmatprep.mubr.bf16.mxu0 0
      %6479 = vmatmul.mubr.bf16.gmra.mxu0 %v6351
      %v6480 = vpop.f32.mrf.mxu0
      %v6481 = vadd.f32 0.0, %v6480
      %v6482 = vpop.f32.mrf.mxu0
      %v6483 = vpop.f32.mrf.mxu0
      %v6484 = vadd.f32 0.0, %v6483
      %v6485 = vpop.f32.mrf.mxu0
      %6486 = vmatprep.mubr.bf16.mxu0 0
      %6487 = vmatmul.mubr.bf16.gmra.mxu0 %v6354
      %v6488 = vpop.f32.mrf.mxu0
      %v6489 = vadd.f32 0.0, %v6488
      %v6490 = vpop.f32.mrf.mxu0
      %v6491 = vpop.f32.mrf.mxu0
      %v6492 = vadd.f32 0.0, %v6491
      %v6493 = vpop.f32.mrf.mxu0
      %6494 = vmatprep.mubr.bf16.mxu0 0
      %6495 = vmatmul.mubr.bf16.gmra.mxu0 %v6357
      %v6496 = vpop.f32.mrf.mxu0
      %v6497 = vadd.f32 0.0, %v6496
      %v6498 = vpop.f32.mrf.mxu0
      %v6499 = vpop.f32.mrf.mxu0
      %v6500 = vadd.f32 0.0, %v6499
      %v6501 = vpop.f32.mrf.mxu0
      %6502 = vmatprep.mubr.bf16.mxu0 0
      %6503 = vmatmul.mubr.bf16.gmra.mxu0 %v6360
      %v6504 = vpop.f32.mrf.mxu0
      %v6505 = vadd.f32 0.0, %v6504
      %v6506 = vpop.f32.mrf.mxu0
      %v6507 = vpop.f32.mrf.mxu0
      %v6508 = vadd.f32 0.0, %v6507
      %v6509 = vpop.f32.mrf.mxu0
      %6510 = vmatprep.mubr.bf16.mxu0 0
      %6511 = vmatmul.mubr.bf16.gmra.mxu0 %v6363
      %v6512 = vpop.f32.mrf.mxu0
      %v6513 = vadd.f32 0.0, %v6512
      %v6514 = vpop.f32.mrf.mxu0
      %v6515 = vpop.f32.mrf.mxu0
      %v6516 = vadd.f32 0.0, %v6515
      %v6517 = vpop.f32.mrf.mxu0
      %6518 = vmatprep.mubr.bf16.mxu0 0
      %6519 = vmatmul.mubr.bf16.gmra.mxu0 %v6366
      %v6520 = vpop.f32.mrf.mxu0
      %v6521 = vadd.f32 0.0, %v6520
      %v6522 = vpop.f32.mrf.mxu0
      %v6523 = vpop.f32.mrf.mxu0
      %v6524 = vadd.f32 0.0, %v6523
      %v6525 = vpop.f32.mrf.mxu0
      %6526 = vmatprep.mubr.bf16.mxu0 0
      %6527 = vmatmul.mubr.bf16.gmra.mxu0 %v6369
      %v6528 = vpop.f32.mrf.mxu0
      %v6529 = vadd.f32 0.0, %v6528
      %v6530 = vpop.f32.mrf.mxu0
      %v6531 = vpop.f32.mrf.mxu0
      %v6532 = vadd.f32 0.0, %v6531
      %v6533 = vpop.f32.mrf.mxu0
      %6534 = vmatprep.mubr.bf16.mxu0 0
      %6535 = vmatmul.mubr.bf16.gmra.mxu0 %v6372
      %v6536 = vpop.f32.mrf.mxu0
      %v6537 = vadd.f32 0.0, %v6536
      %v6538 = vpop.f32.mrf.mxu0
      %v6539 = vpop.f32.mrf.mxu0
      %v6540 = vadd.f32 0.0, %v6539
      %v6541 = vpop.f32.mrf.mxu0
      %6542 = vmatprep.mubr.bf16.mxu0 0
      %6543 = vmatmul.mubr.bf16.gmra.mxu0 %v6375
      %v6544 = vpop.f32.mrf.mxu0
      %v6545 = vadd.f32 0.0, %v6544
      %v6546 = vpop.f32.mrf.mxu0
      %v6547 = vpop.f32.mrf.mxu0
      %v6548 = vadd.f32 0.0, %v6547
      %v6549 = vpop.f32.mrf.mxu0
      %6550 = vmatprep.mubr.bf16.mxu0 0
      %6551 = vmatmul.mubr.bf16.gmra.mxu0 %v6378
      %v6552 = vpop.f32.mrf.mxu0
      %v6553 = vadd.f32 0.0, %v6552
      %v6554 = vpop.f32.mrf.mxu0
      %v6555 = vpop.f32.mrf.mxu0
      %v6556 = vadd.f32 0.0, %v6555
      %v6557 = vpop.f32.mrf.mxu0
      %6558 = vmatprep.mubr.bf16.mxu0 0
      %6559 = vmatmul.mubr.bf16.gmra.mxu0 %v6381
      %v6560 = vpop.f32.mrf.mxu0
      %v6561 = vadd.f32 0.0, %v6560
      %v6562 = vpop.f32.mrf.mxu0
      %v6563 = vpop.f32.mrf.mxu0
      %v6564 = vadd.f32 0.0, %v6563
      %v6565 = vpop.f32.mrf.mxu0
      %6566 = vmatprep.mubr.bf16.mxu0 0
      %6567 = vmatmul.mubr.bf16.gmra.mxu0 %v6384
      %v6568 = vpop.f32.mrf.mxu0
      %v6569 = vadd.f32 0.0, %v6568
      %v6570 = vpop.f32.mrf.mxu0
      %v6571 = vpop.f32.mrf.mxu0
      %v6572 = vadd.f32 0.0, %v6571
      %v6573 = vpop.f32.mrf.mxu0
      %6574 = vmatprep.mubr.bf16.mxu0 0
      %6575 = vmatmul.mubr.bf16.gmra.mxu0 %v6387
      %v6576 = vpop.f32.mrf.mxu0
      %v6577 = vadd.f32 0.0, %v6576
      %v6578 = vpop.f32.mrf.mxu0
      %v6579 = vpop.f32.mrf.mxu0
      %v6580 = vadd.f32 0.0, %v6579
      %v6581 = vpop.f32.mrf.mxu0
      %6582 = vmatprep.mubr.bf16.mxu0 0
      %6583 = vmatmul.mubr.bf16.gmra.mxu0 %v6390
      %v6584 = vpop.f32.mrf.mxu0
      %v6585 = vadd.f32 0.0, %v6584
      %v6586 = vpop.f32.mrf.mxu0
      %v6587 = vpop.f32.mrf.mxu0
      %v6588 = vadd.f32 0.0, %v6587
      %v6589 = vpop.f32.mrf.mxu0
      %6590 = vmatprep.mubr.bf16.mxu0 0
      %6591 = vmatmul.mubr.bf16.gmra.mxu0 %v6393
      %v6592 = vpop.f32.mrf.mxu0
      %v6593 = vadd.f32 0.0, %v6592
      %v6594 = vpop.f32.mrf.mxu0
      %v6595 = vpop.f32.mrf.mxu0
      %v6596 = vpop.f32.mrf.mxu0
      %6597 = vdwg.mxu0
      %v6598 = vadd.f32 %v6097, %v6433
      %v6599 = vadd.f32 %v6098, %v6436
      %v6600 = vadd.f32 %v6099, %v6441
      %v6601 = vadd.f32 %v6100, %v6444
      %v6602 = vadd.f32 %v6101, %v6449
      %v6603 = vadd.f32 %v6102, %v6452
      %v6604 = vadd.f32 %v6103, %v6457
      %v6605 = vadd.f32 %v6104, %v6460
      %v6606 = vadd.f32 %v6105, %v6465
      %v6607 = vadd.f32 %v6106, %v6468
      %v6608 = vadd.f32 %v6107, %v6473
      %v6609 = vadd.f32 %v6108, %v6476
      %v6610 = vadd.f32 %v6109, %v6481
      %v6611 = vadd.f32 %v6110, %v6484
      %v6612 = vadd.f32 %v6111, %v6489
      %v6613 = vadd.f32 %v6112, %v6492
      %v6614 = vadd.f32 %v6113, %v6497
      %v6615 = vadd.f32 %v6114, %v6500
      %v6616 = vadd.f32 %v6115, %v6505
      %v6617 = vadd.f32 %v6116, %v6508
      %v6618 = vadd.f32 %v6117, %v6513
      %v6619 = vadd.f32 %v6118, %v6516
      %v6620 = vadd.f32 %v6119, %v6521
      %v6621 = vadd.f32 %v6120, %v6524
      %v6622 = vadd.f32 %v6121, %v6529
      %v6623 = vadd.f32 %v6122, %v6532
      %v6624 = vadd.f32 %v6123, %v6537
      %v6625 = vadd.f32 %v6124, %v6540
      %v6626 = vadd.f32 %v6125, %v6545
      %v6627 = vadd.f32 %v6126, %v6548
      %v6628 = vadd.f32 %v6127, %v6553
      %v6629 = vadd.f32 %v6128, %v6556
      %v6630 = vadd.f32 %v6129, %v6561
      %v6631 = vadd.f32 %v6130, %v6564
      %v6632 = vadd.f32 %v6131, %v6569
      %v6633 = vadd.f32 %v6132, %v6572
      %v6634 = vadd.f32 %v6133, %v6577
      %v6635 = vadd.f32 %v6134, %v6580
      %v6636 = vadd.f32 %v6135, %v6585
      %v6637 = vadd.f32 %v6136, %v6588
      %v6638 = vadd.f32 %v6137, %v6593
      %v6639 = vld [vmem:[%s321 + $0x8] sm:$0xc]
      %s6640 = scalar_lea.vmem %s3, 56
      %v6641 = vld [vmem:[%s6640] sm:$0xf]
      %v6643 = vunpack.c.l.b16 %v6639
      %v6644 = vpack.c.b16 %v5729, %v6643
      %v6645 = vrot.slane %v6644, 2
      %v6646 = vrot.slane %v5770, 2
      %v6647 = vsel %vm2534, %v6645, %v6646
      %v6648 = vrot.slane %v5771, 2
      %v6649 = vsel %vm2534, %v6646, %v6648
      %v6650 = vrot.slane %v5772, 2
      %v6651 = vsel %vm2534, %v6648, %v6650
      %v6652 = vrot.slane %v5773, 2
      %v6653 = vsel %vm2534, %v6650, %v6652
      %v6654 = vrot.slane %v5774, 2
      %v6655 = vsel %vm2534, %v6652, %v6654
      %v6656 = vrot.slane %v5775, 2
      %v6657 = vsel %vm2534, %v6654, %v6656
      %v6658 = vrot.slane %v5776, 2
      %v6659 = vsel %vm2534, %v6656, %v6658
      %v6660 = vrot.slane %v5777, 2
      %v6661 = vsel %vm2534, %v6658, %v6660
      %v6662 = vrot.slane %v5778, 2
      %v6663 = vsel %vm2534, %v6660, %v6662
      %v6664 = vrot.slane %v5779, 2
      %v6665 = vsel %vm2534, %v6662, %v6664
      %v6666 = vrot.slane %v5780, 2
      %v6667 = vsel %vm2534, %v6664, %v6666
      %v6668 = vrot.slane %v5781, 2
      %v6669 = vsel %vm2534, %v6666, %v6668
      %v6670 = vrot.slane %v5782, 2
      %v6671 = vsel %vm2534, %v6668, %v6670
      %v6672 = vrot.slane %v5783, 2
      %v6673 = vsel %vm2534, %v6670, %v6672
      %v6674 = vrot.slane %v5784, 2
      %v6675 = vsel %vm2534, %v6672, %v6674
      %v6676 = vrot.slane %v5785, 2
      %v6677 = vsel %vm2534, %v6674, %v6676
      %v6678 = vrot.slane %v5786, 2
      %v6679 = vsel %vm2534, %v6676, %v6678
      %v6680 = vrot.slane %v5787, 2
      %v6681 = vsel %vm2534, %v6678, %v6680
      %v6682 = vrot.slane %v5788, 2
      %v6683 = vsel %vm2534, %v6680, %v6682
      %v6684 = vrot.slane %v6143, 2
      %v6685 = vsel %vm2534, %v6682, %v6684
      %v6687 = vsel %vm660, %v6647, 0
      %v6690 = vsel %vm660, %v6649, 0
      %v6693 = vsel %vm660, %v6651, 0
      %v6696 = vsel %vm660, %v6653, 0
      %v6699 = vsel %vm660, %v6655, 0
      %v6702 = vsel %vm660, %v6657, 0
      %v6705 = vsel %vm660, %v6659, 0
      %v6708 = vsel %vm660, %v6661, 0
      %v6711 = vsel %vm660, %v6663, 0
      %v6714 = vsel %vm660, %v6665, 0
      %v6717 = vsel %vm660, %v6667, 0
      %v6720 = vsel %vm660, %v6669, 0
      %v6723 = vsel %vm660, %v6671, 0
      %v6726 = vsel %vm660, %v6673, 0
      %v6729 = vsel %vm660, %v6675, 0
      %v6732 = vsel %vm660, %v6677, 0
      %v6735 = vsel %vm660, %v6679, 0
      %v6738 = vsel %vm660, %v6681, 0
      %v6741 = vsel %vm660, %v6683, 0
      %v6744 = vsel %vm660, %v6685, 0
      %v6747 = vsel %vm660, %v6684, 0
      %v6750 = vsel %vm724, %v6641, 0
      %6752 = vmatprep.subr.bf16.mxu0 0
      %6753 = vmatpush1.bf16.msra.mxu0 0
      %6754 = vmatprep.subr.bf16.mxu0 0
      %6755 = vmatpush1.bf16.msra.mxu0 0
      %6756 = vmatprep.subr.bf16.mxu0 0
      %6757 = vmatpush1.bf16.msra.mxu0 0
      %6758 = vmatprep.subr.bf16.mxu0 0
      %6759 = vmatpush1.bf16.msra.mxu0 0
      %6760 = vmatprep.subr.bf16.mxu0 0
      %6761 = vmatpush1.bf16.msra.mxu0 0
      %6762 = vmatprep.subr.bf16.mxu0 0
      %6763 = vmatpush1.bf16.msra.mxu0 0
      %6764 = vmatprep.subr.bf16.mxu0 0
      %6765 = vmatpush1.bf16.msra.mxu0 0
      %6766 = vmatprep.subr.bf16.mxu0 0
      %6767 = vmatpush1.bf16.msra.mxu0 %v6750
      %6768 = vmatprep.subr.bf16.mxu0 0
      %6769 = vmatpush2.bf16.msra.mxu0 0
      %6770 = vmatprep.subr.bf16.mxu0 0
      %6771 = vmatpush2.bf16.msra.mxu0 0
      %6772 = vmatprep.subr.bf16.mxu0 0
      %6773 = vmatpush2.bf16.msra.mxu0 0
      %6774 = vmatprep.subr.bf16.mxu0 0
      %6775 = vmatpush2.bf16.msra.mxu0 0
      %6776 = vmatprep.subr.bf16.mxu0 0
      %6777 = vmatpush2.bf16.msra.mxu0 0
      %6778 = vmatprep.subr.bf16.mxu0 0
      %6779 = vmatpush2.bf16.msra.mxu0 0
      %6780 = vmatprep.subr.bf16.mxu0 0
      %6781 = vmatpush2.bf16.msra.mxu0 0
      %6782 = vmatprep.subr.bf16.mxu0 0
      %6783 = vmatpush2.bf16.msra.mxu0 0
      %6784 = vmatprep.mubr.bf16.mxu0 0
      %6785 = vmatmul.mubr.bf16.gmra.mxu0 %v6687
      %v6786 = vpop.f32.mrf.mxu0
      %v6787 = vadd.f32 0.0, %v6786
      %v6788 = vpop.f32.mrf.mxu0
      %v6789 = vpop.f32.mrf.mxu0
      %v6790 = vadd.f32 0.0, %v6789
      %v6791 = vpop.f32.mrf.mxu0
      %6792 = vmatprep.mubr.bf16.mxu0 0
      %6793 = vmatmul.mubr.bf16.gmra.mxu0 %v6690
      %v6794 = vpop.f32.mrf.mxu0
      %v6795 = vadd.f32 0.0, %v6794
      %v6796 = vpop.f32.mrf.mxu0
      %v6797 = vpop.f32.mrf.mxu0
      %v6798 = vadd.f32 0.0, %v6797
      %v6799 = vpop.f32.mrf.mxu0
      %6800 = vmatprep.mubr.bf16.mxu0 0
      %6801 = vmatmul.mubr.bf16.gmra.mxu0 %v6693
      %v6802 = vpop.f32.mrf.mxu0
      %v6803 = vadd.f32 0.0, %v6802
      %v6804 = vpop.f32.mrf.mxu0
      %v6805 = vpop.f32.mrf.mxu0
      %v6806 = vadd.f32 0.0, %v6805
      %v6807 = vpop.f32.mrf.mxu0
      %6808 = vmatprep.mubr.bf16.mxu0 0
      %6809 = vmatmul.mubr.bf16.gmra.mxu0 %v6696
      %v6810 = vpop.f32.mrf.mxu0
      %v6811 = vadd.f32 0.0, %v6810
      %v6812 = vpop.f32.mrf.mxu0
      %v6813 = vpop.f32.mrf.mxu0
      %v6814 = vadd.f32 0.0, %v6813
      %v6815 = vpop.f32.mrf.mxu0
      %6816 = vmatprep.mubr.bf16.mxu0 0
      %6817 = vmatmul.mubr.bf16.gmra.mxu0 %v6699
      %v6818 = vpop.f32.mrf.mxu0
      %v6819 = vadd.f32 0.0, %v6818
      %v6820 = vpop.f32.mrf.mxu0
      %v6821 = vpop.f32.mrf.mxu0
      %v6822 = vadd.f32 0.0, %v6821
      %v6823 = vpop.f32.mrf.mxu0
      %6824 = vmatprep.mubr.bf16.mxu0 0
      %6825 = vmatmul.mubr.bf16.gmra.mxu0 %v6702
      %v6826 = vpop.f32.mrf.mxu0
      %v6827 = vadd.f32 0.0, %v6826
      %v6828 = vpop.f32.mrf.mxu0
      %v6829 = vpop.f32.mrf.mxu0
      %v6830 = vadd.f32 0.0, %v6829
      %v6831 = vpop.f32.mrf.mxu0
      %6832 = vmatprep.mubr.bf16.mxu0 0
      %6833 = vmatmul.mubr.bf16.gmra.mxu0 %v6705
      %v6834 = vpop.f32.mrf.mxu0
      %v6835 = vadd.f32 0.0, %v6834
      %v6836 = vpop.f32.mrf.mxu0
      %v6837 = vpop.f32.mrf.mxu0
      %v6838 = vadd.f32 0.0, %v6837
      %v6839 = vpop.f32.mrf.mxu0
      %6840 = vmatprep.mubr.bf16.mxu0 0
      %6841 = vmatmul.mubr.bf16.gmra.mxu0 %v6708
      %v6842 = vpop.f32.mrf.mxu0
      %v6843 = vadd.f32 0.0, %v6842
      %v6844 = vpop.f32.mrf.mxu0
      %v6845 = vpop.f32.mrf.mxu0
      %v6846 = vadd.f32 0.0, %v6845
      %v6847 = vpop.f32.mrf.mxu0
      %6848 = vmatprep.mubr.bf16.mxu0 0
      %6849 = vmatmul.mubr.bf16.gmra.mxu0 %v6711
      %v6850 = vpop.f32.mrf.mxu0
      %v6851 = vadd.f32 0.0, %v6850
      %v6852 = vpop.f32.mrf.mxu0
      %v6853 = vpop.f32.mrf.mxu0
      %v6854 = vadd.f32 0.0, %v6853
      %v6855 = vpop.f32.mrf.mxu0
      %6856 = vmatprep.mubr.bf16.mxu0 0
      %6857 = vmatmul.mubr.bf16.gmra.mxu0 %v6714
      %v6858 = vpop.f32.mrf.mxu0
      %v6859 = vadd.f32 0.0, %v6858
      %v6860 = vpop.f32.mrf.mxu0
      %v6861 = vpop.f32.mrf.mxu0
      %v6862 = vadd.f32 0.0, %v6861
      %v6863 = vpop.f32.mrf.mxu0
      %6864 = vmatprep.mubr.bf16.mxu0 0
      %6865 = vmatmul.mubr.bf16.gmra.mxu0 %v6717
      %v6866 = vpop.f32.mrf.mxu0
      %v6867 = vadd.f32 0.0, %v6866
      %v6868 = vpop.f32.mrf.mxu0
      %v6869 = vpop.f32.mrf.mxu0
      %v6870 = vadd.f32 0.0, %v6869
      %v6871 = vpop.f32.mrf.mxu0
      %6872 = vmatprep.mubr.bf16.mxu0 0
      %6873 = vmatmul.mubr.bf16.gmra.mxu0 %v6720
      %v6874 = vpop.f32.mrf.mxu0
      %v6875 = vadd.f32 0.0, %v6874
      %v6876 = vpop.f32.mrf.mxu0
      %v6877 = vpop.f32.mrf.mxu0
      %v6878 = vadd.f32 0.0, %v6877
      %v6879 = vpop.f32.mrf.mxu0
      %6880 = vmatprep.mubr.bf16.mxu0 0
      %6881 = vmatmul.mubr.bf16.gmra.mxu0 %v6723
      %v6882 = vpop.f32.mrf.mxu0
      %v6883 = vadd.f32 0.0, %v6882
      %v6884 = vpop.f32.mrf.mxu0
      %v6885 = vpop.f32.mrf.mxu0
      %v6886 = vadd.f32 0.0, %v6885
      %v6887 = vpop.f32.mrf.mxu0
      %6888 = vmatprep.mubr.bf16.mxu0 0
      %6889 = vmatmul.mubr.bf16.gmra.mxu0 %v6726
      %v6890 = vpop.f32.mrf.mxu0
      %v6891 = vadd.f32 0.0, %v6890
      %v6892 = vpop.f32.mrf.mxu0
      %v6893 = vpop.f32.mrf.mxu0
      %v6894 = vadd.f32 0.0, %v6893
      %v6895 = vpop.f32.mrf.mxu0
      %6896 = vmatprep.mubr.bf16.mxu0 0
      %6897 = vmatmul.mubr.bf16.gmra.mxu0 %v6729
      %v6898 = vpop.f32.mrf.mxu0
      %v6899 = vadd.f32 0.0, %v6898
      %v6900 = vpop.f32.mrf.mxu0
      %v6901 = vpop.f32.mrf.mxu0
      %v6902 = vadd.f32 0.0, %v6901
      %v6903 = vpop.f32.mrf.mxu0
      %6904 = vmatprep.mubr.bf16.mxu0 0
      %6905 = vmatmul.mubr.bf16.gmra.mxu0 %v6732
      %v6906 = vpop.f32.mrf.mxu0
      %v6907 = vadd.f32 0.0, %v6906
      %v6908 = vpop.f32.mrf.mxu0
      %v6909 = vpop.f32.mrf.mxu0
      %v6910 = vadd.f32 0.0, %v6909
      %v6911 = vpop.f32.mrf.mxu0
      %6912 = vmatprep.mubr.bf16.mxu0 0
      %6913 = vmatmul.mubr.bf16.gmra.mxu0 %v6735
      %v6914 = vpop.f32.mrf.mxu0
      %v6915 = vadd.f32 0.0, %v6914
      %v6916 = vpop.f32.mrf.mxu0
      %v6917 = vpop.f32.mrf.mxu0
      %v6918 = vadd.f32 0.0, %v6917
      %v6919 = vpop.f32.mrf.mxu0
      %6920 = vmatprep.mubr.bf16.mxu0 0
      %6921 = vmatmul.mubr.bf16.gmra.mxu0 %v6738
      %v6922 = vpop.f32.mrf.mxu0
      %v6923 = vadd.f32 0.0, %v6922
      %v6924 = vpop.f32.mrf.mxu0
      %v6925 = vpop.f32.mrf.mxu0
      %v6926 = vadd.f32 0.0, %v6925
      %v6927 = vpop.f32.mrf.mxu0
      %6928 = vmatprep.mubr.bf16.mxu0 0
      %6929 = vmatmul.mubr.bf16.gmra.mxu0 %v6741
      %v6930 = vpop.f32.mrf.mxu0
      %v6931 = vadd.f32 0.0, %v6930
      %v6932 = vpop.f32.mrf.mxu0
      %v6933 = vpop.f32.mrf.mxu0
      %v6934 = vadd.f32 0.0, %v6933
      %v6935 = vpop.f32.mrf.mxu0
      %6936 = vmatprep.mubr.bf16.mxu0 0
      %6937 = vmatmul.mubr.bf16.gmra.mxu0 %v6744
      %v6938 = vpop.f32.mrf.mxu0
      %v6939 = vadd.f32 0.0, %v6938
      %v6940 = vpop.f32.mrf.mxu0
      %v6941 = vpop.f32.mrf.mxu0
      %v6942 = vadd.f32 0.0, %v6941
      %v6943 = vpop.f32.mrf.mxu0
      %6944 = vmatprep.mubr.bf16.mxu0 0
      %6945 = vmatmul.mubr.bf16.gmra.mxu0 %v6747
      %v6946 = vpop.f32.mrf.mxu0
      %v6947 = vadd.f32 0.0, %v6946
      %v6948 = vpop.f32.mrf.mxu0
      %v6949 = vpop.f32.mrf.mxu0
      %v6950 = vpop.f32.mrf.mxu0
      %6951 = vdwg.mxu0
      %v6952 = vadd.f32 %v6598, %v6787
      %v6953 = vadd.f32 %v6599, %v6790
      %v6954 = vadd.f32 %v6600, %v6795
      %v6955 = vadd.f32 %v6601, %v6798
      %v6956 = vadd.f32 %v6602, %v6803
      %v6957 = vadd.f32 %v6603, %v6806
      %v6958 = vadd.f32 %v6604, %v6811
      %v6959 = vadd.f32 %v6605, %v6814
      %v6960 = vadd.f32 %v6606, %v6819
      %v6961 = vadd.f32 %v6607, %v6822
      %v6962 = vadd.f32 %v6608, %v6827
      %v6963 = vadd.f32 %v6609, %v6830
      %v6964 = vadd.f32 %v6610, %v6835
      %v6965 = vadd.f32 %v6611, %v6838
      %v6966 = vadd.f32 %v6612, %v6843
      %v6967 = vadd.f32 %v6613, %v6846
      %v6968 = vadd.f32 %v6614, %v6851
      %v6969 = vadd.f32 %v6615, %v6854
      %v6970 = vadd.f32 %v6616, %v6859
      %v6971 = vadd.f32 %v6617, %v6862
      %v6972 = vadd.f32 %v6618, %v6867
      %v6973 = vadd.f32 %v6619, %v6870
      %v6974 = vadd.f32 %v6620, %v6875
      %v6975 = vadd.f32 %v6621, %v6878
      %v6976 = vadd.f32 %v6622, %v6883
      %v6977 = vadd.f32 %v6623, %v6886
      %v6978 = vadd.f32 %v6624, %v6891
      %v6979 = vadd.f32 %v6625, %v6894
      %v6980 = vadd.f32 %v6626, %v6899
      %v6981 = vadd.f32 %v6627, %v6902
      %v6982 = vadd.f32 %v6628, %v6907
      %v6983 = vadd.f32 %v6629, %v6910
      %v6984 = vadd.f32 %v6630, %v6915
      %v6985 = vadd.f32 %v6631, %v6918
      %v6986 = vadd.f32 %v6632, %v6923
      %v6987 = vadd.f32 %v6633, %v6926
      %v6988 = vadd.f32 %v6634, %v6931
      %v6989 = vadd.f32 %v6635, %v6934
      %v6990 = vadd.f32 %v6636, %v6939
      %v6991 = vadd.f32 %v6637, %v6942
      %v6992 = vadd.f32 %v6638, %v6947
      %v6993 = vld [vmem:[%s321 + $0x10] sm:$0xc]
      %v6994 = vld [vmem:[%s321 + $0x14] sm:$0xf]
      %v6995 = vld [vmem:[%s321 + $0x18] sm:$0xf]
      %v6996 = vld [vmem:[%s321 + $0x1c] sm:$0xf]
      %v6997 = vld [vmem:[%s321 + $0x20] sm:$0xf]
      %v6998 = vld [vmem:[%s321 + $0x24] sm:$0xf]
      %v6999 = vld [vmem:[%s321 + $0x28] sm:$0xf]
      %v7000 = vld [vmem:[%s321 + $0x2c] sm:$0xf]
      %v7001 = vld [vmem:[%s321 + $0x30] sm:$0xf]
      %v7002 = vld [vmem:[%s321 + $0x34] sm:$0xf]
      %v7003 = vld [vmem:[%s321 + $0x38] sm:$0xf]
      %v7004 = vld [vmem:[%s321 + $0x3c] sm:$0xf]
      %v7005 = vld [vmem:[%s321 + $0x40] sm:$0xf]
      %v7006 = vld [vmem:[%s321 + $0x44] sm:$0xf]
      %v7007 = vld [vmem:[%s321 + $0x48] sm:$0xf]
      %v7008 = vld [vmem:[%s321 + $0x4c] sm:$0xf]
      %v7009 = vld [vmem:[%s321 + $0x50] sm:$0xf]
      %v7010 = vld [vmem:[%s321 + $0x54] sm:$0xf]
      %v7011 = vld [vmem:[%s321 + $0x58] sm:$0xf]
      %v7012 = vld [vmem:[%s321 + $0x5c] sm:$0xf]
      %v7013 = vld [vmem:[%s321 + $0x60] sm:$0xf]
      %v7014 = vld [vmem:[%s321 + $0x64] sm:$0xf]
      %v7015 = vld [vmem:[%s321 + $0x68] sm:$0xf]
      %v7016 = vld [vmem:[%s321 + $0x6c] sm:$0xf]
      %v7017 = vld [vmem:[%s321 + $0x70] sm:$0xf]
      %v7018 = vld [vmem:[%s321 + $0x74] sm:$0xf]
      %v7019 = vld [vmem:[%s321 + $0x78] sm:$0xf]
      %v7020 = vld [vmem:[%s321 + $0x7c] sm:$0xf]
      %v7021 = vld [vmem:[%s321 + $0x80] sm:$0xf]
      %v7022 = vld [vmem:[%s321 + $0x84] sm:$0xf]
      %v7023 = vld [vmem:[%s321 + $0x88] sm:$0xf]
      %v7024 = vld [vmem:[%s321 + $0x8c] sm:$0xf]
      %v7025 = vld [vmem:[%s321 + $0x90] sm:$0xf]
      %v7026 = vld [vmem:[%s321 + $0x94] sm:$0xf]
      %v7027 = vld [vmem:[%s321 + $0x98] sm:$0xf]
      %v7028 = vld [vmem:[%s321 + $0x9c] sm:$0xf]
      %v7029 = vld [vmem:[%s321 + $0xa0] sm:$0xf]
      %v7030 = vld [vmem:[%s321 + $0xa4] sm:$0xf]
      %v7031 = vld [vmem:[%s321 + $0xa8] sm:$0xf]
      %v7032 = vld [vmem:[%s321 + $0xac] sm:$0xf]
      %v7033 = vld [vmem:[%s321 + $0xb0] sm:$0xf]
      %s7034 = scalar_lea.vmem %s3, 60
      %v7035 = vld [vmem:[%s7034] sm:$0xf]
      %v7077 = vunpack.c.l.b16 %v6993
      %v7078 = vunpack.c.l.b16 %v6994
      %v7079 = vunpack.c.l.b16 %v6995
      %v7080 = vunpack.c.l.b16 %v6996
      %v7081 = vunpack.c.l.b16 %v6997
      %v7082 = vunpack.c.l.b16 %v6998
      %v7083 = vunpack.c.l.b16 %v6999
      %v7084 = vunpack.c.l.b16 %v7000
      %v7085 = vunpack.c.l.b16 %v7001
      %v7086 = vunpack.c.l.b16 %v7002
      %v7087 = vunpack.c.l.b16 %v7003
      %v7088 = vunpack.c.l.b16 %v7004
      %v7089 = vunpack.c.l.b16 %v7005
      %v7090 = vunpack.c.l.b16 %v7006
      %v7091 = vunpack.c.l.b16 %v7007
      %v7092 = vunpack.c.l.b16 %v7008
      %v7093 = vunpack.c.l.b16 %v7009
      %v7094 = vunpack.c.l.b16 %v7010
      %v7095 = vunpack.c.l.b16 %v7011
      %v7096 = vunpack.c.l.b16 %v7012
      %v7097 = vunpack.c.l.b16 %v7013
      %v7098 = vunpack.c.l.b16 %v7014
      %v7099 = vunpack.c.l.b16 %v7015
      %v7100 = vunpack.c.l.b16 %v7016
      %v7101 = vunpack.c.l.b16 %v7017
      %v7102 = vunpack.c.l.b16 %v7018
      %v7103 = vunpack.c.l.b16 %v7019
      %v7104 = vunpack.c.l.b16 %v7020
      %v7105 = vunpack.c.l.b16 %v7021
      %v7106 = vunpack.c.l.b16 %v7022
      %v7107 = vunpack.c.l.b16 %v7023
      %v7108 = vunpack.c.l.b16 %v7024
      %v7109 = vunpack.c.l.b16 %v7025
      %v7110 = vunpack.c.l.b16 %v7026
      %v7111 = vunpack.c.l.b16 %v7027
      %v7112 = vunpack.c.l.b16 %v7028
      %v7113 = vunpack.c.l.b16 %v7029
      %v7114 = vunpack.c.l.b16 %v7030
      %v7115 = vunpack.c.l.b16 %v7031
      %v7116 = vunpack.c.l.b16 %v7032
      %v7117 = vunpack.c.l.b16 %v7033
      %v7118 = vpack.c.b16 %v7078, %v7077
      %v7119 = vpack.c.b16 %v7080, %v7079
      %v7120 = vpack.c.b16 %v7082, %v7081
      %v7121 = vpack.c.b16 %v7084, %v7083
      %v7122 = vpack.c.b16 %v7086, %v7085
      %v7123 = vpack.c.b16 %v7088, %v7087
      %v7124 = vpack.c.b16 %v7090, %v7089
      %v7125 = vpack.c.b16 %v7092, %v7091
      %v7126 = vpack.c.b16 %v7094, %v7093
      %v7127 = vpack.c.b16 %v7096, %v7095
      %v7128 = vpack.c.b16 %v7098, %v7097
      %v7129 = vpack.c.b16 %v7100, %v7099
      %v7130 = vpack.c.b16 %v7102, %v7101
      %v7131 = vpack.c.b16 %v7104, %v7103
      %v7132 = vpack.c.b16 %v7106, %v7105
      %v7133 = vpack.c.b16 %v7108, %v7107
      %v7134 = vpack.c.b16 %v7110, %v7109
      %v7135 = vpack.c.b16 %v7112, %v7111
      %v7136 = vpack.c.b16 %v7114, %v7113
      %v7137 = vpack.c.b16 %v7116, %v7115
      %v7138 = vpack.c.b16 %v7117, %v7117
      %v7139 = vrot.slane %v7118, 2
      %v7140 = vrot.slane %v7119, 2
      %v7141 = vsel %vm2534, %v7139, %v7140
      %v7142 = vrot.slane %v7120, 2
      %v7143 = vsel %vm2534, %v7140, %v7142
      %v7144 = vrot.slane %v7121, 2
      %v7145 = vsel %vm2534, %v7142, %v7144
      %v7146 = vrot.slane %v7122, 2
      %v7147 = vsel %vm2534, %v7144, %v7146
      %v7148 = vrot.slane %v7123, 2
      %v7149 = vsel %vm2534, %v7146, %v7148
      %v7150 = vrot.slane %v7124, 2
      %v7151 = vsel %vm2534, %v7148, %v7150
      %v7152 = vrot.slane %v7125, 2
      %v7153 = vsel %vm2534, %v7150, %v7152
      %v7154 = vrot.slane %v7126, 2
      %v7155 = vsel %vm2534, %v7152, %v7154
      %v7156 = vrot.slane %v7127, 2
      %v7157 = vsel %vm2534, %v7154, %v7156
      %v7158 = vrot.slane %v7128, 2
      %v7159 = vsel %vm2534, %v7156, %v7158
      %v7160 = vrot.slane %v7129, 2
      %v7161 = vsel %vm2534, %v7158, %v7160
      %v7162 = vrot.slane %v7130, 2
      %v7163 = vsel %vm2534, %v7160, %v7162
      %v7164 = vrot.slane %v7131, 2
      %v7165 = vsel %vm2534, %v7162, %v7164
      %v7166 = vrot.slane %v7132, 2
      %v7167 = vsel %vm2534, %v7164, %v7166
      %v7168 = vrot.slane %v7133, 2
      %v7169 = vsel %vm2534, %v7166, %v7168
      %v7170 = vrot.slane %v7134, 2
      %v7171 = vsel %vm2534, %v7168, %v7170
      %v7172 = vrot.slane %v7135, 2
      %v7173 = vsel %vm2534, %v7170, %v7172
      %v7174 = vrot.slane %v7136, 2
      %v7175 = vsel %vm2534, %v7172, %v7174
      %v7176 = vrot.slane %v7137, 2
      %v7177 = vsel %vm2534, %v7174, %v7176
      %v7178 = vrot.slane %v7138, 2
      %v7179 = vsel %vm2534, %v7176, %v7178
      %v7181 = vsel %vm660, %v7141, 0
      %v7184 = vsel %vm660, %v7143, 0
      %v7187 = vsel %vm660, %v7145, 0
      %v7190 = vsel %vm660, %v7147, 0
      %v7193 = vsel %vm660, %v7149, 0
      %v7196 = vsel %vm660, %v7151, 0
      %v7199 = vsel %vm660, %v7153, 0
      %v7202 = vsel %vm660, %v7155, 0
      %v7205 = vsel %vm660, %v7157, 0
      %v7208 = vsel %vm660, %v7159, 0
      %v7211 = vsel %vm660, %v7161, 0
      %v7214 = vsel %vm660, %v7163, 0
      %v7217 = vsel %vm660, %v7165, 0
      %v7220 = vsel %vm660, %v7167, 0
      %v7223 = vsel %vm660, %v7169, 0
      %v7226 = vsel %vm660, %v7171, 0
      %v7229 = vsel %vm660, %v7173, 0
      %v7232 = vsel %vm660, %v7175, 0
      %v7235 = vsel %vm660, %v7177, 0
      %v7238 = vsel %vm660, %v7179, 0
      %v7241 = vsel %vm660, %v7178, 0
      %v7244 = vsel %vm724, %v7035, 0
      %7246 = vmatprep.subr.bf16.mxu0 0
      %7247 = vmatpush1.bf16.msra.mxu0 0
      %7248 = vmatprep.subr.bf16.mxu0 0
      %7249 = vmatpush1.bf16.msra.mxu0 0
      %7250 = vmatprep.subr.bf16.mxu0 0
      %7251 = vmatpush1.bf16.msra.mxu0 0
      %7252 = vmatprep.subr.bf16.mxu0 0
      %7253 = vmatpush1.bf16.msra.mxu0 0
      %7254 = vmatprep.subr.bf16.mxu0 0
      %7255 = vmatpush1.bf16.msra.mxu0 0
      %7256 = vmatprep.subr.bf16.mxu0 0
      %7257 = vmatpush1.bf16.msra.mxu0 0
      %7258 = vmatprep.subr.bf16.mxu0 0
      %7259 = vmatpush1.bf16.msra.mxu0 0
      %7260 = vmatprep.subr.bf16.mxu0 0
      %7261 = vmatpush1.bf16.msra.mxu0 %v7244
      %7262 = vmatprep.subr.bf16.mxu0 0
      %7263 = vmatpush2.bf16.msra.mxu0 0
      %7264 = vmatprep.subr.bf16.mxu0 0
      %7265 = vmatpush2.bf16.msra.mxu0 0
      %7266 = vmatprep.subr.bf16.mxu0 0
      %7267 = vmatpush2.bf16.msra.mxu0 0
      %7268 = vmatprep.subr.bf16.mxu0 0
      %7269 = vmatpush2.bf16.msra.mxu0 0
      %7270 = vmatprep.subr.bf16.mxu0 0
      %7271 = vmatpush2.bf16.msra.mxu0 0
      %7272 = vmatprep.subr.bf16.mxu0 0
      %7273 = vmatpush2.bf16.msra.mxu0 0
      %7274 = vmatprep.subr.bf16.mxu0 0
      %7275 = vmatpush2.bf16.msra.mxu0 0
      %7276 = vmatprep.subr.bf16.mxu0 0
      %7277 = vmatpush2.bf16.msra.mxu0 0
      %7278 = vmatprep.mubr.bf16.mxu0 0
      %7279 = vmatmul.mubr.bf16.gmra.mxu0 %v7181
      %v7280 = vpop.f32.mrf.mxu0
      %v7281 = vadd.f32 0.0, %v7280
      %v7282 = vpop.f32.mrf.mxu0
      %v7283 = vpop.f32.mrf.mxu0
      %v7284 = vadd.f32 0.0, %v7283
      %v7285 = vpop.f32.mrf.mxu0
      %7286 = vmatprep.mubr.bf16.mxu0 0
      %7287 = vmatmul.mubr.bf16.gmra.mxu0 %v7184
      %v7288 = vpop.f32.mrf.mxu0
      %v7289 = vadd.f32 0.0, %v7288
      %v7290 = vpop.f32.mrf.mxu0
      %v7291 = vpop.f32.mrf.mxu0
      %v7292 = vadd.f32 0.0, %v7291
      %v7293 = vpop.f32.mrf.mxu0
      %7294 = vmatprep.mubr.bf16.mxu0 0
      %7295 = vmatmul.mubr.bf16.gmra.mxu0 %v7187
      %v7296 = vpop.f32.mrf.mxu0
      %v7297 = vadd.f32 0.0, %v7296
      %v7298 = vpop.f32.mrf.mxu0
      %v7299 = vpop.f32.mrf.mxu0
      %v7300 = vadd.f32 0.0, %v7299
      %v7301 = vpop.f32.mrf.mxu0
      %7302 = vmatprep.mubr.bf16.mxu0 0
      %7303 = vmatmul.mubr.bf16.gmra.mxu0 %v7190
      %v7304 = vpop.f32.mrf.mxu0
      %v7305 = vadd.f32 0.0, %v7304
      %v7306 = vpop.f32.mrf.mxu0
      %v7307 = vpop.f32.mrf.mxu0
      %v7308 = vadd.f32 0.0, %v7307
      %v7309 = vpop.f32.mrf.mxu0
      %7310 = vmatprep.mubr.bf16.mxu0 0
      %7311 = vmatmul.mubr.bf16.gmra.mxu0 %v7193
      %v7312 = vpop.f32.mrf.mxu0
      %v7313 = vadd.f32 0.0, %v7312
      %v7314 = vpop.f32.mrf.mxu0
      %v7315 = vpop.f32.mrf.mxu0
      %v7316 = vadd.f32 0.0, %v7315
      %v7317 = vpop.f32.mrf.mxu0
      %7318 = vmatprep.mubr.bf16.mxu0 0
      %7319 = vmatmul.mubr.bf16.gmra.mxu0 %v7196
      %v7320 = vpop.f32.mrf.mxu0
      %v7321 = vadd.f32 0.0, %v7320
      %v7322 = vpop.f32.mrf.mxu0
      %v7323 = vpop.f32.mrf.mxu0
      %v7324 = vadd.f32 0.0, %v7323
      %v7325 = vpop.f32.mrf.mxu0
      %7326 = vmatprep.mubr.bf16.mxu0 0
      %7327 = vmatmul.mubr.bf16.gmra.mxu0 %v7199
      %v7328 = vpop.f32.mrf.mxu0
      %v7329 = vadd.f32 0.0, %v7328
      %v7330 = vpop.f32.mrf.mxu0
      %v7331 = vpop.f32.mrf.mxu0
      %v7332 = vadd.f32 0.0, %v7331
      %v7333 = vpop.f32.mrf.mxu0
      %7334 = vmatprep.mubr.bf16.mxu0 0
      %7335 = vmatmul.mubr.bf16.gmra.mxu0 %v7202
      %v7336 = vpop.f32.mrf.mxu0
      %v7337 = vadd.f32 0.0, %v7336
      %v7338 = vpop.f32.mrf.mxu0
      %v7339 = vpop.f32.mrf.mxu0
      %v7340 = vadd.f32 0.0, %v7339
      %v7341 = vpop.f32.mrf.mxu0
      %7342 = vmatprep.mubr.bf16.mxu0 0
      %7343 = vmatmul.mubr.bf16.gmra.mxu0 %v7205
      %v7344 = vpop.f32.mrf.mxu0
      %v7345 = vadd.f32 0.0, %v7344
      %v7346 = vpop.f32.mrf.mxu0
      %v7347 = vpop.f32.mrf.mxu0
      %v7348 = vadd.f32 0.0, %v7347
      %v7349 = vpop.f32.mrf.mxu0
      %7350 = vmatprep.mubr.bf16.mxu0 0
      %7351 = vmatmul.mubr.bf16.gmra.mxu0 %v7208
      %v7352 = vpop.f32.mrf.mxu0
      %v7353 = vadd.f32 0.0, %v7352
      %v7354 = vpop.f32.mrf.mxu0
      %v7355 = vpop.f32.mrf.mxu0
      %v7356 = vadd.f32 0.0, %v7355
      %v7357 = vpop.f32.mrf.mxu0
      %7358 = vmatprep.mubr.bf16.mxu0 0
      %7359 = vmatmul.mubr.bf16.gmra.mxu0 %v7211
      %v7360 = vpop.f32.mrf.mxu0
      %v7361 = vadd.f32 0.0, %v7360
      %v7362 = vpop.f32.mrf.mxu0
      %v7363 = vpop.f32.mrf.mxu0
      %v7364 = vadd.f32 0.0, %v7363
      %v7365 = vpop.f32.mrf.mxu0
      %7366 = vmatprep.mubr.bf16.mxu0 0
      %7367 = vmatmul.mubr.bf16.gmra.mxu0 %v7214
      %v7368 = vpop.f32.mrf.mxu0
      %v7369 = vadd.f32 0.0, %v7368
      %v7370 = vpop.f32.mrf.mxu0
      %v7371 = vpop.f32.mrf.mxu0
      %v7372 = vadd.f32 0.0, %v7371
      %v7373 = vpop.f32.mrf.mxu0
      %7374 = vmatprep.mubr.bf16.mxu0 0
      %7375 = vmatmul.mubr.bf16.gmra.mxu0 %v7217
      %v7376 = vpop.f32.mrf.mxu0
      %v7377 = vadd.f32 0.0, %v7376
      %v7378 = vpop.f32.mrf.mxu0
      %v7379 = vpop.f32.mrf.mxu0
      %v7380 = vadd.f32 0.0, %v7379
      %v7381 = vpop.f32.mrf.mxu0
      %7382 = vmatprep.mubr.bf16.mxu0 0
      %7383 = vmatmul.mubr.bf16.gmra.mxu0 %v7220
      %v7384 = vpop.f32.mrf.mxu0
      %v7385 = vadd.f32 0.0, %v7384
      %v7386 = vpop.f32.mrf.mxu0
      %v7387 = vpop.f32.mrf.mxu0
      %v7388 = vadd.f32 0.0, %v7387
      %v7389 = vpop.f32.mrf.mxu0
      %7390 = vmatprep.mubr.bf16.mxu0 0
      %7391 = vmatmul.mubr.bf16.gmra.mxu0 %v7223
      %v7392 = vpop.f32.mrf.mxu0
      %v7393 = vadd.f32 0.0, %v7392
      %v7394 = vpop.f32.mrf.mxu0
      %v7395 = vpop.f32.mrf.mxu0
      %v7396 = vadd.f32 0.0, %v7395
      %v7397 = vpop.f32.mrf.mxu0
      %7398 = vmatprep.mubr.bf16.mxu0 0
      %7399 = vmatmul.mubr.bf16.gmra.mxu0 %v7226
      %v7400 = vpop.f32.mrf.mxu0
      %v7401 = vadd.f32 0.0, %v7400
      %v7402 = vpop.f32.mrf.mxu0
      %v7403 = vpop.f32.mrf.mxu0
      %v7404 = vadd.f32 0.0, %v7403
      %v7405 = vpop.f32.mrf.mxu0
      %7406 = vmatprep.mubr.bf16.mxu0 0
      %7407 = vmatmul.mubr.bf16.gmra.mxu0 %v7229
      %v7408 = vpop.f32.mrf.mxu0
      %v7409 = vadd.f32 0.0, %v7408
      %v7410 = vpop.f32.mrf.mxu0
      %v7411 = vpop.f32.mrf.mxu0
      %v7412 = vadd.f32 0.0, %v7411
      %v7413 = vpop.f32.mrf.mxu0
      %7414 = vmatprep.mubr.bf16.mxu0 0
      %7415 = vmatmul.mubr.bf16.gmra.mxu0 %v7232
      %v7416 = vpop.f32.mrf.mxu0
      %v7417 = vadd.f32 0.0, %v7416
      %v7418 = vpop.f32.mrf.mxu0
      %v7419 = vpop.f32.mrf.mxu0
      %v7420 = vadd.f32 0.0, %v7419
      %v7421 = vpop.f32.mrf.mxu0
      %7422 = vmatprep.mubr.bf16.mxu0 0
      %7423 = vmatmul.mubr.bf16.gmra.mxu0 %v7235
      %v7424 = vpop.f32.mrf.mxu0
      %v7425 = vadd.f32 0.0, %v7424
      %v7426 = vpop.f32.mrf.mxu0
      %v7427 = vpop.f32.mrf.mxu0
      %v7428 = vadd.f32 0.0, %v7427
      %v7429 = vpop.f32.mrf.mxu0
      %7430 = vmatprep.mubr.bf16.mxu0 0
      %7431 = vmatmul.mubr.bf16.gmra.mxu0 %v7238
      %v7432 = vpop.f32.mrf.mxu0
      %v7433 = vadd.f32 0.0, %v7432
      %v7434 = vpop.f32.mrf.mxu0
      %v7435 = vpop.f32.mrf.mxu0
      %v7436 = vadd.f32 0.0, %v7435
      %v7437 = vpop.f32.mrf.mxu0
      %7438 = vmatprep.mubr.bf16.mxu0 0
      %7439 = vmatmul.mubr.bf16.gmra.mxu0 %v7241
      %v7440 = vpop.f32.mrf.mxu0
      %v7441 = vadd.f32 0.0, %v7440
      %v7442 = vpop.f32.mrf.mxu0
      %v7443 = vpop.f32.mrf.mxu0
      %v7444 = vpop.f32.mrf.mxu0
      %7445 = vdwg.mxu0
      %v7446 = vadd.f32 %v6952, %v7281
      %v7447 = vadd.f32 %v6953, %v7284
      %v7448 = vadd.f32 %v6954, %v7289
      %v7449 = vadd.f32 %v6955, %v7292
      %v7450 = vadd.f32 %v6956, %v7297
      %v7451 = vadd.f32 %v6957, %v7300
      %v7452 = vadd.f32 %v6958, %v7305
      %v7453 = vadd.f32 %v6959, %v7308
      %v7454 = vadd.f32 %v6960, %v7313
      %v7455 = vadd.f32 %v6961, %v7316
      %v7456 = vadd.f32 %v6962, %v7321
      %v7457 = vadd.f32 %v6963, %v7324
      %v7458 = vadd.f32 %v6964, %v7329
      %v7459 = vadd.f32 %v6965, %v7332
      %v7460 = vadd.f32 %v6966, %v7337
      %v7461 = vadd.f32 %v6967, %v7340
      %v7462 = vadd.f32 %v6968, %v7345
      %v7463 = vadd.f32 %v6969, %v7348
      %v7464 = vadd.f32 %v6970, %v7353
      %v7465 = vadd.f32 %v6971, %v7356
      %v7466 = vadd.f32 %v6972, %v7361
      %v7467 = vadd.f32 %v6973, %v7364
      %v7468 = vadd.f32 %v6974, %v7369
      %v7469 = vadd.f32 %v6975, %v7372
      %v7470 = vadd.f32 %v6976, %v7377
      %v7471 = vadd.f32 %v6977, %v7380
      %v7472 = vadd.f32 %v6978, %v7385
      %v7473 = vadd.f32 %v6979, %v7388
      %v7474 = vadd.f32 %v6980, %v7393
      %v7475 = vadd.f32 %v6981, %v7396
      %v7476 = vadd.f32 %v6982, %v7401
      %v7477 = vadd.f32 %v6983, %v7404
      %v7478 = vadd.f32 %v6984, %v7409
      %v7479 = vadd.f32 %v6985, %v7412
      %v7480 = vadd.f32 %v6986, %v7417
      %v7481 = vadd.f32 %v6987, %v7420
      %v7482 = vadd.f32 %v6988, %v7425
      %v7483 = vadd.f32 %v6989, %v7428
      %v7484 = vadd.f32 %v6990, %v7433
      %v7485 = vadd.f32 %v6991, %v7436
      %v7486 = vadd.f32 %v6992, %v7441
      %v7487 = vld [vmem:[%s321 + $0x10] sm:$0xc]
      %v7488 = vld [vmem:[%s321 + $0x14] sm:$0xf]
      %v7489 = vld [vmem:[%s321 + $0x18] sm:$0xf]
      %v7490 = vld [vmem:[%s321 + $0x1c] sm:$0xf]
      %v7491 = vld [vmem:[%s321 + $0x20] sm:$0xf]
      %v7492 = vld [vmem:[%s321 + $0x24] sm:$0xf]
      %v7493 = vld [vmem:[%s321 + $0x28] sm:$0xf]
      %v7494 = vld [vmem:[%s321 + $0x2c] sm:$0xf]
      %v7495 = vld [vmem:[%s321 + $0x30] sm:$0xf]
      %v7496 = vld [vmem:[%s321 + $0x34] sm:$0xf]
      %v7497 = vld [vmem:[%s321 + $0x38] sm:$0xf]
      %v7498 = vld [vmem:[%s321 + $0x3c] sm:$0xf]
      %v7499 = vld [vmem:[%s321 + $0x40] sm:$0xf]
      %v7500 = vld [vmem:[%s321 + $0x44] sm:$0xf]
      %v7501 = vld [vmem:[%s321 + $0x48] sm:$0xf]
      %v7502 = vld [vmem:[%s321 + $0x4c] sm:$0xf]
      %v7503 = vld [vmem:[%s321 + $0x50] sm:$0xf]
      %v7504 = vld [vmem:[%s321 + $0x54] sm:$0xf]
      %v7505 = vld [vmem:[%s321 + $0x58] sm:$0xf]
      %v7506 = vld [vmem:[%s321 + $0x5c] sm:$0xf]
      %v7507 = vld [vmem:[%s321 + $0x60] sm:$0xf]
      %v7508 = vld [vmem:[%s321 + $0x64] sm:$0xf]
      %v7509 = vld [vmem:[%s321 + $0x68] sm:$0xf]
      %v7510 = vld [vmem:[%s321 + $0x6c] sm:$0xf]
      %v7511 = vld [vmem:[%s321 + $0x70] sm:$0xf]
      %v7512 = vld [vmem:[%s321 + $0x74] sm:$0xf]
      %v7513 = vld [vmem:[%s321 + $0x78] sm:$0xf]
      %v7514 = vld [vmem:[%s321 + $0x7c] sm:$0xf]
      %v7515 = vld [vmem:[%s321 + $0x80] sm:$0xf]
      %v7516 = vld [vmem:[%s321 + $0x84] sm:$0xf]
      %v7517 = vld [vmem:[%s321 + $0x88] sm:$0xf]
      %v7518 = vld [vmem:[%s321 + $0x8c] sm:$0xf]
      %v7519 = vld [vmem:[%s321 + $0x90] sm:$0xf]
      %v7520 = vld [vmem:[%s321 + $0x94] sm:$0xf]
      %v7521 = vld [vmem:[%s321 + $0x98] sm:$0xf]
      %v7522 = vld [vmem:[%s321 + $0x9c] sm:$0xf]
      %v7523 = vld [vmem:[%s321 + $0xa0] sm:$0xf]
      %v7524 = vld [vmem:[%s321 + $0xa4] sm:$0xf]
      %v7525 = vld [vmem:[%s321 + $0xa8] sm:$0xf]
      %v7526 = vld [vmem:[%s321 + $0xac] sm:$0xf]
      %v7527 = vld [vmem:[%s321 + $0xb0] sm:$0xf]
      %v7528 = vld [vmem:[%s321 + $0xb4] sm:$0x1]
      %s7529 = scalar_lea.vmem %s3, 64
      %v7530 = vld [vmem:[%s7529] sm:$0xf]
      %v7573 = vunpack.c.l.b16 %v7487
      %v7574 = vunpack.c.l.b16 %v7488
      %v7575 = vunpack.c.l.b16 %v7489
      %v7576 = vunpack.c.l.b16 %v7490
      %v7577 = vunpack.c.l.b16 %v7491
      %v7578 = vunpack.c.l.b16 %v7492
      %v7579 = vunpack.c.l.b16 %v7493
      %v7580 = vunpack.c.l.b16 %v7494
      %v7581 = vunpack.c.l.b16 %v7495
      %v7582 = vunpack.c.l.b16 %v7496
      %v7583 = vunpack.c.l.b16 %v7497
      %v7584 = vunpack.c.l.b16 %v7498
      %v7585 = vunpack.c.l.b16 %v7499
      %v7586 = vunpack.c.l.b16 %v7500
      %v7587 = vunpack.c.l.b16 %v7501
      %v7588 = vunpack.c.l.b16 %v7502
      %v7589 = vunpack.c.l.b16 %v7503
      %v7590 = vunpack.c.l.b16 %v7504
      %v7591 = vunpack.c.l.b16 %v7505
      %v7592 = vunpack.c.l.b16 %v7506
      %v7593 = vunpack.c.l.b16 %v7507
      %v7594 = vunpack.c.l.b16 %v7508
      %v7595 = vunpack.c.l.b16 %v7509
      %v7596 = vunpack.c.l.b16 %v7510
      %v7597 = vunpack.c.l.b16 %v7511
      %v7598 = vunpack.c.l.b16 %v7512
      %v7599 = vunpack.c.l.b16 %v7513
      %v7600 = vunpack.c.l.b16 %v7514
      %v7601 = vunpack.c.l.b16 %v7515
      %v7602 = vunpack.c.l.b16 %v7516
      %v7603 = vunpack.c.l.b16 %v7517
      %v7604 = vunpack.c.l.b16 %v7518
      %v7605 = vunpack.c.l.b16 %v7519
      %v7606 = vunpack.c.l.b16 %v7520
      %v7607 = vunpack.c.l.b16 %v7521
      %v7608 = vunpack.c.l.b16 %v7522
      %v7609 = vunpack.c.l.b16 %v7523
      %v7610 = vunpack.c.l.b16 %v7524
      %v7611 = vunpack.c.l.b16 %v7525
      %v7612 = vunpack.c.l.b16 %v7526
      %v7613 = vunpack.c.l.b16 %v7527
      %v7614 = vunpack.c.l.b16 %v7528
      %v7615 = vpack.c.b16 %v7574, %v7573
      %v7616 = vpack.c.b16 %v7576, %v7575
      %v7617 = vpack.c.b16 %v7578, %v7577
      %v7618 = vpack.c.b16 %v7580, %v7579
      %v7619 = vpack.c.b16 %v7582, %v7581
      %v7620 = vpack.c.b16 %v7584, %v7583
      %v7621 = vpack.c.b16 %v7586, %v7585
      %v7622 = vpack.c.b16 %v7588, %v7587
      %v7623 = vpack.c.b16 %v7590, %v7589
      %v7624 = vpack.c.b16 %v7592, %v7591
      %v7625 = vpack.c.b16 %v7594, %v7593
      %v7626 = vpack.c.b16 %v7596, %v7595
      %v7627 = vpack.c.b16 %v7598, %v7597
      %v7628 = vpack.c.b16 %v7600, %v7599
      %v7629 = vpack.c.b16 %v7602, %v7601
      %v7630 = vpack.c.b16 %v7604, %v7603
      %v7631 = vpack.c.b16 %v7606, %v7605
      %v7632 = vpack.c.b16 %v7608, %v7607
      %v7633 = vpack.c.b16 %v7610, %v7609
      %v7634 = vpack.c.b16 %v7612, %v7611
      %v7635 = vpack.c.b16 %v7614, %v7613
      %v7637 = vshrl.u32 %v7615, 16
      %v7639 = vrot.slane %v7637, 2
      %v7640 = vshll.u32 %v7615, 16
      %v7642 = vrot.slane %v7640, 3
      %v7643 = vor.u32 %v7639, %v7642
      %v7645 = vshrl.u32 %v7616, 16
      %v7647 = vrot.slane %v7645, 2
      %v7648 = vshll.u32 %v7616, 16
      %v7650 = vrot.slane %v7648, 3
      %v7651 = vor.u32 %v7647, %v7650
      %v7652 = vsel %vm3526, %v7643, %v7651
      %v7654 = vshrl.u32 %v7617, 16
      %v7656 = vrot.slane %v7654, 2
      %v7657 = vshll.u32 %v7617, 16
      %v7659 = vrot.slane %v7657, 3
      %v7660 = vor.u32 %v7656, %v7659
      %v7661 = vsel %vm3526, %v7651, %v7660
      %v7663 = vshrl.u32 %v7618, 16
      %v7665 = vrot.slane %v7663, 2
      %v7666 = vshll.u32 %v7618, 16
      %v7668 = vrot.slane %v7666, 3
      %v7669 = vor.u32 %v7665, %v7668
      %v7670 = vsel %vm3526, %v7660, %v7669
      %v7672 = vshrl.u32 %v7619, 16
      %v7674 = vrot.slane %v7672, 2
      %v7675 = vshll.u32 %v7619, 16
      %v7677 = vrot.slane %v7675, 3
      %v7678 = vor.u32 %v7674, %v7677
      %v7679 = vsel %vm3526, %v7669, %v7678
      %v7681 = vshrl.u32 %v7620, 16
      %v7683 = vrot.slane %v7681, 2
      %v7684 = vshll.u32 %v7620, 16
      %v7686 = vrot.slane %v7684, 3
      %v7687 = vor.u32 %v7683, %v7686
      %v7688 = vsel %vm3526, %v7678, %v7687
      %v7690 = vshrl.u32 %v7621, 16
      %v7692 = vrot.slane %v7690, 2
      %v7693 = vshll.u32 %v7621, 16
      %v7695 = vrot.slane %v7693, 3
      %v7696 = vor.u32 %v7692, %v7695
      %v7697 = vsel %vm3526, %v7687, %v7696
      %v7699 = vshrl.u32 %v7622, 16
      %v7701 = vrot.slane %v7699, 2
      %v7702 = vshll.u32 %v7622, 16
      %v7704 = vrot.slane %v7702, 3
      %v7705 = vor.u32 %v7701, %v7704
      %v7706 = vsel %vm3526, %v7696, %v7705
      %v7708 = vshrl.u32 %v7623, 16
      %v7710 = vrot.slane %v7708, 2
      %v7711 = vshll.u32 %v7623, 16
      %v7713 = vrot.slane %v7711, 3
      %v7714 = vor.u32 %v7710, %v7713
      %v7715 = vsel %vm3526, %v7705, %v7714
      %v7717 = vshrl.u32 %v7624, 16
      %v7719 = vrot.slane %v7717, 2
      %v7720 = vshll.u32 %v7624, 16
      %v7722 = vrot.slane %v7720, 3
      %v7723 = vor.u32 %v7719, %v7722
      %v7724 = vsel %vm3526, %v7714, %v7723
      %v7726 = vshrl.u32 %v7625, 16
      %v7728 = vrot.slane %v7726, 2
      %v7729 = vshll.u32 %v7625, 16
      %v7731 = vrot.slane %v7729, 3
      %v7732 = vor.u32 %v7728, %v7731
      %v7733 = vsel %vm3526, %v7723, %v7732
      %v7735 = vshrl.u32 %v7626, 16
      %v7737 = vrot.slane %v7735, 2
      %v7738 = vshll.u32 %v7626, 16
      %v7740 = vrot.slane %v7738, 3
      %v7741 = vor.u32 %v7737, %v7740
      %v7742 = vsel %vm3526, %v7732, %v7741
      %v7744 = vshrl.u32 %v7627, 16
      %v7746 = vrot.slane %v7744, 2
      %v7747 = vshll.u32 %v7627, 16
      %v7749 = vrot.slane %v7747, 3
      %v7750 = vor.u32 %v7746, %v7749
      %v7751 = vsel %vm3526, %v7741, %v7750
      %v7753 = vshrl.u32 %v7628, 16
      %v7755 = vrot.slane %v7753, 2
      %v7756 = vshll.u32 %v7628, 16
      %v7758 = vrot.slane %v7756, 3
      %v7759 = vor.u32 %v7755, %v7758
      %v7760 = vsel %vm3526, %v7750, %v7759
      %v7762 = vshrl.u32 %v7629, 16
      %v7764 = vrot.slane %v7762, 2
      %v7765 = vshll.u32 %v7629, 16
      %v7767 = vrot.slane %v7765, 3
      %v7768 = vor.u32 %v7764, %v7767
      %v7769 = vsel %vm3526, %v7759, %v7768
      %v7771 = vshrl.u32 %v7630, 16
      %v7773 = vrot.slane %v7771, 2
      %v7774 = vshll.u32 %v7630, 16
      %v7776 = vrot.slane %v7774, 3
      %v7777 = vor.u32 %v7773, %v7776
      %v7778 = vsel %vm3526, %v7768, %v7777
      %v7780 = vshrl.u32 %v7631, 16
      %v7782 = vrot.slane %v7780, 2
      %v7783 = vshll.u32 %v7631, 16
      %v7785 = vrot.slane %v7783, 3
      %v7786 = vor.u32 %v7782, %v7785
      %v7787 = vsel %vm3526, %v7777, %v7786
      %v7789 = vshrl.u32 %v7632, 16
      %v7791 = vrot.slane %v7789, 2
      %v7792 = vshll.u32 %v7632, 16
      %v7794 = vrot.slane %v7792, 3
      %v7795 = vor.u32 %v7791, %v7794
      %v7796 = vsel %vm3526, %v7786, %v7795
      %v7798 = vshrl.u32 %v7633, 16
      %v7800 = vrot.slane %v7798, 2
      %v7801 = vshll.u32 %v7633, 16
      %v7803 = vrot.slane %v7801, 3
      %v7804 = vor.u32 %v7800, %v7803
      %v7805 = vsel %vm3526, %v7795, %v7804
      %v7807 = vshrl.u32 %v7634, 16
      %v7809 = vrot.slane %v7807, 2
      %v7810 = vshll.u32 %v7634, 16
      %v7812 = vrot.slane %v7810, 3
      %v7813 = vor.u32 %v7809, %v7812
      %v7814 = vsel %vm3526, %v7804, %v7813
      %v7816 = vshrl.u32 %v7635, 16
      %v7818 = vrot.slane %v7816, 2
      %v7819 = vshll.u32 %v7635, 16
      %v7821 = vrot.slane %v7819, 3
      %v7822 = vor.u32 %v7818, %v7821
      %v7823 = vsel %vm3526, %v7813, %v7822
      %v7825 = vsel %vm660, %v7652, 0
      %v7828 = vsel %vm660, %v7661, 0
      %v7831 = vsel %vm660, %v7670, 0
      %v7834 = vsel %vm660, %v7679, 0
      %v7837 = vsel %vm660, %v7688, 0
      %v7840 = vsel %vm660, %v7697, 0
      %v7843 = vsel %vm660, %v7706, 0
      %v7846 = vsel %vm660, %v7715, 0
      %v7849 = vsel %vm660, %v7724, 0
      %v7852 = vsel %vm660, %v7733, 0
      %v7855 = vsel %vm660, %v7742, 0
      %v7858 = vsel %vm660, %v7751, 0
      %v7861 = vsel %vm660, %v7760, 0
      %v7864 = vsel %vm660, %v7769, 0
      %v7867 = vsel %vm660, %v7778, 0
      %v7870 = vsel %vm660, %v7787, 0
      %v7873 = vsel %vm660, %v7796, 0
      %v7876 = vsel %vm660, %v7805, 0
      %v7879 = vsel %vm660, %v7814, 0
      %v7882 = vsel %vm660, %v7823, 0
      %v7885 = vsel %vm660, %v7822, 0
      %v7888 = vsel %vm724, %v7530, 0
      %7890 = vmatprep.subr.bf16.mxu0 0
      %7891 = vmatpush1.bf16.msra.mxu0 0
      %7892 = vmatprep.subr.bf16.mxu0 0
      %7893 = vmatpush1.bf16.msra.mxu0 0
      %7894 = vmatprep.subr.bf16.mxu0 0
      %7895 = vmatpush1.bf16.msra.mxu0 0
      %7896 = vmatprep.subr.bf16.mxu0 0
      %7897 = vmatpush1.bf16.msra.mxu0 0
      %7898 = vmatprep.subr.bf16.mxu0 0
      %7899 = vmatpush1.bf16.msra.mxu0 0
      %7900 = vmatprep.subr.bf16.mxu0 0
      %7901 = vmatpush1.bf16.msra.mxu0 0
      %7902 = vmatprep.subr.bf16.mxu0 0
      %7903 = vmatpush1.bf16.msra.mxu0 0
      %7904 = vmatprep.subr.bf16.mxu0 0
      %7905 = vmatpush1.bf16.msra.mxu0 %v7888
      %7906 = vmatprep.subr.bf16.mxu0 0
      %7907 = vmatpush2.bf16.msra.mxu0 0
      %7908 = vmatprep.subr.bf16.mxu0 0
      %7909 = vmatpush2.bf16.msra.mxu0 0
      %7910 = vmatprep.subr.bf16.mxu0 0
      %7911 = vmatpush2.bf16.msra.mxu0 0
      %7912 = vmatprep.subr.bf16.mxu0 0
      %7913 = vmatpush2.bf16.msra.mxu0 0
      %7914 = vmatprep.subr.bf16.mxu0 0
      %7915 = vmatpush2.bf16.msra.mxu0 0
      %7916 = vmatprep.subr.bf16.mxu0 0
      %7917 = vmatpush2.bf16.msra.mxu0 0
      %7918 = vmatprep.subr.bf16.mxu0 0
      %7919 = vmatpush2.bf16.msra.mxu0 0
      %7920 = vmatprep.subr.bf16.mxu0 0
      %7921 = vmatpush2.bf16.msra.mxu0 0
      %7922 = vmatprep.mubr.bf16.mxu0 0
      %7923 = vmatmul.mubr.bf16.gmra.mxu0 %v7825
      %v7924 = vpop.f32.mrf.mxu0
      %v7925 = vadd.f32 0.0, %v7924
      %v7926 = vpop.f32.mrf.mxu0
      %v7927 = vpop.f32.mrf.mxu0
      %v7928 = vadd.f32 0.0, %v7927
      %v7929 = vpop.f32.mrf.mxu0
      %7930 = vmatprep.mubr.bf16.mxu0 0
      %7931 = vmatmul.mubr.bf16.gmra.mxu0 %v7828
      %v7932 = vpop.f32.mrf.mxu0
      %v7933 = vadd.f32 0.0, %v7932
      %v7934 = vpop.f32.mrf.mxu0
      %v7935 = vpop.f32.mrf.mxu0
      %v7936 = vadd.f32 0.0, %v7935
      %v7937 = vpop.f32.mrf.mxu0
      %7938 = vmatprep.mubr.bf16.mxu0 0
      %7939 = vmatmul.mubr.bf16.gmra.mxu0 %v7831
      %v7940 = vpop.f32.mrf.mxu0
      %v7941 = vadd.f32 0.0, %v7940
      %v7942 = vpop.f32.mrf.mxu0
      %v7943 = vpop.f32.mrf.mxu0
      %v7944 = vadd.f32 0.0, %v7943
      %v7945 = vpop.f32.mrf.mxu0
      %7946 = vmatprep.mubr.bf16.mxu0 0
      %7947 = vmatmul.mubr.bf16.gmra.mxu0 %v7834
      %v7948 = vpop.f32.mrf.mxu0
      %v7949 = vadd.f32 0.0, %v7948
      %v7950 = vpop.f32.mrf.mxu0
      %v7951 = vpop.f32.mrf.mxu0
      %v7952 = vadd.f32 0.0, %v7951
      %v7953 = vpop.f32.mrf.mxu0
      %7954 = vmatprep.mubr.bf16.mxu0 0
      %7955 = vmatmul.mubr.bf16.gmra.mxu0 %v7837
      %v7956 = vpop.f32.mrf.mxu0
      %v7957 = vadd.f32 0.0, %v7956
      %v7958 = vpop.f32.mrf.mxu0
      %v7959 = vpop.f32.mrf.mxu0
      %v7960 = vadd.f32 0.0, %v7959
      %v7961 = vpop.f32.mrf.mxu0
      %7962 = vmatprep.mubr.bf16.mxu0 0
      %7963 = vmatmul.mubr.bf16.gmra.mxu0 %v7840
      %v7964 = vpop.f32.mrf.mxu0
      %v7965 = vadd.f32 0.0, %v7964
      %v7966 = vpop.f32.mrf.mxu0
      %v7967 = vpop.f32.mrf.mxu0
      %v7968 = vadd.f32 0.0, %v7967
      %v7969 = vpop.f32.mrf.mxu0
      %7970 = vmatprep.mubr.bf16.mxu0 0
      %7971 = vmatmul.mubr.bf16.gmra.mxu0 %v7843
      %v7972 = vpop.f32.mrf.mxu0
      %v7973 = vadd.f32 0.0, %v7972
      %v7974 = vpop.f32.mrf.mxu0
      %v7975 = vpop.f32.mrf.mxu0
      %v7976 = vadd.f32 0.0, %v7975
      %v7977 = vpop.f32.mrf.mxu0
      %7978 = vmatprep.mubr.bf16.mxu0 0
      %7979 = vmatmul.mubr.bf16.gmra.mxu0 %v7846
      %v7980 = vpop.f32.mrf.mxu0
      %v7981 = vadd.f32 0.0, %v7980
      %v7982 = vpop.f32.mrf.mxu0
      %v7983 = vpop.f32.mrf.mxu0
      %v7984 = vadd.f32 0.0, %v7983
      %v7985 = vpop.f32.mrf.mxu0
      %7986 = vmatprep.mubr.bf16.mxu0 0
      %7987 = vmatmul.mubr.bf16.gmra.mxu0 %v7849
      %v7988 = vpop.f32.mrf.mxu0
      %v7989 = vadd.f32 0.0, %v7988
      %v7990 = vpop.f32.mrf.mxu0
      %v7991 = vpop.f32.mrf.mxu0
      %v7992 = vadd.f32 0.0, %v7991
      %v7993 = vpop.f32.mrf.mxu0
      %7994 = vmatprep.mubr.bf16.mxu0 0
      %7995 = vmatmul.mubr.bf16.gmra.mxu0 %v7852
      %v7996 = vpop.f32.mrf.mxu0
      %v7997 = vadd.f32 0.0, %v7996
      %v7998 = vpop.f32.mrf.mxu0
      %v7999 = vpop.f32.mrf.mxu0
      %v8000 = vadd.f32 0.0, %v7999
      %v8001 = vpop.f32.mrf.mxu0
      %8002 = vmatprep.mubr.bf16.mxu0 0
      %8003 = vmatmul.mubr.bf16.gmra.mxu0 %v7855
      %v8004 = vpop.f32.mrf.mxu0
      %v8005 = vadd.f32 0.0, %v8004
      %v8006 = vpop.f32.mrf.mxu0
      %v8007 = vpop.f32.mrf.mxu0
      %v8008 = vadd.f32 0.0, %v8007
      %v8009 = vpop.f32.mrf.mxu0
      %8010 = vmatprep.mubr.bf16.mxu0 0
      %8011 = vmatmul.mubr.bf16.gmra.mxu0 %v7858
      %v8012 = vpop.f32.mrf.mxu0
      %v8013 = vadd.f32 0.0, %v8012
      %v8014 = vpop.f32.mrf.mxu0
      %v8015 = vpop.f32.mrf.mxu0
      %v8016 = vadd.f32 0.0, %v8015
      %v8017 = vpop.f32.mrf.mxu0
      %8018 = vmatprep.mubr.bf16.mxu0 0
      %8019 = vmatmul.mubr.bf16.gmra.mxu0 %v7861
      %v8020 = vpop.f32.mrf.mxu0
      %v8021 = vadd.f32 0.0, %v8020
      %v8022 = vpop.f32.mrf.mxu0
      %v8023 = vpop.f32.mrf.mxu0
      %v8024 = vadd.f32 0.0, %v8023
      %v8025 = vpop.f32.mrf.mxu0
      %8026 = vmatprep.mubr.bf16.mxu0 0
      %8027 = vmatmul.mubr.bf16.gmra.mxu0 %v7864
      %v8028 = vpop.f32.mrf.mxu0
      %v8029 = vadd.f32 0.0, %v8028
      %v8030 = vpop.f32.mrf.mxu0
      %v8031 = vpop.f32.mrf.mxu0
      %v8032 = vadd.f32 0.0, %v8031
      %v8033 = vpop.f32.mrf.mxu0
      %8034 = vmatprep.mubr.bf16.mxu0 0
      %8035 = vmatmul.mubr.bf16.gmra.mxu0 %v7867
      %v8036 = vpop.f32.mrf.mxu0
      %v8037 = vadd.f32 0.0, %v8036
      %v8038 = vpop.f32.mrf.mxu0
      %v8039 = vpop.f32.mrf.mxu0
      %v8040 = vadd.f32 0.0, %v8039
      %v8041 = vpop.f32.mrf.mxu0
      %8042 = vmatprep.mubr.bf16.mxu0 0
      %8043 = vmatmul.mubr.bf16.gmra.mxu0 %v7870
      %v8044 = vpop.f32.mrf.mxu0
      %v8045 = vadd.f32 0.0, %v8044
      %v8046 = vpop.f32.mrf.mxu0
      %v8047 = vpop.f32.mrf.mxu0
      %v8048 = vadd.f32 0.0, %v8047
      %v8049 = vpop.f32.mrf.mxu0
      %8050 = vmatprep.mubr.bf16.mxu0 0
      %8051 = vmatmul.mubr.bf16.gmra.mxu0 %v7873
      %v8052 = vpop.f32.mrf.mxu0
      %v8053 = vadd.f32 0.0, %v8052
      %v8054 = vpop.f32.mrf.mxu0
      %v8055 = vpop.f32.mrf.mxu0
      %v8056 = vadd.f32 0.0, %v8055
      %v8057 = vpop.f32.mrf.mxu0
      %8058 = vmatprep.mubr.bf16.mxu0 0
      %8059 = vmatmul.mubr.bf16.gmra.mxu0 %v7876
      %v8060 = vpop.f32.mrf.mxu0
      %v8061 = vadd.f32 0.0, %v8060
      %v8062 = vpop.f32.mrf.mxu0
      %v8063 = vpop.f32.mrf.mxu0
      %v8064 = vadd.f32 0.0, %v8063
      %v8065 = vpop.f32.mrf.mxu0
      %8066 = vmatprep.mubr.bf16.mxu0 0
      %8067 = vmatmul.mubr.bf16.gmra.mxu0 %v7879
      %v8068 = vpop.f32.mrf.mxu0
      %v8069 = vadd.f32 0.0, %v8068
      %v8070 = vpop.f32.mrf.mxu0
      %v8071 = vpop.f32.mrf.mxu0
      %v8072 = vadd.f32 0.0, %v8071
      %v8073 = vpop.f32.mrf.mxu0
      %8074 = vmatprep.mubr.bf16.mxu0 0
      %8075 = vmatmul.mubr.bf16.gmra.mxu0 %v7882
      %v8076 = vpop.f32.mrf.mxu0
      %v8077 = vadd.f32 0.0, %v8076
      %v8078 = vpop.f32.mrf.mxu0
      %v8079 = vpop.f32.mrf.mxu0
      %v8080 = vadd.f32 0.0, %v8079
      %v8081 = vpop.f32.mrf.mxu0
      %8082 = vmatprep.mubr.bf16.mxu0 0
      %8083 = vmatmul.mubr.bf16.gmra.mxu0 %v7885
      %v8084 = vpop.f32.mrf.mxu0
      %v8085 = vadd.f32 0.0, %v8084
      %v8086 = vpop.f32.mrf.mxu0
      %v8087 = vpop.f32.mrf.mxu0
      %v8088 = vpop.f32.mrf.mxu0
      %8089 = vdwg.mxu0
      %v8090 = vadd.f32 %v7446, %v7925
      %v8091 = vadd.f32 %v7447, %v7928
      %v8092 = vadd.f32 %v7448, %v7933
      %v8093 = vadd.f32 %v7449, %v7936
      %v8094 = vadd.f32 %v7450, %v7941
      %v8095 = vadd.f32 %v7451, %v7944
      %v8096 = vadd.f32 %v7452, %v7949
      %v8097 = vadd.f32 %v7453, %v7952
      %v8098 = vadd.f32 %v7454, %v7957
      %v8099 = vadd.f32 %v7455, %v7960
      %v8100 = vadd.f32 %v7456, %v7965
      %v8101 = vadd.f32 %v7457, %v7968
      %v8102 = vadd.f32 %v7458, %v7973
      %v8103 = vadd.f32 %v7459, %v7976
      %v8104 = vadd.f32 %v7460, %v7981
      %v8105 = vadd.f32 %v7461, %v7984
      %v8106 = vadd.f32 %v7462, %v7989
      %v8107 = vadd.f32 %v7463, %v7992
      %v8108 = vadd.f32 %v7464, %v7997
      %v8109 = vadd.f32 %v7465, %v8000
      %v8110 = vadd.f32 %v7466, %v8005
      %v8111 = vadd.f32 %v7467, %v8008
      %v8112 = vadd.f32 %v7468, %v8013
      %v8113 = vadd.f32 %v7469, %v8016
      %v8114 = vadd.f32 %v7470, %v8021
      %v8115 = vadd.f32 %v7471, %v8024
      %v8116 = vadd.f32 %v7472, %v8029
      %v8117 = vadd.f32 %v7473, %v8032
      %v8118 = vadd.f32 %v7474, %v8037
      %v8119 = vadd.f32 %v7475, %v8040
      %v8120 = vadd.f32 %v7476, %v8045
      %v8121 = vadd.f32 %v7477, %v8048
      %v8122 = vadd.f32 %v7478, %v8053
      %v8123 = vadd.f32 %v7479, %v8056
      %v8124 = vadd.f32 %v7480, %v8061
      %v8125 = vadd.f32 %v7481, %v8064
      %v8126 = vadd.f32 %v7482, %v8069
      %v8127 = vadd.f32 %v7483, %v8072
      %v8128 = vadd.f32 %v7484, %v8077
      %v8129 = vadd.f32 %v7485, %v8080
      %v8130 = vadd.f32 %v7486, %v8085
      %v8131 = vld [vmem:[%s321 + $0x10] sm:$0x8]
      %s8132 = scalar_lea.vmem %s3, 68
      %v8133 = vld [vmem:[%s8132] sm:$0xf]
      %v8135 = vunpack.c.l.b16 %v8131
      %v8136 = vpack.c.b16 %v7574, %v8135
      %v8137 = vrot.slane %v8136, 3
      %v8138 = vrot.slane %v7616, 3
      %v8139 = vsel %vm4028, %v8137, %v8138
      %v8140 = vrot.slane %v7617, 3
      %v8141 = vsel %vm4028, %v8138, %v8140
      %v8142 = vrot.slane %v7618, 3
      %v8143 = vsel %vm4028, %v8140, %v8142
      %v8144 = vrot.slane %v7619, 3
      %v8145 = vsel %vm4028, %v8142, %v8144
      %v8146 = vrot.slane %v7620, 3
      %v8147 = vsel %vm4028, %v8144, %v8146
      %v8148 = vrot.slane %v7621, 3
      %v8149 = vsel %vm4028, %v8146, %v8148
      %v8150 = vrot.slane %v7622, 3
      %v8151 = vsel %vm4028, %v8148, %v8150
      %v8152 = vrot.slane %v7623, 3
      %v8153 = vsel %vm4028, %v8150, %v8152
      %v8154 = vrot.slane %v7624, 3
      %v8155 = vsel %vm4028, %v8152, %v8154
      %v8156 = vrot.slane %v7625, 3
      %v8157 = vsel %vm4028, %v8154, %v8156
      %v8158 = vrot.slane %v7626, 3
      %v8159 = vsel %vm4028, %v8156, %v8158
      %v8160 = vrot.slane %v7627, 3
      %v8161 = vsel %vm4028, %v8158, %v8160
      %v8162 = vrot.slane %v7628, 3
      %v8163 = vsel %vm4028, %v8160, %v8162
      %v8164 = vrot.slane %v7629, 3
      %v8165 = vsel %vm4028, %v8162, %v8164
      %v8166 = vrot.slane %v7630, 3
      %v8167 = vsel %vm4028, %v8164, %v8166
      %v8168 = vrot.slane %v7631, 3
      %v8169 = vsel %vm4028, %v8166, %v8168
      %v8170 = vrot.slane %v7632, 3
      %v8171 = vsel %vm4028, %v8168, %v8170
      %v8172 = vrot.slane %v7633, 3
      %v8173 = vsel %vm4028, %v8170, %v8172
      %v8174 = vrot.slane %v7634, 3
      %v8175 = vsel %vm4028, %v8172, %v8174
      %v8176 = vrot.slane %v7635, 3
      %v8177 = vsel %vm4028, %v8174, %v8176
      %v8179 = vsel %vm660, %v8139, 0
      %v8182 = vsel %vm660, %v8141, 0
      %v8185 = vsel %vm660, %v8143, 0
      %v8188 = vsel %vm660, %v8145, 0
      %v8191 = vsel %vm660, %v8147, 0
      %v8194 = vsel %vm660, %v8149, 0
      %v8197 = vsel %vm660, %v8151, 0
      %v8200 = vsel %vm660, %v8153, 0
      %v8203 = vsel %vm660, %v8155, 0
      %v8206 = vsel %vm660, %v8157, 0
      %v8209 = vsel %vm660, %v8159, 0
      %v8212 = vsel %vm660, %v8161, 0
      %v8215 = vsel %vm660, %v8163, 0
      %v8218 = vsel %vm660, %v8165, 0
      %v8221 = vsel %vm660, %v8167, 0
      %v8224 = vsel %vm660, %v8169, 0
      %v8227 = vsel %vm660, %v8171, 0
      %v8230 = vsel %vm660, %v8173, 0
      %v8233 = vsel %vm660, %v8175, 0
      %v8236 = vsel %vm660, %v8177, 0
      %v8239 = vsel %vm660, %v8176, 0
      %v8242 = vsel %vm724, %v8133, 0
      %8244 = vmatprep.subr.bf16.mxu0 0
      %8245 = vmatpush1.bf16.msra.mxu0 0
      %8246 = vmatprep.subr.bf16.mxu0 0
      %8247 = vmatpush1.bf16.msra.mxu0 0
      %8248 = vmatprep.subr.bf16.mxu0 0
      %8249 = vmatpush1.bf16.msra.mxu0 0
      %8250 = vmatprep.subr.bf16.mxu0 0
      %8251 = vmatpush1.bf16.msra.mxu0 0
      %8252 = vmatprep.subr.bf16.mxu0 0
      %8253 = vmatpush1.bf16.msra.mxu0 0
      %8254 = vmatprep.subr.bf16.mxu0 0
      %8255 = vmatpush1.bf16.msra.mxu0 0
      %8256 = vmatprep.subr.bf16.mxu0 0
      %8257 = vmatpush1.bf16.msra.mxu0 0
      %8258 = vmatprep.subr.bf16.mxu0 0
      %8259 = vmatpush1.bf16.msra.mxu0 %v8242
      %8260 = vmatprep.subr.bf16.mxu0 0
      %8261 = vmatpush2.bf16.msra.mxu0 0
      %8262 = vmatprep.subr.bf16.mxu0 0
      %8263 = vmatpush2.bf16.msra.mxu0 0
      %8264 = vmatprep.subr.bf16.mxu0 0
      %8265 = vmatpush2.bf16.msra.mxu0 0
      %8266 = vmatprep.subr.bf16.mxu0 0
      %8267 = vmatpush2.bf16.msra.mxu0 0
      %8268 = vmatprep.subr.bf16.mxu0 0
      %8269 = vmatpush2.bf16.msra.mxu0 0
      %8270 = vmatprep.subr.bf16.mxu0 0
      %8271 = vmatpush2.bf16.msra.mxu0 0
      %8272 = vmatprep.subr.bf16.mxu0 0
      %8273 = vmatpush2.bf16.msra.mxu0 0
      %8274 = vmatprep.subr.bf16.mxu0 0
      %8275 = vmatpush2.bf16.msra.mxu0 0
      %8276 = vmatprep.mubr.bf16.mxu0 0
      %8277 = vmatmul.mubr.bf16.gmra.mxu0 %v8179
      %v8278 = vpop.f32.mrf.mxu0
      %v8279 = vadd.f32 0.0, %v8278
      %v8280 = vpop.f32.mrf.mxu0
      %v8281 = vpop.f32.mrf.mxu0
      %v8282 = vadd.f32 0.0, %v8281
      %v8283 = vpop.f32.mrf.mxu0
      %8284 = vmatprep.mubr.bf16.mxu0 0
      %8285 = vmatmul.mubr.bf16.gmra.mxu0 %v8182
      %v8286 = vpop.f32.mrf.mxu0
      %v8287 = vadd.f32 0.0, %v8286
      %v8288 = vpop.f32.mrf.mxu0
      %v8289 = vpop.f32.mrf.mxu0
      %v8290 = vadd.f32 0.0, %v8289
      %v8291 = vpop.f32.mrf.mxu0
      %8292 = vmatprep.mubr.bf16.mxu0 0
      %8293 = vmatmul.mubr.bf16.gmra.mxu0 %v8185
      %v8294 = vpop.f32.mrf.mxu0
      %v8295 = vadd.f32 0.0, %v8294
      %v8296 = vpop.f32.mrf.mxu0
      %v8297 = vpop.f32.mrf.mxu0
      %v8298 = vadd.f32 0.0, %v8297
      %v8299 = vpop.f32.mrf.mxu0
      %8300 = vmatprep.mubr.bf16.mxu0 0
      %8301 = vmatmul.mubr.bf16.gmra.mxu0 %v8188
      %v8302 = vpop.f32.mrf.mxu0
      %v8303 = vadd.f32 0.0, %v8302
      %v8304 = vpop.f32.mrf.mxu0
      %v8305 = vpop.f32.mrf.mxu0
      %v8306 = vadd.f32 0.0, %v8305
      %v8307 = vpop.f32.mrf.mxu0
      %8308 = vmatprep.mubr.bf16.mxu0 0
      %8309 = vmatmul.mubr.bf16.gmra.mxu0 %v8191
      %v8310 = vpop.f32.mrf.mxu0
      %v8311 = vadd.f32 0.0, %v8310
      %v8312 = vpop.f32.mrf.mxu0
      %v8313 = vpop.f32.mrf.mxu0
      %v8314 = vadd.f32 0.0, %v8313
      %v8315 = vpop.f32.mrf.mxu0
      %8316 = vmatprep.mubr.bf16.mxu0 0
      %8317 = vmatmul.mubr.bf16.gmra.mxu0 %v8194
      %v8318 = vpop.f32.mrf.mxu0
      %v8319 = vadd.f32 0.0, %v8318
      %v8320 = vpop.f32.mrf.mxu0
      %v8321 = vpop.f32.mrf.mxu0
      %v8322 = vadd.f32 0.0, %v8321
      %v8323 = vpop.f32.mrf.mxu0
      %8324 = vmatprep.mubr.bf16.mxu0 0
      %8325 = vmatmul.mubr.bf16.gmra.mxu0 %v8197
      %v8326 = vpop.f32.mrf.mxu0
      %v8327 = vadd.f32 0.0, %v8326
      %v8328 = vpop.f32.mrf.mxu0
      %v8329 = vpop.f32.mrf.mxu0
      %v8330 = vadd.f32 0.0, %v8329
      %v8331 = vpop.f32.mrf.mxu0
      %8332 = vmatprep.mubr.bf16.mxu0 0
      %8333 = vmatmul.mubr.bf16.gmra.mxu0 %v8200
      %v8334 = vpop.f32.mrf.mxu0
      %v8335 = vadd.f32 0.0, %v8334
      %v8336 = vpop.f32.mrf.mxu0
      %v8337 = vpop.f32.mrf.mxu0
      %v8338 = vadd.f32 0.0, %v8337
      %v8339 = vpop.f32.mrf.mxu0
      %8340 = vmatprep.mubr.bf16.mxu0 0
      %8341 = vmatmul.mubr.bf16.gmra.mxu0 %v8203
      %v8342 = vpop.f32.mrf.mxu0
      %v8343 = vadd.f32 0.0, %v8342
      %v8344 = vpop.f32.mrf.mxu0
      %v8345 = vpop.f32.mrf.mxu0
      %v8346 = vadd.f32 0.0, %v8345
      %v8347 = vpop.f32.mrf.mxu0
      %8348 = vmatprep.mubr.bf16.mxu0 0
      %8349 = vmatmul.mubr.bf16.gmra.mxu0 %v8206
      %v8350 = vpop.f32.mrf.mxu0
      %v8351 = vadd.f32 0.0, %v8350
      %v8352 = vpop.f32.mrf.mxu0
      %v8353 = vpop.f32.mrf.mxu0
      %v8354 = vadd.f32 0.0, %v8353
      %v8355 = vpop.f32.mrf.mxu0
      %8356 = vmatprep.mubr.bf16.mxu0 0
      %8357 = vmatmul.mubr.bf16.gmra.mxu0 %v8209
      %v8358 = vpop.f32.mrf.mxu0
      %v8359 = vadd.f32 0.0, %v8358
      %v8360 = vpop.f32.mrf.mxu0
      %v8361 = vpop.f32.mrf.mxu0
      %v8362 = vadd.f32 0.0, %v8361
      %v8363 = vpop.f32.mrf.mxu0
      %8364 = vmatprep.mubr.bf16.mxu0 0
      %8365 = vmatmul.mubr.bf16.gmra.mxu0 %v8212
      %v8366 = vpop.f32.mrf.mxu0
      %v8367 = vadd.f32 0.0, %v8366
      %v8368 = vpop.f32.mrf.mxu0
      %v8369 = vpop.f32.mrf.mxu0
      %v8370 = vadd.f32 0.0, %v8369
      %v8371 = vpop.f32.mrf.mxu0
      %8372 = vmatprep.mubr.bf16.mxu0 0
      %8373 = vmatmul.mubr.bf16.gmra.mxu0 %v8215
      %v8374 = vpop.f32.mrf.mxu0
      %v8375 = vadd.f32 0.0, %v8374
      %v8376 = vpop.f32.mrf.mxu0
      %v8377 = vpop.f32.mrf.mxu0
      %v8378 = vadd.f32 0.0, %v8377
      %v8379 = vpop.f32.mrf.mxu0
      %8380 = vmatprep.mubr.bf16.mxu0 0
      %8381 = vmatmul.mubr.bf16.gmra.mxu0 %v8218
      %v8382 = vpop.f32.mrf.mxu0
      %v8383 = vadd.f32 0.0, %v8382
      %v8384 = vpop.f32.mrf.mxu0
      %v8385 = vpop.f32.mrf.mxu0
      %v8386 = vadd.f32 0.0, %v8385
      %v8387 = vpop.f32.mrf.mxu0
      %8388 = vmatprep.mubr.bf16.mxu0 0
      %8389 = vmatmul.mubr.bf16.gmra.mxu0 %v8221
      %v8390 = vpop.f32.mrf.mxu0
      %v8391 = vadd.f32 0.0, %v8390
      %v8392 = vpop.f32.mrf.mxu0
      %v8393 = vpop.f32.mrf.mxu0
      %v8394 = vadd.f32 0.0, %v8393
      %v8395 = vpop.f32.mrf.mxu0
      %8396 = vmatprep.mubr.bf16.mxu0 0
      %8397 = vmatmul.mubr.bf16.gmra.mxu0 %v8224
      %v8398 = vpop.f32.mrf.mxu0
      %v8399 = vadd.f32 0.0, %v8398
      %v8400 = vpop.f32.mrf.mxu0
      %v8401 = vpop.f32.mrf.mxu0
      %v8402 = vadd.f32 0.0, %v8401
      %v8403 = vpop.f32.mrf.mxu0
      %8404 = vmatprep.mubr.bf16.mxu0 0
      %8405 = vmatmul.mubr.bf16.gmra.mxu0 %v8227
      %v8406 = vpop.f32.mrf.mxu0
      %v8407 = vadd.f32 0.0, %v8406
      %v8408 = vpop.f32.mrf.mxu0
      %v8409 = vpop.f32.mrf.mxu0
      %v8410 = vadd.f32 0.0, %v8409
      %v8411 = vpop.f32.mrf.mxu0
      %8412 = vmatprep.mubr.bf16.mxu0 0
      %8413 = vmatmul.mubr.bf16.gmra.mxu0 %v8230
      %v8414 = vpop.f32.mrf.mxu0
      %v8415 = vadd.f32 0.0, %v8414
      %v8416 = vpop.f32.mrf.mxu0
      %v8417 = vpop.f32.mrf.mxu0
      %v8418 = vadd.f32 0.0, %v8417
      %v8419 = vpop.f32.mrf.mxu0
      %8420 = vmatprep.mubr.bf16.mxu0 0
      %8421 = vmatmul.mubr.bf16.gmra.mxu0 %v8233
      %v8422 = vpop.f32.mrf.mxu0
      %v8423 = vadd.f32 0.0, %v8422
      %v8424 = vpop.f32.mrf.mxu0
      %v8425 = vpop.f32.mrf.mxu0
      %v8426 = vadd.f32 0.0, %v8425
      %v8427 = vpop.f32.mrf.mxu0
      %8428 = vmatprep.mubr.bf16.mxu0 0
      %8429 = vmatmul.mubr.bf16.gmra.mxu0 %v8236
      %v8430 = vpop.f32.mrf.mxu0
      %v8431 = vadd.f32 0.0, %v8430
      %v8432 = vpop.f32.mrf.mxu0
      %v8433 = vpop.f32.mrf.mxu0
      %v8434 = vadd.f32 0.0, %v8433
      %v8435 = vpop.f32.mrf.mxu0
      %8436 = vmatprep.mubr.bf16.mxu0 0
      %8437 = vmatmul.mubr.bf16.gmra.mxu0 %v8239
      %v8438 = vpop.f32.mrf.mxu0
      %v8439 = vadd.f32 0.0, %v8438
      %v8440 = vpop.f32.mrf.mxu0
      %v8441 = vpop.f32.mrf.mxu0
      %v8442 = vpop.f32.mrf.mxu0
      %8443 = vdwg.mxu0
      %v8444 = vadd.f32 %v8090, %v8279
      %v8445 = vadd.f32 %v8091, %v8282
      %v8446 = vadd.f32 %v8092, %v8287
      %v8447 = vadd.f32 %v8093, %v8290
      %v8448 = vadd.f32 %v8094, %v8295
      %v8449 = vadd.f32 %v8095, %v8298
      %v8450 = vadd.f32 %v8096, %v8303
      %v8451 = vadd.f32 %v8097, %v8306
      %v8452 = vadd.f32 %v8098, %v8311
      %v8453 = vadd.f32 %v8099, %v8314
      %v8454 = vadd.f32 %v8100, %v8319
      %v8455 = vadd.f32 %v8101, %v8322
      %v8456 = vadd.f32 %v8102, %v8327
      %v8457 = vadd.f32 %v8103, %v8330
      %v8458 = vadd.f32 %v8104, %v8335
      %v8459 = vadd.f32 %v8105, %v8338
      %v8460 = vadd.f32 %v8106, %v8343
      %v8461 = vadd.f32 %v8107, %v8346
      %v8462 = vadd.f32 %v8108, %v8351
      %v8463 = vadd.f32 %v8109, %v8354
      %v8464 = vadd.f32 %v8110, %v8359
      %v8465 = vadd.f32 %v8111, %v8362
      %v8466 = vadd.f32 %v8112, %v8367
      %v8467 = vadd.f32 %v8113, %v8370
      %v8468 = vadd.f32 %v8114, %v8375
      %v8469 = vadd.f32 %v8115, %v8378
      %v8470 = vadd.f32 %v8116, %v8383
      %v8471 = vadd.f32 %v8117, %v8386
      %v8472 = vadd.f32 %v8118, %v8391
      %v8473 = vadd.f32 %v8119, %v8394
      %v8474 = vadd.f32 %v8120, %v8399
      %v8475 = vadd.f32 %v8121, %v8402
      %v8476 = vadd.f32 %v8122, %v8407
      %v8477 = vadd.f32 %v8123, %v8410
      %v8478 = vadd.f32 %v8124, %v8415
      %v8479 = vadd.f32 %v8125, %v8418
      %v8480 = vadd.f32 %v8126, %v8423
      %v8481 = vadd.f32 %v8127, %v8426
      %v8482 = vadd.f32 %v8128, %v8431
      %v8483 = vadd.f32 %v8129, %v8434
      %v8484 = vadd.f32 %v8130, %v8439
      %v8485 = vld [vmem:[%s332] sm:$0xf]
      %v8486 = vld [vmem:[%s332 + $0x4] sm:$0xf]
      %v8487 = vld [vmem:[%s332 + $0x8] sm:$0xf]
      %v8488 = vld [vmem:[%s332 + $0xc] sm:$0xf]
      %v8489 = vld [vmem:[%s332 + $0x10] sm:$0xf]
      %v8490 = vld [vmem:[%s332 + $0x14] sm:$0xf]
      %v8491 = vld [vmem:[%s332 + $0x18] sm:$0xf]
      %v8492 = vld [vmem:[%s332 + $0x1c] sm:$0xf]
      %v8493 = vld [vmem:[%s332 + $0x20] sm:$0xf]
      %v8494 = vld [vmem:[%s332 + $0x24] sm:$0xf]
      %v8495 = vld [vmem:[%s332 + $0x28] sm:$0xf]
      %v8496 = vld [vmem:[%s332 + $0x2c] sm:$0xf]
      %v8497 = vld [vmem:[%s332 + $0x30] sm:$0xf]
      %v8498 = vld [vmem:[%s332 + $0x34] sm:$0xf]
      %v8499 = vld [vmem:[%s332 + $0x38] sm:$0xf]
      %v8500 = vld [vmem:[%s332 + $0x3c] sm:$0xf]
      %v8501 = vld [vmem:[%s332 + $0x40] sm:$0xf]
      %v8502 = vld [vmem:[%s332 + $0x44] sm:$0xf]
      %v8503 = vld [vmem:[%s332 + $0x48] sm:$0xf]
      %v8504 = vld [vmem:[%s332 + $0x4c] sm:$0xf]
      %v8505 = vld [vmem:[%s332 + $0x50] sm:$0xf]
      %v8506 = vld [vmem:[%s332 + $0x54] sm:$0xf]
      %v8507 = vld [vmem:[%s332 + $0x58] sm:$0xf]
      %v8508 = vld [vmem:[%s332 + $0x5c] sm:$0xf]
      %v8509 = vld [vmem:[%s332 + $0x60] sm:$0xf]
      %v8510 = vld [vmem:[%s332 + $0x64] sm:$0xf]
      %v8511 = vld [vmem:[%s332 + $0x68] sm:$0xf]
      %v8512 = vld [vmem:[%s332 + $0x6c] sm:$0xf]
      %v8513 = vld [vmem:[%s332 + $0x70] sm:$0xf]
      %v8514 = vld [vmem:[%s332 + $0x74] sm:$0xf]
      %v8515 = vld [vmem:[%s332 + $0x78] sm:$0xf]
      %v8516 = vld [vmem:[%s332 + $0x7c] sm:$0xf]
      %v8517 = vld [vmem:[%s332 + $0x80] sm:$0xf]
      %v8518 = vld [vmem:[%s332 + $0x84] sm:$0xf]
      %v8519 = vld [vmem:[%s332 + $0x88] sm:$0xf]
      %v8520 = vld [vmem:[%s332 + $0x8c] sm:$0xf]
      %v8521 = vld [vmem:[%s332 + $0x90] sm:$0xf]
      %v8522 = vld [vmem:[%s332 + $0x94] sm:$0xf]
      %v8523 = vld [vmem:[%s332 + $0x98] sm:$0xf]
      %v8524 = vld [vmem:[%s332 + $0x9c] sm:$0xf]
      %v8525 = vld [vmem:[%s332 + $0xa0] sm:$0x3]
      %s8526 = scalar_lea.vmem %s3, 72
      %v8527 = vld [vmem:[%s8526] sm:$0xf]
      %v8569 = vunpack.c.l.b16 %v8485
      %v8570 = vunpack.c.l.b16 %v8486
      %v8571 = vunpack.c.l.b16 %v8487
      %v8572 = vunpack.c.l.b16 %v8488
      %v8573 = vunpack.c.l.b16 %v8489
      %v8574 = vunpack.c.l.b16 %v8490
      %v8575 = vunpack.c.l.b16 %v8491
      %v8576 = vunpack.c.l.b16 %v8492
      %v8577 = vunpack.c.l.b16 %v8493
      %v8578 = vunpack.c.l.b16 %v8494
      %v8579 = vunpack.c.l.b16 %v8495
      %v8580 = vunpack.c.l.b16 %v8496
      %v8581 = vunpack.c.l.b16 %v8497
      %v8582 = vunpack.c.l.b16 %v8498
      %v8583 = vunpack.c.l.b16 %v8499
      %v8584 = vunpack.c.l.b16 %v8500
      %v8585 = vunpack.c.l.b16 %v8501
      %v8586 = vunpack.c.l.b16 %v8502
      %v8587 = vunpack.c.l.b16 %v8503
      %v8588 = vunpack.c.l.b16 %v8504
      %v8589 = vunpack.c.l.b16 %v8505
      %v8590 = vunpack.c.l.b16 %v8506
      %v8591 = vunpack.c.l.b16 %v8507
      %v8592 = vunpack.c.l.b16 %v8508
      %v8593 = vunpack.c.l.b16 %v8509
      %v8594 = vunpack.c.l.b16 %v8510
      %v8595 = vunpack.c.l.b16 %v8511
      %v8596 = vunpack.c.l.b16 %v8512
      %v8597 = vunpack.c.l.b16 %v8513
      %v8598 = vunpack.c.l.b16 %v8514
      %v8599 = vunpack.c.l.b16 %v8515
      %v8600 = vunpack.c.l.b16 %v8516
      %v8601 = vunpack.c.l.b16 %v8517
      %v8602 = vunpack.c.l.b16 %v8518
      %v8603 = vunpack.c.l.b16 %v8519
      %v8604 = vunpack.c.l.b16 %v8520
      %v8605 = vunpack.c.l.b16 %v8521
      %v8606 = vunpack.c.l.b16 %v8522
      %v8607 = vunpack.c.l.b16 %v8523
      %v8608 = vunpack.c.l.b16 %v8524
      %v8609 = vunpack.c.l.b16 %v8525
      %v8610 = vpack.c.b16 %v8570, %v8569
      %v8611 = vpack.c.b16 %v8572, %v8571
      %v8612 = vpack.c.b16 %v8574, %v8573
      %v8613 = vpack.c.b16 %v8576, %v8575
      %v8614 = vpack.c.b16 %v8578, %v8577
      %v8615 = vpack.c.b16 %v8580, %v8579
      %v8616 = vpack.c.b16 %v8582, %v8581
      %v8617 = vpack.c.b16 %v8584, %v8583
      %v8618 = vpack.c.b16 %v8586, %v8585
      %v8619 = vpack.c.b16 %v8588, %v8587
      %v8620 = vpack.c.b16 %v8590, %v8589
      %v8621 = vpack.c.b16 %v8592, %v8591
      %v8622 = vpack.c.b16 %v8594, %v8593
      %v8623 = vpack.c.b16 %v8596, %v8595
      %v8624 = vpack.c.b16 %v8598, %v8597
      %v8625 = vpack.c.b16 %v8600, %v8599
      %v8626 = vpack.c.b16 %v8602, %v8601
      %v8627 = vpack.c.b16 %v8604, %v8603
      %v8628 = vpack.c.b16 %v8606, %v8605
      %v8629 = vpack.c.b16 %v8608, %v8607
      %v8630 = vpack.c.b16 %v8609, %v8609
      %v8632 = vsel %vm660, %v8610, 0
      %v8635 = vsel %vm660, %v8611, 0
      %v8638 = vsel %vm660, %v8612, 0
      %v8641 = vsel %vm660, %v8613, 0
      %v8644 = vsel %vm660, %v8614, 0
      %v8647 = vsel %vm660, %v8615, 0
      %v8650 = vsel %vm660, %v8616, 0
      %v8653 = vsel %vm660, %v8617, 0
      %v8656 = vsel %vm660, %v8618, 0
      %v8659 = vsel %vm660, %v8619, 0
      %v8662 = vsel %vm660, %v8620, 0
      %v8665 = vsel %vm660, %v8621, 0
      %v8668 = vsel %vm660, %v8622, 0
      %v8671 = vsel %vm660, %v8623, 0
      %v8674 = vsel %vm660, %v8624, 0
      %v8677 = vsel %vm660, %v8625, 0
      %v8680 = vsel %vm660, %v8626, 0
      %v8683 = vsel %vm660, %v8627, 0
      %v8686 = vsel %vm660, %v8628, 0
      %v8689 = vsel %vm660, %v8629, 0
      %v8692 = vsel %vm660, %v8630, 0
      %v8695 = vsel %vm724, %v8527, 0
      %8697 = vmatprep.subr.bf16.mxu0 0
      %8698 = vmatpush1.bf16.msra.mxu0 0
      %8699 = vmatprep.subr.bf16.mxu0 0
      %8700 = vmatpush1.bf16.msra.mxu0 0
      %8701 = vmatprep.subr.bf16.mxu0 0
      %8702 = vmatpush1.bf16.msra.mxu0 0
      %8703 = vmatprep.subr.bf16.mxu0 0
      %8704 = vmatpush1.bf16.msra.mxu0 0
      %8705 = vmatprep.subr.bf16.mxu0 0
      %8706 = vmatpush1.bf16.msra.mxu0 0
      %8707 = vmatprep.subr.bf16.mxu0 0
      %8708 = vmatpush1.bf16.msra.mxu0 0
      %8709 = vmatprep.subr.bf16.mxu0 0
      %8710 = vmatpush1.bf16.msra.mxu0 0
      %8711 = vmatprep.subr.bf16.mxu0 0
      %8712 = vmatpush1.bf16.msra.mxu0 %v8695
      %8713 = vmatprep.subr.bf16.mxu0 0
      %8714 = vmatpush2.bf16.msra.mxu0 0
      %8715 = vmatprep.subr.bf16.mxu0 0
      %8716 = vmatpush2.bf16.msra.mxu0 0
      %8717 = vmatprep.subr.bf16.mxu0 0
      %8718 = vmatpush2.bf16.msra.mxu0 0
      %8719 = vmatprep.subr.bf16.mxu0 0
      %8720 = vmatpush2.bf16.msra.mxu0 0
      %8721 = vmatprep.subr.bf16.mxu0 0
      %8722 = vmatpush2.bf16.msra.mxu0 0
      %8723 = vmatprep.subr.bf16.mxu0 0
      %8724 = vmatpush2.bf16.msra.mxu0 0
      %8725 = vmatprep.subr.bf16.mxu0 0
      %8726 = vmatpush2.bf16.msra.mxu0 0
      %8727 = vmatprep.subr.bf16.mxu0 0
      %8728 = vmatpush2.bf16.msra.mxu0 0
      %8729 = vmatprep.mubr.bf16.mxu0 0
      %8730 = vmatmul.mubr.bf16.gmra.mxu0 %v8632
      %v8731 = vpop.f32.mrf.mxu0
      %v8732 = vadd.f32 0.0, %v8731
      %v8733 = vpop.f32.mrf.mxu0
      %v8734 = vpop.f32.mrf.mxu0
      %v8735 = vadd.f32 0.0, %v8734
      %v8736 = vpop.f32.mrf.mxu0
      %8737 = vmatprep.mubr.bf16.mxu0 0
      %8738 = vmatmul.mubr.bf16.gmra.mxu0 %v8635
      %v8739 = vpop.f32.mrf.mxu0
      %v8740 = vadd.f32 0.0, %v8739
      %v8741 = vpop.f32.mrf.mxu0
      %v8742 = vpop.f32.mrf.mxu0
      %v8743 = vadd.f32 0.0, %v8742
      %v8744 = vpop.f32.mrf.mxu0
      %8745 = vmatprep.mubr.bf16.mxu0 0
      %8746 = vmatmul.mubr.bf16.gmra.mxu0 %v8638
      %v8747 = vpop.f32.mrf.mxu0
      %v8748 = vadd.f32 0.0, %v8747
      %v8749 = vpop.f32.mrf.mxu0
      %v8750 = vpop.f32.mrf.mxu0
      %v8751 = vadd.f32 0.0, %v8750
      %v8752 = vpop.f32.mrf.mxu0
      %8753 = vmatprep.mubr.bf16.mxu0 0
      %8754 = vmatmul.mubr.bf16.gmra.mxu0 %v8641
      %v8755 = vpop.f32.mrf.mxu0
      %v8756 = vadd.f32 0.0, %v8755
      %v8757 = vpop.f32.mrf.mxu0
      %v8758 = vpop.f32.mrf.mxu0
      %v8759 = vadd.f32 0.0, %v8758
      %v8760 = vpop.f32.mrf.mxu0
      %8761 = vmatprep.mubr.bf16.mxu0 0
      %8762 = vmatmul.mubr.bf16.gmra.mxu0 %v8644
      %v8763 = vpop.f32.mrf.mxu0
      %v8764 = vadd.f32 0.0, %v8763
      %v8765 = vpop.f32.mrf.mxu0
      %v8766 = vpop.f32.mrf.mxu0
      %v8767 = vadd.f32 0.0, %v8766
      %v8768 = vpop.f32.mrf.mxu0
      %8769 = vmatprep.mubr.bf16.mxu0 0
      %8770 = vmatmul.mubr.bf16.gmra.mxu0 %v8647
      %v8771 = vpop.f32.mrf.mxu0
      %v8772 = vadd.f32 0.0, %v8771
      %v8773 = vpop.f32.mrf.mxu0
      %v8774 = vpop.f32.mrf.mxu0
      %v8775 = vadd.f32 0.0, %v8774
      %v8776 = vpop.f32.mrf.mxu0
      %8777 = vmatprep.mubr.bf16.mxu0 0
      %8778 = vmatmul.mubr.bf16.gmra.mxu0 %v8650
      %v8779 = vpop.f32.mrf.mxu0
      %v8780 = vadd.f32 0.0, %v8779
      %v8781 = vpop.f32.mrf.mxu0
      %v8782 = vpop.f32.mrf.mxu0
      %v8783 = vadd.f32 0.0, %v8782
      %v8784 = vpop.f32.mrf.mxu0
      %8785 = vmatprep.mubr.bf16.mxu0 0
      %8786 = vmatmul.mubr.bf16.gmra.mxu0 %v8653
      %v8787 = vpop.f32.mrf.mxu0
      %v8788 = vadd.f32 0.0, %v8787
      %v8789 = vpop.f32.mrf.mxu0
      %v8790 = vpop.f32.mrf.mxu0
      %v8791 = vadd.f32 0.0, %v8790
      %v8792 = vpop.f32.mrf.mxu0
      %8793 = vmatprep.mubr.bf16.mxu0 0
      %8794 = vmatmul.mubr.bf16.gmra.mxu0 %v8656
      %v8795 = vpop.f32.mrf.mxu0
      %v8796 = vadd.f32 0.0, %v8795
      %v8797 = vpop.f32.mrf.mxu0
      %v8798 = vpop.f32.mrf.mxu0
      %v8799 = vadd.f32 0.0, %v8798
      %v8800 = vpop.f32.mrf.mxu0
      %8801 = vmatprep.mubr.bf16.mxu0 0
      %8802 = vmatmul.mubr.bf16.gmra.mxu0 %v8659
      %v8803 = vpop.f32.mrf.mxu0
      %v8804 = vadd.f32 0.0, %v8803
      %v8805 = vpop.f32.mrf.mxu0
      %v8806 = vpop.f32.mrf.mxu0
      %v8807 = vadd.f32 0.0, %v8806
      %v8808 = vpop.f32.mrf.mxu0
      %8809 = vmatprep.mubr.bf16.mxu0 0
      %8810 = vmatmul.mubr.bf16.gmra.mxu0 %v8662
      %v8811 = vpop.f32.mrf.mxu0
      %v8812 = vadd.f32 0.0, %v8811
      %v8813 = vpop.f32.mrf.mxu0
      %v8814 = vpop.f32.mrf.mxu0
      %v8815 = vadd.f32 0.0, %v8814
      %v8816 = vpop.f32.mrf.mxu0
      %8817 = vmatprep.mubr.bf16.mxu0 0
      %8818 = vmatmul.mubr.bf16.gmra.mxu0 %v8665
      %v8819 = vpop.f32.mrf.mxu0
      %v8820 = vadd.f32 0.0, %v8819
      %v8821 = vpop.f32.mrf.mxu0
      %v8822 = vpop.f32.mrf.mxu0
      %v8823 = vadd.f32 0.0, %v8822
      %v8824 = vpop.f32.mrf.mxu0
      %8825 = vmatprep.mubr.bf16.mxu0 0
      %8826 = vmatmul.mubr.bf16.gmra.mxu0 %v8668
      %v8827 = vpop.f32.mrf.mxu0
      %v8828 = vadd.f32 0.0, %v8827
      %v8829 = vpop.f32.mrf.mxu0
      %v8830 = vpop.f32.mrf.mxu0
      %v8831 = vadd.f32 0.0, %v8830
      %v8832 = vpop.f32.mrf.mxu0
      %8833 = vmatprep.mubr.bf16.mxu0 0
      %8834 = vmatmul.mubr.bf16.gmra.mxu0 %v8671
      %v8835 = vpop.f32.mrf.mxu0
      %v8836 = vadd.f32 0.0, %v8835
      %v8837 = vpop.f32.mrf.mxu0
      %v8838 = vpop.f32.mrf.mxu0
      %v8839 = vadd.f32 0.0, %v8838
      %v8840 = vpop.f32.mrf.mxu0
      %8841 = vmatprep.mubr.bf16.mxu0 0
      %8842 = vmatmul.mubr.bf16.gmra.mxu0 %v8674
      %v8843 = vpop.f32.mrf.mxu0
      %v8844 = vadd.f32 0.0, %v8843
      %v8845 = vpop.f32.mrf.mxu0
      %v8846 = vpop.f32.mrf.mxu0
      %v8847 = vadd.f32 0.0, %v8846
      %v8848 = vpop.f32.mrf.mxu0
      %8849 = vmatprep.mubr.bf16.mxu0 0
      %8850 = vmatmul.mubr.bf16.gmra.mxu0 %v8677
      %v8851 = vpop.f32.mrf.mxu0
      %v8852 = vadd.f32 0.0, %v8851
      %v8853 = vpop.f32.mrf.mxu0
      %v8854 = vpop.f32.mrf.mxu0
      %v8855 = vadd.f32 0.0, %v8854
      %v8856 = vpop.f32.mrf.mxu0
      %8857 = vmatprep.mubr.bf16.mxu0 0
      %8858 = vmatmul.mubr.bf16.gmra.mxu0 %v8680
      %v8859 = vpop.f32.mrf.mxu0
      %v8860 = vadd.f32 0.0, %v8859
      %v8861 = vpop.f32.mrf.mxu0
      %v8862 = vpop.f32.mrf.mxu0
      %v8863 = vadd.f32 0.0, %v8862
      %v8864 = vpop.f32.mrf.mxu0
      %8865 = vmatprep.mubr.bf16.mxu0 0
      %8866 = vmatmul.mubr.bf16.gmra.mxu0 %v8683
      %v8867 = vpop.f32.mrf.mxu0
      %v8868 = vadd.f32 0.0, %v8867
      %v8869 = vpop.f32.mrf.mxu0
      %v8870 = vpop.f32.mrf.mxu0
      %v8871 = vadd.f32 0.0, %v8870
      %v8872 = vpop.f32.mrf.mxu0
      %8873 = vmatprep.mubr.bf16.mxu0 0
      %8874 = vmatmul.mubr.bf16.gmra.mxu0 %v8686
      %v8875 = vpop.f32.mrf.mxu0
      %v8876 = vadd.f32 0.0, %v8875
      %v8877 = vpop.f32.mrf.mxu0
      %v8878 = vpop.f32.mrf.mxu0
      %v8879 = vadd.f32 0.0, %v8878
      %v8880 = vpop.f32.mrf.mxu0
      %8881 = vmatprep.mubr.bf16.mxu0 0
      %8882 = vmatmul.mubr.bf16.gmra.mxu0 %v8689
      %v8883 = vpop.f32.mrf.mxu0
      %v8884 = vadd.f32 0.0, %v8883
      %v8885 = vpop.f32.mrf.mxu0
      %v8886 = vpop.f32.mrf.mxu0
      %v8887 = vadd.f32 0.0, %v8886
      %v8888 = vpop.f32.mrf.mxu0
      %8889 = vmatprep.mubr.bf16.mxu0 0
      %8890 = vmatmul.mubr.bf16.gmra.mxu0 %v8692
      %v8891 = vpop.f32.mrf.mxu0
      %v8892 = vadd.f32 0.0, %v8891
      %v8893 = vpop.f32.mrf.mxu0
      %v8894 = vpop.f32.mrf.mxu0
      %v8895 = vpop.f32.mrf.mxu0
      %8896 = vdwg.mxu0
      %v8897 = vadd.f32 %v8444, %v8732
      %v8898 = vadd.f32 %v8445, %v8735
      %v8899 = vadd.f32 %v8446, %v8740
      %v8900 = vadd.f32 %v8447, %v8743
      %v8901 = vadd.f32 %v8448, %v8748
      %v8902 = vadd.f32 %v8449, %v8751
      %v8903 = vadd.f32 %v8450, %v8756
      %v8904 = vadd.f32 %v8451, %v8759
      %v8905 = vadd.f32 %v8452, %v8764
      %v8906 = vadd.f32 %v8453, %v8767
      %v8907 = vadd.f32 %v8454, %v8772
      %v8908 = vadd.f32 %v8455, %v8775
      %v8909 = vadd.f32 %v8456, %v8780
      %v8910 = vadd.f32 %v8457, %v8783
      %v8911 = vadd.f32 %v8458, %v8788
      %v8912 = vadd.f32 %v8459, %v8791
      %v8913 = vadd.f32 %v8460, %v8796
      %v8914 = vadd.f32 %v8461, %v8799
      %v8915 = vadd.f32 %v8462, %v8804
      %v8916 = vadd.f32 %v8463, %v8807
      %v8917 = vadd.f32 %v8464, %v8812
      %v8918 = vadd.f32 %v8465, %v8815
      %v8919 = vadd.f32 %v8466, %v8820
      %v8920 = vadd.f32 %v8467, %v8823
      %v8921 = vadd.f32 %v8468, %v8828
      %v8922 = vadd.f32 %v8469, %v8831
      %v8923 = vadd.f32 %v8470, %v8836
      %v8924 = vadd.f32 %v8471, %v8839
      %v8925 = vadd.f32 %v8472, %v8844
      %v8926 = vadd.f32 %v8473, %v8847
      %v8927 = vadd.f32 %v8474, %v8852
      %v8928 = vadd.f32 %v8475, %v8855
      %v8929 = vadd.f32 %v8476, %v8860
      %v8930 = vadd.f32 %v8477, %v8863
      %v8931 = vadd.f32 %v8478, %v8868
      %v8932 = vadd.f32 %v8479, %v8871
      %v8933 = vadd.f32 %v8480, %v8876
      %v8934 = vadd.f32 %v8481, %v8879
      %v8935 = vadd.f32 %v8482, %v8884
      %v8936 = vadd.f32 %v8483, %v8887
      %v8937 = vadd.f32 %v8484, %v8892
      %v8938 = vld [vmem:[%s332 + $0xa0] sm:$0x7]
      %s8939 = scalar_lea.vmem %s3, 76
      %v8940 = vld [vmem:[%s8939] sm:$0xf]
      %v8942 = vunpack.c.l.b16 %v8938
      %v8943 = vpack.c.b16 %v8942, %v8942
      %v8944 = vshrl.u32 %v8610, 16
      %v8946 = vshll.u32 %v8610, 16
      %v8948 = vrot.slane %v8946, 1
      %v8949 = vor.u32 %v8944, %v8948
      %v8950 = vshll.u32 %v8611, 16
      %v8952 = vrot.slane %v8950, 1
      %v8953 = vsel %vm492, %v8949, %v8952
      %v8954 = vshrl.u32 %v8611, 16
      %v8956 = vor.u32 %v8954, %v8952
      %v8957 = vshll.u32 %v8612, 16
      %v8959 = vrot.slane %v8957, 1
      %v8960 = vsel %vm492, %v8956, %v8959
      %v8961 = vshrl.u32 %v8612, 16
      %v8963 = vor.u32 %v8961, %v8959
      %v8964 = vshll.u32 %v8613, 16
      %v8966 = vrot.slane %v8964, 1
      %v8967 = vsel %vm492, %v8963, %v8966
      %v8968 = vshrl.u32 %v8613, 16
      %v8970 = vor.u32 %v8968, %v8966
      %v8971 = vshll.u32 %v8614, 16
      %v8973 = vrot.slane %v8971, 1
      %v8974 = vsel %vm492, %v8970, %v8973
      %v8975 = vshrl.u32 %v8614, 16
      %v8977 = vor.u32 %v8975, %v8973
      %v8978 = vshll.u32 %v8615, 16
      %v8980 = vrot.slane %v8978, 1
      %v8981 = vsel %vm492, %v8977, %v8980
      %v8982 = vshrl.u32 %v8615, 16
      %v8984 = vor.u32 %v8982, %v8980
      %v8985 = vshll.u32 %v8616, 16
      %v8987 = vrot.slane %v8985, 1
      %v8988 = vsel %vm492, %v8984, %v8987
      %v8989 = vshrl.u32 %v8616, 16
      %v8991 = vor.u32 %v8989, %v8987
      %v8992 = vshll.u32 %v8617, 16
      %v8994 = vrot.slane %v8992, 1
      %v8995 = vsel %vm492, %v8991, %v8994
      %v8996 = vshrl.u32 %v8617, 16
      %v8998 = vor.u32 %v8996, %v8994
      %v8999 = vshll.u32 %v8618, 16
      %v9001 = vrot.slane %v8999, 1
      %v9002 = vsel %vm492, %v8998, %v9001
      %v9003 = vshrl.u32 %v8618, 16
      %v9005 = vor.u32 %v9003, %v9001
      %v9006 = vshll.u32 %v8619, 16
      %v9008 = vrot.slane %v9006, 1
      %v9009 = vsel %vm492, %v9005, %v9008
      %v9010 = vshrl.u32 %v8619, 16
      %v9012 = vor.u32 %v9010, %v9008
      %v9013 = vshll.u32 %v8620, 16
      %v9015 = vrot.slane %v9013, 1
      %v9016 = vsel %vm492, %v9012, %v9015
      %v9017 = vshrl.u32 %v8620, 16
      %v9019 = vor.u32 %v9017, %v9015
      %v9020 = vshll.u32 %v8621, 16
      %v9022 = vrot.slane %v9020, 1
      %v9023 = vsel %vm492, %v9019, %v9022
      %v9024 = vshrl.u32 %v8621, 16
      %v9026 = vor.u32 %v9024, %v9022
      %v9027 = vshll.u32 %v8622, 16
      %v9029 = vrot.slane %v9027, 1
      %v9030 = vsel %vm492, %v9026, %v9029
      %v9031 = vshrl.u32 %v8622, 16
      %v9033 = vor.u32 %v9031, %v9029
      %v9034 = vshll.u32 %v8623, 16
      %v9036 = vrot.slane %v9034, 1
      %v9037 = vsel %vm492, %v9033, %v9036
      %v9038 = vshrl.u32 %v8623, 16
      %v9040 = vor.u32 %v9038, %v9036
      %v9041 = vshll.u32 %v8624, 16
      %v9043 = vrot.slane %v9041, 1
      %v9044 = vsel %vm492, %v9040, %v9043
      %v9045 = vshrl.u32 %v8624, 16
      %v9047 = vor.u32 %v9045, %v9043
      %v9048 = vshll.u32 %v8625, 16
      %v9050 = vrot.slane %v9048, 1
      %v9051 = vsel %vm492, %v9047, %v9050
      %v9052 = vshrl.u32 %v8625, 16
      %v9054 = vor.u32 %v9052, %v9050
      %v9055 = vshll.u32 %v8626, 16
      %v9057 = vrot.slane %v9055, 1
      %v9058 = vsel %vm492, %v9054, %v9057
      %v9059 = vshrl.u32 %v8626, 16
      %v9061 = vor.u32 %v9059, %v9057
      %v9062 = vshll.u32 %v8627, 16
      %v9064 = vrot.slane %v9062, 1
      %v9065 = vsel %vm492, %v9061, %v9064
      %v9066 = vshrl.u32 %v8627, 16
      %v9068 = vor.u32 %v9066, %v9064
      %v9069 = vshll.u32 %v8628, 16
      %v9071 = vrot.slane %v9069, 1
      %v9072 = vsel %vm492, %v9068, %v9071
      %v9073 = vshrl.u32 %v8628, 16
      %v9075 = vor.u32 %v9073, %v9071
      %v9076 = vshll.u32 %v8629, 16
      %v9078 = vrot.slane %v9076, 1
      %v9079 = vsel %vm492, %v9075, %v9078
      %v9080 = vshrl.u32 %v8629, 16
      %v9082 = vor.u32 %v9080, %v9078
      %v9084 = vshll.u32 %v8943, 16
      %v9086 = vrot.slane %v9084, 1
      %v9087 = vsel %vm492, %v9082, %v9086
      %v9088 = vshrl.u32 %v8943, 16
      %v9090 = vor.u32 %v9088, %v9086
      %v9092 = vsel %vm660, %v8953, 0
      %v9095 = vsel %vm660, %v8960, 0
      %v9098 = vsel %vm660, %v8967, 0
      %v9101 = vsel %vm660, %v8974, 0
      %v9104 = vsel %vm660, %v8981, 0
      %v9107 = vsel %vm660, %v8988, 0
      %v9110 = vsel %vm660, %v8995, 0
      %v9113 = vsel %vm660, %v9002, 0
      %v9116 = vsel %vm660, %v9009, 0
      %v9119 = vsel %vm660, %v9016, 0
      %v9122 = vsel %vm660, %v9023, 0
      %v9125 = vsel %vm660, %v9030, 0
      %v9128 = vsel %vm660, %v9037, 0
      %v9131 = vsel %vm660, %v9044, 0
      %v9134 = vsel %vm660, %v9051, 0
      %v9137 = vsel %vm660, %v9058, 0
      %v9140 = vsel %vm660, %v9065, 0
      %v9143 = vsel %vm660, %v9072, 0
      %v9146 = vsel %vm660, %v9079, 0
      %v9149 = vsel %vm660, %v9087, 0
      %v9152 = vsel %vm660, %v9090, 0
      %v9155 = vsel %vm724, %v8940, 0
      %9157 = vmatprep.subr.bf16.mxu0 0
      %9158 = vmatpush1.bf16.msra.mxu0 0
      %9159 = vmatprep.subr.bf16.mxu0 0
      %9160 = vmatpush1.bf16.msra.mxu0 0
      %9161 = vmatprep.subr.bf16.mxu0 0
      %9162 = vmatpush1.bf16.msra.mxu0 0
      %9163 = vmatprep.subr.bf16.mxu0 0
      %9164 = vmatpush1.bf16.msra.mxu0 0
      %9165 = vmatprep.subr.bf16.mxu0 0
      %9166 = vmatpush1.bf16.msra.mxu0 0
      %9167 = vmatprep.subr.bf16.mxu0 0
      %9168 = vmatpush1.bf16.msra.mxu0 0
      %9169 = vmatprep.subr.bf16.mxu0 0
      %9170 = vmatpush1.bf16.msra.mxu0 0
      %9171 = vmatprep.subr.bf16.mxu0 0
      %9172 = vmatpush1.bf16.msra.mxu0 %v9155
      %9173 = vmatprep.subr.bf16.mxu0 0
      %9174 = vmatpush2.bf16.msra.mxu0 0
      %9175 = vmatprep.subr.bf16.mxu0 0
      %9176 = vmatpush2.bf16.msra.mxu0 0
      %9177 = vmatprep.subr.bf16.mxu0 0
      %9178 = vmatpush2.bf16.msra.mxu0 0
      %9179 = vmatprep.subr.bf16.mxu0 0
      %9180 = vmatpush2.bf16.msra.mxu0 0
      %9181 = vmatprep.subr.bf16.mxu0 0
      %9182 = vmatpush2.bf16.msra.mxu0 0
      %9183 = vmatprep.subr.bf16.mxu0 0
      %9184 = vmatpush2.bf16.msra.mxu0 0
      %9185 = vmatprep.subr.bf16.mxu0 0
      %9186 = vmatpush2.bf16.msra.mxu0 0
      %9187 = vmatprep.subr.bf16.mxu0 0
      %9188 = vmatpush2.bf16.msra.mxu0 0
      %9189 = vmatprep.mubr.bf16.mxu0 0
      %9190 = vmatmul.mubr.bf16.gmra.mxu0 %v9092
      %v9191 = vpop.f32.mrf.mxu0
      %v9192 = vadd.f32 0.0, %v9191
      %v9193 = vpop.f32.mrf.mxu0
      %v9194 = vpop.f32.mrf.mxu0
      %v9195 = vadd.f32 0.0, %v9194
      %v9196 = vpop.f32.mrf.mxu0
      %9197 = vmatprep.mubr.bf16.mxu0 0
      %9198 = vmatmul.mubr.bf16.gmra.mxu0 %v9095
      %v9199 = vpop.f32.mrf.mxu0
      %v9200 = vadd.f32 0.0, %v9199
      %v9201 = vpop.f32.mrf.mxu0
      %v9202 = vpop.f32.mrf.mxu0
      %v9203 = vadd.f32 0.0, %v9202
      %v9204 = vpop.f32.mrf.mxu0
      %9205 = vmatprep.mubr.bf16.mxu0 0
      %9206 = vmatmul.mubr.bf16.gmra.mxu0 %v9098
      %v9207 = vpop.f32.mrf.mxu0
      %v9208 = vadd.f32 0.0, %v9207
      %v9209 = vpop.f32.mrf.mxu0
      %v9210 = vpop.f32.mrf.mxu0
      %v9211 = vadd.f32 0.0, %v9210
      %v9212 = vpop.f32.mrf.mxu0
      %9213 = vmatprep.mubr.bf16.mxu0 0
      %9214 = vmatmul.mubr.bf16.gmra.mxu0 %v9101
      %v9215 = vpop.f32.mrf.mxu0
      %v9216 = vadd.f32 0.0, %v9215
      %v9217 = vpop.f32.mrf.mxu0
      %v9218 = vpop.f32.mrf.mxu0
      %v9219 = vadd.f32 0.0, %v9218
      %v9220 = vpop.f32.mrf.mxu0
      %9221 = vmatprep.mubr.bf16.mxu0 0
      %9222 = vmatmul.mubr.bf16.gmra.mxu0 %v9104
      %v9223 = vpop.f32.mrf.mxu0
      %v9224 = vadd.f32 0.0, %v9223
      %v9225 = vpop.f32.mrf.mxu0
      %v9226 = vpop.f32.mrf.mxu0
      %v9227 = vadd.f32 0.0, %v9226
      %v9228 = vpop.f32.mrf.mxu0
      %9229 = vmatprep.mubr.bf16.mxu0 0
      %9230 = vmatmul.mubr.bf16.gmra.mxu0 %v9107
      %v9231 = vpop.f32.mrf.mxu0
      %v9232 = vadd.f32 0.0, %v9231
      %v9233 = vpop.f32.mrf.mxu0
      %v9234 = vpop.f32.mrf.mxu0
      %v9235 = vadd.f32 0.0, %v9234
      %v9236 = vpop.f32.mrf.mxu0
      %9237 = vmatprep.mubr.bf16.mxu0 0
      %9238 = vmatmul.mubr.bf16.gmra.mxu0 %v9110
      %v9239 = vpop.f32.mrf.mxu0
      %v9240 = vadd.f32 0.0, %v9239
      %v9241 = vpop.f32.mrf.mxu0
      %v9242 = vpop.f32.mrf.mxu0
      %v9243 = vadd.f32 0.0, %v9242
      %v9244 = vpop.f32.mrf.mxu0
      %9245 = vmatprep.mubr.bf16.mxu0 0
      %9246 = vmatmul.mubr.bf16.gmra.mxu0 %v9113
      %v9247 = vpop.f32.mrf.mxu0
      %v9248 = vadd.f32 0.0, %v9247
      %v9249 = vpop.f32.mrf.mxu0
      %v9250 = vpop.f32.mrf.mxu0
      %v9251 = vadd.f32 0.0, %v9250
      %v9252 = vpop.f32.mrf.mxu0
      %9253 = vmatprep.mubr.bf16.mxu0 0
      %9254 = vmatmul.mubr.bf16.gmra.mxu0 %v9116
      %v9255 = vpop.f32.mrf.mxu0
      %v9256 = vadd.f32 0.0, %v9255
      %v9257 = vpop.f32.mrf.mxu0
      %v9258 = vpop.f32.mrf.mxu0
      %v9259 = vadd.f32 0.0, %v9258
      %v9260 = vpop.f32.mrf.mxu0
      %9261 = vmatprep.mubr.bf16.mxu0 0
      %9262 = vmatmul.mubr.bf16.gmra.mxu0 %v9119
      %v9263 = vpop.f32.mrf.mxu0
      %v9264 = vadd.f32 0.0, %v9263
      %v9265 = vpop.f32.mrf.mxu0
      %v9266 = vpop.f32.mrf.mxu0
      %v9267 = vadd.f32 0.0, %v9266
      %v9268 = vpop.f32.mrf.mxu0
      %9269 = vmatprep.mubr.bf16.mxu0 0
      %9270 = vmatmul.mubr.bf16.gmra.mxu0 %v9122
      %v9271 = vpop.f32.mrf.mxu0
      %v9272 = vadd.f32 0.0, %v9271
      %v9273 = vpop.f32.mrf.mxu0
      %v9274 = vpop.f32.mrf.mxu0
      %v9275 = vadd.f32 0.0, %v9274
      %v9276 = vpop.f32.mrf.mxu0
      %9277 = vmatprep.mubr.bf16.mxu0 0
      %9278 = vmatmul.mubr.bf16.gmra.mxu0 %v9125
      %v9279 = vpop.f32.mrf.mxu0
      %v9280 = vadd.f32 0.0, %v9279
      %v9281 = vpop.f32.mrf.mxu0
      %v9282 = vpop.f32.mrf.mxu0
      %v9283 = vadd.f32 0.0, %v9282
      %v9284 = vpop.f32.mrf.mxu0
      %9285 = vmatprep.mubr.bf16.mxu0 0
      %9286 = vmatmul.mubr.bf16.gmra.mxu0 %v9128
      %v9287 = vpop.f32.mrf.mxu0
      %v9288 = vadd.f32 0.0, %v9287
      %v9289 = vpop.f32.mrf.mxu0
      %v9290 = vpop.f32.mrf.mxu0
      %v9291 = vadd.f32 0.0, %v9290
      %v9292 = vpop.f32.mrf.mxu0
      %9293 = vmatprep.mubr.bf16.mxu0 0
      %9294 = vmatmul.mubr.bf16.gmra.mxu0 %v9131
      %v9295 = vpop.f32.mrf.mxu0
      %v9296 = vadd.f32 0.0, %v9295
      %v9297 = vpop.f32.mrf.mxu0
      %v9298 = vpop.f32.mrf.mxu0
      %v9299 = vadd.f32 0.0, %v9298
      %v9300 = vpop.f32.mrf.mxu0
      %9301 = vmatprep.mubr.bf16.mxu0 0
      %9302 = vmatmul.mubr.bf16.gmra.mxu0 %v9134
      %v9303 = vpop.f32.mrf.mxu0
      %v9304 = vadd.f32 0.0, %v9303
      %v9305 = vpop.f32.mrf.mxu0
      %v9306 = vpop.f32.mrf.mxu0
      %v9307 = vadd.f32 0.0, %v9306
      %v9308 = vpop.f32.mrf.mxu0
      %9309 = vmatprep.mubr.bf16.mxu0 0
      %9310 = vmatmul.mubr.bf16.gmra.mxu0 %v9137
      %v9311 = vpop.f32.mrf.mxu0
      %v9312 = vadd.f32 0.0, %v9311
      %v9313 = vpop.f32.mrf.mxu0
      %v9314 = vpop.f32.mrf.mxu0
      %v9315 = vadd.f32 0.0, %v9314
      %v9316 = vpop.f32.mrf.mxu0
      %9317 = vmatprep.mubr.bf16.mxu0 0
      %9318 = vmatmul.mubr.bf16.gmra.mxu0 %v9140
      %v9319 = vpop.f32.mrf.mxu0
      %v9320 = vadd.f32 0.0, %v9319
      %v9321 = vpop.f32.mrf.mxu0
      %v9322 = vpop.f32.mrf.mxu0
      %v9323 = vadd.f32 0.0, %v9322
      %v9324 = vpop.f32.mrf.mxu0
      %9325 = vmatprep.mubr.bf16.mxu0 0
      %9326 = vmatmul.mubr.bf16.gmra.mxu0 %v9143
      %v9327 = vpop.f32.mrf.mxu0
      %v9328 = vadd.f32 0.0, %v9327
      %v9329 = vpop.f32.mrf.mxu0
      %v9330 = vpop.f32.mrf.mxu0
      %v9331 = vadd.f32 0.0, %v9330
      %v9332 = vpop.f32.mrf.mxu0
      %9333 = vmatprep.mubr.bf16.mxu0 0
      %9334 = vmatmul.mubr.bf16.gmra.mxu0 %v9146
      %v9335 = vpop.f32.mrf.mxu0
      %v9336 = vadd.f32 0.0, %v9335
      %v9337 = vpop.f32.mrf.mxu0
      %v9338 = vpop.f32.mrf.mxu0
      %v9339 = vadd.f32 0.0, %v9338
      %v9340 = vpop.f32.mrf.mxu0
      %9341 = vmatprep.mubr.bf16.mxu0 0
      %9342 = vmatmul.mubr.bf16.gmra.mxu0 %v9149
      %v9343 = vpop.f32.mrf.mxu0
      %v9344 = vadd.f32 0.0, %v9343
      %v9345 = vpop.f32.mrf.mxu0
      %v9346 = vpop.f32.mrf.mxu0
      %v9347 = vadd.f32 0.0, %v9346
      %v9348 = vpop.f32.mrf.mxu0
      %9349 = vmatprep.mubr.bf16.mxu0 0
      %9350 = vmatmul.mubr.bf16.gmra.mxu0 %v9152
      %v9351 = vpop.f32.mrf.mxu0
      %v9352 = vadd.f32 0.0, %v9351
      %v9353 = vpop.f32.mrf.mxu0
      %v9354 = vpop.f32.mrf.mxu0
      %v9355 = vpop.f32.mrf.mxu0
      %9356 = vdwg.mxu0
      %v9357 = vadd.f32 %v8897, %v9192
      %v9358 = vadd.f32 %v8898, %v9195
      %v9359 = vadd.f32 %v8899, %v9200
      %v9360 = vadd.f32 %v8900, %v9203
      %v9361 = vadd.f32 %v8901, %v9208
      %v9362 = vadd.f32 %v8902, %v9211
      %v9363 = vadd.f32 %v8903, %v9216
      %v9364 = vadd.f32 %v8904, %v9219
      %v9365 = vadd.f32 %v8905, %v9224
      %v9366 = vadd.f32 %v8906, %v9227
      %v9367 = vadd.f32 %v8907, %v9232
      %v9368 = vadd.f32 %v8908, %v9235
      %v9369 = vadd.f32 %v8909, %v9240
      %v9370 = vadd.f32 %v8910, %v9243
      %v9371 = vadd.f32 %v8911, %v9248
      %v9372 = vadd.f32 %v8912, %v9251
      %v9373 = vadd.f32 %v8913, %v9256
      %v9374 = vadd.f32 %v8914, %v9259
      %v9375 = vadd.f32 %v8915, %v9264
      %v9376 = vadd.f32 %v8916, %v9267
      %v9377 = vadd.f32 %v8917, %v9272
      %v9378 = vadd.f32 %v8918, %v9275
      %v9379 = vadd.f32 %v8919, %v9280
      %v9380 = vadd.f32 %v8920, %v9283
      %v9381 = vadd.f32 %v8921, %v9288
      %v9382 = vadd.f32 %v8922, %v9291
      %v9383 = vadd.f32 %v8923, %v9296
      %v9384 = vadd.f32 %v8924, %v9299
      %v9385 = vadd.f32 %v8925, %v9304
      %v9386 = vadd.f32 %v8926, %v9307
      %v9387 = vadd.f32 %v8927, %v9312
      %v9388 = vadd.f32 %v8928, %v9315
      %v9389 = vadd.f32 %v8929, %v9320
      %v9390 = vadd.f32 %v8930, %v9323
      %v9391 = vadd.f32 %v8931, %v9328
      %v9392 = vadd.f32 %v8932, %v9331
      %v9393 = vadd.f32 %v8933, %v9336
      %v9394 = vadd.f32 %v8934, %v9339
      %v9395 = vadd.f32 %v8935, %v9344
      %v9396 = vadd.f32 %v8936, %v9347
      %v9397 = vadd.f32 %v8937, %v9352
      %v9398 = vld [vmem:[%s332] sm:$0xe]
      %s9399 = scalar_lea.vmem %s3, 80
      %v9400 = vld [vmem:[%s9399] sm:$0xf]
      %v9402 = vunpack.c.l.b16 %v9398
      %v9403 = vpack.c.b16 %v8570, %v9402
      %v9404 = vrot.slane %v9403, 1
      %v9405 = vrot.slane %v8611, 1
      %v9406 = vsel %vm1183, %v9404, %v9405
      %v9407 = vrot.slane %v8612, 1
      %v9408 = vsel %vm1183, %v9405, %v9407
      %v9409 = vrot.slane %v8613, 1
      %v9410 = vsel %vm1183, %v9407, %v9409
      %v9411 = vrot.slane %v8614, 1
      %v9412 = vsel %vm1183, %v9409, %v9411
      %v9413 = vrot.slane %v8615, 1
      %v9414 = vsel %vm1183, %v9411, %v9413
      %v9415 = vrot.slane %v8616, 1
      %v9416 = vsel %vm1183, %v9413, %v9415
      %v9417 = vrot.slane %v8617, 1
      %v9418 = vsel %vm1183, %v9415, %v9417
      %v9419 = vrot.slane %v8618, 1
      %v9420 = vsel %vm1183, %v9417, %v9419
      %v9421 = vrot.slane %v8619, 1
      %v9422 = vsel %vm1183, %v9419, %v9421
      %v9423 = vrot.slane %v8620, 1
      %v9424 = vsel %vm1183, %v9421, %v9423
      %v9425 = vrot.slane %v8621, 1
      %v9426 = vsel %vm1183, %v9423, %v9425
      %v9427 = vrot.slane %v8622, 1
      %v9428 = vsel %vm1183, %v9425, %v9427
      %v9429 = vrot.slane %v8623, 1
      %v9430 = vsel %vm1183, %v9427, %v9429
      %v9431 = vrot.slane %v8624, 1
      %v9432 = vsel %vm1183, %v9429, %v9431
      %v9433 = vrot.slane %v8625, 1
      %v9434 = vsel %vm1183, %v9431, %v9433
      %v9435 = vrot.slane %v8626, 1
      %v9436 = vsel %vm1183, %v9433, %v9435
      %v9437 = vrot.slane %v8627, 1
      %v9438 = vsel %vm1183, %v9435, %v9437
      %v9439 = vrot.slane %v8628, 1
      %v9440 = vsel %vm1183, %v9437, %v9439
      %v9441 = vrot.slane %v8629, 1
      %v9442 = vsel %vm1183, %v9439, %v9441
      %v9443 = vrot.slane %v8943, 1
      %v9444 = vsel %vm1183, %v9441, %v9443
      %v9446 = vsel %vm660, %v9406, 0
      %v9449 = vsel %vm660, %v9408, 0
      %v9452 = vsel %vm660, %v9410, 0
      %v9455 = vsel %vm660, %v9412, 0
      %v9458 = vsel %vm660, %v9414, 0
      %v9461 = vsel %vm660, %v9416, 0
      %v9464 = vsel %vm660, %v9418, 0
      %v9467 = vsel %vm660, %v9420, 0
      %v9470 = vsel %vm660, %v9422, 0
      %v9473 = vsel %vm660, %v9424, 0
      %v9476 = vsel %vm660, %v9426, 0
      %v9479 = vsel %vm660, %v9428, 0
      %v9482 = vsel %vm660, %v9430, 0
      %v9485 = vsel %vm660, %v9432, 0
      %v9488 = vsel %vm660, %v9434, 0
      %v9491 = vsel %vm660, %v9436, 0
      %v9494 = vsel %vm660, %v9438, 0
      %v9497 = vsel %vm660, %v9440, 0
      %v9500 = vsel %vm660, %v9442, 0
      %v9503 = vsel %vm660, %v9444, 0
      %v9506 = vsel %vm660, %v9443, 0
      %v9509 = vsel %vm724, %v9400, 0
      %9511 = vmatprep.subr.bf16.mxu0 0
      %9512 = vmatpush1.bf16.msra.mxu0 0
      %9513 = vmatprep.subr.bf16.mxu0 0
      %9514 = vmatpush1.bf16.msra.mxu0 0
      %9515 = vmatprep.subr.bf16.mxu0 0
      %9516 = vmatpush1.bf16.msra.mxu0 0
      %9517 = vmatprep.subr.bf16.mxu0 0
      %9518 = vmatpush1.bf16.msra.mxu0 0
      %9519 = vmatprep.subr.bf16.mxu0 0
      %9520 = vmatpush1.bf16.msra.mxu0 0
      %9521 = vmatprep.subr.bf16.mxu0 0
      %9522 = vmatpush1.bf16.msra.mxu0 0
      %9523 = vmatprep.subr.bf16.mxu0 0
      %9524 = vmatpush1.bf16.msra.mxu0 0
      %9525 = vmatprep.subr.bf16.mxu0 0
      %9526 = vmatpush1.bf16.msra.mxu0 %v9509
      %9527 = vmatprep.subr.bf16.mxu0 0
      %9528 = vmatpush2.bf16.msra.mxu0 0
      %9529 = vmatprep.subr.bf16.mxu0 0
      %9530 = vmatpush2.bf16.msra.mxu0 0
      %9531 = vmatprep.subr.bf16.mxu0 0
      %9532 = vmatpush2.bf16.msra.mxu0 0
      %9533 = vmatprep.subr.bf16.mxu0 0
      %9534 = vmatpush2.bf16.msra.mxu0 0
      %9535 = vmatprep.subr.bf16.mxu0 0
      %9536 = vmatpush2.bf16.msra.mxu0 0
      %9537 = vmatprep.subr.bf16.mxu0 0
      %9538 = vmatpush2.bf16.msra.mxu0 0
      %9539 = vmatprep.subr.bf16.mxu0 0
      %9540 = vmatpush2.bf16.msra.mxu0 0
      %9541 = vmatprep.subr.bf16.mxu0 0
      %9542 = vmatpush2.bf16.msra.mxu0 0
      %9543 = vmatprep.mubr.bf16.mxu0 0
      %9544 = vmatmul.mubr.bf16.gmra.mxu0 %v9446
      %v9545 = vpop.f32.mrf.mxu0
      %v9546 = vadd.f32 0.0, %v9545
      %v9547 = vpop.f32.mrf.mxu0
      %v9548 = vpop.f32.mrf.mxu0
      %v9549 = vadd.f32 0.0, %v9548
      %v9550 = vpop.f32.mrf.mxu0
      %9551 = vmatprep.mubr.bf16.mxu0 0
      %9552 = vmatmul.mubr.bf16.gmra.mxu0 %v9449
      %v9553 = vpop.f32.mrf.mxu0
      %v9554 = vadd.f32 0.0, %v9553
      %v9555 = vpop.f32.mrf.mxu0
      %v9556 = vpop.f32.mrf.mxu0
      %v9557 = vadd.f32 0.0, %v9556
      %v9558 = vpop.f32.mrf.mxu0
      %9559 = vmatprep.mubr.bf16.mxu0 0
      %9560 = vmatmul.mubr.bf16.gmra.mxu0 %v9452
      %v9561 = vpop.f32.mrf.mxu0
      %v9562 = vadd.f32 0.0, %v9561
      %v9563 = vpop.f32.mrf.mxu0
      %v9564 = vpop.f32.mrf.mxu0
      %v9565 = vadd.f32 0.0, %v9564
      %v9566 = vpop.f32.mrf.mxu0
      %9567 = vmatprep.mubr.bf16.mxu0 0
      %9568 = vmatmul.mubr.bf16.gmra.mxu0 %v9455
      %v9569 = vpop.f32.mrf.mxu0
      %v9570 = vadd.f32 0.0, %v9569
      %v9571 = vpop.f32.mrf.mxu0
      %v9572 = vpop.f32.mrf.mxu0
      %v9573 = vadd.f32 0.0, %v9572
      %v9574 = vpop.f32.mrf.mxu0
      %9575 = vmatprep.mubr.bf16.mxu0 0
      %9576 = vmatmul.mubr.bf16.gmra.mxu0 %v9458
      %v9577 = vpop.f32.mrf.mxu0
      %v9578 = vadd.f32 0.0, %v9577
      %v9579 = vpop.f32.mrf.mxu0
      %v9580 = vpop.f32.mrf.mxu0
      %v9581 = vadd.f32 0.0, %v9580
      %v9582 = vpop.f32.mrf.mxu0
      %9583 = vmatprep.mubr.bf16.mxu0 0
      %9584 = vmatmul.mubr.bf16.gmra.mxu0 %v9461
      %v9585 = vpop.f32.mrf.mxu0
      %v9586 = vadd.f32 0.0, %v9585
      %v9587 = vpop.f32.mrf.mxu0
      %v9588 = vpop.f32.mrf.mxu0
      %v9589 = vadd.f32 0.0, %v9588
      %v9590 = vpop.f32.mrf.mxu0
      %9591 = vmatprep.mubr.bf16.mxu0 0
      %9592 = vmatmul.mubr.bf16.gmra.mxu0 %v9464
      %v9593 = vpop.f32.mrf.mxu0
      %v9594 = vadd.f32 0.0, %v9593
      %v9595 = vpop.f32.mrf.mxu0
      %v9596 = vpop.f32.mrf.mxu0
      %v9597 = vadd.f32 0.0, %v9596
      %v9598 = vpop.f32.mrf.mxu0
      %9599 = vmatprep.mubr.bf16.mxu0 0
      %9600 = vmatmul.mubr.bf16.gmra.mxu0 %v9467
      %v9601 = vpop.f32.mrf.mxu0
      %v9602 = vadd.f32 0.0, %v9601
      %v9603 = vpop.f32.mrf.mxu0
      %v9604 = vpop.f32.mrf.mxu0
      %v9605 = vadd.f32 0.0, %v9604
      %v9606 = vpop.f32.mrf.mxu0
      %9607 = vmatprep.mubr.bf16.mxu0 0
      %9608 = vmatmul.mubr.bf16.gmra.mxu0 %v9470
      %v9609 = vpop.f32.mrf.mxu0
      %v9610 = vadd.f32 0.0, %v9609
      %v9611 = vpop.f32.mrf.mxu0
      %v9612 = vpop.f32.mrf.mxu0
      %v9613 = vadd.f32 0.0, %v9612
      %v9614 = vpop.f32.mrf.mxu0
      %9615 = vmatprep.mubr.bf16.mxu0 0
      %9616 = vmatmul.mubr.bf16.gmra.mxu0 %v9473
      %v9617 = vpop.f32.mrf.mxu0
      %v9618 = vadd.f32 0.0, %v9617
      %v9619 = vpop.f32.mrf.mxu0
      %v9620 = vpop.f32.mrf.mxu0
      %v9621 = vadd.f32 0.0, %v9620
      %v9622 = vpop.f32.mrf.mxu0
      %9623 = vmatprep.mubr.bf16.mxu0 0
      %9624 = vmatmul.mubr.bf16.gmra.mxu0 %v9476
      %v9625 = vpop.f32.mrf.mxu0
      %v9626 = vadd.f32 0.0, %v9625
      %v9627 = vpop.f32.mrf.mxu0
      %v9628 = vpop.f32.mrf.mxu0
      %v9629 = vadd.f32 0.0, %v9628
      %v9630 = vpop.f32.mrf.mxu0
      %9631 = vmatprep.mubr.bf16.mxu0 0
      %9632 = vmatmul.mubr.bf16.gmra.mxu0 %v9479
      %v9633 = vpop.f32.mrf.mxu0
      %v9634 = vadd.f32 0.0, %v9633
      %v9635 = vpop.f32.mrf.mxu0
      %v9636 = vpop.f32.mrf.mxu0
      %v9637 = vadd.f32 0.0, %v9636
      %v9638 = vpop.f32.mrf.mxu0
      %9639 = vmatprep.mubr.bf16.mxu0 0
      %9640 = vmatmul.mubr.bf16.gmra.mxu0 %v9482
      %v9641 = vpop.f32.mrf.mxu0
      %v9642 = vadd.f32 0.0, %v9641
      %v9643 = vpop.f32.mrf.mxu0
      %v9644 = vpop.f32.mrf.mxu0
      %v9645 = vadd.f32 0.0, %v9644
      %v9646 = vpop.f32.mrf.mxu0
      %9647 = vmatprep.mubr.bf16.mxu0 0
      %9648 = vmatmul.mubr.bf16.gmra.mxu0 %v9485
      %v9649 = vpop.f32.mrf.mxu0
      %v9650 = vadd.f32 0.0, %v9649
      %v9651 = vpop.f32.mrf.mxu0
      %v9652 = vpop.f32.mrf.mxu0
      %v9653 = vadd.f32 0.0, %v9652
      %v9654 = vpop.f32.mrf.mxu0
      %9655 = vmatprep.mubr.bf16.mxu0 0
      %9656 = vmatmul.mubr.bf16.gmra.mxu0 %v9488
      %v9657 = vpop.f32.mrf.mxu0
      %v9658 = vadd.f32 0.0, %v9657
      %v9659 = vpop.f32.mrf.mxu0
      %v9660 = vpop.f32.mrf.mxu0
      %v9661 = vadd.f32 0.0, %v9660
      %v9662 = vpop.f32.mrf.mxu0
      %9663 = vmatprep.mubr.bf16.mxu0 0
      %9664 = vmatmul.mubr.bf16.gmra.mxu0 %v9491
      %v9665 = vpop.f32.mrf.mxu0
      %v9666 = vadd.f32 0.0, %v9665
      %v9667 = vpop.f32.mrf.mxu0
      %v9668 = vpop.f32.mrf.mxu0
      %v9669 = vadd.f32 0.0, %v9668
      %v9670 = vpop.f32.mrf.mxu0
      %9671 = vmatprep.mubr.bf16.mxu0 0
      %9672 = vmatmul.mubr.bf16.gmra.mxu0 %v9494
      %v9673 = vpop.f32.mrf.mxu0
      %v9674 = vadd.f32 0.0, %v9673
      %v9675 = vpop.f32.mrf.mxu0
      %v9676 = vpop.f32.mrf.mxu0
      %v9677 = vadd.f32 0.0, %v9676
      %v9678 = vpop.f32.mrf.mxu0
      %9679 = vmatprep.mubr.bf16.mxu0 0
      %9680 = vmatmul.mubr.bf16.gmra.mxu0 %v9497
      %v9681 = vpop.f32.mrf.mxu0
      %v9682 = vadd.f32 0.0, %v9681
      %v9683 = vpop.f32.mrf.mxu0
      %v9684 = vpop.f32.mrf.mxu0
      %v9685 = vadd.f32 0.0, %v9684
      %v9686 = vpop.f32.mrf.mxu0
      %9687 = vmatprep.mubr.bf16.mxu0 0
      %9688 = vmatmul.mubr.bf16.gmra.mxu0 %v9500
      %v9689 = vpop.f32.mrf.mxu0
      %v9690 = vadd.f32 0.0, %v9689
      %v9691 = vpop.f32.mrf.mxu0
      %v9692 = vpop.f32.mrf.mxu0
      %v9693 = vadd.f32 0.0, %v9692
      %v9694 = vpop.f32.mrf.mxu0
      %9695 = vmatprep.mubr.bf16.mxu0 0
      %9696 = vmatmul.mubr.bf16.gmra.mxu0 %v9503
      %v9697 = vpop.f32.mrf.mxu0
      %v9698 = vadd.f32 0.0, %v9697
      %v9699 = vpop.f32.mrf.mxu0
      %v9700 = vpop.f32.mrf.mxu0
      %v9701 = vadd.f32 0.0, %v9700
      %v9702 = vpop.f32.mrf.mxu0
      %9703 = vmatprep.mubr.bf16.mxu0 0
      %9704 = vmatmul.mubr.bf16.gmra.mxu0 %v9506
      %v9705 = vpop.f32.mrf.mxu0
      %v9706 = vadd.f32 0.0, %v9705
      %v9707 = vpop.f32.mrf.mxu0
      %v9708 = vpop.f32.mrf.mxu0
      %v9709 = vpop.f32.mrf.mxu0
      %9710 = vdwg.mxu0
      %v9711 = vadd.f32 %v9357, %v9546
      %v9712 = vadd.f32 %v9358, %v9549
      %v9713 = vadd.f32 %v9359, %v9554
      %v9714 = vadd.f32 %v9360, %v9557
      %v9715 = vadd.f32 %v9361, %v9562
      %v9716 = vadd.f32 %v9362, %v9565
      %v9717 = vadd.f32 %v9363, %v9570
      %v9718 = vadd.f32 %v9364, %v9573
      %v9719 = vadd.f32 %v9365, %v9578
      %v9720 = vadd.f32 %v9366, %v9581
      %v9721 = vadd.f32 %v9367, %v9586
      %v9722 = vadd.f32 %v9368, %v9589
      %v9723 = vadd.f32 %v9369, %v9594
      %v9724 = vadd.f32 %v9370, %v9597
      %v9725 = vadd.f32 %v9371, %v9602
      %v9726 = vadd.f32 %v9372, %v9605
      %v9727 = vadd.f32 %v9373, %v9610
      %v9728 = vadd.f32 %v9374, %v9613
      %v9729 = vadd.f32 %v9375, %v9618
      %v9730 = vadd.f32 %v9376, %v9621
      %v9731 = vadd.f32 %v9377, %v9626
      %v9732 = vadd.f32 %v9378, %v9629
      %v9733 = vadd.f32 %v9379, %v9634
      %v9734 = vadd.f32 %v9380, %v9637
      %v9735 = vadd.f32 %v9381, %v9642
      %v9736 = vadd.f32 %v9382, %v9645
      %v9737 = vadd.f32 %v9383, %v9650
      %v9738 = vadd.f32 %v9384, %v9653
      %v9739 = vadd.f32 %v9385, %v9658
      %v9740 = vadd.f32 %v9386, %v9661
      %v9741 = vadd.f32 %v9387, %v9666
      %v9742 = vadd.f32 %v9388, %v9669
      %v9743 = vadd.f32 %v9389, %v9674
      %v9744 = vadd.f32 %v9390, %v9677
      %v9745 = vadd.f32 %v9391, %v9682
      %v9746 = vadd.f32 %v9392, %v9685
      %v9747 = vadd.f32 %v9393, %v9690
      %v9748 = vadd.f32 %v9394, %v9693
      %v9749 = vadd.f32 %v9395, %v9698
      %v9750 = vadd.f32 %v9396, %v9701
      %v9751 = vadd.f32 %v9397, %v9706
      %v9752 = vld [vmem:[%s332 + $0x8] sm:$0xe]
      %v9753 = vld [vmem:[%s332 + $0xc] sm:$0xf]
      %v9754 = vld [vmem:[%s332 + $0x10] sm:$0xf]
      %v9755 = vld [vmem:[%s332 + $0x14] sm:$0xf]
      %v9756 = vld [vmem:[%s332 + $0x18] sm:$0xf]
      %v9757 = vld [vmem:[%s332 + $0x1c] sm:$0xf]
      %v9758 = vld [vmem:[%s332 + $0x20] sm:$0xf]
      %v9759 = vld [vmem:[%s332 + $0x24] sm:$0xf]
      %v9760 = vld [vmem:[%s332 + $0x28] sm:$0xf]
      %v9761 = vld [vmem:[%s332 + $0x2c] sm:$0xf]
      %v9762 = vld [vmem:[%s332 + $0x30] sm:$0xf]
      %v9763 = vld [vmem:[%s332 + $0x34] sm:$0xf]
      %v9764 = vld [vmem:[%s332 + $0x38] sm:$0xf]
      %v9765 = vld [vmem:[%s332 + $0x3c] sm:$0xf]
      %v9766 = vld [vmem:[%s332 + $0x40] sm:$0xf]
      %v9767 = vld [vmem:[%s332 + $0x44] sm:$0xf]
      %v9768 = vld [vmem:[%s332 + $0x48] sm:$0xf]
      %v9769 = vld [vmem:[%s332 + $0x4c] sm:$0xf]
      %v9770 = vld [vmem:[%s332 + $0x50] sm:$0xf]
      %v9771 = vld [vmem:[%s332 + $0x54] sm:$0xf]
      %v9772 = vld [vmem:[%s332 + $0x58] sm:$0xf]
      %v9773 = vld [vmem:[%s332 + $0x5c] sm:$0xf]
      %v9774 = vld [vmem:[%s332 + $0x60] sm:$0xf]
      %v9775 = vld [vmem:[%s332 + $0x64] sm:$0xf]
      %v9776 = vld [vmem:[%s332 + $0x68] sm:$0xf]
      %v9777 = vld [vmem:[%s332 + $0x6c] sm:$0xf]
      %v9778 = vld [vmem:[%s332 + $0x70] sm:$0xf]
      %v9779 = vld [vmem:[%s332 + $0x74] sm:$0xf]
      %v9780 = vld [vmem:[%s332 + $0x78] sm:$0xf]
      %v9781 = vld [vmem:[%s332 + $0x7c] sm:$0xf]
      %v9782 = vld [vmem:[%s332 + $0x80] sm:$0xf]
      %v9783 = vld [vmem:[%s332 + $0x84] sm:$0xf]
      %v9784 = vld [vmem:[%s332 + $0x88] sm:$0xf]
      %v9785 = vld [vmem:[%s332 + $0x8c] sm:$0xf]
      %v9786 = vld [vmem:[%s332 + $0x90] sm:$0xf]
      %v9787 = vld [vmem:[%s332 + $0x94] sm:$0xf]
      %v9788 = vld [vmem:[%s332 + $0x98] sm:$0xf]
      %v9789 = vld [vmem:[%s332 + $0x9c] sm:$0xf]
      %v9790 = vld [vmem:[%s332 + $0xa0] sm:$0xf]
      %v9791 = vld [vmem:[%s332 + $0xa4] sm:$0xf]
      %v9792 = vld [vmem:[%s332 + $0xa8] sm:$0x7]
      %s9793 = scalar_lea.vmem %s3, 84
      %v9794 = vld [vmem:[%s9793] sm:$0xf]
      %v9836 = vunpack.c.l.b16 %v9752
      %v9837 = vunpack.c.l.b16 %v9753
      %v9838 = vunpack.c.l.b16 %v9754
      %v9839 = vunpack.c.l.b16 %v9755
      %v9840 = vunpack.c.l.b16 %v9756
      %v9841 = vunpack.c.l.b16 %v9757
      %v9842 = vunpack.c.l.b16 %v9758
      %v9843 = vunpack.c.l.b16 %v9759
      %v9844 = vunpack.c.l.b16 %v9760
      %v9845 = vunpack.c.l.b16 %v9761
      %v9846 = vunpack.c.l.b16 %v9762
      %v9847 = vunpack.c.l.b16 %v9763
      %v9848 = vunpack.c.l.b16 %v9764
      %v9849 = vunpack.c.l.b16 %v9765
      %v9850 = vunpack.c.l.b16 %v9766
      %v9851 = vunpack.c.l.b16 %v9767
      %v9852 = vunpack.c.l.b16 %v9768
      %v9853 = vunpack.c.l.b16 %v9769
      %v9854 = vunpack.c.l.b16 %v9770
      %v9855 = vunpack.c.l.b16 %v9771
      %v9856 = vunpack.c.l.b16 %v9772
      %v9857 = vunpack.c.l.b16 %v9773
      %v9858 = vunpack.c.l.b16 %v9774
      %v9859 = vunpack.c.l.b16 %v9775
      %v9860 = vunpack.c.l.b16 %v9776
      %v9861 = vunpack.c.l.b16 %v9777
      %v9862 = vunpack.c.l.b16 %v9778
      %v9863 = vunpack.c.l.b16 %v9779
      %v9864 = vunpack.c.l.b16 %v9780
      %v9865 = vunpack.c.l.b16 %v9781
      %v9866 = vunpack.c.l.b16 %v9782
      %v9867 = vunpack.c.l.b16 %v9783
      %v9868 = vunpack.c.l.b16 %v9784
      %v9869 = vunpack.c.l.b16 %v9785
      %v9870 = vunpack.c.l.b16 %v9786
      %v9871 = vunpack.c.l.b16 %v9787
      %v9872 = vunpack.c.l.b16 %v9788
      %v9873 = vunpack.c.l.b16 %v9789
      %v9874 = vunpack.c.l.b16 %v9790
      %v9875 = vunpack.c.l.b16 %v9791
      %v9876 = vunpack.c.l.b16 %v9792
      %v9877 = vpack.c.b16 %v9837, %v9836
      %v9878 = vpack.c.b16 %v9839, %v9838
      %v9879 = vpack.c.b16 %v9841, %v9840
      %v9880 = vpack.c.b16 %v9843, %v9842
      %v9881 = vpack.c.b16 %v9845, %v9844
      %v9882 = vpack.c.b16 %v9847, %v9846
      %v9883 = vpack.c.b16 %v9849, %v9848
      %v9884 = vpack.c.b16 %v9851, %v9850
      %v9885 = vpack.c.b16 %v9853, %v9852
      %v9886 = vpack.c.b16 %v9855, %v9854
      %v9887 = vpack.c.b16 %v9857, %v9856
      %v9888 = vpack.c.b16 %v9859, %v9858
      %v9889 = vpack.c.b16 %v9861, %v9860
      %v9890 = vpack.c.b16 %v9863, %v9862
      %v9891 = vpack.c.b16 %v9865, %v9864
      %v9892 = vpack.c.b16 %v9867, %v9866
      %v9893 = vpack.c.b16 %v9869, %v9868
      %v9894 = vpack.c.b16 %v9871, %v9870
      %v9895 = vpack.c.b16 %v9873, %v9872
      %v9896 = vpack.c.b16 %v9875, %v9874
      %v9897 = vpack.c.b16 %v9876, %v9876
      %v9898 = vrot.slane %v9877, 1
      %v9899 = vrot.slane %v9878, 1
      %v9900 = vsel %vm1183, %v9898, %v9899
      %v9901 = vrot.slane %v9879, 1
      %v9902 = vsel %vm1183, %v9899, %v9901
      %v9903 = vrot.slane %v9880, 1
      %v9904 = vsel %vm1183, %v9901, %v9903
      %v9905 = vrot.slane %v9881, 1
      %v9906 = vsel %vm1183, %v9903, %v9905
      %v9907 = vrot.slane %v9882, 1
      %v9908 = vsel %vm1183, %v9905, %v9907
      %v9909 = vrot.slane %v9883, 1
      %v9910 = vsel %vm1183, %v9907, %v9909
      %v9911 = vrot.slane %v9884, 1
      %v9912 = vsel %vm1183, %v9909, %v9911
      %v9913 = vrot.slane %v9885, 1
      %v9914 = vsel %vm1183, %v9911, %v9913
      %v9915 = vrot.slane %v9886, 1
      %v9916 = vsel %vm1183, %v9913, %v9915
      %v9917 = vrot.slane %v9887, 1
      %v9918 = vsel %vm1183, %v9915, %v9917
      %v9919 = vrot.slane %v9888, 1
      %v9920 = vsel %vm1183, %v9917, %v9919
      %v9921 = vrot.slane %v9889, 1
      %v9922 = vsel %vm1183, %v9919, %v9921
      %v9923 = vrot.slane %v9890, 1
      %v9924 = vsel %vm1183, %v9921, %v9923
      %v9925 = vrot.slane %v9891, 1
      %v9926 = vsel %vm1183, %v9923, %v9925
      %v9927 = vrot.slane %v9892, 1
      %v9928 = vsel %vm1183, %v9925, %v9927
      %v9929 = vrot.slane %v9893, 1
      %v9930 = vsel %vm1183, %v9927, %v9929
      %v9931 = vrot.slane %v9894, 1
      %v9932 = vsel %vm1183, %v9929, %v9931
      %v9933 = vrot.slane %v9895, 1
      %v9934 = vsel %vm1183, %v9931, %v9933
      %v9935 = vrot.slane %v9896, 1
      %v9936 = vsel %vm1183, %v9933, %v9935
      %v9937 = vrot.slane %v9897, 1
      %v9938 = vsel %vm1183, %v9935, %v9937
      %v9940 = vsel %vm660, %v9900, 0
      %v9943 = vsel %vm660, %v9902, 0
      %v9946 = vsel %vm660, %v9904, 0
      %v9949 = vsel %vm660, %v9906, 0
      %v9952 = vsel %vm660, %v9908, 0
      %v9955 = vsel %vm660, %v9910, 0
      %v9958 = vsel %vm660, %v9912, 0
      %v9961 = vsel %vm660, %v9914, 0
      %v9964 = vsel %vm660, %v9916, 0
      %v9967 = vsel %vm660, %v9918, 0
      %v9970 = vsel %vm660, %v9920, 0
      %v9973 = vsel %vm660, %v9922, 0
      %v9976 = vsel %vm660, %v9924, 0
      %v9979 = vsel %vm660, %v9926, 0
      %v9982 = vsel %vm660, %v9928, 0
      %v9985 = vsel %vm660, %v9930, 0
      %v9988 = vsel %vm660, %v9932, 0
      %v9991 = vsel %vm660, %v9934, 0
      %v9994 = vsel %vm660, %v9936, 0
      %v9997 = vsel %vm660, %v9938, 0
      %v10000 = vsel %vm660, %v9937, 0
      %v10003 = vsel %vm724, %v9794, 0
      %10005 = vmatprep.subr.bf16.mxu0 0
      %10006 = vmatpush1.bf16.msra.mxu0 0
      %10007 = vmatprep.subr.bf16.mxu0 0
      %10008 = vmatpush1.bf16.msra.mxu0 0
      %10009 = vmatprep.subr.bf16.mxu0 0
      %10010 = vmatpush1.bf16.msra.mxu0 0
      %10011 = vmatprep.subr.bf16.mxu0 0
      %10012 = vmatpush1.bf16.msra.mxu0 0
      %10013 = vmatprep.subr.bf16.mxu0 0
      %10014 = vmatpush1.bf16.msra.mxu0 0
      %10015 = vmatprep.subr.bf16.mxu0 0
      %10016 = vmatpush1.bf16.msra.mxu0 0
      %10017 = vmatprep.subr.bf16.mxu0 0
      %10018 = vmatpush1.bf16.msra.mxu0 0
      %10019 = vmatprep.subr.bf16.mxu0 0
      %10020 = vmatpush1.bf16.msra.mxu0 %v10003
      %10021 = vmatprep.subr.bf16.mxu0 0
      %10022 = vmatpush2.bf16.msra.mxu0 0
      %10023 = vmatprep.subr.bf16.mxu0 0
      %10024 = vmatpush2.bf16.msra.mxu0 0
      %10025 = vmatprep.subr.bf16.mxu0 0
      %10026 = vmatpush2.bf16.msra.mxu0 0
      %10027 = vmatprep.subr.bf16.mxu0 0
      %10028 = vmatpush2.bf16.msra.mxu0 0
      %10029 = vmatprep.subr.bf16.mxu0 0
      %10030 = vmatpush2.bf16.msra.mxu0 0
      %10031 = vmatprep.subr.bf16.mxu0 0
      %10032 = vmatpush2.bf16.msra.mxu0 0
      %10033 = vmatprep.subr.bf16.mxu0 0
      %10034 = vmatpush2.bf16.msra.mxu0 0
      %10035 = vmatprep.subr.bf16.mxu0 0
      %10036 = vmatpush2.bf16.msra.mxu0 0
      %10037 = vmatprep.mubr.bf16.mxu0 0
      %10038 = vmatmul.mubr.bf16.gmra.mxu0 %v9940
      %v10039 = vpop.f32.mrf.mxu0
      %v10040 = vadd.f32 0.0, %v10039
      %v10041 = vpop.f32.mrf.mxu0
      %v10042 = vpop.f32.mrf.mxu0
      %v10043 = vadd.f32 0.0, %v10042
      %v10044 = vpop.f32.mrf.mxu0
      %10045 = vmatprep.mubr.bf16.mxu0 0
      %10046 = vmatmul.mubr.bf16.gmra.mxu0 %v9943
      %v10047 = vpop.f32.mrf.mxu0
      %v10048 = vadd.f32 0.0, %v10047
      %v10049 = vpop.f32.mrf.mxu0
      %v10050 = vpop.f32.mrf.mxu0
      %v10051 = vadd.f32 0.0, %v10050
      %v10052 = vpop.f32.mrf.mxu0
      %10053 = vmatprep.mubr.bf16.mxu0 0
      %10054 = vmatmul.mubr.bf16.gmra.mxu0 %v9946
      %v10055 = vpop.f32.mrf.mxu0
      %v10056 = vadd.f32 0.0, %v10055
      %v10057 = vpop.f32.mrf.mxu0
      %v10058 = vpop.f32.mrf.mxu0
      %v10059 = vadd.f32 0.0, %v10058
      %v10060 = vpop.f32.mrf.mxu0
      %10061 = vmatprep.mubr.bf16.mxu0 0
      %10062 = vmatmul.mubr.bf16.gmra.mxu0 %v9949
      %v10063 = vpop.f32.mrf.mxu0
      %v10064 = vadd.f32 0.0, %v10063
      %v10065 = vpop.f32.mrf.mxu0
      %v10066 = vpop.f32.mrf.mxu0
      %v10067 = vadd.f32 0.0, %v10066
      %v10068 = vpop.f32.mrf.mxu0
      %10069 = vmatprep.mubr.bf16.mxu0 0
      %10070 = vmatmul.mubr.bf16.gmra.mxu0 %v9952
      %v10071 = vpop.f32.mrf.mxu0
      %v10072 = vadd.f32 0.0, %v10071
      %v10073 = vpop.f32.mrf.mxu0
      %v10074 = vpop.f32.mrf.mxu0
      %v10075 = vadd.f32 0.0, %v10074
      %v10076 = vpop.f32.mrf.mxu0
      %10077 = vmatprep.mubr.bf16.mxu0 0
      %10078 = vmatmul.mubr.bf16.gmra.mxu0 %v9955
      %v10079 = vpop.f32.mrf.mxu0
      %v10080 = vadd.f32 0.0, %v10079
      %v10081 = vpop.f32.mrf.mxu0
      %v10082 = vpop.f32.mrf.mxu0
      %v10083 = vadd.f32 0.0, %v10082
      %v10084 = vpop.f32.mrf.mxu0
      %10085 = vmatprep.mubr.bf16.mxu0 0
      %10086 = vmatmul.mubr.bf16.gmra.mxu0 %v9958
      %v10087 = vpop.f32.mrf.mxu0
      %v10088 = vadd.f32 0.0, %v10087
      %v10089 = vpop.f32.mrf.mxu0
      %v10090 = vpop.f32.mrf.mxu0
      %v10091 = vadd.f32 0.0, %v10090
      %v10092 = vpop.f32.mrf.mxu0
      %10093 = vmatprep.mubr.bf16.mxu0 0
      %10094 = vmatmul.mubr.bf16.gmra.mxu0 %v9961
      %v10095 = vpop.f32.mrf.mxu0
      %v10096 = vadd.f32 0.0, %v10095
      %v10097 = vpop.f32.mrf.mxu0
      %v10098 = vpop.f32.mrf.mxu0
      %v10099 = vadd.f32 0.0, %v10098
      %v10100 = vpop.f32.mrf.mxu0
      %10101 = vmatprep.mubr.bf16.mxu0 0
      %10102 = vmatmul.mubr.bf16.gmra.mxu0 %v9964
      %v10103 = vpop.f32.mrf.mxu0
      %v10104 = vadd.f32 0.0, %v10103
      %v10105 = vpop.f32.mrf.mxu0
      %v10106 = vpop.f32.mrf.mxu0
      %v10107 = vadd.f32 0.0, %v10106
      %v10108 = vpop.f32.mrf.mxu0
      %10109 = vmatprep.mubr.bf16.mxu0 0
      %10110 = vmatmul.mubr.bf16.gmra.mxu0 %v9967
      %v10111 = vpop.f32.mrf.mxu0
      %v10112 = vadd.f32 0.0, %v10111
      %v10113 = vpop.f32.mrf.mxu0
      %v10114 = vpop.f32.mrf.mxu0
      %v10115 = vadd.f32 0.0, %v10114
      %v10116 = vpop.f32.mrf.mxu0
      %10117 = vmatprep.mubr.bf16.mxu0 0
      %10118 = vmatmul.mubr.bf16.gmra.mxu0 %v9970
      %v10119 = vpop.f32.mrf.mxu0
      %v10120 = vadd.f32 0.0, %v10119
      %v10121 = vpop.f32.mrf.mxu0
      %v10122 = vpop.f32.mrf.mxu0
      %v10123 = vadd.f32 0.0, %v10122
      %v10124 = vpop.f32.mrf.mxu0
      %10125 = vmatprep.mubr.bf16.mxu0 0
      %10126 = vmatmul.mubr.bf16.gmra.mxu0 %v9973
      %v10127 = vpop.f32.mrf.mxu0
      %v10128 = vadd.f32 0.0, %v10127
      %v10129 = vpop.f32.mrf.mxu0
      %v10130 = vpop.f32.mrf.mxu0
      %v10131 = vadd.f32 0.0, %v10130
      %v10132 = vpop.f32.mrf.mxu0
      %10133 = vmatprep.mubr.bf16.mxu0 0
      %10134 = vmatmul.mubr.bf16.gmra.mxu0 %v9976
      %v10135 = vpop.f32.mrf.mxu0
      %v10136 = vadd.f32 0.0, %v10135
      %v10137 = vpop.f32.mrf.mxu0
      %v10138 = vpop.f32.mrf.mxu0
      %v10139 = vadd.f32 0.0, %v10138
      %v10140 = vpop.f32.mrf.mxu0
      %10141 = vmatprep.mubr.bf16.mxu0 0
      %10142 = vmatmul.mubr.bf16.gmra.mxu0 %v9979
      %v10143 = vpop.f32.mrf.mxu0
      %v10144 = vadd.f32 0.0, %v10143
      %v10145 = vpop.f32.mrf.mxu0
      %v10146 = vpop.f32.mrf.mxu0
      %v10147 = vadd.f32 0.0, %v10146
      %v10148 = vpop.f32.mrf.mxu0
      %10149 = vmatprep.mubr.bf16.mxu0 0
      %10150 = vmatmul.mubr.bf16.gmra.mxu0 %v9982
      %v10151 = vpop.f32.mrf.mxu0
      %v10152 = vadd.f32 0.0, %v10151
      %v10153 = vpop.f32.mrf.mxu0
      %v10154 = vpop.f32.mrf.mxu0
      %v10155 = vadd.f32 0.0, %v10154
      %v10156 = vpop.f32.mrf.mxu0
      %10157 = vmatprep.mubr.bf16.mxu0 0
      %10158 = vmatmul.mubr.bf16.gmra.mxu0 %v9985
      %v10159 = vpop.f32.mrf.mxu0
      %v10160 = vadd.f32 0.0, %v10159
      %v10161 = vpop.f32.mrf.mxu0
      %v10162 = vpop.f32.mrf.mxu0
      %v10163 = vadd.f32 0.0, %v10162
      %v10164 = vpop.f32.mrf.mxu0
      %10165 = vmatprep.mubr.bf16.mxu0 0
      %10166 = vmatmul.mubr.bf16.gmra.mxu0 %v9988
      %v10167 = vpop.f32.mrf.mxu0
      %v10168 = vadd.f32 0.0, %v10167
      %v10169 = vpop.f32.mrf.mxu0
      %v10170 = vpop.f32.mrf.mxu0
      %v10171 = vadd.f32 0.0, %v10170
      %v10172 = vpop.f32.mrf.mxu0
      %10173 = vmatprep.mubr.bf16.mxu0 0
      %10174 = vmatmul.mubr.bf16.gmra.mxu0 %v9991
      %v10175 = vpop.f32.mrf.mxu0
      %v10176 = vadd.f32 0.0, %v10175
      %v10177 = vpop.f32.mrf.mxu0
      %v10178 = vpop.f32.mrf.mxu0
      %v10179 = vadd.f32 0.0, %v10178
      %v10180 = vpop.f32.mrf.mxu0
      %10181 = vmatprep.mubr.bf16.mxu0 0
      %10182 = vmatmul.mubr.bf16.gmra.mxu0 %v9994
      %v10183 = vpop.f32.mrf.mxu0
      %v10184 = vadd.f32 0.0, %v10183
      %v10185 = vpop.f32.mrf.mxu0
      %v10186 = vpop.f32.mrf.mxu0
      %v10187 = vadd.f32 0.0, %v10186
      %v10188 = vpop.f32.mrf.mxu0
      %10189 = vmatprep.mubr.bf16.mxu0 0
      %10190 = vmatmul.mubr.bf16.gmra.mxu0 %v9997
      %v10191 = vpop.f32.mrf.mxu0
      %v10192 = vadd.f32 0.0, %v10191
      %v10193 = vpop.f32.mrf.mxu0
      %v10194 = vpop.f32.mrf.mxu0
      %v10195 = vadd.f32 0.0, %v10194
      %v10196 = vpop.f32.mrf.mxu0
      %10197 = vmatprep.mubr.bf16.mxu0 0
      %10198 = vmatmul.mubr.bf16.gmra.mxu0 %v10000
      %v10199 = vpop.f32.mrf.mxu0
      %v10200 = vadd.f32 0.0, %v10199
      %v10201 = vpop.f32.mrf.mxu0
      %v10202 = vpop.f32.mrf.mxu0
      %v10203 = vpop.f32.mrf.mxu0
      %10204 = vdwg.mxu0
      %v10205 = vadd.f32 %v9711, %v10040
      %v10206 = vadd.f32 %v9712, %v10043
      %v10207 = vadd.f32 %v9713, %v10048
      %v10208 = vadd.f32 %v9714, %v10051
      %v10209 = vadd.f32 %v9715, %v10056
      %v10210 = vadd.f32 %v9716, %v10059
      %v10211 = vadd.f32 %v9717, %v10064
      %v10212 = vadd.f32 %v9718, %v10067
      %v10213 = vadd.f32 %v9719, %v10072
      %v10214 = vadd.f32 %v9720, %v10075
      %v10215 = vadd.f32 %v9721, %v10080
      %v10216 = vadd.f32 %v9722, %v10083
      %v10217 = vadd.f32 %v9723, %v10088
      %v10218 = vadd.f32 %v9724, %v10091
      %v10219 = vadd.f32 %v9725, %v10096
      %v10220 = vadd.f32 %v9726, %v10099
      %v10221 = vadd.f32 %v9727, %v10104
      %v10222 = vadd.f32 %v9728, %v10107
      %v10223 = vadd.f32 %v9729, %v10112
      %v10224 = vadd.f32 %v9730, %v10115
      %v10225 = vadd.f32 %v9731, %v10120
      %v10226 = vadd.f32 %v9732, %v10123
      %v10227 = vadd.f32 %v9733, %v10128
      %v10228 = vadd.f32 %v9734, %v10131
      %v10229 = vadd.f32 %v9735, %v10136
      %v10230 = vadd.f32 %v9736, %v10139
      %v10231 = vadd.f32 %v9737, %v10144
      %v10232 = vadd.f32 %v9738, %v10147
      %v10233 = vadd.f32 %v9739, %v10152
      %v10234 = vadd.f32 %v9740, %v10155
      %v10235 = vadd.f32 %v9741, %v10160
      %v10236 = vadd.f32 %v9742, %v10163
      %v10237 = vadd.f32 %v9743, %v10168
      %v10238 = vadd.f32 %v9744, %v10171
      %v10239 = vadd.f32 %v9745, %v10176
      %v10240 = vadd.f32 %v9746, %v10179
      %v10241 = vadd.f32 %v9747, %v10184
      %v10242 = vadd.f32 %v9748, %v10187
      %v10243 = vadd.f32 %v9749, %v10192
      %v10244 = vadd.f32 %v9750, %v10195
      %v10245 = vadd.f32 %v9751, %v10200
      %v10246 = vld [vmem:[%s332 + $0xa8] sm:$0xf]
      %s10247 = scalar_lea.vmem %s3, 88
      %v10248 = vld [vmem:[%s10247] sm:$0xf]
      %v10250 = vunpack.c.l.b16 %v10246
      %v10251 = vpack.c.b16 %v10250, %v10250
      %v10253 = vshrl.u32 %v9877, 16
      %v10255 = vrot.slane %v10253, 1
      %v10256 = vshll.u32 %v9877, 16
      %v10258 = vrot.slane %v10256, 2
      %v10259 = vor.u32 %v10255, %v10258
      %v10261 = vshrl.u32 %v9878, 16
      %v10263 = vrot.slane %v10261, 1
      %v10264 = vshll.u32 %v9878, 16
      %v10266 = vrot.slane %v10264, 2
      %v10267 = vor.u32 %v10263, %v10266
      %v10268 = vsel %vm2032, %v10259, %v10267
      %v10270 = vshrl.u32 %v9879, 16
      %v10272 = vrot.slane %v10270, 1
      %v10273 = vshll.u32 %v9879, 16
      %v10275 = vrot.slane %v10273, 2
      %v10276 = vor.u32 %v10272, %v10275
      %v10277 = vsel %vm2032, %v10267, %v10276
      %v10279 = vshrl.u32 %v9880, 16
      %v10281 = vrot.slane %v10279, 1
      %v10282 = vshll.u32 %v9880, 16
      %v10284 = vrot.slane %v10282, 2
      %v10285 = vor.u32 %v10281, %v10284
      %v10286 = vsel %vm2032, %v10276, %v10285
      %v10288 = vshrl.u32 %v9881, 16
      %v10290 = vrot.slane %v10288, 1
      %v10291 = vshll.u32 %v9881, 16
      %v10293 = vrot.slane %v10291, 2
      %v10294 = vor.u32 %v10290, %v10293
      %v10295 = vsel %vm2032, %v10285, %v10294
      %v10297 = vshrl.u32 %v9882, 16
      %v10299 = vrot.slane %v10297, 1
      %v10300 = vshll.u32 %v9882, 16
      %v10302 = vrot.slane %v10300, 2
      %v10303 = vor.u32 %v10299, %v10302
      %v10304 = vsel %vm2032, %v10294, %v10303
      %v10306 = vshrl.u32 %v9883, 16
      %v10308 = vrot.slane %v10306, 1
      %v10309 = vshll.u32 %v9883, 16
      %v10311 = vrot.slane %v10309, 2
      %v10312 = vor.u32 %v10308, %v10311
      %v10313 = vsel %vm2032, %v10303, %v10312
      %v10315 = vshrl.u32 %v9884, 16
      %v10317 = vrot.slane %v10315, 1
      %v10318 = vshll.u32 %v9884, 16
      %v10320 = vrot.slane %v10318, 2
      %v10321 = vor.u32 %v10317, %v10320
      %v10322 = vsel %vm2032, %v10312, %v10321
      %v10324 = vshrl.u32 %v9885, 16
      %v10326 = vrot.slane %v10324, 1
      %v10327 = vshll.u32 %v9885, 16
      %v10329 = vrot.slane %v10327, 2
      %v10330 = vor.u32 %v10326, %v10329
      %v10331 = vsel %vm2032, %v10321, %v10330
      %v10333 = vshrl.u32 %v9886, 16
      %v10335 = vrot.slane %v10333, 1
      %v10336 = vshll.u32 %v9886, 16
      %v10338 = vrot.slane %v10336, 2
      %v10339 = vor.u32 %v10335, %v10338
      %v10340 = vsel %vm2032, %v10330, %v10339
      %v10342 = vshrl.u32 %v9887, 16
      %v10344 = vrot.slane %v10342, 1
      %v10345 = vshll.u32 %v9887, 16
      %v10347 = vrot.slane %v10345, 2
      %v10348 = vor.u32 %v10344, %v10347
      %v10349 = vsel %vm2032, %v10339, %v10348
      %v10351 = vshrl.u32 %v9888, 16
      %v10353 = vrot.slane %v10351, 1
      %v10354 = vshll.u32 %v9888, 16
      %v10356 = vrot.slane %v10354, 2
      %v10357 = vor.u32 %v10353, %v10356
      %v10358 = vsel %vm2032, %v10348, %v10357
      %v10360 = vshrl.u32 %v9889, 16
      %v10362 = vrot.slane %v10360, 1
      %v10363 = vshll.u32 %v9889, 16
      %v10365 = vrot.slane %v10363, 2
      %v10366 = vor.u32 %v10362, %v10365
      %v10367 = vsel %vm2032, %v10357, %v10366
      %v10369 = vshrl.u32 %v9890, 16
      %v10371 = vrot.slane %v10369, 1
      %v10372 = vshll.u32 %v9890, 16
      %v10374 = vrot.slane %v10372, 2
      %v10375 = vor.u32 %v10371, %v10374
      %v10376 = vsel %vm2032, %v10366, %v10375
      %v10378 = vshrl.u32 %v9891, 16
      %v10380 = vrot.slane %v10378, 1
      %v10381 = vshll.u32 %v9891, 16
      %v10383 = vrot.slane %v10381, 2
      %v10384 = vor.u32 %v10380, %v10383
      %v10385 = vsel %vm2032, %v10375, %v10384
      %v10387 = vshrl.u32 %v9892, 16
      %v10389 = vrot.slane %v10387, 1
      %v10390 = vshll.u32 %v9892, 16
      %v10392 = vrot.slane %v10390, 2
      %v10393 = vor.u32 %v10389, %v10392
      %v10394 = vsel %vm2032, %v10384, %v10393
      %v10396 = vshrl.u32 %v9893, 16
      %v10398 = vrot.slane %v10396, 1
      %v10399 = vshll.u32 %v9893, 16
      %v10401 = vrot.slane %v10399, 2
      %v10402 = vor.u32 %v10398, %v10401
      %v10403 = vsel %vm2032, %v10393, %v10402
      %v10405 = vshrl.u32 %v9894, 16
      %v10407 = vrot.slane %v10405, 1
      %v10408 = vshll.u32 %v9894, 16
      %v10410 = vrot.slane %v10408, 2
      %v10411 = vor.u32 %v10407, %v10410
      %v10412 = vsel %vm2032, %v10402, %v10411
      %v10414 = vshrl.u32 %v9895, 16
      %v10416 = vrot.slane %v10414, 1
      %v10417 = vshll.u32 %v9895, 16
      %v10419 = vrot.slane %v10417, 2
      %v10420 = vor.u32 %v10416, %v10419
      %v10421 = vsel %vm2032, %v10411, %v10420
      %v10423 = vshrl.u32 %v9896, 16
      %v10425 = vrot.slane %v10423, 1
      %v10426 = vshll.u32 %v9896, 16
      %v10428 = vrot.slane %v10426, 2
      %v10429 = vor.u32 %v10425, %v10428
      %v10430 = vsel %vm2032, %v10420, %v10429
      %v10432 = vshrl.u32 %v10251, 16
      %v10434 = vrot.slane %v10432, 1
      %v10435 = vshll.u32 %v10251, 16
      %v10437 = vrot.slane %v10435, 2
      %v10438 = vor.u32 %v10434, %v10437
      %v10439 = vsel %vm2032, %v10429, %v10438
      %v10441 = vsel %vm660, %v10268, 0
      %v10444 = vsel %vm660, %v10277, 0
      %v10447 = vsel %vm660, %v10286, 0
      %v10450 = vsel %vm660, %v10295, 0
      %v10453 = vsel %vm660, %v10304, 0
      %v10456 = vsel %vm660, %v10313, 0
      %v10459 = vsel %vm660, %v10322, 0
      %v10462 = vsel %vm660, %v10331, 0
      %v10465 = vsel %vm660, %v10340, 0
      %v10468 = vsel %vm660, %v10349, 0
      %v10471 = vsel %vm660, %v10358, 0
      %v10474 = vsel %vm660, %v10367, 0
      %v10477 = vsel %vm660, %v10376, 0
      %v10480 = vsel %vm660, %v10385, 0
      %v10483 = vsel %vm660, %v10394, 0
      %v10486 = vsel %vm660, %v10403, 0
      %v10489 = vsel %vm660, %v10412, 0
      %v10492 = vsel %vm660, %v10421, 0
      %v10495 = vsel %vm660, %v10430, 0
      %v10498 = vsel %vm660, %v10439, 0
      %v10501 = vsel %vm660, %v10438, 0
      %v10504 = vsel %vm724, %v10248, 0
      %10506 = vmatprep.subr.bf16.mxu0 0
      %10507 = vmatpush1.bf16.msra.mxu0 0
      %10508 = vmatprep.subr.bf16.mxu0 0
      %10509 = vmatpush1.bf16.msra.mxu0 0
      %10510 = vmatprep.subr.bf16.mxu0 0
      %10511 = vmatpush1.bf16.msra.mxu0 0
      %10512 = vmatprep.subr.bf16.mxu0 0
      %10513 = vmatpush1.bf16.msra.mxu0 0
      %10514 = vmatprep.subr.bf16.mxu0 0
      %10515 = vmatpush1.bf16.msra.mxu0 0
      %10516 = vmatprep.subr.bf16.mxu0 0
      %10517 = vmatpush1.bf16.msra.mxu0 0
      %10518 = vmatprep.subr.bf16.mxu0 0
      %10519 = vmatpush1.bf16.msra.mxu0 0
      %10520 = vmatprep.subr.bf16.mxu0 0
      %10521 = vmatpush1.bf16.msra.mxu0 %v10504
      %10522 = vmatprep.subr.bf16.mxu0 0
      %10523 = vmatpush2.bf16.msra.mxu0 0
      %10524 = vmatprep.subr.bf16.mxu0 0
      %10525 = vmatpush2.bf16.msra.mxu0 0
      %10526 = vmatprep.subr.bf16.mxu0 0
      %10527 = vmatpush2.bf16.msra.mxu0 0
      %10528 = vmatprep.subr.bf16.mxu0 0
      %10529 = vmatpush2.bf16.msra.mxu0 0
      %10530 = vmatprep.subr.bf16.mxu0 0
      %10531 = vmatpush2.bf16.msra.mxu0 0
      %10532 = vmatprep.subr.bf16.mxu0 0
      %10533 = vmatpush2.bf16.msra.mxu0 0
      %10534 = vmatprep.subr.bf16.mxu0 0
      %10535 = vmatpush2.bf16.msra.mxu0 0
      %10536 = vmatprep.subr.bf16.mxu0 0
      %10537 = vmatpush2.bf16.msra.mxu0 0
      %10538 = vmatprep.mubr.bf16.mxu0 0
      %10539 = vmatmul.mubr.bf16.gmra.mxu0 %v10441
      %v10540 = vpop.f32.mrf.mxu0
      %v10541 = vadd.f32 0.0, %v10540
      %v10542 = vpop.f32.mrf.mxu0
      %v10543 = vpop.f32.mrf.mxu0
      %v10544 = vadd.f32 0.0, %v10543
      %v10545 = vpop.f32.mrf.mxu0
      %10546 = vmatprep.mubr.bf16.mxu0 0
      %10547 = vmatmul.mubr.bf16.gmra.mxu0 %v10444
      %v10548 = vpop.f32.mrf.mxu0
      %v10549 = vadd.f32 0.0, %v10548
      %v10550 = vpop.f32.mrf.mxu0
      %v10551 = vpop.f32.mrf.mxu0
      %v10552 = vadd.f32 0.0, %v10551
      %v10553 = vpop.f32.mrf.mxu0
      %10554 = vmatprep.mubr.bf16.mxu0 0
      %10555 = vmatmul.mubr.bf16.gmra.mxu0 %v10447
      %v10556 = vpop.f32.mrf.mxu0
      %v10557 = vadd.f32 0.0, %v10556
      %v10558 = vpop.f32.mrf.mxu0
      %v10559 = vpop.f32.mrf.mxu0
      %v10560 = vadd.f32 0.0, %v10559
      %v10561 = vpop.f32.mrf.mxu0
      %10562 = vmatprep.mubr.bf16.mxu0 0
      %10563 = vmatmul.mubr.bf16.gmra.mxu0 %v10450
      %v10564 = vpop.f32.mrf.mxu0
      %v10565 = vadd.f32 0.0, %v10564
      %v10566 = vpop.f32.mrf.mxu0
      %v10567 = vpop.f32.mrf.mxu0
      %v10568 = vadd.f32 0.0, %v10567
      %v10569 = vpop.f32.mrf.mxu0
      %10570 = vmatprep.mubr.bf16.mxu0 0
      %10571 = vmatmul.mubr.bf16.gmra.mxu0 %v10453
      %v10572 = vpop.f32.mrf.mxu0
      %v10573 = vadd.f32 0.0, %v10572
      %v10574 = vpop.f32.mrf.mxu0
      %v10575 = vpop.f32.mrf.mxu0
      %v10576 = vadd.f32 0.0, %v10575
      %v10577 = vpop.f32.mrf.mxu0
      %10578 = vmatprep.mubr.bf16.mxu0 0
      %10579 = vmatmul.mubr.bf16.gmra.mxu0 %v10456
      %v10580 = vpop.f32.mrf.mxu0
      %v10581 = vadd.f32 0.0, %v10580
      %v10582 = vpop.f32.mrf.mxu0
      %v10583 = vpop.f32.mrf.mxu0
      %v10584 = vadd.f32 0.0, %v10583
      %v10585 = vpop.f32.mrf.mxu0
      %10586 = vmatprep.mubr.bf16.mxu0 0
      %10587 = vmatmul.mubr.bf16.gmra.mxu0 %v10459
      %v10588 = vpop.f32.mrf.mxu0
      %v10589 = vadd.f32 0.0, %v10588
      %v10590 = vpop.f32.mrf.mxu0
      %v10591 = vpop.f32.mrf.mxu0
      %v10592 = vadd.f32 0.0, %v10591
      %v10593 = vpop.f32.mrf.mxu0
      %10594 = vmatprep.mubr.bf16.mxu0 0
      %10595 = vmatmul.mubr.bf16.gmra.mxu0 %v10462
      %v10596 = vpop.f32.mrf.mxu0
      %v10597 = vadd.f32 0.0, %v10596
      %v10598 = vpop.f32.mrf.mxu0
      %v10599 = vpop.f32.mrf.mxu0
      %v10600 = vadd.f32 0.0, %v10599
      %v10601 = vpop.f32.mrf.mxu0
      %10602 = vmatprep.mubr.bf16.mxu0 0
      %10603 = vmatmul.mubr.bf16.gmra.mxu0 %v10465
      %v10604 = vpop.f32.mrf.mxu0
      %v10605 = vadd.f32 0.0, %v10604
      %v10606 = vpop.f32.mrf.mxu0
      %v10607 = vpop.f32.mrf.mxu0
      %v10608 = vadd.f32 0.0, %v10607
      %v10609 = vpop.f32.mrf.mxu0
      %10610 = vmatprep.mubr.bf16.mxu0 0
      %10611 = vmatmul.mubr.bf16.gmra.mxu0 %v10468
      %v10612 = vpop.f32.mrf.mxu0
      %v10613 = vadd.f32 0.0, %v10612
      %v10614 = vpop.f32.mrf.mxu0
      %v10615 = vpop.f32.mrf.mxu0
      %v10616 = vadd.f32 0.0, %v10615
      %v10617 = vpop.f32.mrf.mxu0
      %10618 = vmatprep.mubr.bf16.mxu0 0
      %10619 = vmatmul.mubr.bf16.gmra.mxu0 %v10471
      %v10620 = vpop.f32.mrf.mxu0
      %v10621 = vadd.f32 0.0, %v10620
      %v10622 = vpop.f32.mrf.mxu0
      %v10623 = vpop.f32.mrf.mxu0
      %v10624 = vadd.f32 0.0, %v10623
      %v10625 = vpop.f32.mrf.mxu0
      %10626 = vmatprep.mubr.bf16.mxu0 0
      %10627 = vmatmul.mubr.bf16.gmra.mxu0 %v10474
      %v10628 = vpop.f32.mrf.mxu0
      %v10629 = vadd.f32 0.0, %v10628
      %v10630 = vpop.f32.mrf.mxu0
      %v10631 = vpop.f32.mrf.mxu0
      %v10632 = vadd.f32 0.0, %v10631
      %v10633 = vpop.f32.mrf.mxu0
      %10634 = vmatprep.mubr.bf16.mxu0 0
      %10635 = vmatmul.mubr.bf16.gmra.mxu0 %v10477
      %v10636 = vpop.f32.mrf.mxu0
      %v10637 = vadd.f32 0.0, %v10636
      %v10638 = vpop.f32.mrf.mxu0
      %v10639 = vpop.f32.mrf.mxu0
      %v10640 = vadd.f32 0.0, %v10639
      %v10641 = vpop.f32.mrf.mxu0
      %10642 = vmatprep.mubr.bf16.mxu0 0
      %10643 = vmatmul.mubr.bf16.gmra.mxu0 %v10480
      %v10644 = vpop.f32.mrf.mxu0
      %v10645 = vadd.f32 0.0, %v10644
      %v10646 = vpop.f32.mrf.mxu0
      %v10647 = vpop.f32.mrf.mxu0
      %v10648 = vadd.f32 0.0, %v10647
      %v10649 = vpop.f32.mrf.mxu0
      %10650 = vmatprep.mubr.bf16.mxu0 0
      %10651 = vmatmul.mubr.bf16.gmra.mxu0 %v10483
      %v10652 = vpop.f32.mrf.mxu0
      %v10653 = vadd.f32 0.0, %v10652
      %v10654 = vpop.f32.mrf.mxu0
      %v10655 = vpop.f32.mrf.mxu0
      %v10656 = vadd.f32 0.0, %v10655
      %v10657 = vpop.f32.mrf.mxu0
      %10658 = vmatprep.mubr.bf16.mxu0 0
      %10659 = vmatmul.mubr.bf16.gmra.mxu0 %v10486
      %v10660 = vpop.f32.mrf.mxu0
      %v10661 = vadd.f32 0.0, %v10660
      %v10662 = vpop.f32.mrf.mxu0
      %v10663 = vpop.f32.mrf.mxu0
      %v10664 = vadd.f32 0.0, %v10663
      %v10665 = vpop.f32.mrf.mxu0
      %10666 = vmatprep.mubr.bf16.mxu0 0
      %10667 = vmatmul.mubr.bf16.gmra.mxu0 %v10489
      %v10668 = vpop.f32.mrf.mxu0
      %v10669 = vadd.f32 0.0, %v10668
      %v10670 = vpop.f32.mrf.mxu0
      %v10671 = vpop.f32.mrf.mxu0
      %v10672 = vadd.f32 0.0, %v10671
      %v10673 = vpop.f32.mrf.mxu0
      %10674 = vmatprep.mubr.bf16.mxu0 0
      %10675 = vmatmul.mubr.bf16.gmra.mxu0 %v10492
      %v10676 = vpop.f32.mrf.mxu0
      %v10677 = vadd.f32 0.0, %v10676
      %v10678 = vpop.f32.mrf.mxu0
      %v10679 = vpop.f32.mrf.mxu0
      %v10680 = vadd.f32 0.0, %v10679
      %v10681 = vpop.f32.mrf.mxu0
      %10682 = vmatprep.mubr.bf16.mxu0 0
      %10683 = vmatmul.mubr.bf16.gmra.mxu0 %v10495
      %v10684 = vpop.f32.mrf.mxu0
      %v10685 = vadd.f32 0.0, %v10684
      %v10686 = vpop.f32.mrf.mxu0
      %v10687 = vpop.f32.mrf.mxu0
      %v10688 = vadd.f32 0.0, %v10687
      %v10689 = vpop.f32.mrf.mxu0
      %10690 = vmatprep.mubr.bf16.mxu0 0
      %10691 = vmatmul.mubr.bf16.gmra.mxu0 %v10498
      %v10692 = vpop.f32.mrf.mxu0
      %v10693 = vadd.f32 0.0, %v10692
      %v10694 = vpop.f32.mrf.mxu0
      %v10695 = vpop.f32.mrf.mxu0
      %v10696 = vadd.f32 0.0, %v10695
      %v10697 = vpop.f32.mrf.mxu0
      %10698 = vmatprep.mubr.bf16.mxu0 0
      %10699 = vmatmul.mubr.bf16.gmra.mxu0 %v10501
      %v10700 = vpop.f32.mrf.mxu0
      %v10701 = vadd.f32 0.0, %v10700
      %v10702 = vpop.f32.mrf.mxu0
      %v10703 = vpop.f32.mrf.mxu0
      %v10704 = vpop.f32.mrf.mxu0
      %10705 = vdwg.mxu0
      %v10706 = vadd.f32 %v10205, %v10541
      %v10707 = vadd.f32 %v10206, %v10544
      %v10708 = vadd.f32 %v10207, %v10549
      %v10709 = vadd.f32 %v10208, %v10552
      %v10710 = vadd.f32 %v10209, %v10557
      %v10711 = vadd.f32 %v10210, %v10560
      %v10712 = vadd.f32 %v10211, %v10565
      %v10713 = vadd.f32 %v10212, %v10568
      %v10714 = vadd.f32 %v10213, %v10573
      %v10715 = vadd.f32 %v10214, %v10576
      %v10716 = vadd.f32 %v10215, %v10581
      %v10717 = vadd.f32 %v10216, %v10584
      %v10718 = vadd.f32 %v10217, %v10589
      %v10719 = vadd.f32 %v10218, %v10592
      %v10720 = vadd.f32 %v10219, %v10597
      %v10721 = vadd.f32 %v10220, %v10600
      %v10722 = vadd.f32 %v10221, %v10605
      %v10723 = vadd.f32 %v10222, %v10608
      %v10724 = vadd.f32 %v10223, %v10613
      %v10725 = vadd.f32 %v10224, %v10616
      %v10726 = vadd.f32 %v10225, %v10621
      %v10727 = vadd.f32 %v10226, %v10624
      %v10728 = vadd.f32 %v10227, %v10629
      %v10729 = vadd.f32 %v10228, %v10632
      %v10730 = vadd.f32 %v10229, %v10637
      %v10731 = vadd.f32 %v10230, %v10640
      %v10732 = vadd.f32 %v10231, %v10645
      %v10733 = vadd.f32 %v10232, %v10648
      %v10734 = vadd.f32 %v10233, %v10653
      %v10735 = vadd.f32 %v10234, %v10656
      %v10736 = vadd.f32 %v10235, %v10661
      %v10737 = vadd.f32 %v10236, %v10664
      %v10738 = vadd.f32 %v10237, %v10669
      %v10739 = vadd.f32 %v10238, %v10672
      %v10740 = vadd.f32 %v10239, %v10677
      %v10741 = vadd.f32 %v10240, %v10680
      %v10742 = vadd.f32 %v10241, %v10685
      %v10743 = vadd.f32 %v10242, %v10688
      %v10744 = vadd.f32 %v10243, %v10693
      %v10745 = vadd.f32 %v10244, %v10696
      %v10746 = vadd.f32 %v10245, %v10701
      %v10747 = vld [vmem:[%s332 + $0x8] sm:$0xc]
      %s10748 = scalar_lea.vmem %s3, 92
      %v10749 = vld [vmem:[%s10748] sm:$0xf]
      %v10751 = vunpack.c.l.b16 %v10747
      %v10752 = vpack.c.b16 %v9837, %v10751
      %v10753 = vrot.slane %v10752, 2
      %v10754 = vrot.slane %v9878, 2
      %v10755 = vsel %vm2534, %v10753, %v10754
      %v10756 = vrot.slane %v9879, 2
      %v10757 = vsel %vm2534, %v10754, %v10756
      %v10758 = vrot.slane %v9880, 2
      %v10759 = vsel %vm2534, %v10756, %v10758
      %v10760 = vrot.slane %v9881, 2
      %v10761 = vsel %vm2534, %v10758, %v10760
      %v10762 = vrot.slane %v9882, 2
      %v10763 = vsel %vm2534, %v10760, %v10762
      %v10764 = vrot.slane %v9883, 2
      %v10765 = vsel %vm2534, %v10762, %v10764
      %v10766 = vrot.slane %v9884, 2
      %v10767 = vsel %vm2534, %v10764, %v10766
      %v10768 = vrot.slane %v9885, 2
      %v10769 = vsel %vm2534, %v10766, %v10768
      %v10770 = vrot.slane %v9886, 2
      %v10771 = vsel %vm2534, %v10768, %v10770
      %v10772 = vrot.slane %v9887, 2
      %v10773 = vsel %vm2534, %v10770, %v10772
      %v10774 = vrot.slane %v9888, 2
      %v10775 = vsel %vm2534, %v10772, %v10774
      %v10776 = vrot.slane %v9889, 2
      %v10777 = vsel %vm2534, %v10774, %v10776
      %v10778 = vrot.slane %v9890, 2
      %v10779 = vsel %vm2534, %v10776, %v10778
      %v10780 = vrot.slane %v9891, 2
      %v10781 = vsel %vm2534, %v10778, %v10780
      %v10782 = vrot.slane %v9892, 2
      %v10783 = vsel %vm2534, %v10780, %v10782
      %v10784 = vrot.slane %v9893, 2
      %v10785 = vsel %vm2534, %v10782, %v10784
      %v10786 = vrot.slane %v9894, 2
      %v10787 = vsel %vm2534, %v10784, %v10786
      %v10788 = vrot.slane %v9895, 2
      %v10789 = vsel %vm2534, %v10786, %v10788
      %v10790 = vrot.slane %v9896, 2
      %v10791 = vsel %vm2534, %v10788, %v10790
      %v10792 = vrot.slane %v10251, 2
      %v10793 = vsel %vm2534, %v10790, %v10792
      %v10795 = vsel %vm660, %v10755, 0
      %v10798 = vsel %vm660, %v10757, 0
      %v10801 = vsel %vm660, %v10759, 0
      %v10804 = vsel %vm660, %v10761, 0
      %v10807 = vsel %vm660, %v10763, 0
      %v10810 = vsel %vm660, %v10765, 0
      %v10813 = vsel %vm660, %v10767, 0
      %v10816 = vsel %vm660, %v10769, 0
      %v10819 = vsel %vm660, %v10771, 0
      %v10822 = vsel %vm660, %v10773, 0
      %v10825 = vsel %vm660, %v10775, 0
      %v10828 = vsel %vm660, %v10777, 0
      %v10831 = vsel %vm660, %v10779, 0
      %v10834 = vsel %vm660, %v10781, 0
      %v10837 = vsel %vm660, %v10783, 0
      %v10840 = vsel %vm660, %v10785, 0
      %v10843 = vsel %vm660, %v10787, 0
      %v10846 = vsel %vm660, %v10789, 0
      %v10849 = vsel %vm660, %v10791, 0
      %v10852 = vsel %vm660, %v10793, 0
      %v10855 = vsel %vm660, %v10792, 0
      %v10858 = vsel %vm724, %v10749, 0
      %10860 = vmatprep.subr.bf16.mxu0 0
      %10861 = vmatpush1.bf16.msra.mxu0 0
      %10862 = vmatprep.subr.bf16.mxu0 0
      %10863 = vmatpush1.bf16.msra.mxu0 0
      %10864 = vmatprep.subr.bf16.mxu0 0
      %10865 = vmatpush1.bf16.msra.mxu0 0
      %10866 = vmatprep.subr.bf16.mxu0 0
      %10867 = vmatpush1.bf16.msra.mxu0 0
      %10868 = vmatprep.subr.bf16.mxu0 0
      %10869 = vmatpush1.bf16.msra.mxu0 0
      %10870 = vmatprep.subr.bf16.mxu0 0
      %10871 = vmatpush1.bf16.msra.mxu0 0
      %10872 = vmatprep.subr.bf16.mxu0 0
      %10873 = vmatpush1.bf16.msra.mxu0 0
      %10874 = vmatprep.subr.bf16.mxu0 0
      %10875 = vmatpush1.bf16.msra.mxu0 %v10858
      %10876 = vmatprep.subr.bf16.mxu0 0
      %10877 = vmatpush2.bf16.msra.mxu0 0
      %10878 = vmatprep.subr.bf16.mxu0 0
      %10879 = vmatpush2.bf16.msra.mxu0 0
      %10880 = vmatprep.subr.bf16.mxu0 0
      %10881 = vmatpush2.bf16.msra.mxu0 0
      %10882 = vmatprep.subr.bf16.mxu0 0
      %10883 = vmatpush2.bf16.msra.mxu0 0
      %10884 = vmatprep.subr.bf16.mxu0 0
      %10885 = vmatpush2.bf16.msra.mxu0 0
      %10886 = vmatprep.subr.bf16.mxu0 0
      %10887 = vmatpush2.bf16.msra.mxu0 0
      %10888 = vmatprep.subr.bf16.mxu0 0
      %10889 = vmatpush2.bf16.msra.mxu0 0
      %10890 = vmatprep.subr.bf16.mxu0 0
      %10891 = vmatpush2.bf16.msra.mxu0 0
      %10892 = vmatprep.mubr.bf16.mxu0 0
      %10893 = vmatmul.mubr.bf16.gmra.mxu0 %v10795
      %v10894 = vpop.f32.mrf.mxu0
      %v10895 = vadd.f32 0.0, %v10894
      %v10896 = vpop.f32.mrf.mxu0
      %v10897 = vpop.f32.mrf.mxu0
      %v10898 = vadd.f32 0.0, %v10897
      %v10899 = vpop.f32.mrf.mxu0
      %10900 = vmatprep.mubr.bf16.mxu0 0
      %10901 = vmatmul.mubr.bf16.gmra.mxu0 %v10798
      %v10902 = vpop.f32.mrf.mxu0
      %v10903 = vadd.f32 0.0, %v10902
      %v10904 = vpop.f32.mrf.mxu0
      %v10905 = vpop.f32.mrf.mxu0
      %v10906 = vadd.f32 0.0, %v10905
      %v10907 = vpop.f32.mrf.mxu0
      %10908 = vmatprep.mubr.bf16.mxu0 0
      %10909 = vmatmul.mubr.bf16.gmra.mxu0 %v10801
      %v10910 = vpop.f32.mrf.mxu0
      %v10911 = vadd.f32 0.0, %v10910
      %v10912 = vpop.f32.mrf.mxu0
      %v10913 = vpop.f32.mrf.mxu0
      %v10914 = vadd.f32 0.0, %v10913
      %v10915 = vpop.f32.mrf.mxu0
      %10916 = vmatprep.mubr.bf16.mxu0 0
      %10917 = vmatmul.mubr.bf16.gmra.mxu0 %v10804
      %v10918 = vpop.f32.mrf.mxu0
      %v10919 = vadd.f32 0.0, %v10918
      %v10920 = vpop.f32.mrf.mxu0
      %v10921 = vpop.f32.mrf.mxu0
      %v10922 = vadd.f32 0.0, %v10921
      %v10923 = vpop.f32.mrf.mxu0
      %10924 = vmatprep.mubr.bf16.mxu0 0
      %10925 = vmatmul.mubr.bf16.gmra.mxu0 %v10807
      %v10926 = vpop.f32.mrf.mxu0
      %v10927 = vadd.f32 0.0, %v10926
      %v10928 = vpop.f32.mrf.mxu0
      %v10929 = vpop.f32.mrf.mxu0
      %v10930 = vadd.f32 0.0, %v10929
      %v10931 = vpop.f32.mrf.mxu0
      %10932 = vmatprep.mubr.bf16.mxu0 0
      %10933 = vmatmul.mubr.bf16.gmra.mxu0 %v10810
      %v10934 = vpop.f32.mrf.mxu0
      %v10935 = vadd.f32 0.0, %v10934
      %v10936 = vpop.f32.mrf.mxu0
      %v10937 = vpop.f32.mrf.mxu0
      %v10938 = vadd.f32 0.0, %v10937
      %v10939 = vpop.f32.mrf.mxu0
      %10940 = vmatprep.mubr.bf16.mxu0 0
      %10941 = vmatmul.mubr.bf16.gmra.mxu0 %v10813
      %v10942 = vpop.f32.mrf.mxu0
      %v10943 = vadd.f32 0.0, %v10942
      %v10944 = vpop.f32.mrf.mxu0
      %v10945 = vpop.f32.mrf.mxu0
      %v10946 = vadd.f32 0.0, %v10945
      %v10947 = vpop.f32.mrf.mxu0
      %10948 = vmatprep.mubr.bf16.mxu0 0
      %10949 = vmatmul.mubr.bf16.gmra.mxu0 %v10816
      %v10950 = vpop.f32.mrf.mxu0
      %v10951 = vadd.f32 0.0, %v10950
      %v10952 = vpop.f32.mrf.mxu0
      %v10953 = vpop.f32.mrf.mxu0
      %v10954 = vadd.f32 0.0, %v10953
      %v10955 = vpop.f32.mrf.mxu0
      %10956 = vmatprep.mubr.bf16.mxu0 0
      %10957 = vmatmul.mubr.bf16.gmra.mxu0 %v10819
      %v10958 = vpop.f32.mrf.mxu0
      %v10959 = vadd.f32 0.0, %v10958
      %v10960 = vpop.f32.mrf.mxu0
      %v10961 = vpop.f32.mrf.mxu0
      %v10962 = vadd.f32 0.0, %v10961
      %v10963 = vpop.f32.mrf.mxu0
      %10964 = vmatprep.mubr.bf16.mxu0 0
      %10965 = vmatmul.mubr.bf16.gmra.mxu0 %v10822
      %v10966 = vpop.f32.mrf.mxu0
      %v10967 = vadd.f32 0.0, %v10966
      %v10968 = vpop.f32.mrf.mxu0
      %v10969 = vpop.f32.mrf.mxu0
      %v10970 = vadd.f32 0.0, %v10969
      %v10971 = vpop.f32.mrf.mxu0
      %10972 = vmatprep.mubr.bf16.mxu0 0
      %10973 = vmatmul.mubr.bf16.gmra.mxu0 %v10825
      %v10974 = vpop.f32.mrf.mxu0
      %v10975 = vadd.f32 0.0, %v10974
      %v10976 = vpop.f32.mrf.mxu0
      %v10977 = vpop.f32.mrf.mxu0
      %v10978 = vadd.f32 0.0, %v10977
      %v10979 = vpop.f32.mrf.mxu0
      %10980 = vmatprep.mubr.bf16.mxu0 0
      %10981 = vmatmul.mubr.bf16.gmra.mxu0 %v10828
      %v10982 = vpop.f32.mrf.mxu0
      %v10983 = vadd.f32 0.0, %v10982
      %v10984 = vpop.f32.mrf.mxu0
      %v10985 = vpop.f32.mrf.mxu0
      %v10986 = vadd.f32 0.0, %v10985
      %v10987 = vpop.f32.mrf.mxu0
      %10988 = vmatprep.mubr.bf16.mxu0 0
      %10989 = vmatmul.mubr.bf16.gmra.mxu0 %v10831
      %v10990 = vpop.f32.mrf.mxu0
      %v10991 = vadd.f32 0.0, %v10990
      %v10992 = vpop.f32.mrf.mxu0
      %v10993 = vpop.f32.mrf.mxu0
      %v10994 = vadd.f32 0.0, %v10993
      %v10995 = vpop.f32.mrf.mxu0
      %10996 = vmatprep.mubr.bf16.mxu0 0
      %10997 = vmatmul.mubr.bf16.gmra.mxu0 %v10834
      %v10998 = vpop.f32.mrf.mxu0
      %v10999 = vadd.f32 0.0, %v10998
      %v11000 = vpop.f32.mrf.mxu0
      %v11001 = vpop.f32.mrf.mxu0
      %v11002 = vadd.f32 0.0, %v11001
      %v11003 = vpop.f32.mrf.mxu0
      %11004 = vmatprep.mubr.bf16.mxu0 0
      %11005 = vmatmul.mubr.bf16.gmra.mxu0 %v10837
      %v11006 = vpop.f32.mrf.mxu0
      %v11007 = vadd.f32 0.0, %v11006
      %v11008 = vpop.f32.mrf.mxu0
      %v11009 = vpop.f32.mrf.mxu0
      %v11010 = vadd.f32 0.0, %v11009
      %v11011 = vpop.f32.mrf.mxu0
      %11012 = vmatprep.mubr.bf16.mxu0 0
      %11013 = vmatmul.mubr.bf16.gmra.mxu0 %v10840
      %v11014 = vpop.f32.mrf.mxu0
      %v11015 = vadd.f32 0.0, %v11014
      %v11016 = vpop.f32.mrf.mxu0
      %v11017 = vpop.f32.mrf.mxu0
      %v11018 = vadd.f32 0.0, %v11017
      %v11019 = vpop.f32.mrf.mxu0
      %11020 = vmatprep.mubr.bf16.mxu0 0
      %11021 = vmatmul.mubr.bf16.gmra.mxu0 %v10843
      %v11022 = vpop.f32.mrf.mxu0
      %v11023 = vadd.f32 0.0, %v11022
      %v11024 = vpop.f32.mrf.mxu0
      %v11025 = vpop.f32.mrf.mxu0
      %v11026 = vadd.f32 0.0, %v11025
      %v11027 = vpop.f32.mrf.mxu0
      %11028 = vmatprep.mubr.bf16.mxu0 0
      %11029 = vmatmul.mubr.bf16.gmra.mxu0 %v10846
      %v11030 = vpop.f32.mrf.mxu0
      %v11031 = vadd.f32 0.0, %v11030
      %v11032 = vpop.f32.mrf.mxu0
      %v11033 = vpop.f32.mrf.mxu0
      %v11034 = vadd.f32 0.0, %v11033
      %v11035 = vpop.f32.mrf.mxu0
      %11036 = vmatprep.mubr.bf16.mxu0 0
      %11037 = vmatmul.mubr.bf16.gmra.mxu0 %v10849
      %v11038 = vpop.f32.mrf.mxu0
      %v11039 = vadd.f32 0.0, %v11038
      %v11040 = vpop.f32.mrf.mxu0
      %v11041 = vpop.f32.mrf.mxu0
      %v11042 = vadd.f32 0.0, %v11041
      %v11043 = vpop.f32.mrf.mxu0
      %11044 = vmatprep.mubr.bf16.mxu0 0
      %11045 = vmatmul.mubr.bf16.gmra.mxu0 %v10852
      %v11046 = vpop.f32.mrf.mxu0
      %v11047 = vadd.f32 0.0, %v11046
      %v11048 = vpop.f32.mrf.mxu0
      %v11049 = vpop.f32.mrf.mxu0
      %v11050 = vadd.f32 0.0, %v11049
      %v11051 = vpop.f32.mrf.mxu0
      %11052 = vmatprep.mubr.bf16.mxu0 0
      %11053 = vmatmul.mubr.bf16.gmra.mxu0 %v10855
      %v11054 = vpop.f32.mrf.mxu0
      %v11055 = vadd.f32 0.0, %v11054
      %v11056 = vpop.f32.mrf.mxu0
      %v11057 = vpop.f32.mrf.mxu0
      %v11058 = vpop.f32.mrf.mxu0
      %11059 = vdwg.mxu0
      %v11060 = vadd.f32 %v10706, %v10895
      %v11061 = vadd.f32 %v10707, %v10898
      %v11062 = vadd.f32 %v10708, %v10903
      %v11063 = vadd.f32 %v10709, %v10906
      %v11064 = vadd.f32 %v10710, %v10911
      %v11065 = vadd.f32 %v10711, %v10914
      %v11066 = vadd.f32 %v10712, %v10919
      %v11067 = vadd.f32 %v10713, %v10922
      %v11068 = vadd.f32 %v10714, %v10927
      %v11069 = vadd.f32 %v10715, %v10930
      %v11070 = vadd.f32 %v10716, %v10935
      %v11071 = vadd.f32 %v10717, %v10938
      %v11072 = vadd.f32 %v10718, %v10943
      %v11073 = vadd.f32 %v10719, %v10946
      %v11074 = vadd.f32 %v10720, %v10951
      %v11075 = vadd.f32 %v10721, %v10954
      %v11076 = vadd.f32 %v10722, %v10959
      %v11077 = vadd.f32 %v10723, %v10962
      %v11078 = vadd.f32 %v10724, %v10967
      %v11079 = vadd.f32 %v10725, %v10970
      %v11080 = vadd.f32 %v10726, %v10975
      %v11081 = vadd.f32 %v10727, %v10978
      %v11082 = vadd.f32 %v10728, %v10983
      %v11083 = vadd.f32 %v10729, %v10986
      %v11084 = vadd.f32 %v10730, %v10991
      %v11085 = vadd.f32 %v10731, %v10994
      %v11086 = vadd.f32 %v10732, %v10999
      %v11087 = vadd.f32 %v10733, %v11002
      %v11088 = vadd.f32 %v10734, %v11007
      %v11089 = vadd.f32 %v10735, %v11010
      %v11090 = vadd.f32 %v10736, %v11015
      %v11091 = vadd.f32 %v10737, %v11018
      %v11092 = vadd.f32 %v10738, %v11023
      %v11093 = vadd.f32 %v10739, %v11026
      %v11094 = vadd.f32 %v10740, %v11031
      %v11095 = vadd.f32 %v10741, %v11034
      %v11096 = vadd.f32 %v10742, %v11039
      %v11097 = vadd.f32 %v10743, %v11042
      %v11098 = vadd.f32 %v10744, %v11047
      %v11099 = vadd.f32 %v10745, %v11050
      %v11100 = vadd.f32 %v10746, %v11055
      %v11101 = vld [vmem:[%s332 + $0x10] sm:$0xc]
      %v11102 = vld [vmem:[%s332 + $0x14] sm:$0xf]
      %v11103 = vld [vmem:[%s332 + $0x18] sm:$0xf]
      %v11104 = vld [vmem:[%s332 + $0x1c] sm:$0xf]
      %v11105 = vld [vmem:[%s332 + $0x20] sm:$0xf]
      %v11106 = vld [vmem:[%s332 + $0x24] sm:$0xf]
      %v11107 = vld [vmem:[%s332 + $0x28] sm:$0xf]
      %v11108 = vld [vmem:[%s332 + $0x2c] sm:$0xf]
      %v11109 = vld [vmem:[%s332 + $0x30] sm:$0xf]
      %v11110 = vld [vmem:[%s332 + $0x34] sm:$0xf]
      %v11111 = vld [vmem:[%s332 + $0x38] sm:$0xf]
      %v11112 = vld [vmem:[%s332 + $0x3c] sm:$0xf]
      %v11113 = vld [vmem:[%s332 + $0x40] sm:$0xf]
      %v11114 = vld [vmem:[%s332 + $0x44] sm:$0xf]
      %v11115 = vld [vmem:[%s332 + $0x48] sm:$0xf]
      %v11116 = vld [vmem:[%s332 + $0x4c] sm:$0xf]
      %v11117 = vld [vmem:[%s332 + $0x50] sm:$0xf]
      %v11118 = vld [vmem:[%s332 + $0x54] sm:$0xf]
      %v11119 = vld [vmem:[%s332 + $0x58] sm:$0xf]
      %v11120 = vld [vmem:[%s332 + $0x5c] sm:$0xf]
      %v11121 = vld [vmem:[%s332 + $0x60] sm:$0xf]
      %v11122 = vld [vmem:[%s332 + $0x64] sm:$0xf]
      %v11123 = vld [vmem:[%s332 + $0x68] sm:$0xf]
      %v11124 = vld [vmem:[%s332 + $0x6c] sm:$0xf]
      %v11125 = vld [vmem:[%s332 + $0x70] sm:$0xf]
      %v11126 = vld [vmem:[%s332 + $0x74] sm:$0xf]
      %v11127 = vld [vmem:[%s332 + $0x78] sm:$0xf]
      %v11128 = vld [vmem:[%s332 + $0x7c] sm:$0xf]
      %v11129 = vld [vmem:[%s332 + $0x80] sm:$0xf]
      %v11130 = vld [vmem:[%s332 + $0x84] sm:$0xf]
      %v11131 = vld [vmem:[%s332 + $0x88] sm:$0xf]
      %v11132 = vld [vmem:[%s332 + $0x8c] sm:$0xf]
      %v11133 = vld [vmem:[%s332 + $0x90] sm:$0xf]
      %v11134 = vld [vmem:[%s332 + $0x94] sm:$0xf]
      %v11135 = vld [vmem:[%s332 + $0x98] sm:$0xf]
      %v11136 = vld [vmem:[%s332 + $0x9c] sm:$0xf]
      %v11137 = vld [vmem:[%s332 + $0xa0] sm:$0xf]
      %v11138 = vld [vmem:[%s332 + $0xa4] sm:$0xf]
      %v11139 = vld [vmem:[%s332 + $0xa8] sm:$0xf]
      %v11140 = vld [vmem:[%s332 + $0xac] sm:$0xf]
      %v11141 = vld [vmem:[%s332 + $0xb0] sm:$0xf]
      %s11142 = scalar_lea.vmem %s3, 96
      %v11143 = vld [vmem:[%s11142] sm:$0xf]
      %v11185 = vunpack.c.l.b16 %v11101
      %v11186 = vunpack.c.l.b16 %v11102
      %v11187 = vunpack.c.l.b16 %v11103
      %v11188 = vunpack.c.l.b16 %v11104
      %v11189 = vunpack.c.l.b16 %v11105
      %v11190 = vunpack.c.l.b16 %v11106
      %v11191 = vunpack.c.l.b16 %v11107
      %v11192 = vunpack.c.l.b16 %v11108
      %v11193 = vunpack.c.l.b16 %v11109
      %v11194 = vunpack.c.l.b16 %v11110
      %v11195 = vunpack.c.l.b16 %v11111
      %v11196 = vunpack.c.l.b16 %v11112
      %v11197 = vunpack.c.l.b16 %v11113
      %v11198 = vunpack.c.l.b16 %v11114
      %v11199 = vunpack.c.l.b16 %v11115
      %v11200 = vunpack.c.l.b16 %v11116
      %v11201 = vunpack.c.l.b16 %v11117
      %v11202 = vunpack.c.l.b16 %v11118
      %v11203 = vunpack.c.l.b16 %v11119
      %v11204 = vunpack.c.l.b16 %v11120
      %v11205 = vunpack.c.l.b16 %v11121
      %v11206 = vunpack.c.l.b16 %v11122
      %v11207 = vunpack.c.l.b16 %v11123
      %v11208 = vunpack.c.l.b16 %v11124
      %v11209 = vunpack.c.l.b16 %v11125
      %v11210 = vunpack.c.l.b16 %v11126
      %v11211 = vunpack.c.l.b16 %v11127
      %v11212 = vunpack.c.l.b16 %v11128
      %v11213 = vunpack.c.l.b16 %v11129
      %v11214 = vunpack.c.l.b16 %v11130
      %v11215 = vunpack.c.l.b16 %v11131
      %v11216 = vunpack.c.l.b16 %v11132
      %v11217 = vunpack.c.l.b16 %v11133
      %v11218 = vunpack.c.l.b16 %v11134
      %v11219 = vunpack.c.l.b16 %v11135
      %v11220 = vunpack.c.l.b16 %v11136
      %v11221 = vunpack.c.l.b16 %v11137
      %v11222 = vunpack.c.l.b16 %v11138
      %v11223 = vunpack.c.l.b16 %v11139
      %v11224 = vunpack.c.l.b16 %v11140
      %v11225 = vunpack.c.l.b16 %v11141
      %v11226 = vpack.c.b16 %v11186, %v11185
      %v11227 = vpack.c.b16 %v11188, %v11187
      %v11228 = vpack.c.b16 %v11190, %v11189
      %v11229 = vpack.c.b16 %v11192, %v11191
      %v11230 = vpack.c.b16 %v11194, %v11193
      %v11231 = vpack.c.b16 %v11196, %v11195
      %v11232 = vpack.c.b16 %v11198, %v11197
      %v11233 = vpack.c.b16 %v11200, %v11199
      %v11234 = vpack.c.b16 %v11202, %v11201
      %v11235 = vpack.c.b16 %v11204, %v11203
      %v11236 = vpack.c.b16 %v11206, %v11205
      %v11237 = vpack.c.b16 %v11208, %v11207
      %v11238 = vpack.c.b16 %v11210, %v11209
      %v11239 = vpack.c.b16 %v11212, %v11211
      %v11240 = vpack.c.b16 %v11214, %v11213
      %v11241 = vpack.c.b16 %v11216, %v11215
      %v11242 = vpack.c.b16 %v11218, %v11217
      %v11243 = vpack.c.b16 %v11220, %v11219
      %v11244 = vpack.c.b16 %v11222, %v11221
      %v11245 = vpack.c.b16 %v11224, %v11223
      %v11246 = vpack.c.b16 %v11225, %v11225
      %v11247 = vrot.slane %v11226, 2
      %v11248 = vrot.slane %v11227, 2
      %v11249 = vsel %vm2534, %v11247, %v11248
      %v11250 = vrot.slane %v11228, 2
      %v11251 = vsel %vm2534, %v11248, %v11250
      %v11252 = vrot.slane %v11229, 2
      %v11253 = vsel %vm2534, %v11250, %v11252
      %v11254 = vrot.slane %v11230, 2
      %v11255 = vsel %vm2534, %v11252, %v11254
      %v11256 = vrot.slane %v11231, 2
      %v11257 = vsel %vm2534, %v11254, %v11256
      %v11258 = vrot.slane %v11232, 2
      %v11259 = vsel %vm2534, %v11256, %v11258
      %v11260 = vrot.slane %v11233, 2
      %v11261 = vsel %vm2534, %v11258, %v11260
      %v11262 = vrot.slane %v11234, 2
      %v11263 = vsel %vm2534, %v11260, %v11262
      %v11264 = vrot.slane %v11235, 2
      %v11265 = vsel %vm2534, %v11262, %v11264
      %v11266 = vrot.slane %v11236, 2
      %v11267 = vsel %vm2534, %v11264, %v11266
      %v11268 = vrot.slane %v11237, 2
      %v11269 = vsel %vm2534, %v11266, %v11268
      %v11270 = vrot.slane %v11238, 2
      %v11271 = vsel %vm2534, %v11268, %v11270
      %v11272 = vrot.slane %v11239, 2
      %v11273 = vsel %vm2534, %v11270, %v11272
      %v11274 = vrot.slane %v11240, 2
      %v11275 = vsel %vm2534, %v11272, %v11274
      %v11276 = vrot.slane %v11241, 2
      %v11277 = vsel %vm2534, %v11274, %v11276
      %v11278 = vrot.slane %v11242, 2
      %v11279 = vsel %vm2534, %v11276, %v11278
      %v11280 = vrot.slane %v11243, 2
      %v11281 = vsel %vm2534, %v11278, %v11280
      %v11282 = vrot.slane %v11244, 2
      %v11283 = vsel %vm2534, %v11280, %v11282
      %v11284 = vrot.slane %v11245, 2
      %v11285 = vsel %vm2534, %v11282, %v11284
      %v11286 = vrot.slane %v11246, 2
      %v11287 = vsel %vm2534, %v11284, %v11286
      %v11289 = vsel %vm660, %v11249, 0
      %v11292 = vsel %vm660, %v11251, 0
      %v11295 = vsel %vm660, %v11253, 0
      %v11298 = vsel %vm660, %v11255, 0
      %v11301 = vsel %vm660, %v11257, 0
      %v11304 = vsel %vm660, %v11259, 0
      %v11307 = vsel %vm660, %v11261, 0
      %v11310 = vsel %vm660, %v11263, 0
      %v11313 = vsel %vm660, %v11265, 0
      %v11316 = vsel %vm660, %v11267, 0
      %v11319 = vsel %vm660, %v11269, 0
      %v11322 = vsel %vm660, %v11271, 0
      %v11325 = vsel %vm660, %v11273, 0
      %v11328 = vsel %vm660, %v11275, 0
      %v11331 = vsel %vm660, %v11277, 0
      %v11334 = vsel %vm660, %v11279, 0
      %v11337 = vsel %vm660, %v11281, 0
      %v11340 = vsel %vm660, %v11283, 0
      %v11343 = vsel %vm660, %v11285, 0
      %v11346 = vsel %vm660, %v11287, 0
      %v11349 = vsel %vm660, %v11286, 0
      %v11352 = vsel %vm724, %v11143, 0
      %11354 = vmatprep.subr.bf16.mxu0 0
      %11355 = vmatpush1.bf16.msra.mxu0 0
      %11356 = vmatprep.subr.bf16.mxu0 0
      %11357 = vmatpush1.bf16.msra.mxu0 0
      %11358 = vmatprep.subr.bf16.mxu0 0
      %11359 = vmatpush1.bf16.msra.mxu0 0
      %11360 = vmatprep.subr.bf16.mxu0 0
      %11361 = vmatpush1.bf16.msra.mxu0 0
      %11362 = vmatprep.subr.bf16.mxu0 0
      %11363 = vmatpush1.bf16.msra.mxu0 0
      %11364 = vmatprep.subr.bf16.mxu0 0
      %11365 = vmatpush1.bf16.msra.mxu0 0
      %11366 = vmatprep.subr.bf16.mxu0 0
      %11367 = vmatpush1.bf16.msra.mxu0 0
      %11368 = vmatprep.subr.bf16.mxu0 0
      %11369 = vmatpush1.bf16.msra.mxu0 %v11352
      %11370 = vmatprep.subr.bf16.mxu0 0
      %11371 = vmatpush2.bf16.msra.mxu0 0
      %11372 = vmatprep.subr.bf16.mxu0 0
      %11373 = vmatpush2.bf16.msra.mxu0 0
      %11374 = vmatprep.subr.bf16.mxu0 0
      %11375 = vmatpush2.bf16.msra.mxu0 0
      %11376 = vmatprep.subr.bf16.mxu0 0
      %11377 = vmatpush2.bf16.msra.mxu0 0
      %11378 = vmatprep.subr.bf16.mxu0 0
      %11379 = vmatpush2.bf16.msra.mxu0 0
      %11380 = vmatprep.subr.bf16.mxu0 0
      %11381 = vmatpush2.bf16.msra.mxu0 0
      %11382 = vmatprep.subr.bf16.mxu0 0
      %11383 = vmatpush2.bf16.msra.mxu0 0
      %11384 = vmatprep.subr.bf16.mxu0 0
      %11385 = vmatpush2.bf16.msra.mxu0 0
      %11386 = vmatprep.mubr.bf16.mxu0 0
      %11387 = vmatmul.mubr.bf16.gmra.mxu0 %v11289
      %v11388 = vpop.f32.mrf.mxu0
      %v11389 = vadd.f32 0.0, %v11388
      %v11390 = vpop.f32.mrf.mxu0
      %v11391 = vpop.f32.mrf.mxu0
      %v11392 = vadd.f32 0.0, %v11391
      %v11393 = vpop.f32.mrf.mxu0
      %11394 = vmatprep.mubr.bf16.mxu0 0
      %11395 = vmatmul.mubr.bf16.gmra.mxu0 %v11292
      %v11396 = vpop.f32.mrf.mxu0
      %v11397 = vadd.f32 0.0, %v11396
      %v11398 = vpop.f32.mrf.mxu0
      %v11399 = vpop.f32.mrf.mxu0
      %v11400 = vadd.f32 0.0, %v11399
      %v11401 = vpop.f32.mrf.mxu0
      %11402 = vmatprep.mubr.bf16.mxu0 0
      %11403 = vmatmul.mubr.bf16.gmra.mxu0 %v11295
      %v11404 = vpop.f32.mrf.mxu0
      %v11405 = vadd.f32 0.0, %v11404
      %v11406 = vpop.f32.mrf.mxu0
      %v11407 = vpop.f32.mrf.mxu0
      %v11408 = vadd.f32 0.0, %v11407
      %v11409 = vpop.f32.mrf.mxu0
      %11410 = vmatprep.mubr.bf16.mxu0 0
      %11411 = vmatmul.mubr.bf16.gmra.mxu0 %v11298
      %v11412 = vpop.f32.mrf.mxu0
      %v11413 = vadd.f32 0.0, %v11412
      %v11414 = vpop.f32.mrf.mxu0
      %v11415 = vpop.f32.mrf.mxu0
      %v11416 = vadd.f32 0.0, %v11415
      %v11417 = vpop.f32.mrf.mxu0
      %11418 = vmatprep.mubr.bf16.mxu0 0
      %11419 = vmatmul.mubr.bf16.gmra.mxu0 %v11301
      %v11420 = vpop.f32.mrf.mxu0
      %v11421 = vadd.f32 0.0, %v11420
      %v11422 = vpop.f32.mrf.mxu0
      %v11423 = vpop.f32.mrf.mxu0
      %v11424 = vadd.f32 0.0, %v11423
      %v11425 = vpop.f32.mrf.mxu0
      %11426 = vmatprep.mubr.bf16.mxu0 0
      %11427 = vmatmul.mubr.bf16.gmra.mxu0 %v11304
      %v11428 = vpop.f32.mrf.mxu0
      %v11429 = vadd.f32 0.0, %v11428
      %v11430 = vpop.f32.mrf.mxu0
      %v11431 = vpop.f32.mrf.mxu0
      %v11432 = vadd.f32 0.0, %v11431
      %v11433 = vpop.f32.mrf.mxu0
      %11434 = vmatprep.mubr.bf16.mxu0 0
      %11435 = vmatmul.mubr.bf16.gmra.mxu0 %v11307
      %v11436 = vpop.f32.mrf.mxu0
      %v11437 = vadd.f32 0.0, %v11436
      %v11438 = vpop.f32.mrf.mxu0
      %v11439 = vpop.f32.mrf.mxu0
      %v11440 = vadd.f32 0.0, %v11439
      %v11441 = vpop.f32.mrf.mxu0
      %11442 = vmatprep.mubr.bf16.mxu0 0
      %11443 = vmatmul.mubr.bf16.gmra.mxu0 %v11310
      %v11444 = vpop.f32.mrf.mxu0
      %v11445 = vadd.f32 0.0, %v11444
      %v11446 = vpop.f32.mrf.mxu0
      %v11447 = vpop.f32.mrf.mxu0
      %v11448 = vadd.f32 0.0, %v11447
      %v11449 = vpop.f32.mrf.mxu0
      %11450 = vmatprep.mubr.bf16.mxu0 0
      %11451 = vmatmul.mubr.bf16.gmra.mxu0 %v11313
      %v11452 = vpop.f32.mrf.mxu0
      %v11453 = vadd.f32 0.0, %v11452
      %v11454 = vpop.f32.mrf.mxu0
      %v11455 = vpop.f32.mrf.mxu0
      %v11456 = vadd.f32 0.0, %v11455
      %v11457 = vpop.f32.mrf.mxu0
      %11458 = vmatprep.mubr.bf16.mxu0 0
      %11459 = vmatmul.mubr.bf16.gmra.mxu0 %v11316
      %v11460 = vpop.f32.mrf.mxu0
      %v11461 = vadd.f32 0.0, %v11460
      %v11462 = vpop.f32.mrf.mxu0
      %v11463 = vpop.f32.mrf.mxu0
      %v11464 = vadd.f32 0.0, %v11463
      %v11465 = vpop.f32.mrf.mxu0
      %11466 = vmatprep.mubr.bf16.mxu0 0
      %11467 = vmatmul.mubr.bf16.gmra.mxu0 %v11319
      %v11468 = vpop.f32.mrf.mxu0
      %v11469 = vadd.f32 0.0, %v11468
      %v11470 = vpop.f32.mrf.mxu0
      %v11471 = vpop.f32.mrf.mxu0
      %v11472 = vadd.f32 0.0, %v11471
      %v11473 = vpop.f32.mrf.mxu0
      %11474 = vmatprep.mubr.bf16.mxu0 0
      %11475 = vmatmul.mubr.bf16.gmra.mxu0 %v11322
      %v11476 = vpop.f32.mrf.mxu0
      %v11477 = vadd.f32 0.0, %v11476
      %v11478 = vpop.f32.mrf.mxu0
      %v11479 = vpop.f32.mrf.mxu0
      %v11480 = vadd.f32 0.0, %v11479
      %v11481 = vpop.f32.mrf.mxu0
      %11482 = vmatprep.mubr.bf16.mxu0 0
      %11483 = vmatmul.mubr.bf16.gmra.mxu0 %v11325
      %v11484 = vpop.f32.mrf.mxu0
      %v11485 = vadd.f32 0.0, %v11484
      %v11486 = vpop.f32.mrf.mxu0
      %v11487 = vpop.f32.mrf.mxu0
      %v11488 = vadd.f32 0.0, %v11487
      %v11489 = vpop.f32.mrf.mxu0
      %11490 = vmatprep.mubr.bf16.mxu0 0
      %11491 = vmatmul.mubr.bf16.gmra.mxu0 %v11328
      %v11492 = vpop.f32.mrf.mxu0
      %v11493 = vadd.f32 0.0, %v11492
      %v11494 = vpop.f32.mrf.mxu0
      %v11495 = vpop.f32.mrf.mxu0
      %v11496 = vadd.f32 0.0, %v11495
      %v11497 = vpop.f32.mrf.mxu0
      %11498 = vmatprep.mubr.bf16.mxu0 0
      %11499 = vmatmul.mubr.bf16.gmra.mxu0 %v11331
      %v11500 = vpop.f32.mrf.mxu0
      %v11501 = vadd.f32 0.0, %v11500
      %v11502 = vpop.f32.mrf.mxu0
      %v11503 = vpop.f32.mrf.mxu0
      %v11504 = vadd.f32 0.0, %v11503
      %v11505 = vpop.f32.mrf.mxu0
      %11506 = vmatprep.mubr.bf16.mxu0 0
      %11507 = vmatmul.mubr.bf16.gmra.mxu0 %v11334
      %v11508 = vpop.f32.mrf.mxu0
      %v11509 = vadd.f32 0.0, %v11508
      %v11510 = vpop.f32.mrf.mxu0
      %v11511 = vpop.f32.mrf.mxu0
      %v11512 = vadd.f32 0.0, %v11511
      %v11513 = vpop.f32.mrf.mxu0
      %11514 = vmatprep.mubr.bf16.mxu0 0
      %11515 = vmatmul.mubr.bf16.gmra.mxu0 %v11337
      %v11516 = vpop.f32.mrf.mxu0
      %v11517 = vadd.f32 0.0, %v11516
      %v11518 = vpop.f32.mrf.mxu0
      %v11519 = vpop.f32.mrf.mxu0
      %v11520 = vadd.f32 0.0, %v11519
      %v11521 = vpop.f32.mrf.mxu0
      %11522 = vmatprep.mubr.bf16.mxu0 0
      %11523 = vmatmul.mubr.bf16.gmra.mxu0 %v11340
      %v11524 = vpop.f32.mrf.mxu0
      %v11525 = vadd.f32 0.0, %v11524
      %v11526 = vpop.f32.mrf.mxu0
      %v11527 = vpop.f32.mrf.mxu0
      %v11528 = vadd.f32 0.0, %v11527
      %v11529 = vpop.f32.mrf.mxu0
      %11530 = vmatprep.mubr.bf16.mxu0 0
      %11531 = vmatmul.mubr.bf16.gmra.mxu0 %v11343
      %v11532 = vpop.f32.mrf.mxu0
      %v11533 = vadd.f32 0.0, %v11532
      %v11534 = vpop.f32.mrf.mxu0
      %v11535 = vpop.f32.mrf.mxu0
      %v11536 = vadd.f32 0.0, %v11535
      %v11537 = vpop.f32.mrf.mxu0
      %11538 = vmatprep.mubr.bf16.mxu0 0
      %11539 = vmatmul.mubr.bf16.gmra.mxu0 %v11346
      %v11540 = vpop.f32.mrf.mxu0
      %v11541 = vadd.f32 0.0, %v11540
      %v11542 = vpop.f32.mrf.mxu0
      %v11543 = vpop.f32.mrf.mxu0
      %v11544 = vadd.f32 0.0, %v11543
      %v11545 = vpop.f32.mrf.mxu0
      %11546 = vmatprep.mubr.bf16.mxu0 0
      %11547 = vmatmul.mubr.bf16.gmra.mxu0 %v11349
      %v11548 = vpop.f32.mrf.mxu0
      %v11549 = vadd.f32 0.0, %v11548
      %v11550 = vpop.f32.mrf.mxu0
      %v11551 = vpop.f32.mrf.mxu0
      %v11552 = vpop.f32.mrf.mxu0
      %11553 = vdwg.mxu0
      %v11554 = vadd.f32 %v11060, %v11389
      %v11555 = vadd.f32 %v11061, %v11392
      %v11556 = vadd.f32 %v11062, %v11397
      %v11557 = vadd.f32 %v11063, %v11400
      %v11558 = vadd.f32 %v11064, %v11405
      %v11559 = vadd.f32 %v11065, %v11408
      %v11560 = vadd.f32 %v11066, %v11413
      %v11561 = vadd.f32 %v11067, %v11416
      %v11562 = vadd.f32 %v11068, %v11421
      %v11563 = vadd.f32 %v11069, %v11424
      %v11564 = vadd.f32 %v11070, %v11429
      %v11565 = vadd.f32 %v11071, %v11432
      %v11566 = vadd.f32 %v11072, %v11437
      %v11567 = vadd.f32 %v11073, %v11440
      %v11568 = vadd.f32 %v11074, %v11445
      %v11569 = vadd.f32 %v11075, %v11448
      %v11570 = vadd.f32 %v11076, %v11453
      %v11571 = vadd.f32 %v11077, %v11456
      %v11572 = vadd.f32 %v11078, %v11461
      %v11573 = vadd.f32 %v11079, %v11464
      %v11574 = vadd.f32 %v11080, %v11469
      %v11575 = vadd.f32 %v11081, %v11472
      %v11576 = vadd.f32 %v11082, %v11477
      %v11577 = vadd.f32 %v11083, %v11480
      %v11578 = vadd.f32 %v11084, %v11485
      %v11579 = vadd.f32 %v11085, %v11488
      %v11580 = vadd.f32 %v11086, %v11493
      %v11581 = vadd.f32 %v11087, %v11496
      %v11582 = vadd.f32 %v11088, %v11501
      %v11583 = vadd.f32 %v11089, %v11504
      %v11584 = vadd.f32 %v11090, %v11509
      %v11585 = vadd.f32 %v11091, %v11512
      %v11586 = vadd.f32 %v11092, %v11517
      %v11587 = vadd.f32 %v11093, %v11520
      %v11588 = vadd.f32 %v11094, %v11525
      %v11589 = vadd.f32 %v11095, %v11528
      %v11590 = vadd.f32 %v11096, %v11533
      %v11591 = vadd.f32 %v11097, %v11536
      %v11592 = vadd.f32 %v11098, %v11541
      %v11593 = vadd.f32 %v11099, %v11544
      %v11594 = vadd.f32 %v11100, %v11549
      %v11595 = vld [vmem:[%s332 + $0x10] sm:$0xc]
      %v11596 = vld [vmem:[%s332 + $0x14] sm:$0xf]
      %v11597 = vld [vmem:[%s332 + $0x18] sm:$0xf]
      %v11598 = vld [vmem:[%s332 + $0x1c] sm:$0xf]
      %v11599 = vld [vmem:[%s332 + $0x20] sm:$0xf]
      %v11600 = vld [vmem:[%s332 + $0x24] sm:$0xf]
      %v11601 = vld [vmem:[%s332 + $0x28] sm:$0xf]
      %v11602 = vld [vmem:[%s332 + $0x2c] sm:$0xf]
      %v11603 = vld [vmem:[%s332 + $0x30] sm:$0xf]
      %v11604 = vld [vmem:[%s332 + $0x34] sm:$0xf]
      %v11605 = vld [vmem:[%s332 + $0x38] sm:$0xf]
      %v11606 = vld [vmem:[%s332 + $0x3c] sm:$0xf]
      %v11607 = vld [vmem:[%s332 + $0x40] sm:$0xf]
      %v11608 = vld [vmem:[%s332 + $0x44] sm:$0xf]
      %v11609 = vld [vmem:[%s332 + $0x48] sm:$0xf]
      %v11610 = vld [vmem:[%s332 + $0x4c] sm:$0xf]
      %v11611 = vld [vmem:[%s332 + $0x50] sm:$0xf]
      %v11612 = vld [vmem:[%s332 + $0x54] sm:$0xf]
      %v11613 = vld [vmem:[%s332 + $0x58] sm:$0xf]
      %v11614 = vld [vmem:[%s332 + $0x5c] sm:$0xf]
      %v11615 = vld [vmem:[%s332 + $0x60] sm:$0xf]
      %v11616 = vld [vmem:[%s332 + $0x64] sm:$0xf]
      %v11617 = vld [vmem:[%s332 + $0x68] sm:$0xf]
      %v11618 = vld [vmem:[%s332 + $0x6c] sm:$0xf]
      %v11619 = vld [vmem:[%s332 + $0x70] sm:$0xf]
      %v11620 = vld [vmem:[%s332 + $0x74] sm:$0xf]
      %v11621 = vld [vmem:[%s332 + $0x78] sm:$0xf]
      %v11622 = vld [vmem:[%s332 + $0x7c] sm:$0xf]
      %v11623 = vld [vmem:[%s332 + $0x80] sm:$0xf]
      %v11624 = vld [vmem:[%s332 + $0x84] sm:$0xf]
      %v11625 = vld [vmem:[%s332 + $0x88] sm:$0xf]
      %v11626 = vld [vmem:[%s332 + $0x8c] sm:$0xf]
      %v11627 = vld [vmem:[%s332 + $0x90] sm:$0xf]
      %v11628 = vld [vmem:[%s332 + $0x94] sm:$0xf]
      %v11629 = vld [vmem:[%s332 + $0x98] sm:$0xf]
      %v11630 = vld [vmem:[%s332 + $0x9c] sm:$0xf]
      %v11631 = vld [vmem:[%s332 + $0xa0] sm:$0xf]
      %v11632 = vld [vmem:[%s332 + $0xa4] sm:$0xf]
      %v11633 = vld [vmem:[%s332 + $0xa8] sm:$0xf]
      %v11634 = vld [vmem:[%s332 + $0xac] sm:$0xf]
      %v11635 = vld [vmem:[%s332 + $0xb0] sm:$0xf]
      %v11636 = vld [vmem:[%s332 + $0xb4] sm:$0x1]
      %s11637 = scalar_lea.vmem %s3, 100
      %v11638 = vld [vmem:[%s11637] sm:$0xf]
      %v11681 = vunpack.c.l.b16 %v11595
      %v11682 = vunpack.c.l.b16 %v11596
      %v11683 = vunpack.c.l.b16 %v11597
      %v11684 = vunpack.c.l.b16 %v11598
      %v11685 = vunpack.c.l.b16 %v11599
      %v11686 = vunpack.c.l.b16 %v11600
      %v11687 = vunpack.c.l.b16 %v11601
      %v11688 = vunpack.c.l.b16 %v11602
      %v11689 = vunpack.c.l.b16 %v11603
      %v11690 = vunpack.c.l.b16 %v11604
      %v11691 = vunpack.c.l.b16 %v11605
      %v11692 = vunpack.c.l.b16 %v11606
      %v11693 = vunpack.c.l.b16 %v11607
      %v11694 = vunpack.c.l.b16 %v11608
      %v11695 = vunpack.c.l.b16 %v11609
      %v11696 = vunpack.c.l.b16 %v11610
      %v11697 = vunpack.c.l.b16 %v11611
      %v11698 = vunpack.c.l.b16 %v11612
      %v11699 = vunpack.c.l.b16 %v11613
      %v11700 = vunpack.c.l.b16 %v11614
      %v11701 = vunpack.c.l.b16 %v11615
      %v11702 = vunpack.c.l.b16 %v11616
      %v11703 = vunpack.c.l.b16 %v11617
      %v11704 = vunpack.c.l.b16 %v11618
      %v11705 = vunpack.c.l.b16 %v11619
      %v11706 = vunpack.c.l.b16 %v11620
      %v11707 = vunpack.c.l.b16 %v11621
      %v11708 = vunpack.c.l.b16 %v11622
      %v11709 = vunpack.c.l.b16 %v11623
      %v11710 = vunpack.c.l.b16 %v11624
      %v11711 = vunpack.c.l.b16 %v11625
      %v11712 = vunpack.c.l.b16 %v11626
      %v11713 = vunpack.c.l.b16 %v11627
      %v11714 = vunpack.c.l.b16 %v11628
      %v11715 = vunpack.c.l.b16 %v11629
      %v11716 = vunpack.c.l.b16 %v11630
      %v11717 = vunpack.c.l.b16 %v11631
      %v11718 = vunpack.c.l.b16 %v11632
      %v11719 = vunpack.c.l.b16 %v11633
      %v11720 = vunpack.c.l.b16 %v11634
      %v11721 = vunpack.c.l.b16 %v11635
      %v11722 = vunpack.c.l.b16 %v11636
      %v11723 = vpack.c.b16 %v11682, %v11681
      %v11724 = vpack.c.b16 %v11684, %v11683
      %v11725 = vpack.c.b16 %v11686, %v11685
      %v11726 = vpack.c.b16 %v11688, %v11687
      %v11727 = vpack.c.b16 %v11690, %v11689
      %v11728 = vpack.c.b16 %v11692, %v11691
      %v11729 = vpack.c.b16 %v11694, %v11693
      %v11730 = vpack.c.b16 %v11696, %v11695
      %v11731 = vpack.c.b16 %v11698, %v11697
      %v11732 = vpack.c.b16 %v11700, %v11699
      %v11733 = vpack.c.b16 %v11702, %v11701
      %v11734 = vpack.c.b16 %v11704, %v11703
      %v11735 = vpack.c.b16 %v11706, %v11705
      %v11736 = vpack.c.b16 %v11708, %v11707
      %v11737 = vpack.c.b16 %v11710, %v11709
      %v11738 = vpack.c.b16 %v11712, %v11711
      %v11739 = vpack.c.b16 %v11714, %v11713
      %v11740 = vpack.c.b16 %v11716, %v11715
      %v11741 = vpack.c.b16 %v11718, %v11717
      %v11742 = vpack.c.b16 %v11720, %v11719
      %v11743 = vpack.c.b16 %v11722, %v11721
      %v11745 = vshrl.u32 %v11723, 16
      %v11747 = vrot.slane %v11745, 2
      %v11748 = vshll.u32 %v11723, 16
      %v11750 = vrot.slane %v11748, 3
      %v11751 = vor.u32 %v11747, %v11750
      %v11753 = vshrl.u32 %v11724, 16
      %v11755 = vrot.slane %v11753, 2
      %v11756 = vshll.u32 %v11724, 16
      %v11758 = vrot.slane %v11756, 3
      %v11759 = vor.u32 %v11755, %v11758
      %v11760 = vsel %vm3526, %v11751, %v11759
      %v11762 = vshrl.u32 %v11725, 16
      %v11764 = vrot.slane %v11762, 2
      %v11765 = vshll.u32 %v11725, 16
      %v11767 = vrot.slane %v11765, 3
      %v11768 = vor.u32 %v11764, %v11767
      %v11769 = vsel %vm3526, %v11759, %v11768
      %v11771 = vshrl.u32 %v11726, 16
      %v11773 = vrot.slane %v11771, 2
      %v11774 = vshll.u32 %v11726, 16
      %v11776 = vrot.slane %v11774, 3
      %v11777 = vor.u32 %v11773, %v11776
      %v11778 = vsel %vm3526, %v11768, %v11777
      %v11780 = vshrl.u32 %v11727, 16
      %v11782 = vrot.slane %v11780, 2
      %v11783 = vshll.u32 %v11727, 16
      %v11785 = vrot.slane %v11783, 3
      %v11786 = vor.u32 %v11782, %v11785
      %v11787 = vsel %vm3526, %v11777, %v11786
      %v11789 = vshrl.u32 %v11728, 16
      %v11791 = vrot.slane %v11789, 2
      %v11792 = vshll.u32 %v11728, 16
      %v11794 = vrot.slane %v11792, 3
      %v11795 = vor.u32 %v11791, %v11794
      %v11796 = vsel %vm3526, %v11786, %v11795
      %v11798 = vshrl.u32 %v11729, 16
      %v11800 = vrot.slane %v11798, 2
      %v11801 = vshll.u32 %v11729, 16
      %v11803 = vrot.slane %v11801, 3
      %v11804 = vor.u32 %v11800, %v11803
      %v11805 = vsel %vm3526, %v11795, %v11804
      %v11807 = vshrl.u32 %v11730, 16
      %v11809 = vrot.slane %v11807, 2
      %v11810 = vshll.u32 %v11730, 16
      %v11812 = vrot.slane %v11810, 3
      %v11813 = vor.u32 %v11809, %v11812
      %v11814 = vsel %vm3526, %v11804, %v11813
      %v11816 = vshrl.u32 %v11731, 16
      %v11818 = vrot.slane %v11816, 2
      %v11819 = vshll.u32 %v11731, 16
      %v11821 = vrot.slane %v11819, 3
      %v11822 = vor.u32 %v11818, %v11821
      %v11823 = vsel %vm3526, %v11813, %v11822
      %v11825 = vshrl.u32 %v11732, 16
      %v11827 = vrot.slane %v11825, 2
      %v11828 = vshll.u32 %v11732, 16
      %v11830 = vrot.slane %v11828, 3
      %v11831 = vor.u32 %v11827, %v11830
      %v11832 = vsel %vm3526, %v11822, %v11831
      %v11834 = vshrl.u32 %v11733, 16
      %v11836 = vrot.slane %v11834, 2
      %v11837 = vshll.u32 %v11733, 16
      %v11839 = vrot.slane %v11837, 3
      %v11840 = vor.u32 %v11836, %v11839
      %v11841 = vsel %vm3526, %v11831, %v11840
      %v11843 = vshrl.u32 %v11734, 16
      %v11845 = vrot.slane %v11843, 2
      %v11846 = vshll.u32 %v11734, 16
      %v11848 = vrot.slane %v11846, 3
      %v11849 = vor.u32 %v11845, %v11848
      %v11850 = vsel %vm3526, %v11840, %v11849
      %v11852 = vshrl.u32 %v11735, 16
      %v11854 = vrot.slane %v11852, 2
      %v11855 = vshll.u32 %v11735, 16
      %v11857 = vrot.slane %v11855, 3
      %v11858 = vor.u32 %v11854, %v11857
      %v11859 = vsel %vm3526, %v11849, %v11858
      %v11861 = vshrl.u32 %v11736, 16
      %v11863 = vrot.slane %v11861, 2
      %v11864 = vshll.u32 %v11736, 16
      %v11866 = vrot.slane %v11864, 3
      %v11867 = vor.u32 %v11863, %v11866
      %v11868 = vsel %vm3526, %v11858, %v11867
      %v11870 = vshrl.u32 %v11737, 16
      %v11872 = vrot.slane %v11870, 2
      %v11873 = vshll.u32 %v11737, 16
      %v11875 = vrot.slane %v11873, 3
      %v11876 = vor.u32 %v11872, %v11875
      %v11877 = vsel %vm3526, %v11867, %v11876
      %v11879 = vshrl.u32 %v11738, 16
      %v11881 = vrot.slane %v11879, 2
      %v11882 = vshll.u32 %v11738, 16
      %v11884 = vrot.slane %v11882, 3
      %v11885 = vor.u32 %v11881, %v11884
      %v11886 = vsel %vm3526, %v11876, %v11885
      %v11888 = vshrl.u32 %v11739, 16
      %v11890 = vrot.slane %v11888, 2
      %v11891 = vshll.u32 %v11739, 16
      %v11893 = vrot.slane %v11891, 3
      %v11894 = vor.u32 %v11890, %v11893
      %v11895 = vsel %vm3526, %v11885, %v11894
      %v11897 = vshrl.u32 %v11740, 16
      %v11899 = vrot.slane %v11897, 2
      %v11900 = vshll.u32 %v11740, 16
      %v11902 = vrot.slane %v11900, 3
      %v11903 = vor.u32 %v11899, %v11902
      %v11904 = vsel %vm3526, %v11894, %v11903
      %v11906 = vshrl.u32 %v11741, 16
      %v11908 = vrot.slane %v11906, 2
      %v11909 = vshll.u32 %v11741, 16
      %v11911 = vrot.slane %v11909, 3
      %v11912 = vor.u32 %v11908, %v11911
      %v11913 = vsel %vm3526, %v11903, %v11912
      %v11915 = vshrl.u32 %v11742, 16
      %v11917 = vrot.slane %v11915, 2
      %v11918 = vshll.u32 %v11742, 16
      %v11920 = vrot.slane %v11918, 3
      %v11921 = vor.u32 %v11917, %v11920
      %v11922 = vsel %vm3526, %v11912, %v11921
      %v11924 = vshrl.u32 %v11743, 16
      %v11926 = vrot.slane %v11924, 2
      %v11927 = vshll.u32 %v11743, 16
      %v11929 = vrot.slane %v11927, 3
      %v11930 = vor.u32 %v11926, %v11929
      %v11931 = vsel %vm3526, %v11921, %v11930
      %v11933 = vsel %vm660, %v11760, 0
      %v11936 = vsel %vm660, %v11769, 0
      %v11939 = vsel %vm660, %v11778, 0
      %v11942 = vsel %vm660, %v11787, 0
      %v11945 = vsel %vm660, %v11796, 0
      %v11948 = vsel %vm660, %v11805, 0
      %v11951 = vsel %vm660, %v11814, 0
      %v11954 = vsel %vm660, %v11823, 0
      %v11957 = vsel %vm660, %v11832, 0
      %v11960 = vsel %vm660, %v11841, 0
      %v11963 = vsel %vm660, %v11850, 0
      %v11966 = vsel %vm660, %v11859, 0
      %v11969 = vsel %vm660, %v11868, 0
      %v11972 = vsel %vm660, %v11877, 0
      %v11975 = vsel %vm660, %v11886, 0
      %v11978 = vsel %vm660, %v11895, 0
      %v11981 = vsel %vm660, %v11904, 0
      %v11984 = vsel %vm660, %v11913, 0
      %v11987 = vsel %vm660, %v11922, 0
      %v11990 = vsel %vm660, %v11931, 0
      %v11993 = vsel %vm660, %v11930, 0
      %v11996 = vsel %vm724, %v11638, 0
      %11998 = vmatprep.subr.bf16.mxu0 0
      %11999 = vmatpush1.bf16.msra.mxu0 0
      %12000 = vmatprep.subr.bf16.mxu0 0
      %12001 = vmatpush1.bf16.msra.mxu0 0
      %12002 = vmatprep.subr.bf16.mxu0 0
      %12003 = vmatpush1.bf16.msra.mxu0 0
      %12004 = vmatprep.subr.bf16.mxu0 0
      %12005 = vmatpush1.bf16.msra.mxu0 0
      %12006 = vmatprep.subr.bf16.mxu0 0
      %12007 = vmatpush1.bf16.msra.mxu0 0
      %12008 = vmatprep.subr.bf16.mxu0 0
      %12009 = vmatpush1.bf16.msra.mxu0 0
      %12010 = vmatprep.subr.bf16.mxu0 0
      %12011 = vmatpush1.bf16.msra.mxu0 0
      %12012 = vmatprep.subr.bf16.mxu0 0
      %12013 = vmatpush1.bf16.msra.mxu0 %v11996
      %12014 = vmatprep.subr.bf16.mxu0 0
      %12015 = vmatpush2.bf16.msra.mxu0 0
      %12016 = vmatprep.subr.bf16.mxu0 0
      %12017 = vmatpush2.bf16.msra.mxu0 0
      %12018 = vmatprep.subr.bf16.mxu0 0
      %12019 = vmatpush2.bf16.msra.mxu0 0
      %12020 = vmatprep.subr.bf16.mxu0 0
      %12021 = vmatpush2.bf16.msra.mxu0 0
      %12022 = vmatprep.subr.bf16.mxu0 0
      %12023 = vmatpush2.bf16.msra.mxu0 0
      %12024 = vmatprep.subr.bf16.mxu0 0
      %12025 = vmatpush2.bf16.msra.mxu0 0
      %12026 = vmatprep.subr.bf16.mxu0 0
      %12027 = vmatpush2.bf16.msra.mxu0 0
      %12028 = vmatprep.subr.bf16.mxu0 0
      %12029 = vmatpush2.bf16.msra.mxu0 0
      %12030 = vmatprep.mubr.bf16.mxu0 0
      %12031 = vmatmul.mubr.bf16.gmra.mxu0 %v11933
      %v12032 = vpop.f32.mrf.mxu0
      %v12033 = vadd.f32 0.0, %v12032
      %v12034 = vpop.f32.mrf.mxu0
      %v12035 = vpop.f32.mrf.mxu0
      %v12036 = vadd.f32 0.0, %v12035
      %v12037 = vpop.f32.mrf.mxu0
      %12038 = vmatprep.mubr.bf16.mxu0 0
      %12039 = vmatmul.mubr.bf16.gmra.mxu0 %v11936
      %v12040 = vpop.f32.mrf.mxu0
      %v12041 = vadd.f32 0.0, %v12040
      %v12042 = vpop.f32.mrf.mxu0
      %v12043 = vpop.f32.mrf.mxu0
      %v12044 = vadd.f32 0.0, %v12043
      %v12045 = vpop.f32.mrf.mxu0
      %12046 = vmatprep.mubr.bf16.mxu0 0
      %12047 = vmatmul.mubr.bf16.gmra.mxu0 %v11939
      %v12048 = vpop.f32.mrf.mxu0
      %v12049 = vadd.f32 0.0, %v12048
      %v12050 = vpop.f32.mrf.mxu0
      %v12051 = vpop.f32.mrf.mxu0
      %v12052 = vadd.f32 0.0, %v12051
      %v12053 = vpop.f32.mrf.mxu0
      %12054 = vmatprep.mubr.bf16.mxu0 0
      %12055 = vmatmul.mubr.bf16.gmra.mxu0 %v11942
      %v12056 = vpop.f32.mrf.mxu0
      %v12057 = vadd.f32 0.0, %v12056
      %v12058 = vpop.f32.mrf.mxu0
      %v12059 = vpop.f32.mrf.mxu0
      %v12060 = vadd.f32 0.0, %v12059
      %v12061 = vpop.f32.mrf.mxu0
      %12062 = vmatprep.mubr.bf16.mxu0 0
      %12063 = vmatmul.mubr.bf16.gmra.mxu0 %v11945
      %v12064 = vpop.f32.mrf.mxu0
      %v12065 = vadd.f32 0.0, %v12064
      %v12066 = vpop.f32.mrf.mxu0
      %v12067 = vpop.f32.mrf.mxu0
      %v12068 = vadd.f32 0.0, %v12067
      %v12069 = vpop.f32.mrf.mxu0
      %12070 = vmatprep.mubr.bf16.mxu0 0
      %12071 = vmatmul.mubr.bf16.gmra.mxu0 %v11948
      %v12072 = vpop.f32.mrf.mxu0
      %v12073 = vadd.f32 0.0, %v12072
      %v12074 = vpop.f32.mrf.mxu0
      %v12075 = vpop.f32.mrf.mxu0
      %v12076 = vadd.f32 0.0, %v12075
      %v12077 = vpop.f32.mrf.mxu0
      %12078 = vmatprep.mubr.bf16.mxu0 0
      %12079 = vmatmul.mubr.bf16.gmra.mxu0 %v11951
      %v12080 = vpop.f32.mrf.mxu0
      %v12081 = vadd.f32 0.0, %v12080
      %v12082 = vpop.f32.mrf.mxu0
      %v12083 = vpop.f32.mrf.mxu0
      %v12084 = vadd.f32 0.0, %v12083
      %v12085 = vpop.f32.mrf.mxu0
      %12086 = vmatprep.mubr.bf16.mxu0 0
      %12087 = vmatmul.mubr.bf16.gmra.mxu0 %v11954
      %v12088 = vpop.f32.mrf.mxu0
      %v12089 = vadd.f32 0.0, %v12088
      %v12090 = vpop.f32.mrf.mxu0
      %v12091 = vpop.f32.mrf.mxu0
      %v12092 = vadd.f32 0.0, %v12091
      %v12093 = vpop.f32.mrf.mxu0
      %12094 = vmatprep.mubr.bf16.mxu0 0
      %12095 = vmatmul.mubr.bf16.gmra.mxu0 %v11957
      %v12096 = vpop.f32.mrf.mxu0
      %v12097 = vadd.f32 0.0, %v12096
      %v12098 = vpop.f32.mrf.mxu0
      %v12099 = vpop.f32.mrf.mxu0
      %v12100 = vadd.f32 0.0, %v12099
      %v12101 = vpop.f32.mrf.mxu0
      %12102 = vmatprep.mubr.bf16.mxu0 0
      %12103 = vmatmul.mubr.bf16.gmra.mxu0 %v11960
      %v12104 = vpop.f32.mrf.mxu0
      %v12105 = vadd.f32 0.0, %v12104
      %v12106 = vpop.f32.mrf.mxu0
      %v12107 = vpop.f32.mrf.mxu0
      %v12108 = vadd.f32 0.0, %v12107
      %v12109 = vpop.f32.mrf.mxu0
      %12110 = vmatprep.mubr.bf16.mxu0 0
      %12111 = vmatmul.mubr.bf16.gmra.mxu0 %v11963
      %v12112 = vpop.f32.mrf.mxu0
      %v12113 = vadd.f32 0.0, %v12112
      %v12114 = vpop.f32.mrf.mxu0
      %v12115 = vpop.f32.mrf.mxu0
      %v12116 = vadd.f32 0.0, %v12115
      %v12117 = vpop.f32.mrf.mxu0
      %12118 = vmatprep.mubr.bf16.mxu0 0
      %12119 = vmatmul.mubr.bf16.gmra.mxu0 %v11966
      %v12120 = vpop.f32.mrf.mxu0
      %v12121 = vadd.f32 0.0, %v12120
      %v12122 = vpop.f32.mrf.mxu0
      %v12123 = vpop.f32.mrf.mxu0
      %v12124 = vadd.f32 0.0, %v12123
      %v12125 = vpop.f32.mrf.mxu0
      %12126 = vmatprep.mubr.bf16.mxu0 0
      %12127 = vmatmul.mubr.bf16.gmra.mxu0 %v11969
      %v12128 = vpop.f32.mrf.mxu0
      %v12129 = vadd.f32 0.0, %v12128
      %v12130 = vpop.f32.mrf.mxu0
      %v12131 = vpop.f32.mrf.mxu0
      %v12132 = vadd.f32 0.0, %v12131
      %v12133 = vpop.f32.mrf.mxu0
      %12134 = vmatprep.mubr.bf16.mxu0 0
      %12135 = vmatmul.mubr.bf16.gmra.mxu0 %v11972
      %v12136 = vpop.f32.mrf.mxu0
      %v12137 = vadd.f32 0.0, %v12136
      %v12138 = vpop.f32.mrf.mxu0
      %v12139 = vpop.f32.mrf.mxu0
      %v12140 = vadd.f32 0.0, %v12139
      %v12141 = vpop.f32.mrf.mxu0
      %12142 = vmatprep.mubr.bf16.mxu0 0
      %12143 = vmatmul.mubr.bf16.gmra.mxu0 %v11975
      %v12144 = vpop.f32.mrf.mxu0
      %v12145 = vadd.f32 0.0, %v12144
      %v12146 = vpop.f32.mrf.mxu0
      %v12147 = vpop.f32.mrf.mxu0
      %v12148 = vadd.f32 0.0, %v12147
      %v12149 = vpop.f32.mrf.mxu0
      %12150 = vmatprep.mubr.bf16.mxu0 0
      %12151 = vmatmul.mubr.bf16.gmra.mxu0 %v11978
      %v12152 = vpop.f32.mrf.mxu0
      %v12153 = vadd.f32 0.0, %v12152
      %v12154 = vpop.f32.mrf.mxu0
      %v12155 = vpop.f32.mrf.mxu0
      %v12156 = vadd.f32 0.0, %v12155
      %v12157 = vpop.f32.mrf.mxu0
      %12158 = vmatprep.mubr.bf16.mxu0 0
      %12159 = vmatmul.mubr.bf16.gmra.mxu0 %v11981
      %v12160 = vpop.f32.mrf.mxu0
      %v12161 = vadd.f32 0.0, %v12160
      %v12162 = vpop.f32.mrf.mxu0
      %v12163 = vpop.f32.mrf.mxu0
      %v12164 = vadd.f32 0.0, %v12163
      %v12165 = vpop.f32.mrf.mxu0
      %12166 = vmatprep.mubr.bf16.mxu0 0
      %12167 = vmatmul.mubr.bf16.gmra.mxu0 %v11984
      %v12168 = vpop.f32.mrf.mxu0
      %v12169 = vadd.f32 0.0, %v12168
      %v12170 = vpop.f32.mrf.mxu0
      %v12171 = vpop.f32.mrf.mxu0
      %v12172 = vadd.f32 0.0, %v12171
      %v12173 = vpop.f32.mrf.mxu0
      %12174 = vmatprep.mubr.bf16.mxu0 0
      %12175 = vmatmul.mubr.bf16.gmra.mxu0 %v11987
      %v12176 = vpop.f32.mrf.mxu0
      %v12177 = vadd.f32 0.0, %v12176
      %v12178 = vpop.f32.mrf.mxu0
      %v12179 = vpop.f32.mrf.mxu0
      %v12180 = vadd.f32 0.0, %v12179
      %v12181 = vpop.f32.mrf.mxu0
      %12182 = vmatprep.mubr.bf16.mxu0 0
      %12183 = vmatmul.mubr.bf16.gmra.mxu0 %v11990
      %v12184 = vpop.f32.mrf.mxu0
      %v12185 = vadd.f32 0.0, %v12184
      %v12186 = vpop.f32.mrf.mxu0
      %v12187 = vpop.f32.mrf.mxu0
      %v12188 = vadd.f32 0.0, %v12187
      %v12189 = vpop.f32.mrf.mxu0
      %12190 = vmatprep.mubr.bf16.mxu0 0
      %12191 = vmatmul.mubr.bf16.gmra.mxu0 %v11993
      %v12192 = vpop.f32.mrf.mxu0
      %v12193 = vadd.f32 0.0, %v12192
      %v12194 = vpop.f32.mrf.mxu0
      %v12195 = vpop.f32.mrf.mxu0
      %v12196 = vpop.f32.mrf.mxu0
      %12197 = vdwg.mxu0
      %v12198 = vadd.f32 %v11554, %v12033
      %v12199 = vadd.f32 %v11555, %v12036
      %v12200 = vadd.f32 %v11556, %v12041
      %v12201 = vadd.f32 %v11557, %v12044
      %v12202 = vadd.f32 %v11558, %v12049
      %v12203 = vadd.f32 %v11559, %v12052
      %v12204 = vadd.f32 %v11560, %v12057
      %v12205 = vadd.f32 %v11561, %v12060
      %v12206 = vadd.f32 %v11562, %v12065
      %v12207 = vadd.f32 %v11563, %v12068
      %v12208 = vadd.f32 %v11564, %v12073
      %v12209 = vadd.f32 %v11565, %v12076
      %v12210 = vadd.f32 %v11566, %v12081
      %v12211 = vadd.f32 %v11567, %v12084
      %v12212 = vadd.f32 %v11568, %v12089
      %v12213 = vadd.f32 %v11569, %v12092
      %v12214 = vadd.f32 %v11570, %v12097
      %v12215 = vadd.f32 %v11571, %v12100
      %v12216 = vadd.f32 %v11572, %v12105
      %v12217 = vadd.f32 %v11573, %v12108
      %v12218 = vadd.f32 %v11574, %v12113
      %v12219 = vadd.f32 %v11575, %v12116
      %v12220 = vadd.f32 %v11576, %v12121
      %v12221 = vadd.f32 %v11577, %v12124
      %v12222 = vadd.f32 %v11578, %v12129
      %v12223 = vadd.f32 %v11579, %v12132
      %v12224 = vadd.f32 %v11580, %v12137
      %v12225 = vadd.f32 %v11581, %v12140
      %v12226 = vadd.f32 %v11582, %v12145
      %v12227 = vadd.f32 %v11583, %v12148
      %v12228 = vadd.f32 %v11584, %v12153
      %v12229 = vadd.f32 %v11585, %v12156
      %v12230 = vadd.f32 %v11586, %v12161
      %v12231 = vadd.f32 %v11587, %v12164
      %v12232 = vadd.f32 %v11588, %v12169
      %v12233 = vadd.f32 %v11589, %v12172
      %v12234 = vadd.f32 %v11590, %v12177
      %v12235 = vadd.f32 %v11591, %v12180
      %v12236 = vadd.f32 %v11592, %v12185
      %v12237 = vadd.f32 %v11593, %v12188
      %v12238 = vadd.f32 %v11594, %v12193
      %v12239 = vld [vmem:[%s332 + $0x10] sm:$0x8]
      %s12240 = scalar_lea.vmem %s3, 104
      %v12241 = vld [vmem:[%s12240] sm:$0xf]
      %v12243 = vunpack.c.l.b16 %v12239
      %v12244 = vpack.c.b16 %v11682, %v12243
      %v12245 = vrot.slane %v12244, 3
      %v12246 = vrot.slane %v11724, 3
      %v12247 = vsel %vm4028, %v12245, %v12246
      %v12248 = vrot.slane %v11725, 3
      %v12249 = vsel %vm4028, %v12246, %v12248
      %v12250 = vrot.slane %v11726, 3
      %v12251 = vsel %vm4028, %v12248, %v12250
      %v12252 = vrot.slane %v11727, 3
      %v12253 = vsel %vm4028, %v12250, %v12252
      %v12254 = vrot.slane %v11728, 3
      %v12255 = vsel %vm4028, %v12252, %v12254
      %v12256 = vrot.slane %v11729, 3
      %v12257 = vsel %vm4028, %v12254, %v12256
      %v12258 = vrot.slane %v11730, 3
      %v12259 = vsel %vm4028, %v12256, %v12258
      %v12260 = vrot.slane %v11731, 3
      %v12261 = vsel %vm4028, %v12258, %v12260
      %v12262 = vrot.slane %v11732, 3
      %v12263 = vsel %vm4028, %v12260, %v12262
      %v12264 = vrot.slane %v11733, 3
      %v12265 = vsel %vm4028, %v12262, %v12264
      %v12266 = vrot.slane %v11734, 3
      %v12267 = vsel %vm4028, %v12264, %v12266
      %v12268 = vrot.slane %v11735, 3
      %v12269 = vsel %vm4028, %v12266, %v12268
      %v12270 = vrot.slane %v11736, 3
      %v12271 = vsel %vm4028, %v12268, %v12270
      %v12272 = vrot.slane %v11737, 3
      %v12273 = vsel %vm4028, %v12270, %v12272
      %v12274 = vrot.slane %v11738, 3
      %v12275 = vsel %vm4028, %v12272, %v12274
      %v12276 = vrot.slane %v11739, 3
      %v12277 = vsel %vm4028, %v12274, %v12276
      %v12278 = vrot.slane %v11740, 3
      %v12279 = vsel %vm4028, %v12276, %v12278
      %v12280 = vrot.slane %v11741, 3
      %v12281 = vsel %vm4028, %v12278, %v12280
      %v12282 = vrot.slane %v11742, 3
      %v12283 = vsel %vm4028, %v12280, %v12282
      %v12284 = vrot.slane %v11743, 3
      %v12285 = vsel %vm4028, %v12282, %v12284
      %v12287 = vsel %vm660, %v12247, 0
      %v12290 = vsel %vm660, %v12249, 0
      %v12293 = vsel %vm660, %v12251, 0
      %v12296 = vsel %vm660, %v12253, 0
      %v12299 = vsel %vm660, %v12255, 0
      %v12302 = vsel %vm660, %v12257, 0
      %v12305 = vsel %vm660, %v12259, 0
      %v12308 = vsel %vm660, %v12261, 0
      %v12311 = vsel %vm660, %v12263, 0
      %v12314 = vsel %vm660, %v12265, 0
      %v12317 = vsel %vm660, %v12267, 0
      %v12320 = vsel %vm660, %v12269, 0
      %v12323 = vsel %vm660, %v12271, 0
      %v12326 = vsel %vm660, %v12273, 0
      %v12329 = vsel %vm660, %v12275, 0
      %v12332 = vsel %vm660, %v12277, 0
      %v12335 = vsel %vm660, %v12279, 0
      %v12338 = vsel %vm660, %v12281, 0
      %v12341 = vsel %vm660, %v12283, 0
      %v12344 = vsel %vm660, %v12285, 0
      %v12347 = vsel %vm660, %v12284, 0
      %v12350 = vsel %vm724, %v12241, 0
      %12352 = vmatprep.subr.bf16.mxu0 0
      %12353 = vmatpush1.bf16.msra.mxu0 0
      %12354 = vmatprep.subr.bf16.mxu0 0
      %12355 = vmatpush1.bf16.msra.mxu0 0
      %12356 = vmatprep.subr.bf16.mxu0 0
      %12357 = vmatpush1.bf16.msra.mxu0 0
      %12358 = vmatprep.subr.bf16.mxu0 0
      %12359 = vmatpush1.bf16.msra.mxu0 0
      %12360 = vmatprep.subr.bf16.mxu0 0
      %12361 = vmatpush1.bf16.msra.mxu0 0
      %12362 = vmatprep.subr.bf16.mxu0 0
      %12363 = vmatpush1.bf16.msra.mxu0 0
      %12364 = vmatprep.subr.bf16.mxu0 0
      %12365 = vmatpush1.bf16.msra.mxu0 0
      %12366 = vmatprep.subr.bf16.mxu0 0
      %12367 = vmatpush1.bf16.msra.mxu0 %v12350
      %12368 = vmatprep.subr.bf16.mxu0 0
      %12369 = vmatpush2.bf16.msra.mxu0 0
      %12370 = vmatprep.subr.bf16.mxu0 0
      %12371 = vmatpush2.bf16.msra.mxu0 0
      %12372 = vmatprep.subr.bf16.mxu0 0
      %12373 = vmatpush2.bf16.msra.mxu0 0
      %12374 = vmatprep.subr.bf16.mxu0 0
      %12375 = vmatpush2.bf16.msra.mxu0 0
      %12376 = vmatprep.subr.bf16.mxu0 0
      %12377 = vmatpush2.bf16.msra.mxu0 0
      %12378 = vmatprep.subr.bf16.mxu0 0
      %12379 = vmatpush2.bf16.msra.mxu0 0
      %12380 = vmatprep.subr.bf16.mxu0 0
      %12381 = vmatpush2.bf16.msra.mxu0 0
      %12382 = vmatprep.subr.bf16.mxu0 0
      %12383 = vmatpush2.bf16.msra.mxu0 0
      %12384 = vmatprep.mubr.bf16.mxu0 0
      %12385 = vmatmul.mubr.bf16.gmra.mxu0 %v12287
      %v12386 = vpop.f32.mrf.mxu0
      %v12387 = vadd.f32 0.0, %v12386
      %v12388 = vpop.f32.mrf.mxu0
      %v12389 = vpop.f32.mrf.mxu0
      %v12390 = vadd.f32 0.0, %v12389
      %v12391 = vpop.f32.mrf.mxu0
      %12392 = vmatprep.mubr.bf16.mxu0 0
      %12393 = vmatmul.mubr.bf16.gmra.mxu0 %v12290
      %v12394 = vpop.f32.mrf.mxu0
      %v12395 = vadd.f32 0.0, %v12394
      %v12396 = vpop.f32.mrf.mxu0
      %v12397 = vpop.f32.mrf.mxu0
      %v12398 = vadd.f32 0.0, %v12397
      %v12399 = vpop.f32.mrf.mxu0
      %12400 = vmatprep.mubr.bf16.mxu0 0
      %12401 = vmatmul.mubr.bf16.gmra.mxu0 %v12293
      %v12402 = vpop.f32.mrf.mxu0
      %v12403 = vadd.f32 0.0, %v12402
      %v12404 = vpop.f32.mrf.mxu0
      %v12405 = vpop.f32.mrf.mxu0
      %v12406 = vadd.f32 0.0, %v12405
      %v12407 = vpop.f32.mrf.mxu0
      %12408 = vmatprep.mubr.bf16.mxu0 0
      %12409 = vmatmul.mubr.bf16.gmra.mxu0 %v12296
      %v12410 = vpop.f32.mrf.mxu0
      %v12411 = vadd.f32 0.0, %v12410
      %v12412 = vpop.f32.mrf.mxu0
      %v12413 = vpop.f32.mrf.mxu0
      %v12414 = vadd.f32 0.0, %v12413
      %v12415 = vpop.f32.mrf.mxu0
      %12416 = vmatprep.mubr.bf16.mxu0 0
      %12417 = vmatmul.mubr.bf16.gmra.mxu0 %v12299
      %v12418 = vpop.f32.mrf.mxu0
      %v12419 = vadd.f32 0.0, %v12418
      %v12420 = vpop.f32.mrf.mxu0
      %v12421 = vpop.f32.mrf.mxu0
      %v12422 = vadd.f32 0.0, %v12421
      %v12423 = vpop.f32.mrf.mxu0
      %12424 = vmatprep.mubr.bf16.mxu0 0
      %12425 = vmatmul.mubr.bf16.gmra.mxu0 %v12302
      %v12426 = vpop.f32.mrf.mxu0
      %v12427 = vadd.f32 0.0, %v12426
      %v12428 = vpop.f32.mrf.mxu0
      %v12429 = vpop.f32.mrf.mxu0
      %v12430 = vadd.f32 0.0, %v12429
      %v12431 = vpop.f32.mrf.mxu0
      %12432 = vmatprep.mubr.bf16.mxu0 0
      %12433 = vmatmul.mubr.bf16.gmra.mxu0 %v12305
      %v12434 = vpop.f32.mrf.mxu0
      %v12435 = vadd.f32 0.0, %v12434
      %v12436 = vpop.f32.mrf.mxu0
      %v12437 = vpop.f32.mrf.mxu0
      %v12438 = vadd.f32 0.0, %v12437
      %v12439 = vpop.f32.mrf.mxu0
      %12440 = vmatprep.mubr.bf16.mxu0 0
      %12441 = vmatmul.mubr.bf16.gmra.mxu0 %v12308
      %v12442 = vpop.f32.mrf.mxu0
      %v12443 = vadd.f32 0.0, %v12442
      %v12444 = vpop.f32.mrf.mxu0
      %v12445 = vpop.f32.mrf.mxu0
      %v12446 = vadd.f32 0.0, %v12445
      %v12447 = vpop.f32.mrf.mxu0
      %12448 = vmatprep.mubr.bf16.mxu0 0
      %12449 = vmatmul.mubr.bf16.gmra.mxu0 %v12311
      %v12450 = vpop.f32.mrf.mxu0
      %v12451 = vadd.f32 0.0, %v12450
      %v12452 = vpop.f32.mrf.mxu0
      %v12453 = vpop.f32.mrf.mxu0
      %v12454 = vadd.f32 0.0, %v12453
      %v12455 = vpop.f32.mrf.mxu0
      %12456 = vmatprep.mubr.bf16.mxu0 0
      %12457 = vmatmul.mubr.bf16.gmra.mxu0 %v12314
      %v12458 = vpop.f32.mrf.mxu0
      %v12459 = vadd.f32 0.0, %v12458
      %v12460 = vpop.f32.mrf.mxu0
      %v12461 = vpop.f32.mrf.mxu0
      %v12462 = vadd.f32 0.0, %v12461
      %v12463 = vpop.f32.mrf.mxu0
      %12464 = vmatprep.mubr.bf16.mxu0 0
      %12465 = vmatmul.mubr.bf16.gmra.mxu0 %v12317
      %v12466 = vpop.f32.mrf.mxu0
      %v12467 = vadd.f32 0.0, %v12466
      %v12468 = vpop.f32.mrf.mxu0
      %v12469 = vpop.f32.mrf.mxu0
      %v12470 = vadd.f32 0.0, %v12469
      %v12471 = vpop.f32.mrf.mxu0
      %12472 = vmatprep.mubr.bf16.mxu0 0
      %12473 = vmatmul.mubr.bf16.gmra.mxu0 %v12320
      %v12474 = vpop.f32.mrf.mxu0
      %v12475 = vadd.f32 0.0, %v12474
      %v12476 = vpop.f32.mrf.mxu0
      %v12477 = vpop.f32.mrf.mxu0
      %v12478 = vadd.f32 0.0, %v12477
      %v12479 = vpop.f32.mrf.mxu0
      %12480 = vmatprep.mubr.bf16.mxu0 0
      %12481 = vmatmul.mubr.bf16.gmra.mxu0 %v12323
      %v12482 = vpop.f32.mrf.mxu0
      %v12483 = vadd.f32 0.0, %v12482
      %v12484 = vpop.f32.mrf.mxu0
      %v12485 = vpop.f32.mrf.mxu0
      %v12486 = vadd.f32 0.0, %v12485
      %v12487 = vpop.f32.mrf.mxu0
      %12488 = vmatprep.mubr.bf16.mxu0 0
      %12489 = vmatmul.mubr.bf16.gmra.mxu0 %v12326
      %v12490 = vpop.f32.mrf.mxu0
      %v12491 = vadd.f32 0.0, %v12490
      %v12492 = vpop.f32.mrf.mxu0
      %v12493 = vpop.f32.mrf.mxu0
      %v12494 = vadd.f32 0.0, %v12493
      %v12495 = vpop.f32.mrf.mxu0
      %12496 = vmatprep.mubr.bf16.mxu0 0
      %12497 = vmatmul.mubr.bf16.gmra.mxu0 %v12329
      %v12498 = vpop.f32.mrf.mxu0
      %v12499 = vadd.f32 0.0, %v12498
      %v12500 = vpop.f32.mrf.mxu0
      %v12501 = vpop.f32.mrf.mxu0
      %v12502 = vadd.f32 0.0, %v12501
      %v12503 = vpop.f32.mrf.mxu0
      %12504 = vmatprep.mubr.bf16.mxu0 0
      %12505 = vmatmul.mubr.bf16.gmra.mxu0 %v12332
      %v12506 = vpop.f32.mrf.mxu0
      %v12507 = vadd.f32 0.0, %v12506
      %v12508 = vpop.f32.mrf.mxu0
      %v12509 = vpop.f32.mrf.mxu0
      %v12510 = vadd.f32 0.0, %v12509
      %v12511 = vpop.f32.mrf.mxu0
      %12512 = vmatprep.mubr.bf16.mxu0 0
      %12513 = vmatmul.mubr.bf16.gmra.mxu0 %v12335
      %v12514 = vpop.f32.mrf.mxu0
      %v12515 = vadd.f32 0.0, %v12514
      %v12516 = vpop.f32.mrf.mxu0
      %v12517 = vpop.f32.mrf.mxu0
      %v12518 = vadd.f32 0.0, %v12517
      %v12519 = vpop.f32.mrf.mxu0
      %12520 = vmatprep.mubr.bf16.mxu0 0
      %12521 = vmatmul.mubr.bf16.gmra.mxu0 %v12338
      %v12522 = vpop.f32.mrf.mxu0
      %v12523 = vadd.f32 0.0, %v12522
      %v12524 = vpop.f32.mrf.mxu0
      %v12525 = vpop.f32.mrf.mxu0
      %v12526 = vadd.f32 0.0, %v12525
      %v12527 = vpop.f32.mrf.mxu0
      %12528 = vmatprep.mubr.bf16.mxu0 0
      %12529 = vmatmul.mubr.bf16.gmra.mxu0 %v12341
      %v12530 = vpop.f32.mrf.mxu0
      %v12531 = vadd.f32 0.0, %v12530
      %v12532 = vpop.f32.mrf.mxu0
      %v12533 = vpop.f32.mrf.mxu0
      %v12534 = vadd.f32 0.0, %v12533
      %v12535 = vpop.f32.mrf.mxu0
      %12536 = vmatprep.mubr.bf16.mxu0 0
      %12537 = vmatmul.mubr.bf16.gmra.mxu0 %v12344
      %v12538 = vpop.f32.mrf.mxu0
      %v12539 = vadd.f32 0.0, %v12538
      %v12540 = vpop.f32.mrf.mxu0
      %v12541 = vpop.f32.mrf.mxu0
      %v12542 = vadd.f32 0.0, %v12541
      %v12543 = vpop.f32.mrf.mxu0
      %12544 = vmatprep.mubr.bf16.mxu0 0
      %12545 = vmatmul.mubr.bf16.gmra.mxu0 %v12347
      %v12546 = vpop.f32.mrf.mxu0
      %v12547 = vadd.f32 0.0, %v12546
      %v12548 = vpop.f32.mrf.mxu0
      %v12549 = vpop.f32.mrf.mxu0
      %v12550 = vpop.f32.mrf.mxu0
      %12551 = vdwg.mxu0
      %v12552 = vadd.f32 %v12198, %v12387
      %v12553 = vadd.f32 %v12199, %v12390
      %v12554 = vadd.f32 %v12200, %v12395
      %v12555 = vadd.f32 %v12201, %v12398
      %v12556 = vadd.f32 %v12202, %v12403
      %v12557 = vadd.f32 %v12203, %v12406
      %v12558 = vadd.f32 %v12204, %v12411
      %v12559 = vadd.f32 %v12205, %v12414
      %v12560 = vadd.f32 %v12206, %v12419
      %v12561 = vadd.f32 %v12207, %v12422
      %v12562 = vadd.f32 %v12208, %v12427
      %v12563 = vadd.f32 %v12209, %v12430
      %v12564 = vadd.f32 %v12210, %v12435
      %v12565 = vadd.f32 %v12211, %v12438
      %v12566 = vadd.f32 %v12212, %v12443
      %v12567 = vadd.f32 %v12213, %v12446
      %v12568 = vadd.f32 %v12214, %v12451
      %v12569 = vadd.f32 %v12215, %v12454
      %v12570 = vadd.f32 %v12216, %v12459
      %v12571 = vadd.f32 %v12217, %v12462
      %v12572 = vadd.f32 %v12218, %v12467
      %v12573 = vadd.f32 %v12219, %v12470
      %v12574 = vadd.f32 %v12220, %v12475
      %v12575 = vadd.f32 %v12221, %v12478
      %v12576 = vadd.f32 %v12222, %v12483
      %v12577 = vadd.f32 %v12223, %v12486
      %v12578 = vadd.f32 %v12224, %v12491
      %v12579 = vadd.f32 %v12225, %v12494
      %v12580 = vadd.f32 %v12226, %v12499
      %v12581 = vadd.f32 %v12227, %v12502
      %v12582 = vadd.f32 %v12228, %v12507
      %v12583 = vadd.f32 %v12229, %v12510
      %v12584 = vadd.f32 %v12230, %v12515
      %v12585 = vadd.f32 %v12231, %v12518
      %v12586 = vadd.f32 %v12232, %v12523
      %v12587 = vadd.f32 %v12233, %v12526
      %v12588 = vadd.f32 %v12234, %v12531
      %v12589 = vadd.f32 %v12235, %v12534
      %v12590 = vadd.f32 %v12236, %v12539
      %v12591 = vadd.f32 %v12237, %v12542
      %v12592 = vadd.f32 %v12238, %v12547
      %v12593 = vld [vmem:[%s4] sm:$0x1]
      %v12595 = vlaneseq
      %v12596 = vshrl.u32 %v12595, 7
      %v12597 = vsub.s32 0, %v12596
      %v12598 = vrot.slane %v12593, %v12597
      %v12600 = vadd.f32 %v12552, %v12598
      %v12601 = vadd.f32 %v12553, %v12598
      %v12602 = vadd.f32 %v12554, %v12598
      %v12603 = vadd.f32 %v12555, %v12598
      %v12604 = vadd.f32 %v12556, %v12598
      %v12605 = vadd.f32 %v12557, %v12598
      %v12606 = vadd.f32 %v12558, %v12598
      %v12607 = vadd.f32 %v12559, %v12598
      %v12608 = vadd.f32 %v12560, %v12598
      %v12609 = vadd.f32 %v12561, %v12598
      %v12610 = vadd.f32 %v12562, %v12598
      %v12611 = vadd.f32 %v12563, %v12598
      %v12612 = vadd.f32 %v12564, %v12598
      %v12613 = vadd.f32 %v12565, %v12598
      %v12614 = vadd.f32 %v12566, %v12598
      %v12615 = vadd.f32 %v12567, %v12598
      %v12616 = vadd.f32 %v12568, %v12598
      %v12617 = vadd.f32 %v12569, %v12598
      %v12618 = vadd.f32 %v12570, %v12598
      %v12619 = vadd.f32 %v12571, %v12598
      %v12620 = vadd.f32 %v12572, %v12598
      %v12621 = vadd.f32 %v12573, %v12598
      %v12622 = vadd.f32 %v12574, %v12598
      %v12623 = vadd.f32 %v12575, %v12598
      %v12624 = vadd.f32 %v12576, %v12598
      %v12625 = vadd.f32 %v12577, %v12598
      %v12626 = vadd.f32 %v12578, %v12598
      %v12627 = vadd.f32 %v12579, %v12598
      %v12628 = vadd.f32 %v12580, %v12598
      %v12629 = vadd.f32 %v12581, %v12598
      %v12630 = vadd.f32 %v12582, %v12598
      %v12631 = vadd.f32 %v12583, %v12598
      %v12632 = vadd.f32 %v12584, %v12598
      %v12633 = vadd.f32 %v12585, %v12598
      %v12634 = vadd.f32 %v12586, %v12598
      %v12635 = vadd.f32 %v12587, %v12598
      %v12636 = vadd.f32 %v12588, %v12598
      %v12637 = vadd.f32 %v12589, %v12598
      %v12638 = vadd.f32 %v12590, %v12598
      %v12639 = vadd.f32 %v12591, %v12598
      %v12640 = vadd.f32 %v12592, %v12598
      %v12641 = vpack.c.bf16 %v12601, %v12600
      %v12642 = vpack.c.bf16 %v12603, %v12602
      %v12643 = vpack.c.bf16 %v12605, %v12604
      %v12644 = vpack.c.bf16 %v12607, %v12606
      %v12645 = vpack.c.bf16 %v12609, %v12608
      %v12646 = vpack.c.bf16 %v12611, %v12610
      %v12647 = vpack.c.bf16 %v12613, %v12612
      %v12648 = vpack.c.bf16 %v12615, %v12614
      %v12649 = vpack.c.bf16 %v12617, %v12616
      %v12650 = vpack.c.bf16 %v12619, %v12618
      %v12651 = vpack.c.bf16 %v12621, %v12620
      %v12652 = vpack.c.bf16 %v12623, %v12622
      %v12653 = vpack.c.bf16 %v12625, %v12624
      %v12654 = vpack.c.bf16 %v12627, %v12626
      %v12655 = vpack.c.bf16 %v12629, %v12628
      %v12656 = vpack.c.bf16 %v12631, %v12630
      %v12657 = vpack.c.bf16 %v12633, %v12632
      %v12658 = vpack.c.bf16 %v12635, %v12634
      %v12659 = vpack.c.bf16 %v12637, %v12636
      %v12660 = vpack.c.bf16 %v12639, %v12638
      %v12661 = vpack.c.bf16 %v12640, %v12640
      %v12683 = vunpack.c.l.b16 %v12641
      %v12684 = vunpack.c.h.b16 %v12641
      %v12685 = vunpack.c.l.b16 %v12642
      %v12686 = vunpack.c.h.b16 %v12642
      %v12687 = vunpack.c.l.b16 %v12643
      %v12688 = vunpack.c.h.b16 %v12643
      %v12689 = vunpack.c.l.b16 %v12644
      %v12690 = vunpack.c.h.b16 %v12644
      %v12691 = vunpack.c.l.b16 %v12645
      %v12692 = vunpack.c.h.b16 %v12645
      %v12693 = vunpack.c.l.b16 %v12646
      %v12694 = vunpack.c.h.b16 %v12646
      %v12695 = vunpack.c.l.b16 %v12647
      %v12696 = vunpack.c.h.b16 %v12647
      %v12697 = vunpack.c.l.b16 %v12648
      %v12698 = vunpack.c.h.b16 %v12648
      %v12699 = vunpack.c.l.b16 %v12649
      %v12700 = vunpack.c.h.b16 %v12649
      %v12701 = vunpack.c.l.b16 %v12650
      %v12702 = vunpack.c.h.b16 %v12650
      %v12703 = vunpack.c.l.b16 %v12651
      %v12704 = vunpack.c.h.b16 %v12651
      %v12705 = vunpack.c.l.b16 %v12652
      %v12706 = vunpack.c.h.b16 %v12652
      %v12707 = vunpack.c.l.b16 %v12653
      %v12708 = vunpack.c.h.b16 %v12653
      %v12709 = vunpack.c.l.b16 %v12654
      %v12710 = vunpack.c.h.b16 %v12654
      %v12711 = vunpack.c.l.b16 %v12655
      %v12712 = vunpack.c.h.b16 %v12655
      %v12713 = vunpack.c.l.b16 %v12656
      %v12714 = vunpack.c.h.b16 %v12656
      %v12715 = vunpack.c.l.b16 %v12657
      %v12716 = vunpack.c.h.b16 %v12657
      %v12717 = vunpack.c.l.b16 %v12658
      %v12718 = vunpack.c.h.b16 %v12658
      %v12719 = vunpack.c.l.b16 %v12659
      %v12720 = vunpack.c.h.b16 %v12659
      %v12721 = vunpack.c.l.b16 %v12660
      %v12722 = vunpack.c.h.b16 %v12660
      %v12723 = vunpack.c.l.b16 %v12661
      %v12724 = vpack.c.b16 %v12683, %v12683
      %v12725 = vpack.c.b16 %v12684, %v12684
      %v12726 = vpack.c.b16 %v12685, %v12685
      %v12727 = vpack.c.b16 %v12686, %v12686
      %v12728 = vpack.c.b16 %v12687, %v12687
      %v12729 = vpack.c.b16 %v12688, %v12688
      %v12730 = vpack.c.b16 %v12689, %v12689
      %v12731 = vpack.c.b16 %v12690, %v12690
      %v12732 = vpack.c.b16 %v12691, %v12691
      %v12733 = vpack.c.b16 %v12692, %v12692
      %v12734 = vpack.c.b16 %v12693, %v12693
      %v12735 = vpack.c.b16 %v12694, %v12694
      %v12736 = vpack.c.b16 %v12695, %v12695
      %v12737 = vpack.c.b16 %v12696, %v12696
      %v12738 = vpack.c.b16 %v12697, %v12697
      %v12739 = vpack.c.b16 %v12698, %v12698
      %v12740 = vpack.c.b16 %v12699, %v12699
      %v12741 = vpack.c.b16 %v12700, %v12700
      %v12742 = vpack.c.b16 %v12701, %v12701
      %v12743 = vpack.c.b16 %v12702, %v12702
      %v12744 = vpack.c.b16 %v12703, %v12703
      %v12745 = vpack.c.b16 %v12704, %v12704
      %v12746 = vpack.c.b16 %v12705, %v12705
      %v12747 = vpack.c.b16 %v12706, %v12706
      %v12748 = vpack.c.b16 %v12707, %v12707
      %v12749 = vpack.c.b16 %v12708, %v12708
      %v12750 = vpack.c.b16 %v12709, %v12709
      %v12751 = vpack.c.b16 %v12710, %v12710
      %v12752 = vpack.c.b16 %v12711, %v12711
      %v12753 = vpack.c.b16 %v12712, %v12712
      %v12754 = vpack.c.b16 %v12713, %v12713
      %v12755 = vpack.c.b16 %v12714, %v12714
      %v12756 = vpack.c.b16 %v12715, %v12715
      %v12757 = vpack.c.b16 %v12716, %v12716
      %v12758 = vpack.c.b16 %v12717, %v12717
      %v12759 = vpack.c.b16 %v12718, %v12718
      %v12760 = vpack.c.b16 %v12719, %v12719
      %v12761 = vpack.c.b16 %v12720, %v12720
      %v12762 = vpack.c.b16 %v12721, %v12721
      %v12763 = vpack.c.b16 %v12722, %v12722
      %v12764 = vpack.c.b16 %v12723, %v12723
      %vm12806 = vcmask 125952
      %12807 = vst.msk [vmem:[%s342] sm:$0xf] %vm12806, %v12724
      %12808 = vst.msk [vmem:[%s342 + $0x4] sm:$0xf] %vm12806, %v12725
      %12809 = vst.msk [vmem:[%s342 + $0x8] sm:$0xf] %vm12806, %v12726
      %12810 = vst.msk [vmem:[%s342 + $0xc] sm:$0xf] %vm12806, %v12727
      %12811 = vst.msk [vmem:[%s342 + $0x10] sm:$0xf] %vm12806, %v12728
      %12812 = vst.msk [vmem:[%s342 + $0x14] sm:$0xf] %vm12806, %v12729
      %12813 = vst.msk [vmem:[%s342 + $0x18] sm:$0xf] %vm12806, %v12730
      %12814 = vst.msk [vmem:[%s342 + $0x1c] sm:$0xf] %vm12806, %v12731
      %12815 = vst.msk [vmem:[%s342 + $0x20] sm:$0xf] %vm12806, %v12732
      %12816 = vst.msk [vmem:[%s342 + $0x24] sm:$0xf] %vm12806, %v12733
      %12817 = vst.msk [vmem:[%s342 + $0x28] sm:$0xf] %vm12806, %v12734
      %12818 = vst.msk [vmem:[%s342 + $0x2c] sm:$0xf] %vm12806, %v12735
      %12819 = vst.msk [vmem:[%s342 + $0x30] sm:$0xf] %vm12806, %v12736
      %12820 = vst.msk [vmem:[%s342 + $0x34] sm:$0xf] %vm12806, %v12737
      %12821 = vst.msk [vmem:[%s342 + $0x38] sm:$0xf] %vm12806, %v12738
      %12822 = vst.msk [vmem:[%s342 + $0x3c] sm:$0xf] %vm12806, %v12739
      %12823 = vst.msk [vmem:[%s342 + $0x40] sm:$0xf] %vm12806, %v12740
      %12824 = vst.msk [vmem:[%s342 + $0x44] sm:$0xf] %vm12806, %v12741
      %12825 = vst.msk [vmem:[%s342 + $0x48] sm:$0xf] %vm12806, %v12742
      %12826 = vst.msk [vmem:[%s342 + $0x4c] sm:$0xf] %vm12806, %v12743
      %12827 = vst.msk [vmem:[%s342 + $0x50] sm:$0xf] %vm12806, %v12744
      %12828 = vst.msk [vmem:[%s342 + $0x54] sm:$0xf] %vm12806, %v12745
      %12829 = vst.msk [vmem:[%s342 + $0x58] sm:$0xf] %vm12806, %v12746
      %12830 = vst.msk [vmem:[%s342 + $0x5c] sm:$0xf] %vm12806, %v12747
      %12831 = vst.msk [vmem:[%s342 + $0x60] sm:$0xf] %vm12806, %v12748
      %12832 = vst.msk [vmem:[%s342 + $0x64] sm:$0xf] %vm12806, %v12749
      %12833 = vst.msk [vmem:[%s342 + $0x68] sm:$0xf] %vm12806, %v12750
      %12834 = vst.msk [vmem:[%s342 + $0x6c] sm:$0xf] %vm12806, %v12751
      %12835 = vst.msk [vmem:[%s342 + $0x70] sm:$0xf] %vm12806, %v12752
      %12836 = vst.msk [vmem:[%s342 + $0x74] sm:$0xf] %vm12806, %v12753
      %12837 = vst.msk [vmem:[%s342 + $0x78] sm:$0xf] %vm12806, %v12754
      %12838 = vst.msk [vmem:[%s342 + $0x7c] sm:$0xf] %vm12806, %v12755
      %12839 = vst.msk [vmem:[%s342 + $0x80] sm:$0xf] %vm12806, %v12756
      %12840 = vst.msk [vmem:[%s342 + $0x84] sm:$0xf] %vm12806, %v12757
      %12841 = vst.msk [vmem:[%s342 + $0x88] sm:$0xf] %vm12806, %v12758
      %12842 = vst.msk [vmem:[%s342 + $0x8c] sm:$0xf] %vm12806, %v12759
      %12843 = vst.msk [vmem:[%s342 + $0x90] sm:$0xf] %vm12806, %v12760
      %12844 = vst.msk [vmem:[%s342 + $0x94] sm:$0xf] %vm12806, %v12761
      %12845 = vst.msk [vmem:[%s342 + $0x98] sm:$0xf] %vm12806, %v12762
      %12846 = vst.msk [vmem:[%s342 + $0x9c] sm:$0xf] %vm12806, %v12763
      %vm12847 = vcmask 123904
      %12848 = vst.msk [vmem:[%s342 + $0xa0] sm:$0x3] %vm12847, %v12764
      %p12849 = scmp.lt.s32.totalorder %s20, 1
      %s12850 = scalar_select %p12849, %s20, 1
      %p12851 = scmp.lt.s32.totalorder %s21, 15
      %s12852 = scalar_select %p12851, %s21, 15
      %s12853 = smul.addr %s12852, 41
      %s12854 = smul.addr %s12850, 656
      %s12855 = sadd.s32 %s12853, %s12854
      %s12856 = smul.addr %s12855, 4
      %s12857 = scalar_lea.vmem %s5, %s12856
      // Predicated region
      $region41: #{tpu_custom_call.1} parent=39 // pred_check
        %p12858 = pneg %p178
      $region42: #{tpu_custom_call.1} parent=39 // pred_check_branch
        %12860 = sbr.rel (%p12858) target = $region44
      $region43: #{tpu_custom_call.1} parent=39 // pred_region
        _
      $region44: #{tpu_custom_call.1} parent=39 // pred_fallthru
        _
    $region40: #{tpu_custom_call.1} parent=5 // pred_fallthru
      _
    %p12861 = scmp.le.s32.totalorder 2, %s11
    // Predicated region
    $region45: #{tpu_custom_call.1} parent=5 // pred_check
      %p12862 = pneg %p12861
    $region46: #{tpu_custom_call.1} parent=5 // pred_check_branch
      %12864 = sbr.rel (%p12862) target = $region48
    $region47: #{tpu_custom_call.1} parent=5 // pred_region
      %s12865 = ssub.s32 %s11, 2
      // Predicated region
      $region49: #{tpu_custom_call.1} parent=47 // pred_check
        %p12866 = pneg %p184
      $region50: #{tpu_custom_call.1} parent=47 // pred_check_branch
        %12868 = sbr.rel (%p12866) target = $region52
      $region51: #{tpu_custom_call.1} parent=47 // pred_region
        %p12869 = scmp.lt.s32.totalorder %s22, 1
        %s12870 = scalar_select %p12869, %s22, 1
        %p12871 = scmp.lt.s32.totalorder %s23, 15
        %s12872 = scalar_select %p12871, %s23, 15
        %s12873 = smul.addr %s12872, 41
        %s12874 = smul.addr %s12870, 656
        %s12875 = sadd.s32 %s12873, %s12874
        %s12876 = smul.addr %s12875, 4
        %s12877 = scalar_lea.vmem %s5, %s12876
      $region52: #{tpu_custom_call.1} parent=47 // pred_fallthru
        _
    $region48: #{tpu_custom_call.1} parent=5 // pred_fallthru
      _
  $region6: #{tpu_custom_call.1} parent=0 // loop_footer
    %s15 = sadd.s32 1, %s11
  $region7: #{tpu_custom_call.1} parent=0 // loop_footer_branch
    %10 = sbr.rel target = $region3
  $region8: #{tpu_custom_call.1} parent=0 // loop_exit
    _

</llo_original>
